<compile_context>
chip_gen: v6e
topology: v6e:2x2x1
jax: 0.10.0
libtpu: 0.0.40
codegen_flags: <defaults>
</compile_context>

<pallas_src>
import functools

import jax
import jax.numpy as jnp
from jax.experimental import pallas as pl
from jax.experimental.pallas import tpu as pltpu


LAYER_NAMES = ("self", "cross", "self", "cross")
N_LAYERS = len(LAYER_NAMES)
STRIDES = (8, 16, 32)


# ---------------------------------------------------------------------------
# Pallas kernels
# ---------------------------------------------------------------------------

def _transformer_kernel(f1_ref, f2_ref, m1_ref, m2_ref,
                        wqkv_ref, bqkv_ref, wm_ref, bm_ref, g_ref, b_ref,
                        o1_ref, o2_ref):
    """All encoder layers (self/cross/self/cross) for ONE batch element.

    f1/f2 blocks: (1, L, D); mask blocks: (1, 1, L) (1 = keep).
    wqkv: (n_layers*3, D, D) bf16 stacked [wq, wk, wv] per layer.
    bqkv: (n_layers*3, 1, D) f32.  wm: (n_layers*2, D, D) bf16 merge weights
    for [x, msg].  bm / gamma / beta: (n_layers, 1, D) f32.
    """
    d = f1_ref.shape[-1]
    scale = float(d) ** -0.5

    def attn_merge(x, src, mask, li):
        # QKV projections (bf16 MXU operands, f32 accumulation).
        xb = x.astype(jnp.bfloat16)
        sb = src.astype(jnp.bfloat16)
        q = jnp.dot(xb, wqkv_ref[3 * li + 0],
                    preferred_element_type=jnp.float32) + bqkv_ref[3 * li + 0]
        k = jnp.dot(sb, wqkv_ref[3 * li + 1],
                    preferred_element_type=jnp.float32) + bqkv_ref[3 * li + 1]
        v = jnp.dot(sb, wqkv_ref[3 * li + 2],
                    preferred_element_type=jnp.float32) + bqkv_ref[3 * li + 2]

        # scores: contract on feature dim (no explicit transpose of k).
        s = jax.lax.dot_general(q.astype(jnp.bfloat16), k.astype(jnp.bfloat16),
                                (((1,), (1,)), ((), ())),
                                preferred_element_type=jnp.float32) * scale
        s = jnp.where(mask > 0.5, s, -1e9)
        s = s - jnp.max(s, axis=-1, keepdims=True)
        p = jnp.exp(s)
        p = p / jnp.sum(p, axis=-1, keepdims=True)        # exact softmax (f32)
        msg = jnp.dot(p.astype(jnp.bfloat16), v.astype(jnp.bfloat16),
                      preferred_element_type=jnp.float32)  # (L, D)

        # merge Linear(concat([x, msg])) expressed as two matmuls (no concat).
        m = (jnp.dot(xb, wm_ref[2 * li + 0], preferred_element_type=jnp.float32)
             + jnp.dot(msg.astype(jnp.bfloat16), wm_ref[2 * li + 1],
                       preferred_element_type=jnp.float32)
             + bm_ref[li])
        mu = jnp.mean(m, axis=-1, keepdims=True)
        var = jnp.mean((m - mu) ** 2, axis=-1, keepdims=True)
        m = (m - mu) * jax.lax.rsqrt(var + 1e-5) * g_ref[li] + b_ref[li]
        return x + m

    x1 = f1_ref[0].astype(jnp.float32)                     # (L, D)
    x2 = f2_ref[0].astype(jnp.float32)
    m1 = m1_ref[0]                                         # (1, L)
    m2 = m2_ref[0]

    for li, name in enumerate(LAYER_NAMES):                # static unroll (4)
        if name == "self":
            x1 = attn_merge(x1, x1, m1, li)
            x2 = attn_merge(x2, x2, m2, li)
        else:  # cross
            x1n = attn_merge(x1, x2, m2, li)
            x2n = attn_merge(x2, x1, m1, li)
            x1, x2 = x1n, x2n

    o1_ref[0] = x1.astype(o1_ref.dtype)
    o2_ref[0] = x2.astype(o2_ref.dtype)


def _simgen_kernel(f1_ref, f2_ref, m1_ref, m2_ref, o_ref):
    # f1 block: (1, TL, D), f2: (1, L2, D), m1: (1, TL, 1), m2: (1, 1, L2)
    f1 = f1_ref[0].astype(jnp.float32)
    f2 = f2_ref[0].astype(jnp.float32)
    f1 = f1 * jax.lax.rsqrt(jnp.sum(f1 * f1, -1, keepdims=True) + 1e-6)
    f2 = f2 * jax.lax.rsqrt(jnp.sum(f2 * f2, -1, keepdims=True) + 1e-6)
    sim = jax.lax.dot_general(f1.astype(jnp.bfloat16), f2.astype(jnp.bfloat16),
                              (((1,), (1,)), ((), ())),
                              preferred_element_type=jnp.float32)
    o_ref[0] = (sim * m1_ref[0] * m2_ref[0]).astype(o_ref.dtype)


def _level_det_kernel(x_ref, w_ref, b_ref, o_ref):
    """Folded stem+level+head affine + selective sigmoid, lane-dense layout.

    x block: (1, TN) bf16 (single sim channel, pixels on the lane axis).
    w/b: (6, 1) f32 folded scale/bias.  Output block: (6, TN) f32 so stores
    are wide unmasked vst's (no 6-lane partial stores).
    """
    x = x_ref[...].astype(jnp.float32)                     # (1, TN)
    y = x * w_ref[...] + b_ref[...]                        # (6, TN)
    row = jax.lax.broadcasted_iota(jnp.int32, y.shape, 0)
    o_ref[...] = jnp.where(row < 4, y, jax.nn.sigmoid(y)).astype(o_ref.dtype)


# ---------------------------------------------------------------------------
# Pallas wrappers
# ---------------------------------------------------------------------------

def feature_transformer(f1, f2, mask1, mask2, tp):
    """All 4 encoder layers, both streams, in ONE pallas_call (grid over B)."""
    B, L, D = f1.shape
    m1 = mask1.reshape(B, 1, L).astype(jnp.float32)
    m2 = mask2.reshape(B, 1, L).astype(jnp.float32)

    # Pre-cast / flatten the stacked per-layer weights once (outside kernel).
    wqkv = tp["wqkv"].reshape(N_LAYERS * 3, D, D).astype(jnp.bfloat16)
    bqkv = tp["bqkv"].reshape(N_LAYERS * 3, 1, D)
    wm = tp["wm"].reshape(N_LAYERS * 2, D, D).astype(jnp.bfloat16)
    bm, gamma, beta = tp["bm"], tp["gamma"], tp["beta"]    # (n_layers, 1, D)

    seq_spec = lambda: pl.BlockSpec((1, L, D), lambda b: (b, 0, 0))
    msk_spec = lambda: pl.BlockSpec((1, 1, L), lambda b: (b, 0, 0))
    wgt_spec = lambda s: pl.BlockSpec(s, lambda b: (0, 0, 0))

    out1, out2 = pl.pallas_call(
        _transformer_kernel,
        out_shape=(jax.ShapeDtypeStruct((B, L, D), f1.dtype),
                   jax.ShapeDtypeStruct((B, L, D), f2.dtype)),
        grid=(B,),
        in_specs=[seq_spec(), seq_spec(), msk_spec(), msk_spec(),
                  wgt_spec(wqkv.shape), wgt_spec(bqkv.shape),
                  wgt_spec(wm.shape), wgt_spec(bm.shape),
                  wgt_spec(gamma.shape), wgt_spec(beta.shape)],
        out_specs=(seq_spec(), seq_spec()),
        compiler_params=pltpu.CompilerParams(
            dimension_semantics=("parallel",),
            vmem_limit_bytes=32 * 1024 * 1024),
    )(f1, f2, m1, m2, wqkv, bqkv, wm, bm, gamma, beta)
    return out1, out2


def sim_gen(f1, f2, mask1, mask2, row_tile=512):
    B, L1, D = f1.shape
    L2 = f2.shape[1]
    m1 = mask1.reshape(B, L1, 1).astype(jnp.float32)
    m2 = mask2.reshape(B, 1, L2).astype(jnp.float32)
    tl = L1 if L1 <= row_tile else row_tile
    return pl.pallas_call(
        _simgen_kernel,
        out_shape=jax.ShapeDtypeStruct((B, L1, L2), jnp.float32),
        grid=(B, pl.cdiv(L1, tl)),
        in_specs=[pl.BlockSpec((1, tl, D), lambda b, i: (b, i, 0)),
                  pl.BlockSpec((1, L2, D), lambda b, i: (b, 0, 0)),
                  pl.BlockSpec((1, tl, 1), lambda b, i: (b, i, 0)),
                  pl.BlockSpec((1, 1, L2), lambda b, i: (b, 0, 0))],
        out_specs=pl.BlockSpec((1, tl, L2), lambda b, i: (b, i, 0)),
        compiler_params=pltpu.CompilerParams(
            dimension_semantics=("parallel", "parallel"),
            vmem_limit_bytes=32 * 1024 * 1024),
    )(f1, f2, m1, m2)


def level_det(x2d, w_t, b_t, col_tile=6400):
    """Lane-dense fused detection: x2d (1, N) bf16 -> (6, N) f32."""
    N = x2d.shape[1]
    tn = N if N <= col_tile else col_tile                  # 6400 = 50 * 128
    return pl.pallas_call(
        _level_det_kernel,
        out_shape=jax.ShapeDtypeStruct((6, N), jnp.float32),
        grid=(pl.cdiv(N, tn),),
        in_specs=[pl.BlockSpec((1, tn), lambda i: (0, i)),
                  pl.BlockSpec((6, 1), lambda i: (0, 0)),
                  pl.BlockSpec((6, 1), lambda i: (0, 0))],
        out_specs=pl.BlockSpec((6, tn), lambda i: (0, i)),
        compiler_params=pltpu.CompilerParams(
            dimension_semantics=("parallel",),
            vmem_limit_bytes=32 * 1024 * 1024),
    )(x2d, w_t, b_t)


# ---------------------------------------------------------------------------
# Model pieces (plain JAX glue)
# ---------------------------------------------------------------------------

def sinusoidal_pe(L, D):
    pos = jnp.arange(L, dtype=jnp.float32)[:, None]
    idx = jnp.arange(0, D, 2, dtype=jnp.float32)
    div = jnp.exp(-jnp.log(10000.0) * idx / D)
    pe = jnp.zeros((L, D), dtype=jnp.float32)
    pe = pe.at[:, 0::2].set(jnp.sin(pos * div))
    pe = pe.at[:, 1::2].set(jnp.cos(pos * div))
    return pe[None]  # (1, L, D)


def mlp_head(x, p):
    # Linear(2D->D) -> ReLU -> LayerNorm(D) -> Linear(D->1): too small for a
    # custom-call launch; XLA fuses this for free.
    h = jnp.maximum(x @ p["w1"] + p["b1"], 0.0)
    mu = jnp.mean(h, axis=-1, keepdims=True)
    var = jnp.mean((h - mu) ** 2, axis=-1, keepdims=True)
    h = (h - mu) * jax.lax.rsqrt(var + 1e-5) * p["gamma"] + p["beta"]
    return h @ p["w2"] + p["b2"]


def build_sim_images(sim, mask1, mask2, input_size):
    """Per-sample crop-by-mask-length + nearest resize to (H, W), jittable.

    PyTorch F.interpolate(mode='nearest') uses src = floor(dst * in / out);
    since all source indices stay below the valid length, gathering from the
    full sim matrix equals crop-then-resize (no host sync / recompiles).
    The 3 identical channels are NOT materialized (folded into the detection
    weights instead).
    """
    H, W = input_size
    n1 = mask1.sum(axis=1).astype(jnp.int32)   # (B,)
    n2 = mask2.sum(axis=1).astype(jnp.int32)

    def one(sim_b, n1b, n2b):
        ih = (jnp.arange(H, dtype=jnp.int32) * n1b) // H
        iw = (jnp.arange(W, dtype=jnp.int32) * n2b) // W
        return sim_b[ih][:, iw]                             # (H, W)

    return jax.vmap(one)(sim, n1, n2)                        # (B, H, W)


def fold_detection_weights(bparams, head_params):
    """Fold stem(1x1) -> level(1x1) -> head(1x1) into one affine per level.

    Valid because the stand-in backbone has no nonlinearity, and the 3 sim
    image channels are identical so x @ W == sim_value * W.sum(axis=0).
    """
    ws, bs = bparams["w_stem"], bparams["b_stem"]            # (3, Cs), (1, Cs)
    folded = []
    for (wl, bl), (wh, bh) in zip(bparams["levels"], head_params):
        w = ws @ wl @ wh                                     # (3, 6)
        b = (bs @ wl + bl) @ wh + bh                         # (1, 6)
        folded.append((jnp.sum(w, axis=0, keepdims=True).T,  # (6, 1)
                       b.T))                                 # (6, 1)
    return folded


def backbone_and_head(x_img, folded):
    """Per level: spatial downsample (glue) + ONE lane-dense fused kernel."""
    B = x_img.shape[0]
    preds = []
    for stride, (w_t, b_t) in zip(STRIDES, folded):
        xs = x_img[:, ::stride, ::stride]                    # (B, h, w) bf16
        hw = xs.shape[1] * xs.shape[2]
        y = level_det(xs.reshape(1, B * hw), w_t, b_t)       # (6, B*hw)
        preds.append(y.reshape(6, B, hw).transpose(1, 2, 0)) # (B, hw, 6)
    return jnp.concatenate(preds, axis=1)                    # (B, N, 6)


def transvcl_forward(params, feat1, feat2, mask1, mask2, input_size=(32, 32)):
    """Eval-mode forward: returns [global_pred, detection_outputs]."""
    B, L, D = feat1.shape

    # Positional encoding add in plain JAX (XLA fuses; not worth a kernel).
    pe = sinusoidal_pe(L, D).astype(feat1.dtype)
    feat1 = feat1 + pe
    feat2 = feat2 + pe

    # cls token prepend (global_loss=True path)
    cls1 = jnp.broadcast_to(params["cls1"], (B, 1, D))
    cls2 = jnp.broadcast_to(params["cls2"], (B, 1, D))
    f1 = jnp.concatenate([cls1, feat1], axis=1)
    f2 = jnp.concatenate([cls2, feat2], axis=1)
    ones = jnp.ones((B, 1), dtype=mask1.dtype)
    m1e = jnp.concatenate([ones, mask1], axis=1)
    m2e = jnp.concatenate([ones, mask2], axis=1)

    f1, f2 = feature_transformer(f1, f2, m1e, m2e, params["transformer"])

    global_pred = mlp_head(jnp.concatenate([f1[:, 0], f2[:, 0]], axis=-1),
                           params["mlp_head"])
    f1, f2 = f1[:, 1:], f2[:, 1:]

    sim = sim_gen(f1, f2, mask1, mask2)                      # (B, L, L)
    x = build_sim_images(sim, mask1, mask2, input_size)      # (B, H, W)

    folded = fold_detection_weights(params["backbone"], params["head"])
    outputs = backbone_and_head(x.astype(jnp.bfloat16), folded)
    return [global_pred, outputs]


# ---------------------------------------------------------------------------
# Deterministic parameter initialization
# ---------------------------------------------------------------------------

def init_params(key, d_model=32, n_layers=4, c_stem=16,
                level_channels=(16, 32, 64)):
    keys = iter(jax.random.split(key, 64))
    nrm = lambda s: jax.random.normal(next(keys), s, jnp.float32) * 0.05
    D = d_model

    transformer = dict(
        wqkv=nrm((n_layers, 3, D, D)),                 # stacked [wq, wk, wv]
        bqkv=jnp.zeros((n_layers, 3, 1, D), jnp.float32),
        wm=nrm((n_layers, 2, D, D)),                   # merge for [x, msg]
        bm=jnp.zeros((n_layers, 1, D), jnp.float32),
        gamma=jnp.ones((n_layers, 1, D), jnp.float32),
        beta=jnp.zeros((n_layers, 1, D), jnp.float32))

    mlp = dict(w1=nrm((2 * D, D)), b1=jnp.zeros((1, D), jnp.float32),
               gamma=jnp.ones((1, D), jnp.float32),
               beta=jnp.zeros((1, D), jnp.float32),
               w2=nrm((D, 1)), b2=jnp.zeros((1, 1), jnp.float32))

    levels = [(nrm((c_stem, c)), jnp.zeros((1, c), jnp.float32))
              for c in level_channels]
    backbone = dict(w_stem=nrm((3, c_stem)),
                    b_stem=jnp.zeros((1, c_stem), jnp.float32),
                    levels=levels)

    head = [(nrm((c, 6)), jnp.zeros((1, 6), jnp.float32))
            for c in level_channels]

    return dict(cls1=nrm((1, 1, D)), cls2=nrm((1, 1, D)),
                transformer=transformer, mlp_head=mlp,
                backbone=backbone, head=head)


# ---------------------------------------------------------------------------
# Main
# ---------------------------------------------------------------------------

if __name__ == "__main__":
    B, L, D = 2, 8, 32
    H = W = 32  # small stand-in for input_size=(640, 640)

    key = jax.random.PRNGKey(0)
    k1, k2, kp = jax.random.split(key, 3)
    feat1 = jax.random.normal(k1, (B, L, D), jnp.float32)
    feat2 = jax.random.normal(k2, (B, L, D), jnp.float32)

    # masks: sample 0 has ragged valid lengths, sample 1 fully valid
    mask1 = jnp.array([[1, 1, 1, 1, 1, 1, 0, 0],
                       [1, 1, 1, 1, 1, 1, 1, 1]], dtype=jnp.float32)
    mask2 = jnp.array([[1, 1, 1, 1, 1, 1, 1, 0],
                       [1, 1, 1, 1, 1, 1, 1, 1]], dtype=jnp.float32)

    params = init_params(kp, d_model=D)

    fwd = jax.jit(functools.partial(transvcl_forward, input_size=(H, W)))
    global_pred, det_outputs = fwd(params, feat1, feat2, mask1, mask2)

    jax.block_until_ready(global_pred)
    jax.block_until_ready(det_outputs)

    assert global_pred.shape == (B, 1)
    assert det_outputs.shape == (
        B, (H // 8) ** 2 + (H // 16) ** 2 + (H // 32) ** 2, 6)
    print("KERNEL_OK")
</pallas_src>

<mosaic_0001>
module attributes {stable_mosaic.version = 11 : i64} {
  func.func @_transformer_kernel(%arg0: i32, %arg1: memref<1x9x32xf32, #tpu.memory_space<vmem>>, %arg2: memref<1x9x32xf32, #tpu.memory_space<vmem>>, %arg3: memref<1x1x9xf32, #tpu.memory_space<vmem>>, %arg4: memref<1x1x9xf32, #tpu.memory_space<vmem>>, %arg5: memref<12x32x32xbf16, #tpu.memory_space<vmem>>, %arg6: memref<12x1x32xf32, #tpu.memory_space<vmem>>, %arg7: memref<8x32x32xbf16, #tpu.memory_space<vmem>>, %arg8: memref<4x1x32xf32, #tpu.memory_space<vmem>>, %arg9: memref<4x1x32xf32, #tpu.memory_space<vmem>>, %arg10: memref<4x1x32xf32, #tpu.memory_space<vmem>>, %arg11: memref<1x9x32xf32, #tpu.memory_space<vmem>>, %arg12: memref<1x9x32xf32, #tpu.memory_space<vmem>>) attributes {dimension_semantics = [#tpu.dimension_semantics<parallel>], iteration_bounds = array<i64: 2>, scalar_prefetch = 0 : i64, scratch_operands = 0 : i64, tpu.core_type = #tpu.core_type<tc>, window_params = [{transform_indices = @transform_0, window_bounds = array<i64: 1, 9, 32>}, {transform_indices = @transform_1, window_bounds = array<i64: 1, 9, 32>}, {transform_indices = @transform_2, window_bounds = array<i64: 1, 1, 9>}, {transform_indices = @transform_3, window_bounds = array<i64: 1, 1, 9>}, {pipeline_mode = #tpu.pipeline_mode<synchronous>, transform_indices = @transform_4, window_bounds = array<i64: 12, 32, 32>}, {pipeline_mode = #tpu.pipeline_mode<synchronous>, transform_indices = @transform_5, window_bounds = array<i64: 12, 1, 32>}, {pipeline_mode = #tpu.pipeline_mode<synchronous>, transform_indices = @transform_6, window_bounds = array<i64: 8, 32, 32>}, {pipeline_mode = #tpu.pipeline_mode<synchronous>, transform_indices = @transform_7, window_bounds = array<i64: 4, 1, 32>}, {pipeline_mode = #tpu.pipeline_mode<synchronous>, transform_indices = @transform_8, window_bounds = array<i64: 4, 1, 32>}, {pipeline_mode = #tpu.pipeline_mode<synchronous>, transform_indices = @transform_9, window_bounds = array<i64: 4, 1, 32>}, {transform_indices = @transform_10, window_bounds = array<i64: 1, 9, 32>}, {transform_indices = @transform_11, window_bounds = array<i64: 1, 9, 32>}]} {
    %c0 = arith.constant 0 : index
    %c0_0 = arith.constant 0 : index
    %c0_1 = arith.constant 0 : index
    %0 = vector.load %arg1[%c0, %c0_0, %c0_1] : memref<1x9x32xf32, #tpu.memory_space<vmem>>, vector<1x9x32xf32>
    %1 = vector.shape_cast %0 : vector<1x9x32xf32> to vector<9x32xf32>
    %c0_2 = arith.constant 0 : index
    %c0_3 = arith.constant 0 : index
    %c0_4 = arith.constant 0 : index
    %2 = vector.load %arg2[%c0_2, %c0_3, %c0_4] : memref<1x9x32xf32, #tpu.memory_space<vmem>>, vector<1x9x32xf32>
    %3 = vector.shape_cast %2 : vector<1x9x32xf32> to vector<9x32xf32>
    %c0_5 = arith.constant 0 : index
    %c0_6 = arith.constant 0 : index
    %c0_7 = arith.constant 0 : index
    %4 = vector.load %arg3[%c0_5, %c0_6, %c0_7] : memref<1x1x9xf32, #tpu.memory_space<vmem>>, vector<1x1x9xf32>
    %5 = vector.shape_cast %4 : vector<1x1x9xf32> to vector<1x9xf32>
    %c0_8 = arith.constant 0 : index
    %c0_9 = arith.constant 0 : index
    %c0_10 = arith.constant 0 : index
    %6 = vector.load %arg4[%c0_8, %c0_9, %c0_10] : memref<1x1x9xf32, #tpu.memory_space<vmem>>, vector<1x1x9xf32>
    %7 = vector.shape_cast %6 : vector<1x1x9xf32> to vector<1x9xf32>
    %8 = arith.truncf %1 : vector<9x32xf32> to vector<9x32xbf16>
    %9 = arith.truncf %1 : vector<9x32xf32> to vector<9x32xbf16>
    %c0_11 = arith.constant 0 : index
    %c0_12 = arith.constant 0 : index
    %c0_13 = arith.constant 0 : index
    %10 = vector.load %arg5[%c0_11, %c0_12, %c0_13] : memref<12x32x32xbf16, #tpu.memory_space<vmem>>, vector<1x32x32xbf16>
    %11 = vector.shape_cast %10 : vector<1x32x32xbf16> to vector<32x32xbf16>
    %cst = arith.constant dense<0.000000e+00> : vector<9x32xf32>
    %12 = tpu.matmul %8, %11, %cst {dimension_numbers = #tpu.dot_dimension_numbers<[1], [0], [0], [1], [0, 0, 1, 1], [], []>} : vector<9x32xbf16>, vector<32x32xbf16>, vector<9x32xf32> -> vector<9x32xf32>
    %c0_14 = arith.constant 0 : index
    %c0_15 = arith.constant 0 : index
    %c0_16 = arith.constant 0 : index
    %13 = vector.load %arg6[%c0_14, %c0_15, %c0_16] : memref<12x1x32xf32, #tpu.memory_space<vmem>>, vector<1x1x32xf32>
    %14 = vector.shape_cast %13 : vector<1x1x32xf32> to vector<1x32xf32>
    %15 = vector.broadcast %14 : vector<1x32xf32> to vector<9x32xf32>
    %16 = arith.addf %12, %15 : vector<9x32xf32>
    %c1 = arith.constant 1 : index
    %c0_17 = arith.constant 0 : index
    %c0_18 = arith.constant 0 : index
    %17 = vector.load %arg5[%c1, %c0_17, %c0_18] : memref<12x32x32xbf16, #tpu.memory_space<vmem>>, vector<1x32x32xbf16>
    %18 = vector.shape_cast %17 : vector<1x32x32xbf16> to vector<32x32xbf16>
    %cst_19 = arith.constant dense<0.000000e+00> : vector<9x32xf32>
    %19 = tpu.matmul %9, %18, %cst_19 {dimension_numbers = #tpu.dot_dimension_numbers<[1], [0], [0], [1], [0, 0, 1, 1], [], []>} : vector<9x32xbf16>, vector<32x32xbf16>, vector<9x32xf32> -> vector<9x32xf32>
    %c1_20 = arith.constant 1 : index
    %c0_21 = arith.constant 0 : index
    %c0_22 = arith.constant 0 : index
    %20 = vector.load %arg6[%c1_20, %c0_21, %c0_22] : memref<12x1x32xf32, #tpu.memory_space<vmem>>, vector<1x1x32xf32>
    %21 = vector.shape_cast %20 : vector<1x1x32xf32> to vector<1x32xf32>
    %22 = vector.broadcast %21 : vector<1x32xf32> to vector<9x32xf32>
    %23 = arith.addf %19, %22 : vector<9x32xf32>
    %c2 = arith.constant 2 : index
    %c0_23 = arith.constant 0 : index
    %c0_24 = arith.constant 0 : index
    %24 = vector.load %arg5[%c2, %c0_23, %c0_24] : memref<12x32x32xbf16, #tpu.memory_space<vmem>>, vector<1x32x32xbf16>
    %25 = vector.shape_cast %24 : vector<1x32x32xbf16> to vector<32x32xbf16>
    %cst_25 = arith.constant dense<0.000000e+00> : vector<9x32xf32>
    %26 = tpu.matmul %9, %25, %cst_25 {dimension_numbers = #tpu.dot_dimension_numbers<[1], [0], [0], [1], [0, 0, 1, 1], [], []>} : vector<9x32xbf16>, vector<32x32xbf16>, vector<9x32xf32> -> vector<9x32xf32>
    %c2_26 = arith.constant 2 : index
    %c0_27 = arith.constant 0 : index
    %c0_28 = arith.constant 0 : index
    %27 = vector.load %arg6[%c2_26, %c0_27, %c0_28] : memref<12x1x32xf32, #tpu.memory_space<vmem>>, vector<1x1x32xf32>
    %28 = vector.shape_cast %27 : vector<1x1x32xf32> to vector<1x32xf32>
    %29 = vector.broadcast %28 : vector<1x32xf32> to vector<9x32xf32>
    %30 = arith.addf %26, %29 : vector<9x32xf32>
    %31 = arith.truncf %16 : vector<9x32xf32> to vector<9x32xbf16>
    %32 = arith.truncf %23 : vector<9x32xf32> to vector<9x32xbf16>
    %cst_29 = arith.constant dense<0.000000e+00> : vector<9x9xf32>
    %33 = tpu.matmul %31, %32, %cst_29 {dimension_numbers = #tpu.dot_dimension_numbers<[1], [1], [0], [0], [0, 0, 1, 0], [], []>} : vector<9x32xbf16>, vector<9x32xbf16>, vector<9x9xf32> -> vector<9x9xf32>
    %cst_30 = arith.constant 0.176776692 : f32
    %34 = vector.broadcast %cst_30 : f32 to vector<9x9xf32>
    %35 = arith.mulf %33, %34 : vector<9x9xf32>
    %cst_31 = arith.constant 5.000000e-01 : f32
    %36 = vector.broadcast %cst_31 : f32 to vector<1x9xf32>
    %37 = arith.cmpf ogt, %5, %36 : vector<1x9xf32>
    %cst_32 = arith.constant -1.000000e+09 : f32
    %38 = vector.shape_cast %37 : vector<1x9xi1> to vector<1x9xi1>
    %39 = vector.broadcast %38 : vector<1x9xi1> to vector<9x9xi1>
    %40 = vector.broadcast %cst_32 : f32 to vector<9x9xf32>
    %41 = arith.select %39, %35, %40 : vector<9x9xi1>, vector<9x9xf32>
    %cst_33 = arith.constant dense<0xFF800000> : vector<9xf32>
    %42 = vector.multi_reduction <maximumf>, %41, %cst_33 [1] : vector<9x9xf32> to vector<9xf32>
    %43 = vector.shape_cast %42 : vector<9xf32> to vector<9x1xf32>
    %44 = vector.broadcast %43 : vector<9x1xf32> to vector<9x9xf32>
    %45 = arith.subf %41, %44 : vector<9x9xf32>
    %46 = math.exp %45 : vector<9x9xf32>
    %cst_34 = arith.constant dense<0.000000e+00> : vector<9xf32>
    %47 = vector.multi_reduction <add>, %46, %cst_34 [1] : vector<9x9xf32> to vector<9xf32>
    %48 = vector.shape_cast %47 : vector<9xf32> to vector<9x1xf32>
    %49 = vector.broadcast %48 : vector<9x1xf32> to vector<9x9xf32>
    %50 = arith.divf %46, %49 : vector<9x9xf32>
    %51 = arith.truncf %50 : vector<9x9xf32> to vector<9x9xbf16>
    %52 = arith.truncf %30 : vector<9x32xf32> to vector<9x32xbf16>
    %cst_35 = arith.constant dense<0.000000e+00> : vector<9x32xf32>
    %53 = tpu.matmul %51, %52, %cst_35 {dimension_numbers = #tpu.dot_dimension_numbers<[1], [0], [0], [1], [0, 0, 1, 1], [], []>} : vector<9x9xbf16>, vector<9x32xbf16>, vector<9x32xf32> -> vector<9x32xf32>
    %c0_36 = arith.constant 0 : index
    %c0_37 = arith.constant 0 : index
    %c0_38 = arith.constant 0 : index
    %54 = vector.load %arg7[%c0_36, %c0_37, %c0_38] : memref<8x32x32xbf16, #tpu.memory_space<vmem>>, vector<1x32x32xbf16>
    %55 = vector.shape_cast %54 : vector<1x32x32xbf16> to vector<32x32xbf16>
    %cst_39 = arith.constant dense<0.000000e+00> : vector<9x32xf32>
    %56 = tpu.matmul %8, %55, %cst_39 {dimension_numbers = #tpu.dot_dimension_numbers<[1], [0], [0], [1], [0, 0, 1, 1], [], []>} : vector<9x32xbf16>, vector<32x32xbf16>, vector<9x32xf32> -> vector<9x32xf32>
    %57 = arith.truncf %53 : vector<9x32xf32> to vector<9x32xbf16>
    %c1_40 = arith.constant 1 : index
    %c0_41 = arith.constant 0 : index
    %c0_42 = arith.constant 0 : index
    %58 = vector.load %arg7[%c1_40, %c0_41, %c0_42] : memref<8x32x32xbf16, #tpu.memory_space<vmem>>, vector<1x32x32xbf16>
    %59 = vector.shape_cast %58 : vector<1x32x32xbf16> to vector<32x32xbf16>
    %cst_43 = arith.constant dense<0.000000e+00> : vector<9x32xf32>
    %60 = tpu.matmul %57, %59, %cst_43 {dimension_numbers = #tpu.dot_dimension_numbers<[1], [0], [0], [1], [0, 0, 1, 1], [], []>} : vector<9x32xbf16>, vector<32x32xbf16>, vector<9x32xf32> -> vector<9x32xf32>
    %61 = arith.addf %56, %60 : vector<9x32xf32>
    %c0_44 = arith.constant 0 : index
    %c0_45 = arith.constant 0 : index
    %c0_46 = arith.constant 0 : index
    %62 = vector.load %arg8[%c0_44, %c0_45, %c0_46] : memref<4x1x32xf32, #tpu.memory_space<vmem>>, vector<1x1x32xf32>
    %63 = vector.shape_cast %62 : vector<1x1x32xf32> to vector<1x32xf32>
    %64 = vector.broadcast %63 : vector<1x32xf32> to vector<9x32xf32>
    %65 = arith.addf %61, %64 : vector<9x32xf32>
    %cst_47 = arith.constant dense<0.000000e+00> : vector<9xf32>
    %66 = vector.multi_reduction <add>, %65, %cst_47 [1] : vector<9x32xf32> to vector<9xf32>
    %67 = vector.shape_cast %66 : vector<9xf32> to vector<9x1xf32>
    %cst_48 = arith.constant 3.200000e+01 : f32
    %68 = vector.broadcast %cst_48 : f32 to vector<9x1xf32>
    %69 = arith.divf %67, %68 : vector<9x1xf32>
    %70 = vector.broadcast %69 : vector<9x1xf32> to vector<9x32xf32>
    %71 = arith.subf %65, %70 : vector<9x32xf32>
    %72 = arith.mulf %71, %71 : vector<9x32xf32>
    %cst_49 = arith.constant dense<0.000000e+00> : vector<9xf32>
    %73 = vector.multi_reduction <add>, %72, %cst_49 [1] : vector<9x32xf32> to vector<9xf32>
    %74 = vector.shape_cast %73 : vector<9xf32> to vector<9x1xf32>
    %cst_50 = arith.constant 3.200000e+01 : f32
    %75 = vector.broadcast %cst_50 : f32 to vector<9x1xf32>
    %76 = arith.divf %74, %75 : vector<9x1xf32>
    %77 = vector.broadcast %69 : vector<9x1xf32> to vector<9x32xf32>
    %78 = arith.subf %65, %77 : vector<9x32xf32>
    %cst_51 = arith.constant 9.99999974E-6 : f32
    %79 = vector.broadcast %cst_51 : f32 to vector<9x1xf32>
    %80 = arith.addf %76, %79 : vector<9x1xf32>
    %81 = math.rsqrt %80 : vector<9x1xf32>
    %82 = vector.broadcast %81 : vector<9x1xf32> to vector<9x32xf32>
    %83 = arith.mulf %78, %82 : vector<9x32xf32>
    %c0_52 = arith.constant 0 : index
    %c0_53 = arith.constant 0 : index
    %c0_54 = arith.constant 0 : index
    %84 = vector.load %arg9[%c0_52, %c0_53, %c0_54] : memref<4x1x32xf32, #tpu.memory_space<vmem>>, vector<1x1x32xf32>
    %85 = vector.shape_cast %84 : vector<1x1x32xf32> to vector<1x32xf32>
    %86 = vector.broadcast %85 : vector<1x32xf32> to vector<9x32xf32>
    %87 = arith.mulf %83, %86 : vector<9x32xf32>
    %c0_55 = arith.constant 0 : index
    %c0_56 = arith.constant 0 : index
    %c0_57 = arith.constant 0 : index
    %88 = vector.load %arg10[%c0_55, %c0_56, %c0_57] : memref<4x1x32xf32, #tpu.memory_space<vmem>>, vector<1x1x32xf32>
    %89 = vector.shape_cast %88 : vector<1x1x32xf32> to vector<1x32xf32>
    %90 = vector.broadcast %89 : vector<1x32xf32> to vector<9x32xf32>
    %91 = arith.addf %87, %90 : vector<9x32xf32>
    %92 = arith.addf %1, %91 : vector<9x32xf32>
    %93 = arith.truncf %3 : vector<9x32xf32> to vector<9x32xbf16>
    %94 = arith.truncf %3 : vector<9x32xf32> to vector<9x32xbf16>
    %c0_58 = arith.constant 0 : index
    %c0_59 = arith.constant 0 : index
    %c0_60 = arith.constant 0 : index
    %95 = vector.load %arg5[%c0_58, %c0_59, %c0_60] : memref<12x32x32xbf16, #tpu.memory_space<vmem>>, vector<1x32x32xbf16>
    %96 = vector.shape_cast %95 : vector<1x32x32xbf16> to vector<32x32xbf16>
    %cst_61 = arith.constant dense<0.000000e+00> : vector<9x32xf32>
    %97 = tpu.matmul %93, %96, %cst_61 {dimension_numbers = #tpu.dot_dimension_numbers<[1], [0], [0], [1], [0, 0, 1, 1], [], []>} : vector<9x32xbf16>, vector<32x32xbf16>, vector<9x32xf32> -> vector<9x32xf32>
    %c0_62 = arith.constant 0 : index
    %c0_63 = arith.constant 0 : index
    %c0_64 = arith.constant 0 : index
    %98 = vector.load %arg6[%c0_62, %c0_63, %c0_64] : memref<12x1x32xf32, #tpu.memory_space<vmem>>, vector<1x1x32xf32>
    %99 = vector.shape_cast %98 : vector<1x1x32xf32> to vector<1x32xf32>
    %100 = vector.broadcast %99 : vector<1x32xf32> to vector<9x32xf32>
    %101 = arith.addf %97, %100 : vector<9x32xf32>
    %c1_65 = arith.constant 1 : index
    %c0_66 = arith.constant 0 : index
    %c0_67 = arith.constant 0 : index
    %102 = vector.load %arg5[%c1_65, %c0_66, %c0_67] : memref<12x32x32xbf16, #tpu.memory_space<vmem>>, vector<1x32x32xbf16>
    %103 = vector.shape_cast %102 : vector<1x32x32xbf16> to vector<32x32xbf16>
    %cst_68 = arith.constant dense<0.000000e+00> : vector<9x32xf32>
    %104 = tpu.matmul %94, %103, %cst_68 {dimension_numbers = #tpu.dot_dimension_numbers<[1], [0], [0], [1], [0, 0, 1, 1], [], []>} : vector<9x32xbf16>, vector<32x32xbf16>, vector<9x32xf32> -> vector<9x32xf32>
    %c1_69 = arith.constant 1 : index
    %c0_70 = arith.constant 0 : index
    %c0_71 = arith.constant 0 : index
    %105 = vector.load %arg6[%c1_69, %c0_70, %c0_71] : memref<12x1x32xf32, #tpu.memory_space<vmem>>, vector<1x1x32xf32>
    %106 = vector.shape_cast %105 : vector<1x1x32xf32> to vector<1x32xf32>
    %107 = vector.broadcast %106 : vector<1x32xf32> to vector<9x32xf32>
    %108 = arith.addf %104, %107 : vector<9x32xf32>
    %c2_72 = arith.constant 2 : index
    %c0_73 = arith.constant 0 : index
    %c0_74 = arith.constant 0 : index
    %109 = vector.load %arg5[%c2_72, %c0_73, %c0_74] : memref<12x32x32xbf16, #tpu.memory_space<vmem>>, vector<1x32x32xbf16>
    %110 = vector.shape_cast %109 : vector<1x32x32xbf16> to vector<32x32xbf16>
    %cst_75 = arith.constant dense<0.000000e+00> : vector<9x32xf32>
    %111 = tpu.matmul %94, %110, %cst_75 {dimension_numbers = #tpu.dot_dimension_numbers<[1], [0], [0], [1], [0, 0, 1, 1], [], []>} : vector<9x32xbf16>, vector<32x32xbf16>, vector<9x32xf32> -> vector<9x32xf32>
    %c2_76 = arith.constant 2 : index
    %c0_77 = arith.constant 0 : index
    %c0_78 = arith.constant 0 : index
    %112 = vector.load %arg6[%c2_76, %c0_77, %c0_78] : memref<12x1x32xf32, #tpu.memory_space<vmem>>, vector<1x1x32xf32>
    %113 = vector.shape_cast %112 : vector<1x1x32xf32> to vector<1x32xf32>
    %114 = vector.broadcast %113 : vector<1x32xf32> to vector<9x32xf32>
    %115 = arith.addf %111, %114 : vector<9x32xf32>
    %116 = arith.truncf %101 : vector<9x32xf32> to vector<9x32xbf16>
    %117 = arith.truncf %108 : vector<9x32xf32> to vector<9x32xbf16>
    %cst_79 = arith.constant dense<0.000000e+00> : vector<9x9xf32>
    %118 = tpu.matmul %116, %117, %cst_79 {dimension_numbers = #tpu.dot_dimension_numbers<[1], [1], [0], [0], [0, 0, 1, 0], [], []>} : vector<9x32xbf16>, vector<9x32xbf16>, vector<9x9xf32> -> vector<9x9xf32>
    %cst_80 = arith.constant 0.176776692 : f32
    %119 = vector.broadcast %cst_80 : f32 to vector<9x9xf32>
    %120 = arith.mulf %118, %119 : vector<9x9xf32>
    %cst_81 = arith.constant 5.000000e-01 : f32
    %121 = vector.broadcast %cst_81 : f32 to vector<1x9xf32>
    %122 = arith.cmpf ogt, %7, %121 : vector<1x9xf32>
    %cst_82 = arith.constant -1.000000e+09 : f32
    %123 = vector.shape_cast %122 : vector<1x9xi1> to vector<1x9xi1>
    %124 = vector.broadcast %123 : vector<1x9xi1> to vector<9x9xi1>
    %125 = vector.broadcast %cst_82 : f32 to vector<9x9xf32>
    %126 = arith.select %124, %120, %125 : vector<9x9xi1>, vector<9x9xf32>
    %cst_83 = arith.constant dense<0xFF800000> : vector<9xf32>
    %127 = vector.multi_reduction <maximumf>, %126, %cst_83 [1] : vector<9x9xf32> to vector<9xf32>
    %128 = vector.shape_cast %127 : vector<9xf32> to vector<9x1xf32>
    %129 = vector.broadcast %128 : vector<9x1xf32> to vector<9x9xf32>
    %130 = arith.subf %126, %129 : vector<9x9xf32>
    %131 = math.exp %130 : vector<9x9xf32>
    %cst_84 = arith.constant dense<0.000000e+00> : vector<9xf32>
    %132 = vector.multi_reduction <add>, %131, %cst_84 [1] : vector<9x9xf32> to vector<9xf32>
    %133 = vector.shape_cast %132 : vector<9xf32> to vector<9x1xf32>
    %134 = vector.broadcast %133 : vector<9x1xf32> to vector<9x9xf32>
    %135 = arith.divf %131, %134 : vector<9x9xf32>
    %136 = arith.truncf %135 : vector<9x9xf32> to vector<9x9xbf16>
    %137 = arith.truncf %115 : vector<9x32xf32> to vector<9x32xbf16>
    %cst_85 = arith.constant dense<0.000000e+00> : vector<9x32xf32>
    %138 = tpu.matmul %136, %137, %cst_85 {dimension_numbers = #tpu.dot_dimension_numbers<[1], [0], [0], [1], [0, 0, 1, 1], [], []>} : vector<9x9xbf16>, vector<9x32xbf16>, vector<9x32xf32> -> vector<9x32xf32>
    %c0_86 = arith.constant 0 : index
    %c0_87 = arith.constant 0 : index
    %c0_88 = arith.constant 0 : index
    %139 = vector.load %arg7[%c0_86, %c0_87, %c0_88] : memref<8x32x32xbf16, #tpu.memory_space<vmem>>, vector<1x32x32xbf16>
    %140 = vector.shape_cast %139 : vector<1x32x32xbf16> to vector<32x32xbf16>
    %cst_89 = arith.constant dense<0.000000e+00> : vector<9x32xf32>
    %141 = tpu.matmul %93, %140, %cst_89 {dimension_numbers = #tpu.dot_dimension_numbers<[1], [0], [0], [1], [0, 0, 1, 1], [], []>} : vector<9x32xbf16>, vector<32x32xbf16>, vector<9x32xf32> -> vector<9x32xf32>
    %142 = arith.truncf %138 : vector<9x32xf32> to vector<9x32xbf16>
    %c1_90 = arith.constant 1 : index
    %c0_91 = arith.constant 0 : index
    %c0_92 = arith.constant 0 : index
    %143 = vector.load %arg7[%c1_90, %c0_91, %c0_92] : memref<8x32x32xbf16, #tpu.memory_space<vmem>>, vector<1x32x32xbf16>
    %144 = vector.shape_cast %143 : vector<1x32x32xbf16> to vector<32x32xbf16>
    %cst_93 = arith.constant dense<0.000000e+00> : vector<9x32xf32>
    %145 = tpu.matmul %142, %144, %cst_93 {dimension_numbers = #tpu.dot_dimension_numbers<[1], [0], [0], [1], [0, 0, 1, 1], [], []>} : vector<9x32xbf16>, vector<32x32xbf16>, vector<9x32xf32> -> vector<9x32xf32>
    %146 = arith.addf %141, %145 : vector<9x32xf32>
    %c0_94 = arith.constant 0 : index
    %c0_95 = arith.constant 0 : index
    %c0_96 = arith.constant 0 : index
    %147 = vector.load %arg8[%c0_94, %c0_95, %c0_96] : memref<4x1x32xf32, #tpu.memory_space<vmem>>, vector<1x1x32xf32>
    %148 = vector.shape_cast %147 : vector<1x1x32xf32> to vector<1x32xf32>
    %149 = vector.broadcast %148 : vector<1x32xf32> to vector<9x32xf32>
    %150 = arith.addf %146, %149 : vector<9x32xf32>
    %cst_97 = arith.constant dense<0.000000e+00> : vector<9xf32>
    %151 = vector.multi_reduction <add>, %150, %cst_97 [1] : vector<9x32xf32> to vector<9xf32>
    %152 = vector.shape_cast %151 : vector<9xf32> to vector<9x1xf32>
    %cst_98 = arith.constant 3.200000e+01 : f32
    %153 = vector.broadcast %cst_98 : f32 to vector<9x1xf32>
    %154 = arith.divf %152, %153 : vector<9x1xf32>
    %155 = vector.broadcast %154 : vector<9x1xf32> to vector<9x32xf32>
    %156 = arith.subf %150, %155 : vector<9x32xf32>
    %157 = arith.mulf %156, %156 : vector<9x32xf32>
    %cst_99 = arith.constant dense<0.000000e+00> : vector<9xf32>
    %158 = vector.multi_reduction <add>, %157, %cst_99 [1] : vector<9x32xf32> to vector<9xf32>
    %159 = vector.shape_cast %158 : vector<9xf32> to vector<9x1xf32>
    %cst_100 = arith.constant 3.200000e+01 : f32
    %160 = vector.broadcast %cst_100 : f32 to vector<9x1xf32>
    %161 = arith.divf %159, %160 : vector<9x1xf32>
    %162 = vector.broadcast %154 : vector<9x1xf32> to vector<9x32xf32>
    %163 = arith.subf %150, %162 : vector<9x32xf32>
    %cst_101 = arith.constant 9.99999974E-6 : f32
    %164 = vector.broadcast %cst_101 : f32 to vector<9x1xf32>
    %165 = arith.addf %161, %164 : vector<9x1xf32>
    %166 = math.rsqrt %165 : vector<9x1xf32>
    %167 = vector.broadcast %166 : vector<9x1xf32> to vector<9x32xf32>
    %168 = arith.mulf %163, %167 : vector<9x32xf32>
    %c0_102 = arith.constant 0 : index
    %c0_103 = arith.constant 0 : index
    %c0_104 = arith.constant 0 : index
    %169 = vector.load %arg9[%c0_102, %c0_103, %c0_104] : memref<4x1x32xf32, #tpu.memory_space<vmem>>, vector<1x1x32xf32>
    %170 = vector.shape_cast %169 : vector<1x1x32xf32> to vector<1x32xf32>
    %171 = vector.broadcast %170 : vector<1x32xf32> to vector<9x32xf32>
    %172 = arith.mulf %168, %171 : vector<9x32xf32>
    %c0_105 = arith.constant 0 : index
    %c0_106 = arith.constant 0 : index
    %c0_107 = arith.constant 0 : index
    %173 = vector.load %arg10[%c0_105, %c0_106, %c0_107] : memref<4x1x32xf32, #tpu.memory_space<vmem>>, vector<1x1x32xf32>
    %174 = vector.shape_cast %173 : vector<1x1x32xf32> to vector<1x32xf32>
    %175 = vector.broadcast %174 : vector<1x32xf32> to vector<9x32xf32>
    %176 = arith.addf %172, %175 : vector<9x32xf32>
    %177 = arith.addf %3, %176 : vector<9x32xf32>
    %178 = arith.truncf %92 : vector<9x32xf32> to vector<9x32xbf16>
    %179 = arith.truncf %177 : vector<9x32xf32> to vector<9x32xbf16>
    %c3 = arith.constant 3 : index
    %c0_108 = arith.constant 0 : index
    %c0_109 = arith.constant 0 : index
    %180 = vector.load %arg5[%c3, %c0_108, %c0_109] : memref<12x32x32xbf16, #tpu.memory_space<vmem>>, vector<1x32x32xbf16>
    %181 = vector.shape_cast %180 : vector<1x32x32xbf16> to vector<32x32xbf16>
    %cst_110 = arith.constant dense<0.000000e+00> : vector<9x32xf32>
    %182 = tpu.matmul %178, %181, %cst_110 {dimension_numbers = #tpu.dot_dimension_numbers<[1], [0], [0], [1], [0, 0, 1, 1], [], []>} : vector<9x32xbf16>, vector<32x32xbf16>, vector<9x32xf32> -> vector<9x32xf32>
    %c3_111 = arith.constant 3 : index
    %c0_112 = arith.constant 0 : index
    %c0_113 = arith.constant 0 : index
    %183 = vector.load %arg6[%c3_111, %c0_112, %c0_113] : memref<12x1x32xf32, #tpu.memory_space<vmem>>, vector<1x1x32xf32>
    %184 = vector.shape_cast %183 : vector<1x1x32xf32> to vector<1x32xf32>
    %185 = vector.broadcast %184 : vector<1x32xf32> to vector<9x32xf32>
    %186 = arith.addf %182, %185 : vector<9x32xf32>
    %c4 = arith.constant 4 : index
    %c0_114 = arith.constant 0 : index
    %c0_115 = arith.constant 0 : index
    %187 = vector.load %arg5[%c4, %c0_114, %c0_115] : memref<12x32x32xbf16, #tpu.memory_space<vmem>>, vector<1x32x32xbf16>
    %188 = vector.shape_cast %187 : vector<1x32x32xbf16> to vector<32x32xbf16>
    %cst_116 = arith.constant dense<0.000000e+00> : vector<9x32xf32>
    %189 = tpu.matmul %179, %188, %cst_116 {dimension_numbers = #tpu.dot_dimension_numbers<[1], [0], [0], [1], [0, 0, 1, 1], [], []>} : vector<9x32xbf16>, vector<32x32xbf16>, vector<9x32xf32> -> vector<9x32xf32>
    %c4_117 = arith.constant 4 : index
    %c0_118 = arith.constant 0 : index
    %c0_119 = arith.constant 0 : index
    %190 = vector.load %arg6[%c4_117, %c0_118, %c0_119] : memref<12x1x32xf32, #tpu.memory_space<vmem>>, vector<1x1x32xf32>
    %191 = vector.shape_cast %190 : vector<1x1x32xf32> to vector<1x32xf32>
    %192 = vector.broadcast %191 : vector<1x32xf32> to vector<9x32xf32>
    %193 = arith.addf %189, %192 : vector<9x32xf32>
    %c5 = arith.constant 5 : index
    %c0_120 = arith.constant 0 : index
    %c0_121 = arith.constant 0 : index
    %194 = vector.load %arg5[%c5, %c0_120, %c0_121] : memref<12x32x32xbf16, #tpu.memory_space<vmem>>, vector<1x32x32xbf16>
    %195 = vector.shape_cast %194 : vector<1x32x32xbf16> to vector<32x32xbf16>
    %cst_122 = arith.constant dense<0.000000e+00> : vector<9x32xf32>
    %196 = tpu.matmul %179, %195, %cst_122 {dimension_numbers = #tpu.dot_dimension_numbers<[1], [0], [0], [1], [0, 0, 1, 1], [], []>} : vector<9x32xbf16>, vector<32x32xbf16>, vector<9x32xf32> -> vector<9x32xf32>
    %c5_123 = arith.constant 5 : index
    %c0_124 = arith.constant 0 : index
    %c0_125 = arith.constant 0 : index
    %197 = vector.load %arg6[%c5_123, %c0_124, %c0_125] : memref<12x1x32xf32, #tpu.memory_space<vmem>>, vector<1x1x32xf32>
    %198 = vector.shape_cast %197 : vector<1x1x32xf32> to vector<1x32xf32>
    %199 = vector.broadcast %198 : vector<1x32xf32> to vector<9x32xf32>
    %200 = arith.addf %196, %199 : vector<9x32xf32>
    %201 = arith.truncf %186 : vector<9x32xf32> to vector<9x32xbf16>
    %202 = arith.truncf %193 : vector<9x32xf32> to vector<9x32xbf16>
    %cst_126 = arith.constant dense<0.000000e+00> : vector<9x9xf32>
    %203 = tpu.matmul %201, %202, %cst_126 {dimension_numbers = #tpu.dot_dimension_numbers<[1], [1], [0], [0], [0, 0, 1, 0], [], []>} : vector<9x32xbf16>, vector<9x32xbf16>, vector<9x9xf32> -> vector<9x9xf32>
    %cst_127 = arith.constant 0.176776692 : f32
    %204 = vector.broadcast %cst_127 : f32 to vector<9x9xf32>
    %205 = arith.mulf %203, %204 : vector<9x9xf32>
    %cst_128 = arith.constant 5.000000e-01 : f32
    %206 = vector.broadcast %cst_128 : f32 to vector<1x9xf32>
    %207 = arith.cmpf ogt, %7, %206 : vector<1x9xf32>
    %cst_129 = arith.constant -1.000000e+09 : f32
    %208 = vector.shape_cast %207 : vector<1x9xi1> to vector<1x9xi1>
    %209 = vector.broadcast %208 : vector<1x9xi1> to vector<9x9xi1>
    %210 = vector.broadcast %cst_129 : f32 to vector<9x9xf32>
    %211 = arith.select %209, %205, %210 : vector<9x9xi1>, vector<9x9xf32>
    %cst_130 = arith.constant dense<0xFF800000> : vector<9xf32>
    %212 = vector.multi_reduction <maximumf>, %211, %cst_130 [1] : vector<9x9xf32> to vector<9xf32>
    %213 = vector.shape_cast %212 : vector<9xf32> to vector<9x1xf32>
    %214 = vector.broadcast %213 : vector<9x1xf32> to vector<9x9xf32>
    %215 = arith.subf %211, %214 : vector<9x9xf32>
    %216 = math.exp %215 : vector<9x9xf32>
    %cst_131 = arith.constant dense<0.000000e+00> : vector<9xf32>
    %217 = vector.multi_reduction <add>, %216, %cst_131 [1] : vector<9x9xf32> to vector<9xf32>
    %218 = vector.shape_cast %217 : vector<9xf32> to vector<9x1xf32>
    %219 = vector.broadcast %218 : vector<9x1xf32> to vector<9x9xf32>
    %220 = arith.divf %216, %219 : vector<9x9xf32>
    %221 = arith.truncf %220 : vector<9x9xf32> to vector<9x9xbf16>
    %222 = arith.truncf %200 : vector<9x32xf32> to vector<9x32xbf16>
    %cst_132 = arith.constant dense<0.000000e+00> : vector<9x32xf32>
    %223 = tpu.matmul %221, %222, %cst_132 {dimension_numbers = #tpu.dot_dimension_numbers<[1], [0], [0], [1], [0, 0, 1, 1], [], []>} : vector<9x9xbf16>, vector<9x32xbf16>, vector<9x32xf32> -> vector<9x32xf32>
    %c2_133 = arith.constant 2 : index
    %c0_134 = arith.constant 0 : index
    %c0_135 = arith.constant 0 : index
    %224 = vector.load %arg7[%c2_133, %c0_134, %c0_135] : memref<8x32x32xbf16, #tpu.memory_space<vmem>>, vector<1x32x32xbf16>
    %225 = vector.shape_cast %224 : vector<1x32x32xbf16> to vector<32x32xbf16>
    %cst_136 = arith.constant dense<0.000000e+00> : vector<9x32xf32>
    %226 = tpu.matmul %178, %225, %cst_136 {dimension_numbers = #tpu.dot_dimension_numbers<[1], [0], [0], [1], [0, 0, 1, 1], [], []>} : vector<9x32xbf16>, vector<32x32xbf16>, vector<9x32xf32> -> vector<9x32xf32>
    %227 = arith.truncf %223 : vector<9x32xf32> to vector<9x32xbf16>
    %c3_137 = arith.constant 3 : index
    %c0_138 = arith.constant 0 : index
    %c0_139 = arith.constant 0 : index
    %228 = vector.load %arg7[%c3_137, %c0_138, %c0_139] : memref<8x32x32xbf16, #tpu.memory_space<vmem>>, vector<1x32x32xbf16>
    %229 = vector.shape_cast %228 : vector<1x32x32xbf16> to vector<32x32xbf16>
    %cst_140 = arith.constant dense<0.000000e+00> : vector<9x32xf32>
    %230 = tpu.matmul %227, %229, %cst_140 {dimension_numbers = #tpu.dot_dimension_numbers<[1], [0], [0], [1], [0, 0, 1, 1], [], []>} : vector<9x32xbf16>, vector<32x32xbf16>, vector<9x32xf32> -> vector<9x32xf32>
    %231 = arith.addf %226, %230 : vector<9x32xf32>
    %c1_141 = arith.constant 1 : index
    %c0_142 = arith.constant 0 : index
    %c0_143 = arith.constant 0 : index
    %232 = vector.load %arg8[%c1_141, %c0_142, %c0_143] : memref<4x1x32xf32, #tpu.memory_space<vmem>>, vector<1x1x32xf32>
    %233 = vector.shape_cast %232 : vector<1x1x32xf32> to vector<1x32xf32>
    %234 = vector.broadcast %233 : vector<1x32xf32> to vector<9x32xf32>
    %235 = arith.addf %231, %234 : vector<9x32xf32>
    %cst_144 = arith.constant dense<0.000000e+00> : vector<9xf32>
    %236 = vector.multi_reduction <add>, %235, %cst_144 [1] : vector<9x32xf32> to vector<9xf32>
    %237 = vector.shape_cast %236 : vector<9xf32> to vector<9x1xf32>
    %cst_145 = arith.constant 3.200000e+01 : f32
    %238 = vector.broadcast %cst_145 : f32 to vector<9x1xf32>
    %239 = arith.divf %237, %238 : vector<9x1xf32>
    %240 = vector.broadcast %239 : vector<9x1xf32> to vector<9x32xf32>
    %241 = arith.subf %235, %240 : vector<9x32xf32>
    %242 = arith.mulf %241, %241 : vector<9x32xf32>
    %cst_146 = arith.constant dense<0.000000e+00> : vector<9xf32>
    %243 = vector.multi_reduction <add>, %242, %cst_146 [1] : vector<9x32xf32> to vector<9xf32>
    %244 = vector.shape_cast %243 : vector<9xf32> to vector<9x1xf32>
    %cst_147 = arith.constant 3.200000e+01 : f32
    %245 = vector.broadcast %cst_147 : f32 to vector<9x1xf32>
    %246 = arith.divf %244, %245 : vector<9x1xf32>
    %247 = vector.broadcast %239 : vector<9x1xf32> to vector<9x32xf32>
    %248 = arith.subf %235, %247 : vector<9x32xf32>
    %cst_148 = arith.constant 9.99999974E-6 : f32
    %249 = vector.broadcast %cst_148 : f32 to vector<9x1xf32>
    %250 = arith.addf %246, %249 : vector<9x1xf32>
    %251 = math.rsqrt %250 : vector<9x1xf32>
    %252 = vector.broadcast %251 : vector<9x1xf32> to vector<9x32xf32>
    %253 = arith.mulf %248, %252 : vector<9x32xf32>
    %c1_149 = arith.constant 1 : index
    %c0_150 = arith.constant 0 : index
    %c0_151 = arith.constant 0 : index
    %254 = vector.load %arg9[%c1_149, %c0_150, %c0_151] : memref<4x1x32xf32, #tpu.memory_space<vmem>>, vector<1x1x32xf32>
    %255 = vector.shape_cast %254 : vector<1x1x32xf32> to vector<1x32xf32>
    %256 = vector.broadcast %255 : vector<1x32xf32> to vector<9x32xf32>
    %257 = arith.mulf %253, %256 : vector<9x32xf32>
    %c1_152 = arith.constant 1 : index
    %c0_153 = arith.constant 0 : index
    %c0_154 = arith.constant 0 : index
    %258 = vector.load %arg10[%c1_152, %c0_153, %c0_154] : memref<4x1x32xf32, #tpu.memory_space<vmem>>, vector<1x1x32xf32>
    %259 = vector.shape_cast %258 : vector<1x1x32xf32> to vector<1x32xf32>
    %260 = vector.broadcast %259 : vector<1x32xf32> to vector<9x32xf32>
    %261 = arith.addf %257, %260 : vector<9x32xf32>
    %262 = arith.addf %92, %261 : vector<9x32xf32>
    %263 = arith.truncf %177 : vector<9x32xf32> to vector<9x32xbf16>
    %264 = arith.truncf %92 : vector<9x32xf32> to vector<9x32xbf16>
    %c3_155 = arith.constant 3 : index
    %c0_156 = arith.constant 0 : index
    %c0_157 = arith.constant 0 : index
    %265 = vector.load %arg5[%c3_155, %c0_156, %c0_157] : memref<12x32x32xbf16, #tpu.memory_space<vmem>>, vector<1x32x32xbf16>
    %266 = vector.shape_cast %265 : vector<1x32x32xbf16> to vector<32x32xbf16>
    %cst_158 = arith.constant dense<0.000000e+00> : vector<9x32xf32>
    %267 = tpu.matmul %263, %266, %cst_158 {dimension_numbers = #tpu.dot_dimension_numbers<[1], [0], [0], [1], [0, 0, 1, 1], [], []>} : vector<9x32xbf16>, vector<32x32xbf16>, vector<9x32xf32> -> vector<9x32xf32>
    %c3_159 = arith.constant 3 : index
    %c0_160 = arith.constant 0 : index
    %c0_161 = arith.constant 0 : index
    %268 = vector.load %arg6[%c3_159, %c0_160, %c0_161] : memref<12x1x32xf32, #tpu.memory_space<vmem>>, vector<1x1x32xf32>
    %269 = vector.shape_cast %268 : vector<1x1x32xf32> to vector<1x32xf32>
    %270 = vector.broadcast %269 : vector<1x32xf32> to vector<9x32xf32>
    %271 = arith.addf %267, %270 : vector<9x32xf32>
    %c4_162 = arith.constant 4 : index
    %c0_163 = arith.constant 0 : index
    %c0_164 = arith.constant 0 : index
    %272 = vector.load %arg5[%c4_162, %c0_163, %c0_164] : memref<12x32x32xbf16, #tpu.memory_space<vmem>>, vector<1x32x32xbf16>
    %273 = vector.shape_cast %272 : vector<1x32x32xbf16> to vector<32x32xbf16>
    %cst_165 = arith.constant dense<0.000000e+00> : vector<9x32xf32>
    %274 = tpu.matmul %264, %273, %cst_165 {dimension_numbers = #tpu.dot_dimension_numbers<[1], [0], [0], [1], [0, 0, 1, 1], [], []>} : vector<9x32xbf16>, vector<32x32xbf16>, vector<9x32xf32> -> vector<9x32xf32>
    %c4_166 = arith.constant 4 : index
    %c0_167 = arith.constant 0 : index
    %c0_168 = arith.constant 0 : index
    %275 = vector.load %arg6[%c4_166, %c0_167, %c0_168] : memref<12x1x32xf32, #tpu.memory_space<vmem>>, vector<1x1x32xf32>
    %276 = vector.shape_cast %275 : vector<1x1x32xf32> to vector<1x32xf32>
    %277 = vector.broadcast %276 : vector<1x32xf32> to vector<9x32xf32>
    %278 = arith.addf %274, %277 : vector<9x32xf32>
    %c5_169 = arith.constant 5 : index
    %c0_170 = arith.constant 0 : index
    %c0_171 = arith.constant 0 : index
    %279 = vector.load %arg5[%c5_169, %c0_170, %c0_171] : memref<12x32x32xbf16, #tpu.memory_space<vmem>>, vector<1x32x32xbf16>
    %280 = vector.shape_cast %279 : vector<1x32x32xbf16> to vector<32x32xbf16>
    %cst_172 = arith.constant dense<0.000000e+00> : vector<9x32xf32>
    %281 = tpu.matmul %264, %280, %cst_172 {dimension_numbers = #tpu.dot_dimension_numbers<[1], [0], [0], [1], [0, 0, 1, 1], [], []>} : vector<9x32xbf16>, vector<32x32xbf16>, vector<9x32xf32> -> vector<9x32xf32>
    %c5_173 = arith.constant 5 : index
    %c0_174 = arith.constant 0 : index
    %c0_175 = arith.constant 0 : index
    %282 = vector.load %arg6[%c5_173, %c0_174, %c0_175] : memref<12x1x32xf32, #tpu.memory_space<vmem>>, vector<1x1x32xf32>
    %283 = vector.shape_cast %282 : vector<1x1x32xf32> to vector<1x32xf32>
    %284 = vector.broadcast %283 : vector<1x32xf32> to vector<9x32xf32>
    %285 = arith.addf %281, %284 : vector<9x32xf32>
    %286 = arith.truncf %271 : vector<9x32xf32> to vector<9x32xbf16>
    %287 = arith.truncf %278 : vector<9x32xf32> to vector<9x32xbf16>
    %cst_176 = arith.constant dense<0.000000e+00> : vector<9x9xf32>
    %288 = tpu.matmul %286, %287, %cst_176 {dimension_numbers = #tpu.dot_dimension_numbers<[1], [1], [0], [0], [0, 0, 1, 0], [], []>} : vector<9x32xbf16>, vector<9x32xbf16>, vector<9x9xf32> -> vector<9x9xf32>
    %cst_177 = arith.constant 0.176776692 : f32
    %289 = vector.broadcast %cst_177 : f32 to vector<9x9xf32>
    %290 = arith.mulf %288, %289 : vector<9x9xf32>
    %cst_178 = arith.constant 5.000000e-01 : f32
    %291 = vector.broadcast %cst_178 : f32 to vector<1x9xf32>
    %292 = arith.cmpf ogt, %5, %291 : vector<1x9xf32>
    %cst_179 = arith.constant -1.000000e+09 : f32
    %293 = vector.shape_cast %292 : vector<1x9xi1> to vector<1x9xi1>
    %294 = vector.broadcast %293 : vector<1x9xi1> to vector<9x9xi1>
    %295 = vector.broadcast %cst_179 : f32 to vector<9x9xf32>
    %296 = arith.select %294, %290, %295 : vector<9x9xi1>, vector<9x9xf32>
    %cst_180 = arith.constant dense<0xFF800000> : vector<9xf32>
    %297 = vector.multi_reduction <maximumf>, %296, %cst_180 [1] : vector<9x9xf32> to vector<9xf32>
    %298 = vector.shape_cast %297 : vector<9xf32> to vector<9x1xf32>
    %299 = vector.broadcast %298 : vector<9x1xf32> to vector<9x9xf32>
    %300 = arith.subf %296, %299 : vector<9x9xf32>
    %301 = math.exp %300 : vector<9x9xf32>
    %cst_181 = arith.constant dense<0.000000e+00> : vector<9xf32>
    %302 = vector.multi_reduction <add>, %301, %cst_181 [1] : vector<9x9xf32> to vector<9xf32>
    %303 = vector.shape_cast %302 : vector<9xf32> to vector<9x1xf32>
    %304 = vector.broadcast %303 : vector<9x1xf32> to vector<9x9xf32>
    %305 = arith.divf %301, %304 : vector<9x9xf32>
    %306 = arith.truncf %305 : vector<9x9xf32> to vector<9x9xbf16>
    %307 = arith.truncf %285 : vector<9x32xf32> to vector<9x32xbf16>
    %cst_182 = arith.constant dense<0.000000e+00> : vector<9x32xf32>
    %308 = tpu.matmul %306, %307, %cst_182 {dimension_numbers = #tpu.dot_dimension_numbers<[1], [0], [0], [1], [0, 0, 1, 1], [], []>} : vector<9x9xbf16>, vector<9x32xbf16>, vector<9x32xf32> -> vector<9x32xf32>
    %c2_183 = arith.constant 2 : index
    %c0_184 = arith.constant 0 : index
    %c0_185 = arith.constant 0 : index
    %309 = vector.load %arg7[%c2_183, %c0_184, %c0_185] : memref<8x32x32xbf16, #tpu.memory_space<vmem>>, vector<1x32x32xbf16>
    %310 = vector.shape_cast %309 : vector<1x32x32xbf16> to vector<32x32xbf16>
    %cst_186 = arith.constant dense<0.000000e+00> : vector<9x32xf32>
    %311 = tpu.matmul %263, %310, %cst_186 {dimension_numbers = #tpu.dot_dimension_numbers<[1], [0], [0], [1], [0, 0, 1, 1], [], []>} : vector<9x32xbf16>, vector<32x32xbf16>, vector<9x32xf32> -> vector<9x32xf32>
    %312 = arith.truncf %308 : vector<9x32xf32> to vector<9x32xbf16>
    %c3_187 = arith.constant 3 : index
    %c0_188 = arith.constant 0 : index
    %c0_189 = arith.constant 0 : index
    %313 = vector.load %arg7[%c3_187, %c0_188, %c0_189] : memref<8x32x32xbf16, #tpu.memory_space<vmem>>, vector<1x32x32xbf16>
    %314 = vector.shape_cast %313 : vector<1x32x32xbf16> to vector<32x32xbf16>
    %cst_190 = arith.constant dense<0.000000e+00> : vector<9x32xf32>
    %315 = tpu.matmul %312, %314, %cst_190 {dimension_numbers = #tpu.dot_dimension_numbers<[1], [0], [0], [1], [0, 0, 1, 1], [], []>} : vector<9x32xbf16>, vector<32x32xbf16>, vector<9x32xf32> -> vector<9x32xf32>
    %316 = arith.addf %311, %315 : vector<9x32xf32>
    %c1_191 = arith.constant 1 : index
    %c0_192 = arith.constant 0 : index
    %c0_193 = arith.constant 0 : index
    %317 = vector.load %arg8[%c1_191, %c0_192, %c0_193] : memref<4x1x32xf32, #tpu.memory_space<vmem>>, vector<1x1x32xf32>
    %318 = vector.shape_cast %317 : vector<1x1x32xf32> to vector<1x32xf32>
    %319 = vector.broadcast %318 : vector<1x32xf32> to vector<9x32xf32>
    %320 = arith.addf %316, %319 : vector<9x32xf32>
    %cst_194 = arith.constant dense<0.000000e+00> : vector<9xf32>
    %321 = vector.multi_reduction <add>, %320, %cst_194 [1] : vector<9x32xf32> to vector<9xf32>
    %322 = vector.shape_cast %321 : vector<9xf32> to vector<9x1xf32>
    %cst_195 = arith.constant 3.200000e+01 : f32
    %323 = vector.broadcast %cst_195 : f32 to vector<9x1xf32>
    %324 = arith.divf %322, %323 : vector<9x1xf32>
    %325 = vector.broadcast %324 : vector<9x1xf32> to vector<9x32xf32>
    %326 = arith.subf %320, %325 : vector<9x32xf32>
    %327 = arith.mulf %326, %326 : vector<9x32xf32>
    %cst_196 = arith.constant dense<0.000000e+00> : vector<9xf32>
    %328 = vector.multi_reduction <add>, %327, %cst_196 [1] : vector<9x32xf32> to vector<9xf32>
    %329 = vector.shape_cast %328 : vector<9xf32> to vector<9x1xf32>
    %cst_197 = arith.constant 3.200000e+01 : f32
    %330 = vector.broadcast %cst_197 : f32 to vector<9x1xf32>
    %331 = arith.divf %329, %330 : vector<9x1xf32>
    %332 = vector.broadcast %324 : vector<9x1xf32> to vector<9x32xf32>
    %333 = arith.subf %320, %332 : vector<9x32xf32>
    %cst_198 = arith.constant 9.99999974E-6 : f32
    %334 = vector.broadcast %cst_198 : f32 to vector<9x1xf32>
    %335 = arith.addf %331, %334 : vector<9x1xf32>
    %336 = math.rsqrt %335 : vector<9x1xf32>
    %337 = vector.broadcast %336 : vector<9x1xf32> to vector<9x32xf32>
    %338 = arith.mulf %333, %337 : vector<9x32xf32>
    %c1_199 = arith.constant 1 : index
    %c0_200 = arith.constant 0 : index
    %c0_201 = arith.constant 0 : index
    %339 = vector.load %arg9[%c1_199, %c0_200, %c0_201] : memref<4x1x32xf32, #tpu.memory_space<vmem>>, vector<1x1x32xf32>
    %340 = vector.shape_cast %339 : vector<1x1x32xf32> to vector<1x32xf32>
    %341 = vector.broadcast %340 : vector<1x32xf32> to vector<9x32xf32>
    %342 = arith.mulf %338, %341 : vector<9x32xf32>
    %c1_202 = arith.constant 1 : index
    %c0_203 = arith.constant 0 : index
    %c0_204 = arith.constant 0 : index
    %343 = vector.load %arg10[%c1_202, %c0_203, %c0_204] : memref<4x1x32xf32, #tpu.memory_space<vmem>>, vector<1x1x32xf32>
    %344 = vector.shape_cast %343 : vector<1x1x32xf32> to vector<1x32xf32>
    %345 = vector.broadcast %344 : vector<1x32xf32> to vector<9x32xf32>
    %346 = arith.addf %342, %345 : vector<9x32xf32>
    %347 = arith.addf %177, %346 : vector<9x32xf32>
    %348 = arith.truncf %262 : vector<9x32xf32> to vector<9x32xbf16>
    %349 = arith.truncf %262 : vector<9x32xf32> to vector<9x32xbf16>
    %c6 = arith.constant 6 : index
    %c0_205 = arith.constant 0 : index
    %c0_206 = arith.constant 0 : index
    %350 = vector.load %arg5[%c6, %c0_205, %c0_206] : memref<12x32x32xbf16, #tpu.memory_space<vmem>>, vector<1x32x32xbf16>
    %351 = vector.shape_cast %350 : vector<1x32x32xbf16> to vector<32x32xbf16>
    %cst_207 = arith.constant dense<0.000000e+00> : vector<9x32xf32>
    %352 = tpu.matmul %348, %351, %cst_207 {dimension_numbers = #tpu.dot_dimension_numbers<[1], [0], [0], [1], [0, 0, 1, 1], [], []>} : vector<9x32xbf16>, vector<32x32xbf16>, vector<9x32xf32> -> vector<9x32xf32>
    %c6_208 = arith.constant 6 : index
    %c0_209 = arith.constant 0 : index
    %c0_210 = arith.constant 0 : index
    %353 = vector.load %arg6[%c6_208, %c0_209, %c0_210] : memref<12x1x32xf32, #tpu.memory_space<vmem>>, vector<1x1x32xf32>
    %354 = vector.shape_cast %353 : vector<1x1x32xf32> to vector<1x32xf32>
    %355 = vector.broadcast %354 : vector<1x32xf32> to vector<9x32xf32>
    %356 = arith.addf %352, %355 : vector<9x32xf32>
    %c7 = arith.constant 7 : index
    %c0_211 = arith.constant 0 : index
    %c0_212 = arith.constant 0 : index
    %357 = vector.load %arg5[%c7, %c0_211, %c0_212] : memref<12x32x32xbf16, #tpu.memory_space<vmem>>, vector<1x32x32xbf16>
    %358 = vector.shape_cast %357 : vector<1x32x32xbf16> to vector<32x32xbf16>
    %cst_213 = arith.constant dense<0.000000e+00> : vector<9x32xf32>
    %359 = tpu.matmul %349, %358, %cst_213 {dimension_numbers = #tpu.dot_dimension_numbers<[1], [0], [0], [1], [0, 0, 1, 1], [], []>} : vector<9x32xbf16>, vector<32x32xbf16>, vector<9x32xf32> -> vector<9x32xf32>
    %c7_214 = arith.constant 7 : index
    %c0_215 = arith.constant 0 : index
    %c0_216 = arith.constant 0 : index
    %360 = vector.load %arg6[%c7_214, %c0_215, %c0_216] : memref<12x1x32xf32, #tpu.memory_space<vmem>>, vector<1x1x32xf32>
    %361 = vector.shape_cast %360 : vector<1x1x32xf32> to vector<1x32xf32>
    %362 = vector.broadcast %361 : vector<1x32xf32> to vector<9x32xf32>
    %363 = arith.addf %359, %362 : vector<9x32xf32>
    %c8 = arith.constant 8 : index
    %c0_217 = arith.constant 0 : index
    %c0_218 = arith.constant 0 : index
    %364 = vector.load %arg5[%c8, %c0_217, %c0_218] : memref<12x32x32xbf16, #tpu.memory_space<vmem>>, vector<1x32x32xbf16>
    %365 = vector.shape_cast %364 : vector<1x32x32xbf16> to vector<32x32xbf16>
    %cst_219 = arith.constant dense<0.000000e+00> : vector<9x32xf32>
    %366 = tpu.matmul %349, %365, %cst_219 {dimension_numbers = #tpu.dot_dimension_numbers<[1], [0], [0], [1], [0, 0, 1, 1], [], []>} : vector<9x32xbf16>, vector<32x32xbf16>, vector<9x32xf32> -> vector<9x32xf32>
    %c8_220 = arith.constant 8 : index
    %c0_221 = arith.constant 0 : index
    %c0_222 = arith.constant 0 : index
    %367 = vector.load %arg6[%c8_220, %c0_221, %c0_222] : memref<12x1x32xf32, #tpu.memory_space<vmem>>, vector<1x1x32xf32>
    %368 = vector.shape_cast %367 : vector<1x1x32xf32> to vector<1x32xf32>
    %369 = vector.broadcast %368 : vector<1x32xf32> to vector<9x32xf32>
    %370 = arith.addf %366, %369 : vector<9x32xf32>
    %371 = arith.truncf %356 : vector<9x32xf32> to vector<9x32xbf16>
    %372 = arith.truncf %363 : vector<9x32xf32> to vector<9x32xbf16>
    %cst_223 = arith.constant dense<0.000000e+00> : vector<9x9xf32>
    %373 = tpu.matmul %371, %372, %cst_223 {dimension_numbers = #tpu.dot_dimension_numbers<[1], [1], [0], [0], [0, 0, 1, 0], [], []>} : vector<9x32xbf16>, vector<9x32xbf16>, vector<9x9xf32> -> vector<9x9xf32>
    %cst_224 = arith.constant 0.176776692 : f32
    %374 = vector.broadcast %cst_224 : f32 to vector<9x9xf32>
    %375 = arith.mulf %373, %374 : vector<9x9xf32>
    %cst_225 = arith.constant 5.000000e-01 : f32
    %376 = vector.broadcast %cst_225 : f32 to vector<1x9xf32>
    %377 = arith.cmpf ogt, %5, %376 : vector<1x9xf32>
    %cst_226 = arith.constant -1.000000e+09 : f32
    %378 = vector.shape_cast %377 : vector<1x9xi1> to vector<1x9xi1>
    %379 = vector.broadcast %378 : vector<1x9xi1> to vector<9x9xi1>
    %380 = vector.broadcast %cst_226 : f32 to vector<9x9xf32>
    %381 = arith.select %379, %375, %380 : vector<9x9xi1>, vector<9x9xf32>
    %cst_227 = arith.constant dense<0xFF800000> : vector<9xf32>
    %382 = vector.multi_reduction <maximumf>, %381, %cst_227 [1] : vector<9x9xf32> to vector<9xf32>
    %383 = vector.shape_cast %382 : vector<9xf32> to vector<9x1xf32>
    %384 = vector.broadcast %383 : vector<9x1xf32> to vector<9x9xf32>
    %385 = arith.subf %381, %384 : vector<9x9xf32>
    %386 = math.exp %385 : vector<9x9xf32>
    %cst_228 = arith.constant dense<0.000000e+00> : vector<9xf32>
    %387 = vector.multi_reduction <add>, %386, %cst_228 [1] : vector<9x9xf32> to vector<9xf32>
    %388 = vector.shape_cast %387 : vector<9xf32> to vector<9x1xf32>
    %389 = vector.broadcast %388 : vector<9x1xf32> to vector<9x9xf32>
    %390 = arith.divf %386, %389 : vector<9x9xf32>
    %391 = arith.truncf %390 : vector<9x9xf32> to vector<9x9xbf16>
    %392 = arith.truncf %370 : vector<9x32xf32> to vector<9x32xbf16>
    %cst_229 = arith.constant dense<0.000000e+00> : vector<9x32xf32>
    %393 = tpu.matmul %391, %392, %cst_229 {dimension_numbers = #tpu.dot_dimension_numbers<[1], [0], [0], [1], [0, 0, 1, 1], [], []>} : vector<9x9xbf16>, vector<9x32xbf16>, vector<9x32xf32> -> vector<9x32xf32>
    %c4_230 = arith.constant 4 : index
    %c0_231 = arith.constant 0 : index
    %c0_232 = arith.constant 0 : index
    %394 = vector.load %arg7[%c4_230, %c0_231, %c0_232] : memref<8x32x32xbf16, #tpu.memory_space<vmem>>, vector<1x32x32xbf16>
    %395 = vector.shape_cast %394 : vector<1x32x32xbf16> to vector<32x32xbf16>
    %cst_233 = arith.constant dense<0.000000e+00> : vector<9x32xf32>
    %396 = tpu.matmul %348, %395, %cst_233 {dimension_numbers = #tpu.dot_dimension_numbers<[1], [0], [0], [1], [0, 0, 1, 1], [], []>} : vector<9x32xbf16>, vector<32x32xbf16>, vector<9x32xf32> -> vector<9x32xf32>
    %397 = arith.truncf %393 : vector<9x32xf32> to vector<9x32xbf16>
    %c5_234 = arith.constant 5 : index
    %c0_235 = arith.constant 0 : index
    %c0_236 = arith.constant 0 : index
    %398 = vector.load %arg7[%c5_234, %c0_235, %c0_236] : memref<8x32x32xbf16, #tpu.memory_space<vmem>>, vector<1x32x32xbf16>
    %399 = vector.shape_cast %398 : vector<1x32x32xbf16> to vector<32x32xbf16>
    %cst_237 = arith.constant dense<0.000000e+00> : vector<9x32xf32>
    %400 = tpu.matmul %397, %399, %cst_237 {dimension_numbers = #tpu.dot_dimension_numbers<[1], [0], [0], [1], [0, 0, 1, 1], [], []>} : vector<9x32xbf16>, vector<32x32xbf16>, vector<9x32xf32> -> vector<9x32xf32>
    %401 = arith.addf %396, %400 : vector<9x32xf32>
    %c2_238 = arith.constant 2 : index
    %c0_239 = arith.constant 0 : index
    %c0_240 = arith.constant 0 : index
    %402 = vector.load %arg8[%c2_238, %c0_239, %c0_240] : memref<4x1x32xf32, #tpu.memory_space<vmem>>, vector<1x1x32xf32>
    %403 = vector.shape_cast %402 : vector<1x1x32xf32> to vector<1x32xf32>
    %404 = vector.broadcast %403 : vector<1x32xf32> to vector<9x32xf32>
    %405 = arith.addf %401, %404 : vector<9x32xf32>
    %cst_241 = arith.constant dense<0.000000e+00> : vector<9xf32>
    %406 = vector.multi_reduction <add>, %405, %cst_241 [1] : vector<9x32xf32> to vector<9xf32>
    %407 = vector.shape_cast %406 : vector<9xf32> to vector<9x1xf32>
    %cst_242 = arith.constant 3.200000e+01 : f32
    %408 = vector.broadcast %cst_242 : f32 to vector<9x1xf32>
    %409 = arith.divf %407, %408 : vector<9x1xf32>
    %410 = vector.broadcast %409 : vector<9x1xf32> to vector<9x32xf32>
    %411 = arith.subf %405, %410 : vector<9x32xf32>
    %412 = arith.mulf %411, %411 : vector<9x32xf32>
    %cst_243 = arith.constant dense<0.000000e+00> : vector<9xf32>
    %413 = vector.multi_reduction <add>, %412, %cst_243 [1] : vector<9x32xf32> to vector<9xf32>
    %414 = vector.shape_cast %413 : vector<9xf32> to vector<9x1xf32>
    %cst_244 = arith.constant 3.200000e+01 : f32
    %415 = vector.broadcast %cst_244 : f32 to vector<9x1xf32>
    %416 = arith.divf %414, %415 : vector<9x1xf32>
    %417 = vector.broadcast %409 : vector<9x1xf32> to vector<9x32xf32>
    %418 = arith.subf %405, %417 : vector<9x32xf32>
    %cst_245 = arith.constant 9.99999974E-6 : f32
    %419 = vector.broadcast %cst_245 : f32 to vector<9x1xf32>
    %420 = arith.addf %416, %419 : vector<9x1xf32>
    %421 = math.rsqrt %420 : vector<9x1xf32>
    %422 = vector.broadcast %421 : vector<9x1xf32> to vector<9x32xf32>
    %423 = arith.mulf %418, %422 : vector<9x32xf32>
    %c2_246 = arith.constant 2 : index
    %c0_247 = arith.constant 0 : index
    %c0_248 = arith.constant 0 : index
    %424 = vector.load %arg9[%c2_246, %c0_247, %c0_248] : memref<4x1x32xf32, #tpu.memory_space<vmem>>, vector<1x1x32xf32>
    %425 = vector.shape_cast %424 : vector<1x1x32xf32> to vector<1x32xf32>
    %426 = vector.broadcast %425 : vector<1x32xf32> to vector<9x32xf32>
    %427 = arith.mulf %423, %426 : vector<9x32xf32>
    %c2_249 = arith.constant 2 : index
    %c0_250 = arith.constant 0 : index
    %c0_251 = arith.constant 0 : index
    %428 = vector.load %arg10[%c2_249, %c0_250, %c0_251] : memref<4x1x32xf32, #tpu.memory_space<vmem>>, vector<1x1x32xf32>
    %429 = vector.shape_cast %428 : vector<1x1x32xf32> to vector<1x32xf32>
    %430 = vector.broadcast %429 : vector<1x32xf32> to vector<9x32xf32>
    %431 = arith.addf %427, %430 : vector<9x32xf32>
    %432 = arith.addf %262, %431 : vector<9x32xf32>
    %433 = arith.truncf %347 : vector<9x32xf32> to vector<9x32xbf16>
    %434 = arith.truncf %347 : vector<9x32xf32> to vector<9x32xbf16>
    %c6_252 = arith.constant 6 : index
    %c0_253 = arith.constant 0 : index
    %c0_254 = arith.constant 0 : index
    %435 = vector.load %arg5[%c6_252, %c0_253, %c0_254] : memref<12x32x32xbf16, #tpu.memory_space<vmem>>, vector<1x32x32xbf16>
    %436 = vector.shape_cast %435 : vector<1x32x32xbf16> to vector<32x32xbf16>
    %cst_255 = arith.constant dense<0.000000e+00> : vector<9x32xf32>
    %437 = tpu.matmul %433, %436, %cst_255 {dimension_numbers = #tpu.dot_dimension_numbers<[1], [0], [0], [1], [0, 0, 1, 1], [], []>} : vector<9x32xbf16>, vector<32x32xbf16>, vector<9x32xf32> -> vector<9x32xf32>
    %c6_256 = arith.constant 6 : index
    %c0_257 = arith.constant 0 : index
    %c0_258 = arith.constant 0 : index
    %438 = vector.load %arg6[%c6_256, %c0_257, %c0_258] : memref<12x1x32xf32, #tpu.memory_space<vmem>>, vector<1x1x32xf32>
    %439 = vector.shape_cast %438 : vector<1x1x32xf32> to vector<1x32xf32>
    %440 = vector.broadcast %439 : vector<1x32xf32> to vector<9x32xf32>
    %441 = arith.addf %437, %440 : vector<9x32xf32>
    %c7_259 = arith.constant 7 : index
    %c0_260 = arith.constant 0 : index
    %c0_261 = arith.constant 0 : index
    %442 = vector.load %arg5[%c7_259, %c0_260, %c0_261] : memref<12x32x32xbf16, #tpu.memory_space<vmem>>, vector<1x32x32xbf16>
    %443 = vector.shape_cast %442 : vector<1x32x32xbf16> to vector<32x32xbf16>
    %cst_262 = arith.constant dense<0.000000e+00> : vector<9x32xf32>
    %444 = tpu.matmul %434, %443, %cst_262 {dimension_numbers = #tpu.dot_dimension_numbers<[1], [0], [0], [1], [0, 0, 1, 1], [], []>} : vector<9x32xbf16>, vector<32x32xbf16>, vector<9x32xf32> -> vector<9x32xf32>
    %c7_263 = arith.constant 7 : index
    %c0_264 = arith.constant 0 : index
    %c0_265 = arith.constant 0 : index
    %445 = vector.load %arg6[%c7_263, %c0_264, %c0_265] : memref<12x1x32xf32, #tpu.memory_space<vmem>>, vector<1x1x32xf32>
    %446 = vector.shape_cast %445 : vector<1x1x32xf32> to vector<1x32xf32>
    %447 = vector.broadcast %446 : vector<1x32xf32> to vector<9x32xf32>
    %448 = arith.addf %444, %447 : vector<9x32xf32>
    %c8_266 = arith.constant 8 : index
    %c0_267 = arith.constant 0 : index
    %c0_268 = arith.constant 0 : index
    %449 = vector.load %arg5[%c8_266, %c0_267, %c0_268] : memref<12x32x32xbf16, #tpu.memory_space<vmem>>, vector<1x32x32xbf16>
    %450 = vector.shape_cast %449 : vector<1x32x32xbf16> to vector<32x32xbf16>
    %cst_269 = arith.constant dense<0.000000e+00> : vector<9x32xf32>
    %451 = tpu.matmul %434, %450, %cst_269 {dimension_numbers = #tpu.dot_dimension_numbers<[1], [0], [0], [1], [0, 0, 1, 1], [], []>} : vector<9x32xbf16>, vector<32x32xbf16>, vector<9x32xf32> -> vector<9x32xf32>
    %c8_270 = arith.constant 8 : index
    %c0_271 = arith.constant 0 : index
    %c0_272 = arith.constant 0 : index
    %452 = vector.load %arg6[%c8_270, %c0_271, %c0_272] : memref<12x1x32xf32, #tpu.memory_space<vmem>>, vector<1x1x32xf32>
    %453 = vector.shape_cast %452 : vector<1x1x32xf32> to vector<1x32xf32>
    %454 = vector.broadcast %453 : vector<1x32xf32> to vector<9x32xf32>
    %455 = arith.addf %451, %454 : vector<9x32xf32>
    %456 = arith.truncf %441 : vector<9x32xf32> to vector<9x32xbf16>
    %457 = arith.truncf %448 : vector<9x32xf32> to vector<9x32xbf16>
    %cst_273 = arith.constant dense<0.000000e+00> : vector<9x9xf32>
    %458 = tpu.matmul %456, %457, %cst_273 {dimension_numbers = #tpu.dot_dimension_numbers<[1], [1], [0], [0], [0, 0, 1, 0], [], []>} : vector<9x32xbf16>, vector<9x32xbf16>, vector<9x9xf32> -> vector<9x9xf32>
    %cst_274 = arith.constant 0.176776692 : f32
    %459 = vector.broadcast %cst_274 : f32 to vector<9x9xf32>
    %460 = arith.mulf %458, %459 : vector<9x9xf32>
    %cst_275 = arith.constant 5.000000e-01 : f32
    %461 = vector.broadcast %cst_275 : f32 to vector<1x9xf32>
    %462 = arith.cmpf ogt, %7, %461 : vector<1x9xf32>
    %cst_276 = arith.constant -1.000000e+09 : f32
    %463 = vector.shape_cast %462 : vector<1x9xi1> to vector<1x9xi1>
    %464 = vector.broadcast %463 : vector<1x9xi1> to vector<9x9xi1>
    %465 = vector.broadcast %cst_276 : f32 to vector<9x9xf32>
    %466 = arith.select %464, %460, %465 : vector<9x9xi1>, vector<9x9xf32>
    %cst_277 = arith.constant dense<0xFF800000> : vector<9xf32>
    %467 = vector.multi_reduction <maximumf>, %466, %cst_277 [1] : vector<9x9xf32> to vector<9xf32>
    %468 = vector.shape_cast %467 : vector<9xf32> to vector<9x1xf32>
    %469 = vector.broadcast %468 : vector<9x1xf32> to vector<9x9xf32>
    %470 = arith.subf %466, %469 : vector<9x9xf32>
    %471 = math.exp %470 : vector<9x9xf32>
    %cst_278 = arith.constant dense<0.000000e+00> : vector<9xf32>
    %472 = vector.multi_reduction <add>, %471, %cst_278 [1] : vector<9x9xf32> to vector<9xf32>
    %473 = vector.shape_cast %472 : vector<9xf32> to vector<9x1xf32>
    %474 = vector.broadcast %473 : vector<9x1xf32> to vector<9x9xf32>
    %475 = arith.divf %471, %474 : vector<9x9xf32>
    %476 = arith.truncf %475 : vector<9x9xf32> to vector<9x9xbf16>
    %477 = arith.truncf %455 : vector<9x32xf32> to vector<9x32xbf16>
    %cst_279 = arith.constant dense<0.000000e+00> : vector<9x32xf32>
    %478 = tpu.matmul %476, %477, %cst_279 {dimension_numbers = #tpu.dot_dimension_numbers<[1], [0], [0], [1], [0, 0, 1, 1], [], []>} : vector<9x9xbf16>, vector<9x32xbf16>, vector<9x32xf32> -> vector<9x32xf32>
    %c4_280 = arith.constant 4 : index
    %c0_281 = arith.constant 0 : index
    %c0_282 = arith.constant 0 : index
    %479 = vector.load %arg7[%c4_280, %c0_281, %c0_282] : memref<8x32x32xbf16, #tpu.memory_space<vmem>>, vector<1x32x32xbf16>
    %480 = vector.shape_cast %479 : vector<1x32x32xbf16> to vector<32x32xbf16>
    %cst_283 = arith.constant dense<0.000000e+00> : vector<9x32xf32>
    %481 = tpu.matmul %433, %480, %cst_283 {dimension_numbers = #tpu.dot_dimension_numbers<[1], [0], [0], [1], [0, 0, 1, 1], [], []>} : vector<9x32xbf16>, vector<32x32xbf16>, vector<9x32xf32> -> vector<9x32xf32>
    %482 = arith.truncf %478 : vector<9x32xf32> to vector<9x32xbf16>
    %c5_284 = arith.constant 5 : index
    %c0_285 = arith.constant 0 : index
    %c0_286 = arith.constant 0 : index
    %483 = vector.load %arg7[%c5_284, %c0_285, %c0_286] : memref<8x32x32xbf16, #tpu.memory_space<vmem>>, vector<1x32x32xbf16>
    %484 = vector.shape_cast %483 : vector<1x32x32xbf16> to vector<32x32xbf16>
    %cst_287 = arith.constant dense<0.000000e+00> : vector<9x32xf32>
    %485 = tpu.matmul %482, %484, %cst_287 {dimension_numbers = #tpu.dot_dimension_numbers<[1], [0], [0], [1], [0, 0, 1, 1], [], []>} : vector<9x32xbf16>, vector<32x32xbf16>, vector<9x32xf32> -> vector<9x32xf32>
    %486 = arith.addf %481, %485 : vector<9x32xf32>
    %c2_288 = arith.constant 2 : index
    %c0_289 = arith.constant 0 : index
    %c0_290 = arith.constant 0 : index
    %487 = vector.load %arg8[%c2_288, %c0_289, %c0_290] : memref<4x1x32xf32, #tpu.memory_space<vmem>>, vector<1x1x32xf32>
    %488 = vector.shape_cast %487 : vector<1x1x32xf32> to vector<1x32xf32>
    %489 = vector.broadcast %488 : vector<1x32xf32> to vector<9x32xf32>
    %490 = arith.addf %486, %489 : vector<9x32xf32>
    %cst_291 = arith.constant dense<0.000000e+00> : vector<9xf32>
    %491 = vector.multi_reduction <add>, %490, %cst_291 [1] : vector<9x32xf32> to vector<9xf32>
    %492 = vector.shape_cast %491 : vector<9xf32> to vector<9x1xf32>
    %cst_292 = arith.constant 3.200000e+01 : f32
    %493 = vector.broadcast %cst_292 : f32 to vector<9x1xf32>
    %494 = arith.divf %492, %493 : vector<9x1xf32>
    %495 = vector.broadcast %494 : vector<9x1xf32> to vector<9x32xf32>
    %496 = arith.subf %490, %495 : vector<9x32xf32>
    %497 = arith.mulf %496, %496 : vector<9x32xf32>
    %cst_293 = arith.constant dense<0.000000e+00> : vector<9xf32>
    %498 = vector.multi_reduction <add>, %497, %cst_293 [1] : vector<9x32xf32> to vector<9xf32>
    %499 = vector.shape_cast %498 : vector<9xf32> to vector<9x1xf32>
    %cst_294 = arith.constant 3.200000e+01 : f32
    %500 = vector.broadcast %cst_294 : f32 to vector<9x1xf32>
    %501 = arith.divf %499, %500 : vector<9x1xf32>
    %502 = vector.broadcast %494 : vector<9x1xf32> to vector<9x32xf32>
    %503 = arith.subf %490, %502 : vector<9x32xf32>
    %cst_295 = arith.constant 9.99999974E-6 : f32
    %504 = vector.broadcast %cst_295 : f32 to vector<9x1xf32>
    %505 = arith.addf %501, %504 : vector<9x1xf32>
    %506 = math.rsqrt %505 : vector<9x1xf32>
    %507 = vector.broadcast %506 : vector<9x1xf32> to vector<9x32xf32>
    %508 = arith.mulf %503, %507 : vector<9x32xf32>
    %c2_296 = arith.constant 2 : index
    %c0_297 = arith.constant 0 : index
    %c0_298 = arith.constant 0 : index
    %509 = vector.load %arg9[%c2_296, %c0_297, %c0_298] : memref<4x1x32xf32, #tpu.memory_space<vmem>>, vector<1x1x32xf32>
    %510 = vector.shape_cast %509 : vector<1x1x32xf32> to vector<1x32xf32>
    %511 = vector.broadcast %510 : vector<1x32xf32> to vector<9x32xf32>
    %512 = arith.mulf %508, %511 : vector<9x32xf32>
    %c2_299 = arith.constant 2 : index
    %c0_300 = arith.constant 0 : index
    %c0_301 = arith.constant 0 : index
    %513 = vector.load %arg10[%c2_299, %c0_300, %c0_301] : memref<4x1x32xf32, #tpu.memory_space<vmem>>, vector<1x1x32xf32>
    %514 = vector.shape_cast %513 : vector<1x1x32xf32> to vector<1x32xf32>
    %515 = vector.broadcast %514 : vector<1x32xf32> to vector<9x32xf32>
    %516 = arith.addf %512, %515 : vector<9x32xf32>
    %517 = arith.addf %347, %516 : vector<9x32xf32>
    %518 = arith.truncf %432 : vector<9x32xf32> to vector<9x32xbf16>
    %519 = arith.truncf %517 : vector<9x32xf32> to vector<9x32xbf16>
    %c9 = arith.constant 9 : index
    %c0_302 = arith.constant 0 : index
    %c0_303 = arith.constant 0 : index
    %520 = vector.load %arg5[%c9, %c0_302, %c0_303] : memref<12x32x32xbf16, #tpu.memory_space<vmem>>, vector<1x32x32xbf16>
    %521 = vector.shape_cast %520 : vector<1x32x32xbf16> to vector<32x32xbf16>
    %cst_304 = arith.constant dense<0.000000e+00> : vector<9x32xf32>
    %522 = tpu.matmul %518, %521, %cst_304 {dimension_numbers = #tpu.dot_dimension_numbers<[1], [0], [0], [1], [0, 0, 1, 1], [], []>} : vector<9x32xbf16>, vector<32x32xbf16>, vector<9x32xf32> -> vector<9x32xf32>
    %c9_305 = arith.constant 9 : index
    %c0_306 = arith.constant 0 : index
    %c0_307 = arith.constant 0 : index
    %523 = vector.load %arg6[%c9_305, %c0_306, %c0_307] : memref<12x1x32xf32, #tpu.memory_space<vmem>>, vector<1x1x32xf32>
    %524 = vector.shape_cast %523 : vector<1x1x32xf32> to vector<1x32xf32>
    %525 = vector.broadcast %524 : vector<1x32xf32> to vector<9x32xf32>
    %526 = arith.addf %522, %525 : vector<9x32xf32>
    %c10 = arith.constant 10 : index
    %c0_308 = arith.constant 0 : index
    %c0_309 = arith.constant 0 : index
    %527 = vector.load %arg5[%c10, %c0_308, %c0_309] : memref<12x32x32xbf16, #tpu.memory_space<vmem>>, vector<1x32x32xbf16>
    %528 = vector.shape_cast %527 : vector<1x32x32xbf16> to vector<32x32xbf16>
    %cst_310 = arith.constant dense<0.000000e+00> : vector<9x32xf32>
    %529 = tpu.matmul %519, %528, %cst_310 {dimension_numbers = #tpu.dot_dimension_numbers<[1], [0], [0], [1], [0, 0, 1, 1], [], []>} : vector<9x32xbf16>, vector<32x32xbf16>, vector<9x32xf32> -> vector<9x32xf32>
    %c10_311 = arith.constant 10 : index
    %c0_312 = arith.constant 0 : index
    %c0_313 = arith.constant 0 : index
    %530 = vector.load %arg6[%c10_311, %c0_312, %c0_313] : memref<12x1x32xf32, #tpu.memory_space<vmem>>, vector<1x1x32xf32>
    %531 = vector.shape_cast %530 : vector<1x1x32xf32> to vector<1x32xf32>
    %532 = vector.broadcast %531 : vector<1x32xf32> to vector<9x32xf32>
    %533 = arith.addf %529, %532 : vector<9x32xf32>
    %c11 = arith.constant 11 : index
    %c0_314 = arith.constant 0 : index
    %c0_315 = arith.constant 0 : index
    %534 = vector.load %arg5[%c11, %c0_314, %c0_315] : memref<12x32x32xbf16, #tpu.memory_space<vmem>>, vector<1x32x32xbf16>
    %535 = vector.shape_cast %534 : vector<1x32x32xbf16> to vector<32x32xbf16>
    %cst_316 = arith.constant dense<0.000000e+00> : vector<9x32xf32>
    %536 = tpu.matmul %519, %535, %cst_316 {dimension_numbers = #tpu.dot_dimension_numbers<[1], [0], [0], [1], [0, 0, 1, 1], [], []>} : vector<9x32xbf16>, vector<32x32xbf16>, vector<9x32xf32> -> vector<9x32xf32>
    %c11_317 = arith.constant 11 : index
    %c0_318 = arith.constant 0 : index
    %c0_319 = arith.constant 0 : index
    %537 = vector.load %arg6[%c11_317, %c0_318, %c0_319] : memref<12x1x32xf32, #tpu.memory_space<vmem>>, vector<1x1x32xf32>
    %538 = vector.shape_cast %537 : vector<1x1x32xf32> to vector<1x32xf32>
    %539 = vector.broadcast %538 : vector<1x32xf32> to vector<9x32xf32>
    %540 = arith.addf %536, %539 : vector<9x32xf32>
    %541 = arith.truncf %526 : vector<9x32xf32> to vector<9x32xbf16>
    %542 = arith.truncf %533 : vector<9x32xf32> to vector<9x32xbf16>
    %cst_320 = arith.constant dense<0.000000e+00> : vector<9x9xf32>
    %543 = tpu.matmul %541, %542, %cst_320 {dimension_numbers = #tpu.dot_dimension_numbers<[1], [1], [0], [0], [0, 0, 1, 0], [], []>} : vector<9x32xbf16>, vector<9x32xbf16>, vector<9x9xf32> -> vector<9x9xf32>
    %cst_321 = arith.constant 0.176776692 : f32
    %544 = vector.broadcast %cst_321 : f32 to vector<9x9xf32>
    %545 = arith.mulf %543, %544 : vector<9x9xf32>
    %cst_322 = arith.constant 5.000000e-01 : f32
    %546 = vector.broadcast %cst_322 : f32 to vector<1x9xf32>
    %547 = arith.cmpf ogt, %7, %546 : vector<1x9xf32>
    %cst_323 = arith.constant -1.000000e+09 : f32
    %548 = vector.shape_cast %547 : vector<1x9xi1> to vector<1x9xi1>
    %549 = vector.broadcast %548 : vector<1x9xi1> to vector<9x9xi1>
    %550 = vector.broadcast %cst_323 : f32 to vector<9x9xf32>
    %551 = arith.select %549, %545, %550 : vector<9x9xi1>, vector<9x9xf32>
    %cst_324 = arith.constant dense<0xFF800000> : vector<9xf32>
    %552 = vector.multi_reduction <maximumf>, %551, %cst_324 [1] : vector<9x9xf32> to vector<9xf32>
    %553 = vector.shape_cast %552 : vector<9xf32> to vector<9x1xf32>
    %554 = vector.broadcast %553 : vector<9x1xf32> to vector<9x9xf32>
    %555 = arith.subf %551, %554 : vector<9x9xf32>
    %556 = math.exp %555 : vector<9x9xf32>
    %cst_325 = arith.constant dense<0.000000e+00> : vector<9xf32>
    %557 = vector.multi_reduction <add>, %556, %cst_325 [1] : vector<9x9xf32> to vector<9xf32>
    %558 = vector.shape_cast %557 : vector<9xf32> to vector<9x1xf32>
    %559 = vector.broadcast %558 : vector<9x1xf32> to vector<9x9xf32>
    %560 = arith.divf %556, %559 : vector<9x9xf32>
    %561 = arith.truncf %560 : vector<9x9xf32> to vector<9x9xbf16>
    %562 = arith.truncf %540 : vector<9x32xf32> to vector<9x32xbf16>
    %cst_326 = arith.constant dense<0.000000e+00> : vector<9x32xf32>
    %563 = tpu.matmul %561, %562, %cst_326 {dimension_numbers = #tpu.dot_dimension_numbers<[1], [0], [0], [1], [0, 0, 1, 1], [], []>} : vector<9x9xbf16>, vector<9x32xbf16>, vector<9x32xf32> -> vector<9x32xf32>
    %c6_327 = arith.constant 6 : index
    %c0_328 = arith.constant 0 : index
    %c0_329 = arith.constant 0 : index
    %564 = vector.load %arg7[%c6_327, %c0_328, %c0_329] : memref<8x32x32xbf16, #tpu.memory_space<vmem>>, vector<1x32x32xbf16>
    %565 = vector.shape_cast %564 : vector<1x32x32xbf16> to vector<32x32xbf16>
    %cst_330 = arith.constant dense<0.000000e+00> : vector<9x32xf32>
    %566 = tpu.matmul %518, %565, %cst_330 {dimension_numbers = #tpu.dot_dimension_numbers<[1], [0], [0], [1], [0, 0, 1, 1], [], []>} : vector<9x32xbf16>, vector<32x32xbf16>, vector<9x32xf32> -> vector<9x32xf32>
    %567 = arith.truncf %563 : vector<9x32xf32> to vector<9x32xbf16>
    %c7_331 = arith.constant 7 : index
    %c0_332 = arith.constant 0 : index
    %c0_333 = arith.constant 0 : index
    %568 = vector.load %arg7[%c7_331, %c0_332, %c0_333] : memref<8x32x32xbf16, #tpu.memory_space<vmem>>, vector<1x32x32xbf16>
    %569 = vector.shape_cast %568 : vector<1x32x32xbf16> to vector<32x32xbf16>
    %cst_334 = arith.constant dense<0.000000e+00> : vector<9x32xf32>
    %570 = tpu.matmul %567, %569, %cst_334 {dimension_numbers = #tpu.dot_dimension_numbers<[1], [0], [0], [1], [0, 0, 1, 1], [], []>} : vector<9x32xbf16>, vector<32x32xbf16>, vector<9x32xf32> -> vector<9x32xf32>
    %571 = arith.addf %566, %570 : vector<9x32xf32>
    %c3_335 = arith.constant 3 : index
    %c0_336 = arith.constant 0 : index
    %c0_337 = arith.constant 0 : index
    %572 = vector.load %arg8[%c3_335, %c0_336, %c0_337] : memref<4x1x32xf32, #tpu.memory_space<vmem>>, vector<1x1x32xf32>
    %573 = vector.shape_cast %572 : vector<1x1x32xf32> to vector<1x32xf32>
    %574 = vector.broadcast %573 : vector<1x32xf32> to vector<9x32xf32>
    %575 = arith.addf %571, %574 : vector<9x32xf32>
    %cst_338 = arith.constant dense<0.000000e+00> : vector<9xf32>
    %576 = vector.multi_reduction <add>, %575, %cst_338 [1] : vector<9x32xf32> to vector<9xf32>
    %577 = vector.shape_cast %576 : vector<9xf32> to vector<9x1xf32>
    %cst_339 = arith.constant 3.200000e+01 : f32
    %578 = vector.broadcast %cst_339 : f32 to vector<9x1xf32>
    %579 = arith.divf %577, %578 : vector<9x1xf32>
    %580 = vector.broadcast %579 : vector<9x1xf32> to vector<9x32xf32>
    %581 = arith.subf %575, %580 : vector<9x32xf32>
    %582 = arith.mulf %581, %581 : vector<9x32xf32>
    %cst_340 = arith.constant dense<0.000000e+00> : vector<9xf32>
    %583 = vector.multi_reduction <add>, %582, %cst_340 [1] : vector<9x32xf32> to vector<9xf32>
    %584 = vector.shape_cast %583 : vector<9xf32> to vector<9x1xf32>
    %cst_341 = arith.constant 3.200000e+01 : f32
    %585 = vector.broadcast %cst_341 : f32 to vector<9x1xf32>
    %586 = arith.divf %584, %585 : vector<9x1xf32>
    %587 = vector.broadcast %579 : vector<9x1xf32> to vector<9x32xf32>
    %588 = arith.subf %575, %587 : vector<9x32xf32>
    %cst_342 = arith.constant 9.99999974E-6 : f32
    %589 = vector.broadcast %cst_342 : f32 to vector<9x1xf32>
    %590 = arith.addf %586, %589 : vector<9x1xf32>
    %591 = math.rsqrt %590 : vector<9x1xf32>
    %592 = vector.broadcast %591 : vector<9x1xf32> to vector<9x32xf32>
    %593 = arith.mulf %588, %592 : vector<9x32xf32>
    %c3_343 = arith.constant 3 : index
    %c0_344 = arith.constant 0 : index
    %c0_345 = arith.constant 0 : index
    %594 = vector.load %arg9[%c3_343, %c0_344, %c0_345] : memref<4x1x32xf32, #tpu.memory_space<vmem>>, vector<1x1x32xf32>
    %595 = vector.shape_cast %594 : vector<1x1x32xf32> to vector<1x32xf32>
    %596 = vector.broadcast %595 : vector<1x32xf32> to vector<9x32xf32>
    %597 = arith.mulf %593, %596 : vector<9x32xf32>
    %c3_346 = arith.constant 3 : index
    %c0_347 = arith.constant 0 : index
    %c0_348 = arith.constant 0 : index
    %598 = vector.load %arg10[%c3_346, %c0_347, %c0_348] : memref<4x1x32xf32, #tpu.memory_space<vmem>>, vector<1x1x32xf32>
    %599 = vector.shape_cast %598 : vector<1x1x32xf32> to vector<1x32xf32>
    %600 = vector.broadcast %599 : vector<1x32xf32> to vector<9x32xf32>
    %601 = arith.addf %597, %600 : vector<9x32xf32>
    %602 = arith.addf %432, %601 : vector<9x32xf32>
    %603 = arith.truncf %517 : vector<9x32xf32> to vector<9x32xbf16>
    %604 = arith.truncf %432 : vector<9x32xf32> to vector<9x32xbf16>
    %c9_349 = arith.constant 9 : index
    %c0_350 = arith.constant 0 : index
    %c0_351 = arith.constant 0 : index
    %605 = vector.load %arg5[%c9_349, %c0_350, %c0_351] : memref<12x32x32xbf16, #tpu.memory_space<vmem>>, vector<1x32x32xbf16>
    %606 = vector.shape_cast %605 : vector<1x32x32xbf16> to vector<32x32xbf16>
    %cst_352 = arith.constant dense<0.000000e+00> : vector<9x32xf32>
    %607 = tpu.matmul %603, %606, %cst_352 {dimension_numbers = #tpu.dot_dimension_numbers<[1], [0], [0], [1], [0, 0, 1, 1], [], []>} : vector<9x32xbf16>, vector<32x32xbf16>, vector<9x32xf32> -> vector<9x32xf32>
    %c9_353 = arith.constant 9 : index
    %c0_354 = arith.constant 0 : index
    %c0_355 = arith.constant 0 : index
    %608 = vector.load %arg6[%c9_353, %c0_354, %c0_355] : memref<12x1x32xf32, #tpu.memory_space<vmem>>, vector<1x1x32xf32>
    %609 = vector.shape_cast %608 : vector<1x1x32xf32> to vector<1x32xf32>
    %610 = vector.broadcast %609 : vector<1x32xf32> to vector<9x32xf32>
    %611 = arith.addf %607, %610 : vector<9x32xf32>
    %c10_356 = arith.constant 10 : index
    %c0_357 = arith.constant 0 : index
    %c0_358 = arith.constant 0 : index
    %612 = vector.load %arg5[%c10_356, %c0_357, %c0_358] : memref<12x32x32xbf16, #tpu.memory_space<vmem>>, vector<1x32x32xbf16>
    %613 = vector.shape_cast %612 : vector<1x32x32xbf16> to vector<32x32xbf16>
    %cst_359 = arith.constant dense<0.000000e+00> : vector<9x32xf32>
    %614 = tpu.matmul %604, %613, %cst_359 {dimension_numbers = #tpu.dot_dimension_numbers<[1], [0], [0], [1], [0, 0, 1, 1], [], []>} : vector<9x32xbf16>, vector<32x32xbf16>, vector<9x32xf32> -> vector<9x32xf32>
    %c10_360 = arith.constant 10 : index
    %c0_361 = arith.constant 0 : index
    %c0_362 = arith.constant 0 : index
    %615 = vector.load %arg6[%c10_360, %c0_361, %c0_362] : memref<12x1x32xf32, #tpu.memory_space<vmem>>, vector<1x1x32xf32>
    %616 = vector.shape_cast %615 : vector<1x1x32xf32> to vector<1x32xf32>
    %617 = vector.broadcast %616 : vector<1x32xf32> to vector<9x32xf32>
    %618 = arith.addf %614, %617 : vector<9x32xf32>
    %c11_363 = arith.constant 11 : index
    %c0_364 = arith.constant 0 : index
    %c0_365 = arith.constant 0 : index
    %619 = vector.load %arg5[%c11_363, %c0_364, %c0_365] : memref<12x32x32xbf16, #tpu.memory_space<vmem>>, vector<1x32x32xbf16>
    %620 = vector.shape_cast %619 : vector<1x32x32xbf16> to vector<32x32xbf16>
    %cst_366 = arith.constant dense<0.000000e+00> : vector<9x32xf32>
    %621 = tpu.matmul %604, %620, %cst_366 {dimension_numbers = #tpu.dot_dimension_numbers<[1], [0], [0], [1], [0, 0, 1, 1], [], []>} : vector<9x32xbf16>, vector<32x32xbf16>, vector<9x32xf32> -> vector<9x32xf32>
    %c11_367 = arith.constant 11 : index
    %c0_368 = arith.constant 0 : index
    %c0_369 = arith.constant 0 : index
    %622 = vector.load %arg6[%c11_367, %c0_368, %c0_369] : memref<12x1x32xf32, #tpu.memory_space<vmem>>, vector<1x1x32xf32>
    %623 = vector.shape_cast %622 : vector<1x1x32xf32> to vector<1x32xf32>
    %624 = vector.broadcast %623 : vector<1x32xf32> to vector<9x32xf32>
    %625 = arith.addf %621, %624 : vector<9x32xf32>
    %626 = arith.truncf %611 : vector<9x32xf32> to vector<9x32xbf16>
    %627 = arith.truncf %618 : vector<9x32xf32> to vector<9x32xbf16>
    %cst_370 = arith.constant dense<0.000000e+00> : vector<9x9xf32>
    %628 = tpu.matmul %626, %627, %cst_370 {dimension_numbers = #tpu.dot_dimension_numbers<[1], [1], [0], [0], [0, 0, 1, 0], [], []>} : vector<9x32xbf16>, vector<9x32xbf16>, vector<9x9xf32> -> vector<9x9xf32>
    %cst_371 = arith.constant 0.176776692 : f32
    %629 = vector.broadcast %cst_371 : f32 to vector<9x9xf32>
    %630 = arith.mulf %628, %629 : vector<9x9xf32>
    %cst_372 = arith.constant 5.000000e-01 : f32
    %631 = vector.broadcast %cst_372 : f32 to vector<1x9xf32>
    %632 = arith.cmpf ogt, %5, %631 : vector<1x9xf32>
    %cst_373 = arith.constant -1.000000e+09 : f32
    %633 = vector.shape_cast %632 : vector<1x9xi1> to vector<1x9xi1>
    %634 = vector.broadcast %633 : vector<1x9xi1> to vector<9x9xi1>
    %635 = vector.broadcast %cst_373 : f32 to vector<9x9xf32>
    %636 = arith.select %634, %630, %635 : vector<9x9xi1>, vector<9x9xf32>
    %cst_374 = arith.constant dense<0xFF800000> : vector<9xf32>
    %637 = vector.multi_reduction <maximumf>, %636, %cst_374 [1] : vector<9x9xf32> to vector<9xf32>
    %638 = vector.shape_cast %637 : vector<9xf32> to vector<9x1xf32>
    %639 = vector.broadcast %638 : vector<9x1xf32> to vector<9x9xf32>
    %640 = arith.subf %636, %639 : vector<9x9xf32>
    %641 = math.exp %640 : vector<9x9xf32>
    %cst_375 = arith.constant dense<0.000000e+00> : vector<9xf32>
    %642 = vector.multi_reduction <add>, %641, %cst_375 [1] : vector<9x9xf32> to vector<9xf32>
    %643 = vector.shape_cast %642 : vector<9xf32> to vector<9x1xf32>
    %644 = vector.broadcast %643 : vector<9x1xf32> to vector<9x9xf32>
    %645 = arith.divf %641, %644 : vector<9x9xf32>
    %646 = arith.truncf %645 : vector<9x9xf32> to vector<9x9xbf16>
    %647 = arith.truncf %625 : vector<9x32xf32> to vector<9x32xbf16>
    %cst_376 = arith.constant dense<0.000000e+00> : vector<9x32xf32>
    %648 = tpu.matmul %646, %647, %cst_376 {dimension_numbers = #tpu.dot_dimension_numbers<[1], [0], [0], [1], [0, 0, 1, 1], [], []>} : vector<9x9xbf16>, vector<9x32xbf16>, vector<9x32xf32> -> vector<9x32xf32>
    %c6_377 = arith.constant 6 : index
    %c0_378 = arith.constant 0 : index
    %c0_379 = arith.constant 0 : index
    %649 = vector.load %arg7[%c6_377, %c0_378, %c0_379] : memref<8x32x32xbf16, #tpu.memory_space<vmem>>, vector<1x32x32xbf16>
    %650 = vector.shape_cast %649 : vector<1x32x32xbf16> to vector<32x32xbf16>
    %cst_380 = arith.constant dense<0.000000e+00> : vector<9x32xf32>
    %651 = tpu.matmul %603, %650, %cst_380 {dimension_numbers = #tpu.dot_dimension_numbers<[1], [0], [0], [1], [0, 0, 1, 1], [], []>} : vector<9x32xbf16>, vector<32x32xbf16>, vector<9x32xf32> -> vector<9x32xf32>
    %652 = arith.truncf %648 : vector<9x32xf32> to vector<9x32xbf16>
    %c7_381 = arith.constant 7 : index
    %c0_382 = arith.constant 0 : index
    %c0_383 = arith.constant 0 : index
    %653 = vector.load %arg7[%c7_381, %c0_382, %c0_383] : memref<8x32x32xbf16, #tpu.memory_space<vmem>>, vector<1x32x32xbf16>
    %654 = vector.shape_cast %653 : vector<1x32x32xbf16> to vector<32x32xbf16>
    %cst_384 = arith.constant dense<0.000000e+00> : vector<9x32xf32>
    %655 = tpu.matmul %652, %654, %cst_384 {dimension_numbers = #tpu.dot_dimension_numbers<[1], [0], [0], [1], [0, 0, 1, 1], [], []>} : vector<9x32xbf16>, vector<32x32xbf16>, vector<9x32xf32> -> vector<9x32xf32>
    %656 = arith.addf %651, %655 : vector<9x32xf32>
    %c3_385 = arith.constant 3 : index
    %c0_386 = arith.constant 0 : index
    %c0_387 = arith.constant 0 : index
    %657 = vector.load %arg8[%c3_385, %c0_386, %c0_387] : memref<4x1x32xf32, #tpu.memory_space<vmem>>, vector<1x1x32xf32>
    %658 = vector.shape_cast %657 : vector<1x1x32xf32> to vector<1x32xf32>
    %659 = vector.broadcast %658 : vector<1x32xf32> to vector<9x32xf32>
    %660 = arith.addf %656, %659 : vector<9x32xf32>
    %cst_388 = arith.constant dense<0.000000e+00> : vector<9xf32>
    %661 = vector.multi_reduction <add>, %660, %cst_388 [1] : vector<9x32xf32> to vector<9xf32>
    %662 = vector.shape_cast %661 : vector<9xf32> to vector<9x1xf32>
    %cst_389 = arith.constant 3.200000e+01 : f32
    %663 = vector.broadcast %cst_389 : f32 to vector<9x1xf32>
    %664 = arith.divf %662, %663 : vector<9x1xf32>
    %665 = vector.broadcast %664 : vector<9x1xf32> to vector<9x32xf32>
    %666 = arith.subf %660, %665 : vector<9x32xf32>
    %667 = arith.mulf %666, %666 : vector<9x32xf32>
    %cst_390 = arith.constant dense<0.000000e+00> : vector<9xf32>
    %668 = vector.multi_reduction <add>, %667, %cst_390 [1] : vector<9x32xf32> to vector<9xf32>
    %669 = vector.shape_cast %668 : vector<9xf32> to vector<9x1xf32>
    %cst_391 = arith.constant 3.200000e+01 : f32
    %670 = vector.broadcast %cst_391 : f32 to vector<9x1xf32>
    %671 = arith.divf %669, %670 : vector<9x1xf32>
    %672 = vector.broadcast %664 : vector<9x1xf32> to vector<9x32xf32>
    %673 = arith.subf %660, %672 : vector<9x32xf32>
    %cst_392 = arith.constant 9.99999974E-6 : f32
    %674 = vector.broadcast %cst_392 : f32 to vector<9x1xf32>
    %675 = arith.addf %671, %674 : vector<9x1xf32>
    %676 = math.rsqrt %675 : vector<9x1xf32>
    %677 = vector.broadcast %676 : vector<9x1xf32> to vector<9x32xf32>
    %678 = arith.mulf %673, %677 : vector<9x32xf32>
    %c3_393 = arith.constant 3 : index
    %c0_394 = arith.constant 0 : index
    %c0_395 = arith.constant 0 : index
    %679 = vector.load %arg9[%c3_393, %c0_394, %c0_395] : memref<4x1x32xf32, #tpu.memory_space<vmem>>, vector<1x1x32xf32>
    %680 = vector.shape_cast %679 : vector<1x1x32xf32> to vector<1x32xf32>
    %681 = vector.broadcast %680 : vector<1x32xf32> to vector<9x32xf32>
    %682 = arith.mulf %678, %681 : vector<9x32xf32>
    %c3_396 = arith.constant 3 : index
    %c0_397 = arith.constant 0 : index
    %c0_398 = arith.constant 0 : index
    %683 = vector.load %arg10[%c3_396, %c0_397, %c0_398] : memref<4x1x32xf32, #tpu.memory_space<vmem>>, vector<1x1x32xf32>
    %684 = vector.shape_cast %683 : vector<1x1x32xf32> to vector<1x32xf32>
    %685 = vector.broadcast %684 : vector<1x32xf32> to vector<9x32xf32>
    %686 = arith.addf %682, %685 : vector<9x32xf32>
    %687 = arith.addf %517, %686 : vector<9x32xf32>
    %c0_399 = arith.constant 0 : index
    %c0_400 = arith.constant 0 : index
    %c0_401 = arith.constant 0 : index
    %688 = vector.load %arg11[%c0_399, %c0_400, %c0_401] : memref<1x9x32xf32, #tpu.memory_space<vmem>>, vector<1x9x32xf32>
    %689 = vector.shape_cast %688 : vector<1x9x32xf32> to vector<9x32xf32>
    %690 = vector.shape_cast %602 : vector<9x32xf32> to vector<1x9x32xf32>
    tpu.vector_store %arg11[%c0_399, %c0_400, %c0_401], %690 {strides = array<i32>} : memref<1x9x32xf32, #tpu.memory_space<vmem>>, vector<1x9x32xf32>,
    %c0_402 = arith.constant 0 : index
    %c0_403 = arith.constant 0 : index
    %c0_404 = arith.constant 0 : index
    %691 = vector.load %arg12[%c0_402, %c0_403, %c0_404] : memref<1x9x32xf32, #tpu.memory_space<vmem>>, vector<1x9x32xf32>
    %692 = vector.shape_cast %691 : vector<1x9x32xf32> to vector<9x32xf32>
    %693 = vector.shape_cast %687 : vector<9x32xf32> to vector<1x9x32xf32>
    tpu.vector_store %arg12[%c0_402, %c0_403, %c0_404], %693 {strides = array<i32>} : memref<1x9x32xf32, #tpu.memory_space<vmem>>, vector<1x9x32xf32>,
    return
  }
  func.func @transform_0(%arg0: i32) -> (i32, i32, i32) {
    %c0_i32 = arith.constant 0 : i32
    %c0_i32_0 = arith.constant 0 : i32
    %c0_i32_1 = arith.constant 0 : i32
    return %arg0, %c0_i32, %c0_i32_0 : i32, i32, i32
  }
  func.func @transform_1(%arg0: i32) -> (i32, i32, i32) {
    %c0_i32 = arith.constant 0 : i32
    %c0_i32_0 = arith.constant 0 : i32
    %c0_i32_1 = arith.constant 0 : i32
    return %arg0, %c0_i32, %c0_i32_0 : i32, i32, i32
  }
  func.func @transform_2(%arg0: i32) -> (i32, i32, i32) {
    %c0_i32 = arith.constant 0 : i32
    %c0_i32_0 = arith.constant 0 : i32
    %c0_i32_1 = arith.constant 0 : i32
    return %arg0, %c0_i32, %c0_i32_0 : i32, i32, i32
  }
  func.func @transform_3(%arg0: i32) -> (i32, i32, i32) {
    %c0_i32 = arith.constant 0 : i32
    %c0_i32_0 = arith.constant 0 : i32
    %c0_i32_1 = arith.constant 0 : i32
    return %arg0, %c0_i32, %c0_i32_0 : i32, i32, i32
  }
  func.func @transform_4(%arg0: i32) -> (i32, i32, i32) {
    %c0_i32 = arith.constant 0 : i32
    %c0_i32_0 = arith.constant 0 : i32
    %c0_i32_1 = arith.constant 0 : i32
    %c0_i32_2 = arith.constant 0 : i32
    return %c0_i32, %c0_i32_0, %c0_i32_1 : i32, i32, i32
  }
  func.func @transform_5(%arg0: i32) -> (i32, i32, i32) {
    %c0_i32 = arith.constant 0 : i32
    %c0_i32_0 = arith.constant 0 : i32
    %c0_i32_1 = arith.constant 0 : i32
    %c0_i32_2 = arith.constant 0 : i32
    return %c0_i32, %c0_i32_0, %c0_i32_1 : i32, i32, i32
  }
  func.func @transform_6(%arg0: i32) -> (i32, i32, i32) {
    %c0_i32 = arith.constant 0 : i32
    %c0_i32_0 = arith.constant 0 : i32
    %c0_i32_1 = arith.constant 0 : i32
    %c0_i32_2 = arith.constant 0 : i32
    return %c0_i32, %c0_i32_0, %c0_i32_1 : i32, i32, i32
  }
  func.func @transform_7(%arg0: i32) -> (i32, i32, i32) {
    %c0_i32 = arith.constant 0 : i32
    %c0_i32_0 = arith.constant 0 : i32
    %c0_i32_1 = arith.constant 0 : i32
    %c0_i32_2 = arith.constant 0 : i32
    return %c0_i32, %c0_i32_0, %c0_i32_1 : i32, i32, i32
  }
  func.func @transform_8(%arg0: i32) -> (i32, i32, i32) {
    %c0_i32 = arith.constant 0 : i32
    %c0_i32_0 = arith.constant 0 : i32
    %c0_i32_1 = arith.constant 0 : i32
    %c0_i32_2 = arith.constant 0 : i32
    return %c0_i32, %c0_i32_0, %c0_i32_1 : i32, i32, i32
  }
  func.func @transform_9(%arg0: i32) -> (i32, i32, i32) {
    %c0_i32 = arith.constant 0 : i32
    %c0_i32_0 = arith.constant 0 : i32
    %c0_i32_1 = arith.constant 0 : i32
    %c0_i32_2 = arith.constant 0 : i32
    return %c0_i32, %c0_i32_0, %c0_i32_1 : i32, i32, i32
  }
  func.func @transform_10(%arg0: i32) -> (i32, i32, i32) {
    %c0_i32 = arith.constant 0 : i32
    %c0_i32_0 = arith.constant 0 : i32
    %c0_i32_1 = arith.constant 0 : i32
    return %arg0, %c0_i32, %c0_i32_0 : i32, i32, i32
  }
  func.func @transform_11(%arg0: i32) -> (i32, i32, i32) {
    %c0_i32 = arith.constant 0 : i32
    %c0_i32_0 = arith.constant 0 : i32
    %c0_i32_1 = arith.constant 0 : i32
    return %arg0, %c0_i32, %c0_i32_0 : i32, i32, i32
  }
}

module attributes {stable_mosaic.version = 11 : i64} {
  func.func @_simgen_kernel(%arg0: i32, %arg1: i32, %arg2: memref<1x8x32xf32, #tpu.memory_space<vmem>>, %arg3: memref<1x8x32xf32, #tpu.memory_space<vmem>>, %arg4: memref<1x8x1xf32, #tpu.memory_space<vmem>>, %arg5: memref<1x1x8xf32, #tpu.memory_space<vmem>>, %arg6: memref<1x8x8xf32, #tpu.memory_space<vmem>>) attributes {dimension_semantics = [#tpu.dimension_semantics<parallel>, #tpu.dimension_semantics<parallel>], iteration_bounds = array<i64: 2, 1>, scalar_prefetch = 0 : i64, scratch_operands = 0 : i64, tpu.core_type = #tpu.core_type<tc>, window_params = [{transform_indices = @transform_0, window_bounds = array<i64: 1, 8, 32>}, {transform_indices = @transform_1, window_bounds = array<i64: 1, 8, 32>}, {transform_indices = @transform_2, window_bounds = array<i64: 1, 8, 1>}, {transform_indices = @transform_3, window_bounds = array<i64: 1, 1, 8>}, {transform_indices = @transform_4, window_bounds = array<i64: 1, 8, 8>}]} {
    %c0 = arith.constant 0 : index
    %c0_0 = arith.constant 0 : index
    %c0_1 = arith.constant 0 : index
    %0 = vector.load %arg2[%c0, %c0_0, %c0_1] : memref<1x8x32xf32, #tpu.memory_space<vmem>>, vector<1x8x32xf32>
    %1 = vector.shape_cast %0 : vector<1x8x32xf32> to vector<8x32xf32>
    %c0_2 = arith.constant 0 : index
    %c0_3 = arith.constant 0 : index
    %c0_4 = arith.constant 0 : index
    %2 = vector.load %arg3[%c0_2, %c0_3, %c0_4] : memref<1x8x32xf32, #tpu.memory_space<vmem>>, vector<1x8x32xf32>
    %3 = vector.shape_cast %2 : vector<1x8x32xf32> to vector<8x32xf32>
    %4 = arith.mulf %1, %1 : vector<8x32xf32>
    %cst = arith.constant dense<0.000000e+00> : vector<8xf32>
    %5 = vector.multi_reduction <add>, %4, %cst [1] : vector<8x32xf32> to vector<8xf32>
    %6 = vector.shape_cast %5 : vector<8xf32> to vector<8x1xf32>
    %cst_5 = arith.constant 9.99999997E-7 : f32
    %7 = vector.broadcast %cst_5 : f32 to vector<8x1xf32>
    %8 = arith.addf %6, %7 : vector<8x1xf32>
    %9 = math.rsqrt %8 : vector<8x1xf32>
    %10 = vector.broadcast %9 : vector<8x1xf32> to vector<8x32xf32>
    %11 = arith.mulf %1, %10 : vector<8x32xf32>
    %12 = arith.mulf %3, %3 : vector<8x32xf32>
    %cst_6 = arith.constant dense<0.000000e+00> : vector<8xf32>
    %13 = vector.multi_reduction <add>, %12, %cst_6 [1] : vector<8x32xf32> to vector<8xf32>
    %14 = vector.shape_cast %13 : vector<8xf32> to vector<8x1xf32>
    %cst_7 = arith.constant 9.99999997E-7 : f32
    %15 = vector.broadcast %cst_7 : f32 to vector<8x1xf32>
    %16 = arith.addf %14, %15 : vector<8x1xf32>
    %17 = math.rsqrt %16 : vector<8x1xf32>
    %18 = vector.broadcast %17 : vector<8x1xf32> to vector<8x32xf32>
    %19 = arith.mulf %3, %18 : vector<8x32xf32>
    %20 = arith.truncf %11 : vector<8x32xf32> to vector<8x32xbf16>
    %21 = arith.truncf %19 : vector<8x32xf32> to vector<8x32xbf16>
    %cst_8 = arith.constant dense<0.000000e+00> : vector<8x8xf32>
    %22 = tpu.matmul %20, %21, %cst_8 {dimension_numbers = #tpu.dot_dimension_numbers<[1], [1], [0], [0], [0, 0, 1, 0], [], []>} : vector<8x32xbf16>, vector<8x32xbf16>, vector<8x8xf32> -> vector<8x8xf32>
    %c0_9 = arith.constant 0 : index
    %c0_10 = arith.constant 0 : index
    %c0_11 = arith.constant 0 : index
    %23 = vector.load %arg4[%c0_9, %c0_10, %c0_11] : memref<1x8x1xf32, #tpu.memory_space<vmem>>, vector<1x8x1xf32>
    %24 = vector.shape_cast %23 : vector<1x8x1xf32> to vector<8x1xf32>
    %25 = vector.broadcast %24 : vector<8x1xf32> to vector<8x8xf32>
    %26 = arith.mulf %22, %25 : vector<8x8xf32>
    %c0_12 = arith.constant 0 : index
    %c0_13 = arith.constant 0 : index
    %c0_14 = arith.constant 0 : index
    %27 = vector.load %arg5[%c0_12, %c0_13, %c0_14] : memref<1x1x8xf32, #tpu.memory_space<vmem>>, vector<1x1x8xf32>
    %28 = vector.shape_cast %27 : vector<1x1x8xf32> to vector<1x8xf32>
    %29 = vector.broadcast %28 : vector<1x8xf32> to vector<8x8xf32>
    %30 = arith.mulf %26, %29 : vector<8x8xf32>
    %c0_15 = arith.constant 0 : index
    %c0_16 = arith.constant 0 : index
    %c0_17 = arith.constant 0 : index
    %31 = vector.load %arg6[%c0_15, %c0_16, %c0_17] : memref<1x8x8xf32, #tpu.memory_space<vmem>>, vector<1x8x8xf32>
    %32 = vector.shape_cast %31 : vector<1x8x8xf32> to vector<8x8xf32>
    %33 = vector.shape_cast %30 : vector<8x8xf32> to vector<1x8x8xf32>
    tpu.vector_store %arg6[%c0_15, %c0_16, %c0_17], %33 {strides = array<i32>} : memref<1x8x8xf32, #tpu.memory_space<vmem>>, vector<1x8x8xf32>,
    return
  }
  func.func @transform_0(%arg0: i32, %arg1: i32) -> (i32, i32, i32) {
    %c0_i32 = arith.constant 0 : i32
    %c0_i32_0 = arith.constant 0 : i32
    return %arg0, %arg1, %c0_i32 : i32, i32, i32
  }
  func.func @transform_1(%arg0: i32, %arg1: i32) -> (i32, i32, i32) {
    %c0_i32 = arith.constant 0 : i32
    %c0_i32_0 = arith.constant 0 : i32
    %c0_i32_1 = arith.constant 0 : i32
    return %arg0, %c0_i32, %c0_i32_0 : i32, i32, i32
  }
  func.func @transform_2(%arg0: i32, %arg1: i32) -> (i32, i32, i32) {
    %c0_i32 = arith.constant 0 : i32
    %c0_i32_0 = arith.constant 0 : i32
    return %arg0, %arg1, %c0_i32 : i32, i32, i32
  }
  func.func @transform_3(%arg0: i32, %arg1: i32) -> (i32, i32, i32) {
    %c0_i32 = arith.constant 0 : i32
    %c0_i32_0 = arith.constant 0 : i32
    %c0_i32_1 = arith.constant 0 : i32
    return %arg0, %c0_i32, %c0_i32_0 : i32, i32, i32
  }
  func.func @transform_4(%arg0: i32, %arg1: i32) -> (i32, i32, i32) {
    %c0_i32 = arith.constant 0 : i32
    %c0_i32_0 = arith.constant 0 : i32
    return %arg0, %arg1, %c0_i32 : i32, i32, i32
  }
}

module attributes {stable_mosaic.version = 11 : i64} {
  func.func @_level_det_kernel(%arg0: i32, %arg1: memref<1x32xbf16, #tpu.memory_space<vmem>>, %arg2: memref<6x1xf32, #tpu.memory_space<vmem>>, %arg3: memref<6x1xf32, #tpu.memory_space<vmem>>, %arg4: memref<6x32xf32, #tpu.memory_space<vmem>>) attributes {dimension_semantics = [#tpu.dimension_semantics<parallel>], iteration_bounds = array<i64: 1>, scalar_prefetch = 0 : i64, scratch_operands = 0 : i64, tpu.core_type = #tpu.core_type<tc>, window_params = [{transform_indices = @transform_0, window_bounds = array<i64: 1, 32>}, {pipeline_mode = #tpu.pipeline_mode<synchronous>, transform_indices = @transform_1, window_bounds = array<i64: 6, 1>}, {pipeline_mode = #tpu.pipeline_mode<synchronous>, transform_indices = @transform_2, window_bounds = array<i64: 6, 1>}, {transform_indices = @transform_3, window_bounds = array<i64: 6, 32>}]} {
    %c0 = arith.constant 0 : index
    %c0_0 = arith.constant 0 : index
    %0 = vector.load %arg1[%c0, %c0_0] : memref<1x32xbf16, #tpu.memory_space<vmem>>, vector<1x32xbf16>
    %1 = arith.extf %0 : vector<1x32xbf16> to vector<1x32xf32>
    %c0_1 = arith.constant 0 : index
    %c0_2 = arith.constant 0 : index
    %2 = vector.load %arg2[%c0_1, %c0_2] : memref<6x1xf32, #tpu.memory_space<vmem>>, vector<6x1xf32>
    %3 = vector.broadcast %1 : vector<1x32xf32> to vector<6x32xf32>
    %4 = vector.broadcast %2 : vector<6x1xf32> to vector<6x32xf32>
    %5 = arith.mulf %3, %4 : vector<6x32xf32>
    %c0_3 = arith.constant 0 : index
    %c0_4 = arith.constant 0 : index
    %6 = vector.load %arg3[%c0_3, %c0_4] : memref<6x1xf32, #tpu.memory_space<vmem>>, vector<6x1xf32>
    %7 = vector.broadcast %6 : vector<6x1xf32> to vector<6x32xf32>
    %8 = arith.addf %5, %7 : vector<6x32xf32>
    %9 = tpu.iota {dimensions = array<i32: 0>} : vector<6x32xi32>
    %c4_i32 = arith.constant 4 : i32
    %10 = vector.broadcast %c4_i32 : i32 to vector<6x32xi32>
    %11 = arith.cmpi slt, %9, %10 : vector<6x32xi32>
    %12 = arith.negf %8 : vector<6x32xf32>
    %13 = math.exp %12 : vector<6x32xf32>
    %cst = arith.constant 1.000000e+00 : f32
    %14 = vector.broadcast %cst : f32 to vector<6x32xf32>
    %15 = arith.addf %14, %13 : vector<6x32xf32>
    %16 = arith.divf %14, %15 : vector<6x32xf32>
    %17 = arith.select %11, %8, %16 : vector<6x32xi1>, vector<6x32xf32>
    %c0_5 = arith.constant 0 : index
    %c0_6 = arith.constant 0 : index
    %18 = vector.load %arg4[%c0_5, %c0_6] : memref<6x32xf32, #tpu.memory_space<vmem>>, vector<6x32xf32>
    tpu.vector_store %arg4[%c0_5, %c0_6], %17 {strides = array<i32>} : memref<6x32xf32, #tpu.memory_space<vmem>>, vector<6x32xf32>,
    return
  }
  func.func @transform_0(%arg0: i32) -> (i32, i32) {
    %c0_i32 = arith.constant 0 : i32
    %c0_i32_0 = arith.constant 0 : i32
    return %c0_i32, %arg0 : i32, i32
  }
  func.func @transform_1(%arg0: i32) -> (i32, i32) {
    %c0_i32 = arith.constant 0 : i32
    %c0_i32_0 = arith.constant 0 : i32
    %c0_i32_1 = arith.constant 0 : i32
    return %c0_i32, %c0_i32_0 : i32, i32
  }
  func.func @transform_2(%arg0: i32) -> (i32, i32) {
    %c0_i32 = arith.constant 0 : i32
    %c0_i32_0 = arith.constant 0 : i32
    %c0_i32_1 = arith.constant 0 : i32
    return %c0_i32, %c0_i32_0 : i32, i32
  }
  func.func @transform_3(%arg0: i32) -> (i32, i32) {
    %c0_i32 = arith.constant 0 : i32
    %c0_i32_0 = arith.constant 0 : i32
    return %c0_i32, %arg0 : i32, i32
  }
}

module attributes {stable_mosaic.version = 11 : i64} {
  func.func @_level_det_kernel(%arg0: i32, %arg1: memref<1x8xbf16, #tpu.memory_space<vmem>>, %arg2: memref<6x1xf32, #tpu.memory_space<vmem>>, %arg3: memref<6x1xf32, #tpu.memory_space<vmem>>, %arg4: memref<6x8xf32, #tpu.memory_space<vmem>>) attributes {dimension_semantics = [#tpu.dimension_semantics<parallel>], iteration_bounds = array<i64: 1>, scalar_prefetch = 0 : i64, scratch_operands = 0 : i64, tpu.core_type = #tpu.core_type<tc>, window_params = [{transform_indices = @transform_0, window_bounds = array<i64: 1, 8>}, {pipeline_mode = #tpu.pipeline_mode<synchronous>, transform_indices = @transform_1, window_bounds = array<i64: 6, 1>}, {pipeline_mode = #tpu.pipeline_mode<synchronous>, transform_indices = @transform_2, window_bounds = array<i64: 6, 1>}, {transform_indices = @transform_3, window_bounds = array<i64: 6, 8>}]} {
    %c0 = arith.constant 0 : index
    %c0_0 = arith.constant 0 : index
    %0 = vector.load %arg1[%c0, %c0_0] : memref<1x8xbf16, #tpu.memory_space<vmem>>, vector<1x8xbf16>
    %1 = arith.extf %0 : vector<1x8xbf16> to vector<1x8xf32>
    %c0_1 = arith.constant 0 : index
    %c0_2 = arith.constant 0 : index
    %2 = vector.load %arg2[%c0_1, %c0_2] : memref<6x1xf32, #tpu.memory_space<vmem>>, vector<6x1xf32>
    %3 = vector.broadcast %1 : vector<1x8xf32> to vector<6x8xf32>
    %4 = vector.broadcast %2 : vector<6x1xf32> to vector<6x8xf32>
    %5 = arith.mulf %3, %4 : vector<6x8xf32>
    %c0_3 = arith.constant 0 : index
    %c0_4 = arith.constant 0 : index
    %6 = vector.load %arg3[%c0_3, %c0_4] : memref<6x1xf32, #tpu.memory_space<vmem>>, vector<6x1xf32>
    %7 = vector.broadcast %6 : vector<6x1xf32> to vector<6x8xf32>
    %8 = arith.addf %5, %7 : vector<6x8xf32>
    %9 = tpu.iota {dimensions = array<i32: 0>} : vector<6x8xi32>
    %c4_i32 = arith.constant 4 : i32
    %10 = vector.broadcast %c4_i32 : i32 to vector<6x8xi32>
    %11 = arith.cmpi slt, %9, %10 : vector<6x8xi32>
    %12 = arith.negf %8 : vector<6x8xf32>
    %13 = math.exp %12 : vector<6x8xf32>
    %cst = arith.constant 1.000000e+00 : f32
    %14 = vector.broadcast %cst : f32 to vector<6x8xf32>
    %15 = arith.addf %14, %13 : vector<6x8xf32>
    %16 = arith.divf %14, %15 : vector<6x8xf32>
    %17 = arith.select %11, %8, %16 : vector<6x8xi1>, vector<6x8xf32>
    %c0_5 = arith.constant 0 : index
    %c0_6 = arith.constant 0 : index
    %18 = vector.load %arg4[%c0_5, %c0_6] : memref<6x8xf32, #tpu.memory_space<vmem>>, vector<6x8xf32>
    tpu.vector_store %arg4[%c0_5, %c0_6], %17 {strides = array<i32>} : memref<6x8xf32, #tpu.memory_space<vmem>>, vector<6x8xf32>,
    return
  }
  func.func @transform_0(%arg0: i32) -> (i32, i32) {
    %c0_i32 = arith.constant 0 : i32
    %c0_i32_0 = arith.constant 0 : i32
    return %c0_i32, %arg0 : i32, i32
  }
  func.func @transform_1(%arg0: i32) -> (i32, i32) {
    %c0_i32 = arith.constant 0 : i32
    %c0_i32_0 = arith.constant 0 : i32
    %c0_i32_1 = arith.constant 0 : i32
    return %c0_i32, %c0_i32_0 : i32, i32
  }
  func.func @transform_2(%arg0: i32) -> (i32, i32) {
    %c0_i32 = arith.constant 0 : i32
    %c0_i32_0 = arith.constant 0 : i32
    %c0_i32_1 = arith.constant 0 : i32
    return %c0_i32, %c0_i32_0 : i32, i32
  }
  func.func @transform_3(%arg0: i32) -> (i32, i32) {
    %c0_i32 = arith.constant 0 : i32
    %c0_i32_0 = arith.constant 0 : i32
    return %c0_i32, %arg0 : i32, i32
  }
}

module attributes {stable_mosaic.version = 11 : i64} {
  func.func @_level_det_kernel(%arg0: i32, %arg1: memref<1x2xbf16, #tpu.memory_space<vmem>>, %arg2: memref<6x1xf32, #tpu.memory_space<vmem>>, %arg3: memref<6x1xf32, #tpu.memory_space<vmem>>, %arg4: memref<6x2xf32, #tpu.memory_space<vmem>>) attributes {dimension_semantics = [#tpu.dimension_semantics<parallel>], iteration_bounds = array<i64: 1>, scalar_prefetch = 0 : i64, scratch_operands = 0 : i64, tpu.core_type = #tpu.core_type<tc>, window_params = [{transform_indices = @transform_0, window_bounds = array<i64: 1, 2>}, {pipeline_mode = #tpu.pipeline_mode<synchronous>, transform_indices = @transform_1, window_bounds = array<i64: 6, 1>}, {pipeline_mode = #tpu.pipeline_mode<synchronous>, transform_indices = @transform_2, window_bounds = array<i64: 6, 1>}, {transform_indices = @transform_3, window_bounds = array<i64: 6, 2>}]} {
    %c0 = arith.constant 0 : index
    %c0_0 = arith.constant 0 : index
    %0 = vector.load %arg1[%c0, %c0_0] : memref<1x2xbf16, #tpu.memory_space<vmem>>, vector<1x2xbf16>
    %1 = arith.extf %0 : vector<1x2xbf16> to vector<1x2xf32>
    %c0_1 = arith.constant 0 : index
    %c0_2 = arith.constant 0 : index
    %2 = vector.load %arg2[%c0_1, %c0_2] : memref<6x1xf32, #tpu.memory_space<vmem>>, vector<6x1xf32>
    %3 = vector.broadcast %1 : vector<1x2xf32> to vector<6x2xf32>
    %4 = vector.broadcast %2 : vector<6x1xf32> to vector<6x2xf32>
    %5 = arith.mulf %3, %4 : vector<6x2xf32>
    %c0_3 = arith.constant 0 : index
    %c0_4 = arith.constant 0 : index
    %6 = vector.load %arg3[%c0_3, %c0_4] : memref<6x1xf32, #tpu.memory_space<vmem>>, vector<6x1xf32>
    %7 = vector.broadcast %6 : vector<6x1xf32> to vector<6x2xf32>
    %8 = arith.addf %5, %7 : vector<6x2xf32>
    %9 = tpu.iota {dimensions = array<i32: 0>} : vector<6x2xi32>
    %c4_i32 = arith.constant 4 : i32
    %10 = vector.broadcast %c4_i32 : i32 to vector<6x2xi32>
    %11 = arith.cmpi slt, %9, %10 : vector<6x2xi32>
    %12 = arith.negf %8 : vector<6x2xf32>
    %13 = math.exp %12 : vector<6x2xf32>
    %cst = arith.constant 1.000000e+00 : f32
    %14 = vector.broadcast %cst : f32 to vector<6x2xf32>
    %15 = arith.addf %14, %13 : vector<6x2xf32>
    %16 = arith.divf %14, %15 : vector<6x2xf32>
    %17 = arith.select %11, %8, %16 : vector<6x2xi1>, vector<6x2xf32>
    %c0_5 = arith.constant 0 : index
    %c0_6 = arith.constant 0 : index
    %18 = vector.load %arg4[%c0_5, %c0_6] : memref<6x2xf32, #tpu.memory_space<vmem>>, vector<6x2xf32>
    tpu.vector_store %arg4[%c0_5, %c0_6], %17 {strides = array<i32>} : memref<6x2xf32, #tpu.memory_space<vmem>>, vector<6x2xf32>,
    return
  }
  func.func @transform_0(%arg0: i32) -> (i32, i32) {
    %c0_i32 = arith.constant 0 : i32
    %c0_i32_0 = arith.constant 0 : i32
    return %c0_i32, %arg0 : i32, i32
  }
  func.func @transform_1(%arg0: i32) -> (i32, i32) {
    %c0_i32 = arith.constant 0 : i32
    %c0_i32_0 = arith.constant 0 : i32
    %c0_i32_1 = arith.constant 0 : i32
    return %c0_i32, %c0_i32_0 : i32, i32
  }
  func.func @transform_2(%arg0: i32) -> (i32, i32) {
    %c0_i32 = arith.constant 0 : i32
    %c0_i32_0 = arith.constant 0 : i32
    %c0_i32_1 = arith.constant 0 : i32
    return %c0_i32, %c0_i32_0 : i32, i32
  }
  func.func @transform_3(%arg0: i32) -> (i32, i32) {
    %c0_i32 = arith.constant 0 : i32
    %c0_i32_0 = arith.constant 0 : i32
    return %c0_i32, %arg0 : i32, i32
  }
}

</mosaic_0001>

<llo_original>
// kernel: transvcl_forward.6
$region0: #{transvcl_forward.6}
  #allocation0 [shape = 'u32[]', space=smem, size = 0x4, offset = 0x4, fixed_abs, tag = 'smem constant byte address 0x4 - core index']
  #allocation1 [shape = 'u32[144,128]{1,0:T(1,128)}', space=vmem, size = 0x12000, scoped, tag = 'internal scratch']
  %s0 = inlined_call_operand.vmem [shape: f32[2,8,32], index: 0, kind: input, shape index: {}]
  %s1 = inlined_call_operand.vmem [shape: f32[2,8,32], index: 1, kind: input, shape index: {}]
  %s2 = inlined_call_operand.vmem [shape: f32[2,8,1], index: 2, kind: input, shape index: {}]
  %s3 = inlined_call_operand.vmem [shape: f32[2,1,8], index: 3, kind: input, shape index: {}]
  %s4 = inlined_call_operand.vmem [shape: f32[2,8,8], index: 4, kind: output, shape index: {}]
  %s5 = sld [smem:[#allocation0]]
  $region49: #{transvcl_forward.6} parent=0
    _
  %s7 = ssub.s32 1, %s5
  %s8 = scalar_select 0, %s7, %s5
  loop: start=0, step=1, limit=4
  $region2: #{transvcl_forward.6} parent=0 // loop_pre_header
    _
  $region3: #{transvcl_forward.6} parent=0 // loop_header
    %s10 = sphi 0, %s14
    %p11 = scmp.ge.s32.totalorder %s10, 4
    %s17 = sphi 0, %s29
    %s18 = sphi 0, %s25
    %s19 = sphi 0, %s17
    %s20 = sphi 0, %s18
    %s21 = sphi 0, %s19
    %s22 = sphi 0, %s20
    %s34 = sphi 0, %s36
    %s37 = sphi 0, %s34
    %s38 = sphi 0, %s37
    %s54 = sphi 0, %s38
    %s60 = sphi 0, %s62
    %s63 = sphi 0, %s60
    %s64 = sphi 0, %s63
    %s80 = sphi 0, %s64
    %s88 = sphi 0, %s90
    %s91 = sphi 0, %s88
    %s92 = sphi 0, %s91
    %s108 = sphi 0, %s92
    %s114 = sphi 0, %s116
    %s117 = sphi 0, %s114
    %s118 = sphi 0, %s117
    %s134 = sphi 0, %s118
    %s142 = sphi 0, %s144
    %s145 = sphi 0, %s142
    %s146 = sphi 0, %s145
    %s162 = sphi 0, %s146
  $region4: #{transvcl_forward.6} parent=0 // loop_header_branch
    %13 = sbr.rel (%p11) target = $region8
  $region5: #{transvcl_forward.6} parent=0 // loop_body
    %s15 = ssub.s32 %s10, 1
    %s16 = ssub.s32 %s10, 2
    %s23 = sadd.s32 1, %s18
    %p24 = scmp.ge.s32.totalorder %s23, 1
    %s25 = scalar_select %p24, 0, %s23
    %s26 = sadd.s32 1, %s17
    %s27 = scalar_select %p24, %s26, %s17
    %p28 = scmp.ge.s32.totalorder %s27, 2
    %s29 = scalar_select %p28, 0, %s27
    %s30 = ssub.s32 %s17, %s29
    %s31 = ssub.s32 %s18, %s25
    %s32 = sor.u32 %s30, %s31
    %p33 = scmp.eq.s32.totalorder %s32, 0
    %s35 = sadd.s32 %s34, 1
    %s36 = scalar_select %p33, %s34, %s35
    %p39 = pneg %p33
    %p40 = scmp.eq.s32.totalorder %s10, 1
    %p41 = por %p39, %p40
    %p42 = scmp.ne.s32.totalorder %s34, %s37
    %p43 = scmp.eq.s32.totalorder %s10, 0
    %p44 = por %p42, %p43
    %p45 = scmp.ne.s32.totalorder %s34, %s37
    %p46 = scmp.eq.s32.totalorder %s15, 1
    %p47 = por %p45, %p46
    %p48 = scmp.ne.s32.totalorder %s37, %s38
    %p49 = scmp.eq.s32.totalorder %s15, 0
    %p50 = por %p48, %p49
    %p51 = scmp.ne.s32.totalorder %s37, %s38
    %p52 = scmp.eq.s32.totalorder %s16, 1
    %p53 = por %p51, %p52
    %p55 = scmp.ne.s32.totalorder %s38, %s54
    %p56 = scmp.eq.s32.totalorder %s16, 0
    %p57 = por %p55, %p56
    %s58 = ssub.s32 %s17, %s29
    %p59 = scmp.eq.s32.totalorder %s58, 0
    %s61 = sadd.s32 %s60, 1
    %s62 = scalar_select %p59, %s60, %s61
    %p65 = pneg %p59
    %p66 = scmp.eq.s32.totalorder %s10, 1
    %p67 = por %p65, %p66
    %p68 = scmp.ne.s32.totalorder %s60, %s63
    %p69 = scmp.eq.s32.totalorder %s10, 0
    %p70 = por %p68, %p69
    %p71 = scmp.ne.s32.totalorder %s60, %s63
    %p72 = scmp.eq.s32.totalorder %s15, 1
    %p73 = por %p71, %p72
    %p74 = scmp.ne.s32.totalorder %s63, %s64
    %p75 = scmp.eq.s32.totalorder %s15, 0
    %p76 = por %p74, %p75
    %p77 = scmp.ne.s32.totalorder %s63, %s64
    %p78 = scmp.eq.s32.totalorder %s16, 1
    %p79 = por %p77, %p78
    %p81 = scmp.ne.s32.totalorder %s64, %s80
    %p82 = scmp.eq.s32.totalorder %s16, 0
    %p83 = por %p81, %p82
    %s84 = ssub.s32 %s17, %s29
    %s85 = ssub.s32 %s18, %s25
    %s86 = sor.u32 %s84, %s85
    %p87 = scmp.eq.s32.totalorder %s86, 0
    %s89 = sadd.s32 %s88, 1
    %s90 = scalar_select %p87, %s88, %s89
    %p93 = pneg %p87
    %p94 = scmp.eq.s32.totalorder %s10, 1
    %p95 = por %p93, %p94
    %p96 = scmp.ne.s32.totalorder %s88, %s91
    %p97 = scmp.eq.s32.totalorder %s10, 0
    %p98 = por %p96, %p97
    %p99 = scmp.ne.s32.totalorder %s88, %s91
    %p100 = scmp.eq.s32.totalorder %s15, 1
    %p101 = por %p99, %p100
    %p102 = scmp.ne.s32.totalorder %s91, %s92
    %p103 = scmp.eq.s32.totalorder %s15, 0
    %p104 = por %p102, %p103
    %p105 = scmp.ne.s32.totalorder %s91, %s92
    %p106 = scmp.eq.s32.totalorder %s16, 1
    %p107 = por %p105, %p106
    %p109 = scmp.ne.s32.totalorder %s92, %s108
    %p110 = scmp.eq.s32.totalorder %s16, 0
    %p111 = por %p109, %p110
    %s112 = ssub.s32 %s17, %s29
    %p113 = scmp.eq.s32.totalorder %s112, 0
    %s115 = sadd.s32 %s114, 1
    %s116 = scalar_select %p113, %s114, %s115
    %p119 = pneg %p113
    %p120 = scmp.eq.s32.totalorder %s10, 1
    %p121 = por %p119, %p120
    %p122 = scmp.ne.s32.totalorder %s114, %s117
    %p123 = scmp.eq.s32.totalorder %s10, 0
    %p124 = por %p122, %p123
    %p125 = scmp.ne.s32.totalorder %s114, %s117
    %p126 = scmp.eq.s32.totalorder %s15, 1
    %p127 = por %p125, %p126
    %p128 = scmp.ne.s32.totalorder %s117, %s118
    %p129 = scmp.eq.s32.totalorder %s15, 0
    %p130 = por %p128, %p129
    %p131 = scmp.ne.s32.totalorder %s117, %s118
    %p132 = scmp.eq.s32.totalorder %s16, 1
    %p133 = por %p131, %p132
    %p135 = scmp.ne.s32.totalorder %s118, %s134
    %p136 = scmp.eq.s32.totalorder %s16, 0
    %p137 = por %p135, %p136
    %s138 = ssub.s32 %s17, %s29
    %s139 = ssub.s32 %s18, %s25
    %s140 = sor.u32 %s138, %s139
    %p141 = scmp.eq.s32.totalorder %s140, 0
    %s143 = sadd.s32 %s142, 1
    %s144 = scalar_select %p141, %s142, %s143
    %p147 = pneg %p141
    %p148 = scmp.eq.s32.totalorder %s10, 1
    %p149 = por %p147, %p148
    %p150 = scmp.ne.s32.totalorder %s142, %s145
    %p151 = scmp.eq.s32.totalorder %s10, 0
    %p152 = por %p150, %p151
    %p153 = scmp.ne.s32.totalorder %s142, %s145
    %p154 = scmp.eq.s32.totalorder %s15, 1
    %p155 = por %p153, %p154
    %p156 = scmp.ne.s32.totalorder %s145, %s146
    %p157 = scmp.eq.s32.totalorder %s15, 0
    %p158 = por %p156, %p157
    %p159 = scmp.ne.s32.totalorder %s145, %s146
    %p160 = scmp.eq.s32.totalorder %s16, 1
    %p161 = por %p159, %p160
    %p163 = scmp.ne.s32.totalorder %s146, %s162
    %p164 = scmp.eq.s32.totalorder %s16, 0
    %p165 = por %p163, %p164
    %p166 = scmp.le.s32.totalorder 1, %s10
    %p167 = scmp.lt.s32.totalorder %s10, 3
    %p168 = pnand %p166, %p167
    %p169 = pneg %p168
    // Predicated region
    $region9: #{transvcl_forward.6} parent=5 // pred_check
      _
    $region10: #{transvcl_forward.6} parent=5 // pred_check_branch
      %171 = sbr.rel (%p168) target = $region12
    $region11: #{transvcl_forward.6} parent=5 // pred_region
      %s172 = ssub.s32 %s10, 1
    $region12: #{transvcl_forward.6} parent=5 // pred_fallthru
      _
    %p173 = scmp.lt.s32.totalorder %s10, 2
    // Predicated region
    $region13: #{transvcl_forward.6} parent=5 // pred_check
      %p174 = pneg %p173
    $region14: #{transvcl_forward.6} parent=5 // pred_check_branch
      %176 = sbr.rel (%p174) target = $region16
    $region15: #{transvcl_forward.6} parent=5 // pred_region
      // Predicated region
      $region17: #{transvcl_forward.6} parent=15 // pred_check
        %p177 = pneg %p44
      $region18: #{transvcl_forward.6} parent=15 // pred_check_branch
        %179 = sbr.rel (%p177) target = $region20
      $region19: #{transvcl_forward.6} parent=15 // pred_region
        %p180 = scmp.lt.s32.totalorder %s17, 1
        %s181 = scalar_select %p180, %s17, 1
        %p182 = scmp.lt.s32.totalorder %s18, 0
        %s183 = scalar_select %p182, %s18, 0
        %s184 = sadd.s32 %s183, %s181
        %s185 = smul.addr %s184, 8
        %s186 = scalar_lea.vmem %s0, %s185
      $region20: #{transvcl_forward.6} parent=15 // pred_fallthru
        _
      // Predicated region
      $region21: #{transvcl_forward.6} parent=15 // pred_check
        %p187 = pneg %p70
      $region22: #{transvcl_forward.6} parent=15 // pred_check_branch
        %189 = sbr.rel (%p187) target = $region24
      $region23: #{transvcl_forward.6} parent=15 // pred_region
        %p190 = scmp.lt.s32.totalorder %s17, 1
        %s191 = scalar_select %p190, %s17, 1
        %s192 = smul.addr %s191, 8
        %s193 = scalar_lea.vmem %s1, %s192
      $region24: #{transvcl_forward.6} parent=15 // pred_fallthru
        _
      // Predicated region
      $region25: #{transvcl_forward.6} parent=15 // pred_check
        %p194 = pneg %p98
      $region26: #{transvcl_forward.6} parent=15 // pred_check_branch
        %196 = sbr.rel (%p194) target = $region28
      $region27: #{transvcl_forward.6} parent=15 // pred_region
        %p197 = scmp.lt.s32.totalorder %s17, 1
        %s198 = scalar_select %p197, %s17, 1
        %p199 = scmp.lt.s32.totalorder %s18, 0
        %s200 = scalar_select %p199, %s18, 0
        %s201 = sadd.s32 %s200, %s198
        %s202 = smul.addr %s201, 8
        %s203 = scalar_lea.vmem %s2, %s202
      $region28: #{transvcl_forward.6} parent=15 // pred_fallthru
        _
      // Predicated region
      $region29: #{transvcl_forward.6} parent=15 // pred_check
        %p204 = pneg %p124
      $region30: #{transvcl_forward.6} parent=15 // pred_check_branch
        %206 = sbr.rel (%p204) target = $region32
      $region31: #{transvcl_forward.6} parent=15 // pred_region
        %p207 = scmp.lt.s32.totalorder %s17, 1
        %s208 = scalar_select %p207, %s17, 1
        %s209 = scalar_lea.vmem %s3, %s208
      $region32: #{transvcl_forward.6} parent=15 // pred_fallthru
        _
    $region16: #{transvcl_forward.6} parent=5 // pred_fallthru
      _
    %p210 = scmp.le.s32.totalorder 1, %s10
    %p211 = scmp.lt.s32.totalorder %s10, 3
    %p212 = pnand %p210, %p211
    %p213 = pneg %p212
    // Predicated region
    $region33: #{transvcl_forward.6} parent=5 // pred_check
      _
    $region34: #{transvcl_forward.6} parent=5 // pred_check_branch
      %215 = sbr.rel (%p212) target = $region36
    $region35: #{transvcl_forward.6} parent=5 // pred_region
      %s216 = ssub.s32 %s10, 1
      %p217 = scmp.lt.s32.totalorder %s19, 1
      %s218 = scalar_select %p217, %s19, 1
      %p219 = scmp.lt.s32.totalorder %s20, 0
      %s220 = scalar_select %p219, %s20, 0
      %s221 = sadd.s32 %s220, %s218
      %s222 = smul.addr %s221, 8
      %s223 = scalar_lea.vmem %s0, %s222
      %p224 = pneg %p50
      %p225 = pneg %p47
      %p226 = scmp.lt.s32.totalorder %s19, 1
      %s227 = scalar_select %p226, %s19, 1
      %s228 = smul.addr %s227, 8
      %s229 = scalar_lea.vmem %s1, %s228
      %p230 = pneg %p76
      %p231 = pneg %p73
      %p232 = scmp.lt.s32.totalorder %s19, 1
      %s233 = scalar_select %p232, %s19, 1
      %p234 = scmp.lt.s32.totalorder %s20, 0
      %s235 = scalar_select %p234, %s20, 0
      %s236 = sadd.s32 %s235, %s233
      %s237 = smul.addr %s236, 8
      %s238 = scalar_lea.vmem %s2, %s237
      %p239 = pneg %p104
      %p240 = pneg %p101
      %p241 = scmp.lt.s32.totalorder %s19, 1
      %s242 = scalar_select %p241, %s19, 1
      %s243 = scalar_lea.vmem %s3, %s242
      %p244 = pneg %p130
      %p245 = pneg %p127
      %p246 = pneg %p158
      %p247 = pneg %p155
      %p248 = scmp.lt.s32.totalorder %s19, 1
      %s249 = scalar_select %p248, %s19, 1
      %p250 = scmp.lt.s32.totalorder %s20, 0
      %s251 = scalar_select %p250, %s20, 0
      %s252 = sadd.s32 %s251, %s249
      %s253 = smul.addr %s252, 8
      %s254 = scalar_lea.vmem %s4, %s253
      %p255 = scmp.lt.s32.totalorder %s19, 1
      %s256 = scalar_select %p255, %s19, 1
      %p257 = scmp.lt.s32.totalorder %s20, 0
      %s258 = scalar_select %p257, %s20, 0
      %s259 = sadd.s32 %s258, %s256
      %s260 = smul.addr %s259, 8
      %s261 = scalar_lea.vmem %s0, %s260
      %p262 = scmp.lt.s32.totalorder %s19, 1
      %s263 = scalar_select %p262, %s19, 1
      %s264 = smul.addr %s263, 8
      %s265 = scalar_lea.vmem %s1, %s264
      %p266 = scmp.lt.s32.totalorder %s19, 1
      %s267 = scalar_select %p266, %s19, 1
      %p268 = scmp.lt.s32.totalorder %s20, 0
      %s269 = scalar_select %p268, %s20, 0
      %s270 = sadd.s32 %s269, %s267
      %s271 = smul.addr %s270, 8
      %s272 = scalar_lea.vmem %s2, %s271
      %p273 = scmp.lt.s32.totalorder %s19, 1
      %s274 = scalar_select %p273, %s19, 1
      %s275 = scalar_lea.vmem %s3, %s274
      %p276 = scmp.lt.s32.totalorder %s19, 1
      %s277 = scalar_select %p276, %s19, 1
      %p278 = scmp.lt.s32.totalorder %s20, 0
      %s279 = scalar_select %p278, %s20, 0
      %s280 = sadd.s32 %s279, %s277
      %s281 = smul.addr %s280, 8
      %s282 = scalar_lea.vmem %s4, %s281
      %v284 = vld [vmem:[%s261] sm:$0xff]
      %v285 = vld [vmem:[%s265] sm:$0xff]
      %v286 = vmul.f32 %v284, %v284
      %vm287 = vcmask 261120
      %v288 = vsel %vm287, %v286, 0.0
      %289 = vadd.xlane.f32.xlu0 %v288
      %v290 = vpop.xlane.xlu0 %289
      %v291 = vadd.f32 %v290, 1e-06
      %v292 = vrsqrt.pop %v291
      %v293 = vmul.f32 %v284, %v292
      %v294 = vmul.f32 %v285, %v285
      %v295 = vsel %vm287, %v294, 0.0
      %296 = vadd.xlane.f32.xlu0 %v295
      %v297 = vpop.xlane.xlu0 %296
      %v298 = vadd.f32 %v297, 1e-06
      %v299 = vrsqrt.pop %v298
      %v300 = vmul.f32 %v285, %v299
      %v301 = vpack.c.bf16 %v293, %v293
      %v302 = vpack.c.bf16 %v300, %v300
      %v304 = vsel %vm287, %v301, 0
      %v307 = vsel %vm287, %v302, 0
      %309 = vmatprep.subr.bf16.mxu0 0
      %310 = vmatpush1.bf16.xpose.msra.mxu0 0
      %311 = vmatprep.subr.bf16.mxu0 0
      %312 = vmatpush1.bf16.xpose.msra.mxu0 0
      %313 = vmatprep.subr.bf16.mxu0 0
      %314 = vmatpush1.bf16.xpose.msra.mxu0 0
      %315 = vmatprep.subr.bf16.mxu0 0
      %316 = vmatpush1.bf16.xpose.msra.mxu0 0
      %317 = vmatprep.subr.bf16.mxu0 0
      %318 = vmatpush1.bf16.xpose.msra.mxu0 0
      %319 = vmatprep.subr.bf16.mxu0 0
      %320 = vmatpush1.bf16.xpose.msra.mxu0 0
      %321 = vmatprep.subr.bf16.mxu0 0
      %322 = vmatpush1.bf16.xpose.msra.mxu0 0
      %323 = vmatprep.subr.bf16.mxu0 0
      %324 = vmatpush1.bf16.xpose.msra.mxu0 %v307
      %325 = vmatprep.subr.bf16.mxu0 0
      %326 = vmatpush2.bf16.xpose.msra.mxu0 0
      %327 = vmatprep.subr.bf16.mxu0 0
      %328 = vmatpush2.bf16.xpose.msra.mxu0 0
      %329 = vmatprep.subr.bf16.mxu0 0
      %330 = vmatpush2.bf16.xpose.msra.mxu0 0
      %331 = vmatprep.subr.bf16.mxu0 0
      %332 = vmatpush2.bf16.xpose.msra.mxu0 0
      %333 = vmatprep.subr.bf16.mxu0 0
      %334 = vmatpush2.bf16.xpose.msra.mxu0 0
      %335 = vmatprep.subr.bf16.mxu0 0
      %336 = vmatpush2.bf16.xpose.msra.mxu0 0
      %337 = vmatprep.subr.bf16.mxu0 0
      %338 = vmatpush2.bf16.xpose.msra.mxu0 0
      %339 = vmatprep.subr.bf16.mxu0 0
      %340 = vmatpush2.bf16.xpose.msra.mxu0 0
      %341 = vmatprep.mubr.bf16.mxu0 0
      %342 = vmatmul.mubr.bf16.gmra.mxu0 %v304
      %v343 = vpop.f32.mrf.mxu0
      %v344 = vadd.f32 0.0, %v343
      %v345 = vpop.f32.mrf.mxu0
      %v346 = vpop.f32.mrf.mxu0
      %v347 = vpop.f32.mrf.mxu0
      %348 = vdwg.mxu0
      %v349 = vld [vmem:[%s272] sm:$0xff]
      %351 = vset.pattern.permute.xlu0 0
      %352 = vperm.xlu0 %351, %v349
      %v353 = vpop.permute.xlu0 %352
      %v355 = vmul.f32 %v344, %v353
      %v356 = vld [vmem:[%s275] sm:$0x1]
      %v358 = vlaneseq
      %v359 = vshrl.u32 %v358, 7
      %v360 = vsub.s32 0, %v359
      %v361 = vrot.slane %v356, %v360
      %v363 = vmul.f32 %v355, %v361
      %vm364 = vcmask 64512
      %365 = vst.msk [vmem:[%s282] sm:$0xff] %vm364, %v363
      %p366 = scmp.lt.s32.totalorder %s19, 1
      %s367 = scalar_select %p366, %s19, 1
      %p368 = scmp.lt.s32.totalorder %s20, 0
      %s369 = scalar_select %p368, %s20, 0
      %s370 = sadd.s32 %s369, %s367
      %s371 = smul.addr %s370, 8
      %s372 = scalar_lea.vmem %s4, %s371
      // Predicated region
      $region37: #{transvcl_forward.6} parent=35 // pred_check
        %p373 = pneg %p155
      $region38: #{transvcl_forward.6} parent=35 // pred_check_branch
        %375 = sbr.rel (%p373) target = $region40
      $region39: #{transvcl_forward.6} parent=35 // pred_region
        _
      $region40: #{transvcl_forward.6} parent=35 // pred_fallthru
        _
    $region36: #{transvcl_forward.6} parent=5 // pred_fallthru
      _
    %p376 = scmp.le.s32.totalorder 2, %s10
    // Predicated region
    $region41: #{transvcl_forward.6} parent=5 // pred_check
      %p377 = pneg %p376
    $region42: #{transvcl_forward.6} parent=5 // pred_check_branch
      %379 = sbr.rel (%p377) target = $region44
    $region43: #{transvcl_forward.6} parent=5 // pred_region
      %s380 = ssub.s32 %s10, 2
      // Predicated region
      $region45: #{transvcl_forward.6} parent=43 // pred_check
        %p381 = pneg %p161
      $region46: #{transvcl_forward.6} parent=43 // pred_check_branch
        %383 = sbr.rel (%p381) target = $region48
      $region47: #{transvcl_forward.6} parent=43 // pred_region
        %p384 = scmp.lt.s32.totalorder %s21, 1
        %s385 = scalar_select %p384, %s21, 1
        %p386 = scmp.lt.s32.totalorder %s22, 0
        %s387 = scalar_select %p386, %s22, 0
        %s388 = sadd.s32 %s387, %s385
        %s389 = smul.addr %s388, 8
        %s390 = scalar_lea.vmem %s4, %s389
      $region48: #{transvcl_forward.6} parent=43 // pred_fallthru
        _
    $region44: #{transvcl_forward.6} parent=5 // pred_fallthru
      _
  $region6: #{transvcl_forward.6} parent=0 // loop_footer
    %s14 = sadd.s32 1, %s10
  $region7: #{transvcl_forward.6} parent=0 // loop_footer_branch
    %9 = sbr.rel target = $region3
  $region8: #{transvcl_forward.6} parent=0 // loop_exit
    _

// kernel: transvcl_forward.7
$region0: #{transvcl_forward.7}
  #allocation0 [shape = 'u32[]', space=smem, size = 0x4, offset = 0x4, fixed_abs, tag = 'smem constant byte address 0x4 - core index']
  #allocation1 [shape = 'u32[144,128]{1,0:T(1,128)}', space=vmem, size = 0x12000, scoped, tag = 'internal scratch']
  %s0 = inlined_call_operand.vmem [shape: bf16[1,32], index: 0, kind: input, shape index: {}]
  %s1 = inlined_call_operand.vmem [shape: f32[6,1], index: 1, kind: input, shape index: {}]
  %s2 = inlined_call_operand.vmem [shape: f32[6,1], index: 2, kind: input, shape index: {}]
  %s3 = inlined_call_operand.vmem [shape: f32[6,32], index: 3, kind: output, shape index: {}]
  %s4 = sld [smem:[#allocation0]]
  $region22: #{transvcl_forward.7} parent=0
    _
  %s6 = ssub.s32 1, %s4
  %s7 = scalar_select 0, %s6, %s4
  // Predicated region
  $region2: #{transvcl_forward.7} parent=0 // pred_check
    _
  $region3: #{transvcl_forward.7} parent=0 // pred_check_branch
    %9 = sbr.rel (0) target = $region5
  $region4: #{transvcl_forward.7} parent=0 // pred_region
    _
  $region5: #{transvcl_forward.7} parent=0 // pred_fallthru
    _
  // Predicated region
  $region6: #{transvcl_forward.7} parent=0 // pred_check
    _
  $region7: #{transvcl_forward.7} parent=0 // pred_check_branch
    %11 = sbr.rel (0) target = $region9
  $region8: #{transvcl_forward.7} parent=0 // pred_region
    _
  $region9: #{transvcl_forward.7} parent=0 // pred_fallthru
    _
  // Predicated region
  $region10: #{transvcl_forward.7} parent=0 // pred_check
    _
  $region11: #{transvcl_forward.7} parent=0 // pred_check_branch
    %13 = sbr.rel (0) target = $region13
  $region12: #{transvcl_forward.7} parent=0 // pred_region
    _
  $region13: #{transvcl_forward.7} parent=0 // pred_fallthru
    _
  %v14 = vld [vmem:[%s0] sm:$0x1]
  %v15 = vunpack.c.l.bf16 %v14
  %v16 = vld [vmem:[%s1] sm:$0x3f]
  %v17 = vlaneseq
  %v18 = vshrl.u32 %v17, 7
  %v19 = vsub.s32 0, %v18
  %v20 = vrot.slane %v15, %v19
  %22 = vset.pattern.permute.xlu0 0
  %23 = vperm.xlu0 %22, %v16
  %v24 = vpop.permute.xlu0 %23
  %v26 = vmul.f32 %v20, %v24
  %v27 = vld [vmem:[%s2] sm:$0x3f]
  %29 = vset.pattern.permute.xlu0 0
  %30 = vperm.xlu0 %29, %v27
  %v31 = vpop.permute.xlu0 %30
  %v33 = vadd.f32 %v26, %v31
  %v34 = vlaneseq
  %v35 = vshrl.u32 %v34, 7
  %vm36 = vcmp.lt.s32.totalorder %v35, 4
  %v37 = vxor.u32 %v33, 2147483648
  %v38 = vmul.f32 %v37, 1.442695
  %v39 = vpow.pop %v38
  %v40 = vadd.f32 %v39, 1.0
  %v41 = vrcp.pop %v40
  %v42 = vmul.f32 1.0, %v41
  %v43 = vsel %vm36, %v33, %v42
  %vm44 = vcmask 259072
  %45 = vst.msk [vmem:[%s3] sm:$0x3f] %vm44, %v43
  // Predicated region
  $region14: #{transvcl_forward.7} parent=0 // pred_check
    _
  $region15: #{transvcl_forward.7} parent=0 // pred_check_branch
    %47 = sbr.rel (0) target = $region17
  $region16: #{transvcl_forward.7} parent=0 // pred_region
    _
  $region17: #{transvcl_forward.7} parent=0 // pred_fallthru
    _
  // Predicated region
  $region18: #{transvcl_forward.7} parent=0 // pred_check
    _
  $region19: #{transvcl_forward.7} parent=0 // pred_check_branch
    %49 = sbr.rel (0) target = $region21
  $region20: #{transvcl_forward.7} parent=0 // pred_region
    _
  $region21: #{transvcl_forward.7} parent=0 // pred_fallthru
    _

// kernel: transvcl_forward.5
$region0: #{transvcl_forward.5}
  #allocation0 [shape = 'u32[]', space=smem, size = 0x4, offset = 0x4, fixed_abs, tag = 'smem constant byte address 0x4 - core index']
  #allocation1 [shape = 'u32[144,128]{1,0:T(1,128)}', space=vmem, size = 0x12000, scoped, tag = 'internal scratch']
  %s0 = inlined_call_operand.vmem [shape: f32[2,9,32], index: 0, kind: input, shape index: {}]
  %s1 = inlined_call_operand.vmem [shape: f32[2,9,32], index: 1, kind: input, shape index: {}]
  %s2 = inlined_call_operand.vmem [shape: f32[2,1,9], index: 2, kind: input, shape index: {}]
  %s3 = inlined_call_operand.vmem [shape: f32[2,1,9], index: 3, kind: input, shape index: {}]
  %s4 = inlined_call_operand.vmem [shape: bf16[12,32,32], index: 4, kind: input, shape index: {}]
  %s5 = inlined_call_operand.vmem [shape: f32[12,1,32], index: 5, kind: input, shape index: {}]
  %s6 = inlined_call_operand.vmem [shape: bf16[8,32,32], index: 6, kind: input, shape index: {}]
  %s7 = inlined_call_operand.vmem [shape: f32[4,1,32], index: 7, kind: input, shape index: {}]
  %s8 = inlined_call_operand.vmem [shape: f32[4,1,32], index: 8, kind: input, shape index: {}]
  %s9 = inlined_call_operand.vmem [shape: f32[4,1,32], index: 9, kind: input, shape index: {}]
  %s10 = inlined_call_operand.vmem [shape: f32[2,9,32], index: 10, kind: output, shape index: {0}]
  %s11 = inlined_call_operand.vmem [shape: f32[2,9,32], index: 11, kind: output, shape index: {1}]
  %12 = xla_tuple %s10, %s11
  %s13 = sld [smem:[#allocation0]]
  $region81: #{transvcl_forward.5} parent=0
    _
  %s15 = ssub.s32 1, %s13
  %s16 = scalar_select 0, %s15, %s13
  loop: start=0, step=1, limit=4
  $region2: #{transvcl_forward.5} parent=0 // loop_pre_header
    _
  $region3: #{transvcl_forward.5} parent=0 // loop_header
    %s18 = sphi 0, %s22
    %p19 = scmp.ge.s32.totalorder %s18, 4
    %s28 = sphi 0, %s30
    %s31 = sphi 0, %s28
    %s32 = sphi 0, %s31
    %s48 = sphi 0, %s32
    %s54 = sphi 0, %s56
    %s57 = sphi 0, %s54
    %s58 = sphi 0, %s57
    %s74 = sphi 0, %s58
    %s80 = sphi 0, %s82
    %s83 = sphi 0, %s80
    %s84 = sphi 0, %s83
    %s100 = sphi 0, %s84
    %s106 = sphi 0, %s108
    %s109 = sphi 0, %s106
    %s110 = sphi 0, %s109
    %s126 = sphi 0, %s110
    %s130 = sphi 0, %s130
    %s132 = sphi 0, %s130
    %s133 = sphi 0, %s132
    %s147 = sphi 0, %s133
    %s151 = sphi 0, %s151
    %s153 = sphi 0, %s151
    %s154 = sphi 0, %s153
    %s168 = sphi 0, %s154
    %s172 = sphi 0, %s172
    %s174 = sphi 0, %s172
    %s175 = sphi 0, %s174
    %s189 = sphi 0, %s175
    %s193 = sphi 0, %s193
    %s195 = sphi 0, %s193
    %s196 = sphi 0, %s195
    %s210 = sphi 0, %s196
    %s214 = sphi 0, %s214
    %s216 = sphi 0, %s214
    %s217 = sphi 0, %s216
    %s231 = sphi 0, %s217
    %s235 = sphi 0, %s235
    %s237 = sphi 0, %s235
    %s238 = sphi 0, %s237
    %s252 = sphi 0, %s238
    %s258 = sphi 0, %s260
    %s261 = sphi 0, %s258
    %s262 = sphi 0, %s261
    %s278 = sphi 0, %s262
    %s284 = sphi 0, %s286
    %s287 = sphi 0, %s284
    %s288 = sphi 0, %s287
    %s304 = sphi 0, %s288
  $region4: #{transvcl_forward.5} parent=0 // loop_header_branch
    %21 = sbr.rel (%p19) target = $region8
  $region5: #{transvcl_forward.5} parent=0 // loop_body
    %s23 = ssub.s32 %s18, 1
    %s24 = ssub.s32 %s18, 2
    %s25 = sadd.s32 %s18, 1
    %s26 = ssub.s32 %s18, %s25
    %p27 = scmp.eq.s32.totalorder %s26, 0
    %s29 = sadd.s32 %s28, 1
    %s30 = scalar_select %p27, %s28, %s29
    %p33 = pneg %p27
    %p34 = scmp.eq.s32.totalorder %s18, 1
    %p35 = por %p33, %p34
    %p36 = scmp.ne.s32.totalorder %s28, %s31
    %p37 = scmp.eq.s32.totalorder %s18, 0
    %p38 = por %p36, %p37
    %p39 = scmp.ne.s32.totalorder %s28, %s31
    %p40 = scmp.eq.s32.totalorder %s23, 1
    %p41 = por %p39, %p40
    %p42 = scmp.ne.s32.totalorder %s31, %s32
    %p43 = scmp.eq.s32.totalorder %s23, 0
    %p44 = por %p42, %p43
    %p45 = scmp.ne.s32.totalorder %s31, %s32
    %p46 = scmp.eq.s32.totalorder %s24, 1
    %p47 = por %p45, %p46
    %p49 = scmp.ne.s32.totalorder %s32, %s48
    %p50 = scmp.eq.s32.totalorder %s24, 0
    %p51 = por %p49, %p50
    %s52 = ssub.s32 %s18, %s25
    %p53 = scmp.eq.s32.totalorder %s52, 0
    %s55 = sadd.s32 %s54, 1
    %s56 = scalar_select %p53, %s54, %s55
    %p59 = pneg %p53
    %p60 = scmp.eq.s32.totalorder %s18, 1
    %p61 = por %p59, %p60
    %p62 = scmp.ne.s32.totalorder %s54, %s57
    %p63 = scmp.eq.s32.totalorder %s18, 0
    %p64 = por %p62, %p63
    %p65 = scmp.ne.s32.totalorder %s54, %s57
    %p66 = scmp.eq.s32.totalorder %s23, 1
    %p67 = por %p65, %p66
    %p68 = scmp.ne.s32.totalorder %s57, %s58
    %p69 = scmp.eq.s32.totalorder %s23, 0
    %p70 = por %p68, %p69
    %p71 = scmp.ne.s32.totalorder %s57, %s58
    %p72 = scmp.eq.s32.totalorder %s24, 1
    %p73 = por %p71, %p72
    %p75 = scmp.ne.s32.totalorder %s58, %s74
    %p76 = scmp.eq.s32.totalorder %s24, 0
    %p77 = por %p75, %p76
    %s78 = ssub.s32 %s18, %s25
    %p79 = scmp.eq.s32.totalorder %s78, 0
    %s81 = sadd.s32 %s80, 1
    %s82 = scalar_select %p79, %s80, %s81
    %p85 = pneg %p79
    %p86 = scmp.eq.s32.totalorder %s18, 1
    %p87 = por %p85, %p86
    %p88 = scmp.ne.s32.totalorder %s80, %s83
    %p89 = scmp.eq.s32.totalorder %s18, 0
    %p90 = por %p88, %p89
    %p91 = scmp.ne.s32.totalorder %s80, %s83
    %p92 = scmp.eq.s32.totalorder %s23, 1
    %p93 = por %p91, %p92
    %p94 = scmp.ne.s32.totalorder %s83, %s84
    %p95 = scmp.eq.s32.totalorder %s23, 0
    %p96 = por %p94, %p95
    %p97 = scmp.ne.s32.totalorder %s83, %s84
    %p98 = scmp.eq.s32.totalorder %s24, 1
    %p99 = por %p97, %p98
    %p101 = scmp.ne.s32.totalorder %s84, %s100
    %p102 = scmp.eq.s32.totalorder %s24, 0
    %p103 = por %p101, %p102
    %s104 = ssub.s32 %s18, %s25
    %p105 = scmp.eq.s32.totalorder %s104, 0
    %s107 = sadd.s32 %s106, 1
    %s108 = scalar_select %p105, %s106, %s107
    %p111 = pneg %p105
    %p112 = scmp.eq.s32.totalorder %s18, 1
    %p113 = por %p111, %p112
    %p114 = scmp.ne.s32.totalorder %s106, %s109
    %p115 = scmp.eq.s32.totalorder %s18, 0
    %p116 = por %p114, %p115
    %p117 = scmp.ne.s32.totalorder %s106, %s109
    %p118 = scmp.eq.s32.totalorder %s23, 1
    %p119 = por %p117, %p118
    %p120 = scmp.ne.s32.totalorder %s109, %s110
    %p121 = scmp.eq.s32.totalorder %s23, 0
    %p122 = por %p120, %p121
    %p123 = scmp.ne.s32.totalorder %s109, %s110
    %p124 = scmp.eq.s32.totalorder %s24, 1
    %p125 = por %p123, %p124
    %p127 = scmp.ne.s32.totalorder %s110, %s126
    %p128 = scmp.eq.s32.totalorder %s24, 0
    %p129 = por %p127, %p128
    %s131 = sadd.s32 %s130, 1
    %p134 = scmp.eq.s32.totalorder %s18, 1
    %p135 = scmp.ne.s32.totalorder %s130, %s132
    %p136 = scmp.eq.s32.totalorder %s18, 0
    %p137 = por %p135, %p136
    %p138 = scmp.ne.s32.totalorder %s130, %s132
    %p139 = scmp.eq.s32.totalorder %s23, 1
    %p140 = por %p138, %p139
    %p141 = scmp.ne.s32.totalorder %s132, %s133
    %p142 = scmp.eq.s32.totalorder %s23, 0
    %p143 = por %p141, %p142
    %p144 = scmp.ne.s32.totalorder %s132, %s133
    %p145 = scmp.eq.s32.totalorder %s24, 1
    %p146 = por %p144, %p145
    %p148 = scmp.ne.s32.totalorder %s133, %s147
    %p149 = scmp.eq.s32.totalorder %s24, 0
    %p150 = por %p148, %p149
    %s152 = sadd.s32 %s151, 1
    %p155 = scmp.eq.s32.totalorder %s18, 1
    %p156 = scmp.ne.s32.totalorder %s151, %s153
    %p157 = scmp.eq.s32.totalorder %s18, 0
    %p158 = por %p156, %p157
    %p159 = scmp.ne.s32.totalorder %s151, %s153
    %p160 = scmp.eq.s32.totalorder %s23, 1
    %p161 = por %p159, %p160
    %p162 = scmp.ne.s32.totalorder %s153, %s154
    %p163 = scmp.eq.s32.totalorder %s23, 0
    %p164 = por %p162, %p163
    %p165 = scmp.ne.s32.totalorder %s153, %s154
    %p166 = scmp.eq.s32.totalorder %s24, 1
    %p167 = por %p165, %p166
    %p169 = scmp.ne.s32.totalorder %s154, %s168
    %p170 = scmp.eq.s32.totalorder %s24, 0
    %p171 = por %p169, %p170
    %s173 = sadd.s32 %s172, 1
    %p176 = scmp.eq.s32.totalorder %s18, 1
    %p177 = scmp.ne.s32.totalorder %s172, %s174
    %p178 = scmp.eq.s32.totalorder %s18, 0
    %p179 = por %p177, %p178
    %p180 = scmp.ne.s32.totalorder %s172, %s174
    %p181 = scmp.eq.s32.totalorder %s23, 1
    %p182 = por %p180, %p181
    %p183 = scmp.ne.s32.totalorder %s174, %s175
    %p184 = scmp.eq.s32.totalorder %s23, 0
    %p185 = por %p183, %p184
    %p186 = scmp.ne.s32.totalorder %s174, %s175
    %p187 = scmp.eq.s32.totalorder %s24, 1
    %p188 = por %p186, %p187
    %p190 = scmp.ne.s32.totalorder %s175, %s189
    %p191 = scmp.eq.s32.totalorder %s24, 0
    %p192 = por %p190, %p191
    %s194 = sadd.s32 %s193, 1
    %p197 = scmp.eq.s32.totalorder %s18, 1
    %p198 = scmp.ne.s32.totalorder %s193, %s195
    %p199 = scmp.eq.s32.totalorder %s18, 0
    %p200 = por %p198, %p199
    %p201 = scmp.ne.s32.totalorder %s193, %s195
    %p202 = scmp.eq.s32.totalorder %s23, 1
    %p203 = por %p201, %p202
    %p204 = scmp.ne.s32.totalorder %s195, %s196
    %p205 = scmp.eq.s32.totalorder %s23, 0
    %p206 = por %p204, %p205
    %p207 = scmp.ne.s32.totalorder %s195, %s196
    %p208 = scmp.eq.s32.totalorder %s24, 1
    %p209 = por %p207, %p208
    %p211 = scmp.ne.s32.totalorder %s196, %s210
    %p212 = scmp.eq.s32.totalorder %s24, 0
    %p213 = por %p211, %p212
    %s215 = sadd.s32 %s214, 1
    %p218 = scmp.eq.s32.totalorder %s18, 1
    %p219 = scmp.ne.s32.totalorder %s214, %s216
    %p220 = scmp.eq.s32.totalorder %s18, 0
    %p221 = por %p219, %p220
    %p222 = scmp.ne.s32.totalorder %s214, %s216
    %p223 = scmp.eq.s32.totalorder %s23, 1
    %p224 = por %p222, %p223
    %p225 = scmp.ne.s32.totalorder %s216, %s217
    %p226 = scmp.eq.s32.totalorder %s23, 0
    %p227 = por %p225, %p226
    %p228 = scmp.ne.s32.totalorder %s216, %s217
    %p229 = scmp.eq.s32.totalorder %s24, 1
    %p230 = por %p228, %p229
    %p232 = scmp.ne.s32.totalorder %s217, %s231
    %p233 = scmp.eq.s32.totalorder %s24, 0
    %p234 = por %p232, %p233
    %s236 = sadd.s32 %s235, 1
    %p239 = scmp.eq.s32.totalorder %s18, 1
    %p240 = scmp.ne.s32.totalorder %s235, %s237
    %p241 = scmp.eq.s32.totalorder %s18, 0
    %p242 = por %p240, %p241
    %p243 = scmp.ne.s32.totalorder %s235, %s237
    %p244 = scmp.eq.s32.totalorder %s23, 1
    %p245 = por %p243, %p244
    %p246 = scmp.ne.s32.totalorder %s237, %s238
    %p247 = scmp.eq.s32.totalorder %s23, 0
    %p248 = por %p246, %p247
    %p249 = scmp.ne.s32.totalorder %s237, %s238
    %p250 = scmp.eq.s32.totalorder %s24, 1
    %p251 = por %p249, %p250
    %p253 = scmp.ne.s32.totalorder %s238, %s252
    %p254 = scmp.eq.s32.totalorder %s24, 0
    %p255 = por %p253, %p254
    %s256 = ssub.s32 %s18, %s25
    %p257 = scmp.eq.s32.totalorder %s256, 0
    %s259 = sadd.s32 %s258, 1
    %s260 = scalar_select %p257, %s258, %s259
    %p263 = pneg %p257
    %p264 = scmp.eq.s32.totalorder %s18, 1
    %p265 = por %p263, %p264
    %p266 = scmp.ne.s32.totalorder %s258, %s261
    %p267 = scmp.eq.s32.totalorder %s18, 0
    %p268 = por %p266, %p267
    %p269 = scmp.ne.s32.totalorder %s258, %s261
    %p270 = scmp.eq.s32.totalorder %s23, 1
    %p271 = por %p269, %p270
    %p272 = scmp.ne.s32.totalorder %s261, %s262
    %p273 = scmp.eq.s32.totalorder %s23, 0
    %p274 = por %p272, %p273
    %p275 = scmp.ne.s32.totalorder %s261, %s262
    %p276 = scmp.eq.s32.totalorder %s24, 1
    %p277 = por %p275, %p276
    %p279 = scmp.ne.s32.totalorder %s262, %s278
    %p280 = scmp.eq.s32.totalorder %s24, 0
    %p281 = por %p279, %p280
    %s282 = ssub.s32 %s18, %s25
    %p283 = scmp.eq.s32.totalorder %s282, 0
    %s285 = sadd.s32 %s284, 1
    %s286 = scalar_select %p283, %s284, %s285
    %p289 = pneg %p283
    %p290 = scmp.eq.s32.totalorder %s18, 1
    %p291 = por %p289, %p290
    %p292 = scmp.ne.s32.totalorder %s284, %s287
    %p293 = scmp.eq.s32.totalorder %s18, 0
    %p294 = por %p292, %p293
    %p295 = scmp.ne.s32.totalorder %s284, %s287
    %p296 = scmp.eq.s32.totalorder %s23, 1
    %p297 = por %p295, %p296
    %p298 = scmp.ne.s32.totalorder %s287, %s288
    %p299 = scmp.eq.s32.totalorder %s23, 0
    %p300 = por %p298, %p299
    %p301 = scmp.ne.s32.totalorder %s287, %s288
    %p302 = scmp.eq.s32.totalorder %s24, 1
    %p303 = por %p301, %p302
    %p305 = scmp.ne.s32.totalorder %s288, %s304
    %p306 = scmp.eq.s32.totalorder %s24, 0
    %p307 = por %p305, %p306
    %p308 = scmp.le.s32.totalorder 1, %s18
    %p309 = scmp.lt.s32.totalorder %s18, 3
    %p310 = pnand %p308, %p309
    %p311 = pneg %p310
    // Predicated region
    $region9: #{transvcl_forward.5} parent=5 // pred_check
      _
    $region10: #{transvcl_forward.5} parent=5 // pred_check_branch
      %313 = sbr.rel (%p310) target = $region12
    $region11: #{transvcl_forward.5} parent=5 // pred_region
      %s314 = ssub.s32 %s18, 1
      // Predicated region
      $region13: #{transvcl_forward.5} parent=11 // pred_check
        %p315 = pneg %p143
      $region14: #{transvcl_forward.5} parent=11 // pred_check_branch
        %317 = sbr.rel (%p315) target = $region16
      $region15: #{transvcl_forward.5} parent=11 // pred_region
        _
      $region16: #{transvcl_forward.5} parent=11 // pred_fallthru
        _
      // Predicated region
      $region17: #{transvcl_forward.5} parent=11 // pred_check
        %p318 = pneg %p164
      $region18: #{transvcl_forward.5} parent=11 // pred_check_branch
        %320 = sbr.rel (%p318) target = $region20
      $region19: #{transvcl_forward.5} parent=11 // pred_region
        _
      $region20: #{transvcl_forward.5} parent=11 // pred_fallthru
        _
      // Predicated region
      $region21: #{transvcl_forward.5} parent=11 // pred_check
        %p321 = pneg %p185
      $region22: #{transvcl_forward.5} parent=11 // pred_check_branch
        %323 = sbr.rel (%p321) target = $region24
      $region23: #{transvcl_forward.5} parent=11 // pred_region
        _
      $region24: #{transvcl_forward.5} parent=11 // pred_fallthru
        _
      // Predicated region
      $region25: #{transvcl_forward.5} parent=11 // pred_check
        %p324 = pneg %p206
      $region26: #{transvcl_forward.5} parent=11 // pred_check_branch
        %326 = sbr.rel (%p324) target = $region28
      $region27: #{transvcl_forward.5} parent=11 // pred_region
        _
      $region28: #{transvcl_forward.5} parent=11 // pred_fallthru
        _
      // Predicated region
      $region29: #{transvcl_forward.5} parent=11 // pred_check
        %p327 = pneg %p227
      $region30: #{transvcl_forward.5} parent=11 // pred_check_branch
        %329 = sbr.rel (%p327) target = $region32
      $region31: #{transvcl_forward.5} parent=11 // pred_region
        _
      $region32: #{transvcl_forward.5} parent=11 // pred_fallthru
        _
      // Predicated region
      $region33: #{transvcl_forward.5} parent=11 // pred_check
        %p330 = pneg %p248
      $region34: #{transvcl_forward.5} parent=11 // pred_check_branch
        %332 = sbr.rel (%p330) target = $region36
      $region35: #{transvcl_forward.5} parent=11 // pred_region
        _
      $region36: #{transvcl_forward.5} parent=11 // pred_fallthru
        _
    $region12: #{transvcl_forward.5} parent=5 // pred_fallthru
      _
    %p333 = scmp.lt.s32.totalorder %s18, 2
    // Predicated region
    $region37: #{transvcl_forward.5} parent=5 // pred_check
      %p334 = pneg %p333
    $region38: #{transvcl_forward.5} parent=5 // pred_check_branch
      %336 = sbr.rel (%p334) target = $region40
    $region39: #{transvcl_forward.5} parent=5 // pred_region
      // Predicated region
      $region41: #{transvcl_forward.5} parent=39 // pred_check
        %p337 = pneg %p38
      $region42: #{transvcl_forward.5} parent=39 // pred_check_branch
        %339 = sbr.rel (%p337) target = $region44
      $region43: #{transvcl_forward.5} parent=39 // pred_region
        %p340 = scmp.lt.s32.totalorder %s18, 1
        %s341 = scalar_select %p340, %s18, 1
        %s342 = smul.addr %s341, 2
        %s343 = smul.addr %s342, 8
        %s344 = scalar_lea.vmem %s0, %s343
      $region44: #{transvcl_forward.5} parent=39 // pred_fallthru
        _
      // Predicated region
      $region45: #{transvcl_forward.5} parent=39 // pred_check
        %p345 = pneg %p64
      $region46: #{transvcl_forward.5} parent=39 // pred_check_branch
        %347 = sbr.rel (%p345) target = $region48
      $region47: #{transvcl_forward.5} parent=39 // pred_region
        %p348 = scmp.lt.s32.totalorder %s18, 1
        %s349 = scalar_select %p348, %s18, 1
        %s350 = smul.addr %s349, 2
        %s351 = smul.addr %s350, 8
        %s352 = scalar_lea.vmem %s1, %s351
      $region48: #{transvcl_forward.5} parent=39 // pred_fallthru
        _
      // Predicated region
      $region49: #{transvcl_forward.5} parent=39 // pred_check
        %p353 = pneg %p90
      $region50: #{transvcl_forward.5} parent=39 // pred_check_branch
        %355 = sbr.rel (%p353) target = $region52
      $region51: #{transvcl_forward.5} parent=39 // pred_region
        %p356 = scmp.lt.s32.totalorder %s18, 1
        %s357 = scalar_select %p356, %s18, 1
        %s358 = scalar_lea.vmem %s2, %s357
      $region52: #{transvcl_forward.5} parent=39 // pred_fallthru
        _
      // Predicated region
      $region53: #{transvcl_forward.5} parent=39 // pred_check
        %p359 = pneg %p116
      $region54: #{transvcl_forward.5} parent=39 // pred_check_branch
        %361 = sbr.rel (%p359) target = $region56
      $region55: #{transvcl_forward.5} parent=39 // pred_region
        %p362 = scmp.lt.s32.totalorder %s18, 1
        %s363 = scalar_select %p362, %s18, 1
        %s364 = scalar_lea.vmem %s3, %s363
      $region56: #{transvcl_forward.5} parent=39 // pred_fallthru
        _
    $region40: #{transvcl_forward.5} parent=5 // pred_fallthru
      _
    %p365 = scmp.le.s32.totalorder 1, %s18
    %p366 = scmp.lt.s32.totalorder %s18, 3
    %p367 = pnand %p365, %p366
    %p368 = pneg %p367
    // Predicated region
    $region57: #{transvcl_forward.5} parent=5 // pred_check
      _
    $region58: #{transvcl_forward.5} parent=5 // pred_check_branch
      %370 = sbr.rel (%p367) target = $region60
    $region59: #{transvcl_forward.5} parent=5 // pred_region
      %s371 = ssub.s32 %s18, 1
      %p372 = scmp.lt.s32.totalorder %s23, 1
      %s373 = scalar_select %p372, %s23, 1
      %s374 = smul.addr %s373, 2
      %s375 = smul.addr %s374, 8
      %s376 = scalar_lea.vmem %s0, %s375
      %p377 = pneg %p44
      %p378 = pneg %p41
      %p379 = scmp.lt.s32.totalorder %s23, 1
      %s380 = scalar_select %p379, %s23, 1
      %s381 = smul.addr %s380, 2
      %s382 = smul.addr %s381, 8
      %s383 = scalar_lea.vmem %s1, %s382
      %p384 = pneg %p70
      %p385 = pneg %p67
      %p386 = scmp.lt.s32.totalorder %s23, 1
      %s387 = scalar_select %p386, %s23, 1
      %s388 = scalar_lea.vmem %s2, %s387
      %p389 = pneg %p96
      %p390 = pneg %p93
      %p391 = scmp.lt.s32.totalorder %s23, 1
      %s392 = scalar_select %p391, %s23, 1
      %s393 = scalar_lea.vmem %s3, %s392
      %p394 = pneg %p122
      %p395 = pneg %p119
      %p396 = pneg %p143
      %p397 = pneg %p140
      %p398 = pneg %p164
      %p399 = pneg %p161
      %p400 = pneg %p185
      %p401 = pneg %p182
      %p402 = pneg %p206
      %p403 = pneg %p203
      %p404 = pneg %p227
      %p405 = pneg %p224
      %p406 = pneg %p248
      %p407 = pneg %p245
      %p408 = pneg %p274
      %p409 = pneg %p271
      %p410 = scmp.lt.s32.totalorder %s23, 1
      %s411 = scalar_select %p410, %s23, 1
      %s412 = smul.addr %s411, 2
      %s413 = smul.addr %s412, 8
      %s414 = scalar_lea.vmem %s10, %s413
      %p415 = pneg %p300
      %p416 = pneg %p297
      %p417 = scmp.lt.s32.totalorder %s23, 1
      %s418 = scalar_select %p417, %s23, 1
      %s419 = smul.addr %s418, 2
      %s420 = smul.addr %s419, 8
      %s421 = scalar_lea.vmem %s11, %s420
      %p422 = scmp.lt.s32.totalorder %s23, 1
      %s423 = scalar_select %p422, %s23, 1
      %s424 = smul.addr %s423, 2
      %s425 = smul.addr %s424, 8
      %s426 = scalar_lea.vmem %s0, %s425
      %p427 = scmp.lt.s32.totalorder %s23, 1
      %s428 = scalar_select %p427, %s23, 1
      %s429 = smul.addr %s428, 2
      %s430 = smul.addr %s429, 8
      %s431 = scalar_lea.vmem %s1, %s430
      %p432 = scmp.lt.s32.totalorder %s23, 1
      %s433 = scalar_select %p432, %s23, 1
      %s434 = scalar_lea.vmem %s2, %s433
      %p435 = scmp.lt.s32.totalorder %s23, 1
      %s436 = scalar_select %p435, %s23, 1
      %s437 = scalar_lea.vmem %s3, %s436
      %p438 = scmp.lt.s32.totalorder %s23, 1
      %s439 = scalar_select %p438, %s23, 1
      %s440 = smul.addr %s439, 2
      %s441 = smul.addr %s440, 8
      %s442 = scalar_lea.vmem %s10, %s441
      %p443 = scmp.lt.s32.totalorder %s23, 1
      %s444 = scalar_select %p443, %s23, 1
      %s445 = smul.addr %s444, 2
      %s446 = smul.addr %s445, 8
      %s447 = scalar_lea.vmem %s11, %s446
      %v449 = vld [vmem:[%s426] sm:$0xff]
      %v450 = vld [vmem:[%s426 + $0x8] sm:$0x1]
      %v451 = vld [vmem:[%s431] sm:$0xff]
      %v452 = vld [vmem:[%s431 + $0x8] sm:$0x1]
      %v453 = vld [vmem:[%s434] sm:$0x1]
      %v454 = vld [vmem:[%s437] sm:$0x1]
      %v455 = vpack.c.bf16 %v450, %v449
      %v456 = vld [vmem:[%s4] sm:$0xf]
      %v457 = vld [vmem:[%s4 + $0x4] sm:$0xf]
      %v458 = vld [vmem:[%s4 + $0x8] sm:$0xf]
      %v459 = vld [vmem:[%s4 + $0xc] sm:$0xf]
      %v460 = vld [vmem:[%s5] sm:$0x1]
      %v462 = vlaneseq
      %v463 = vshrl.u32 %v462, 7
      %v464 = vsub.s32 0, %v463
      %v465 = vrot.slane %v460, %v464
      %v471 = vunpack.c.l.b16 %v456
      %v472 = vunpack.c.l.b16 %v457
      %v473 = vunpack.c.l.b16 %v458
      %v474 = vunpack.c.l.b16 %v459
      %v475 = vpack.c.b16 %v472, %v471
      %v476 = vpack.c.b16 %v474, %v473
      %vm479 = vcmask 261120
      %v481 = vsel %vm479, %v455, 0
      %483 = vmatprep.subr.bf16.mxu0 0
      %484 = vmatpush1.bf16.msra.mxu0 0
      %485 = vmatprep.subr.bf16.mxu0 0
      %486 = vmatpush1.bf16.msra.mxu0 0
      %487 = vmatprep.subr.bf16.mxu0 0
      %488 = vmatpush1.bf16.msra.mxu0 0
      %489 = vmatprep.subr.bf16.mxu0 0
      %490 = vmatpush1.bf16.msra.mxu0 0
      %491 = vmatprep.subr.bf16.mxu0 0
      %492 = vmatpush1.bf16.msra.mxu0 0
      %493 = vmatprep.subr.bf16.mxu0 0
      %494 = vmatpush1.bf16.msra.mxu0 0
      %495 = vmatprep.subr.bf16.mxu0 0
      %496 = vmatpush1.bf16.msra.mxu0 %v476
      %497 = vmatprep.subr.bf16.mxu0 0
      %498 = vmatpush1.bf16.msra.mxu0 %v475
      %499 = vmatprep.subr.bf16.mxu0 0
      %500 = vmatpush2.bf16.msra.mxu0 0
      %501 = vmatprep.subr.bf16.mxu0 0
      %502 = vmatpush2.bf16.msra.mxu0 0
      %503 = vmatprep.subr.bf16.mxu0 0
      %504 = vmatpush2.bf16.msra.mxu0 0
      %505 = vmatprep.subr.bf16.mxu0 0
      %506 = vmatpush2.bf16.msra.mxu0 0
      %507 = vmatprep.subr.bf16.mxu0 0
      %508 = vmatpush2.bf16.msra.mxu0 0
      %509 = vmatprep.subr.bf16.mxu0 0
      %510 = vmatpush2.bf16.msra.mxu0 0
      %511 = vmatprep.subr.bf16.mxu0 0
      %512 = vmatpush2.bf16.msra.mxu0 0
      %513 = vmatprep.subr.bf16.mxu0 0
      %514 = vmatpush2.bf16.msra.mxu0 0
      %515 = vmatprep.mubr.bf16.mxu0 0
      %516 = vmatmul.mubr.bf16.gmra.mxu0 %v481
      %v517 = vpop.f32.mrf.mxu0
      %v518 = vadd.f32 %v465, %v517
      %v519 = vpop.f32.mrf.mxu0
      %v520 = vpop.f32.mrf.mxu0
      %v521 = vadd.f32 %v465, %v520
      %v522 = vpop.f32.mrf.mxu0
      %523 = vdwg.mxu0
      %s524 = scalar_lea.vmem %s4, 16
      %v525 = vld [vmem:[%s524] sm:$0xf]
      %v526 = vld [vmem:[%s524 + $0x4] sm:$0xf]
      %v527 = vld [vmem:[%s524 + $0x8] sm:$0xf]
      %v528 = vld [vmem:[%s524 + $0xc] sm:$0xf]
      %s529 = scalar_lea.vmem %s5, 1
      %v530 = vld [vmem:[%s529] sm:$0x1]
      %v532 = vlaneseq
      %v533 = vshrl.u32 %v532, 7
      %v534 = vsub.s32 0, %v533
      %v535 = vrot.slane %v530, %v534
      %v541 = vunpack.c.l.b16 %v525
      %v542 = vunpack.c.l.b16 %v526
      %v543 = vunpack.c.l.b16 %v527
      %v544 = vunpack.c.l.b16 %v528
      %v545 = vpack.c.b16 %v542, %v541
      %v546 = vpack.c.b16 %v544, %v543
      %549 = vmatprep.subr.bf16.mxu0 0
      %550 = vmatpush1.bf16.msra.mxu0 0
      %551 = vmatprep.subr.bf16.mxu0 0
      %552 = vmatpush1.bf16.msra.mxu0 0
      %553 = vmatprep.subr.bf16.mxu0 0
      %554 = vmatpush1.bf16.msra.mxu0 0
      %555 = vmatprep.subr.bf16.mxu0 0
      %556 = vmatpush1.bf16.msra.mxu0 0
      %557 = vmatprep.subr.bf16.mxu0 0
      %558 = vmatpush1.bf16.msra.mxu0 0
      %559 = vmatprep.subr.bf16.mxu0 0
      %560 = vmatpush1.bf16.msra.mxu0 0
      %561 = vmatprep.subr.bf16.mxu0 0
      %562 = vmatpush1.bf16.msra.mxu0 %v546
      %563 = vmatprep.subr.bf16.mxu0 0
      %564 = vmatpush1.bf16.msra.mxu0 %v545
      %565 = vmatprep.subr.bf16.mxu0 0
      %566 = vmatpush2.bf16.msra.mxu0 0
      %567 = vmatprep.subr.bf16.mxu0 0
      %568 = vmatpush2.bf16.msra.mxu0 0
      %569 = vmatprep.subr.bf16.mxu0 0
      %570 = vmatpush2.bf16.msra.mxu0 0
      %571 = vmatprep.subr.bf16.mxu0 0
      %572 = vmatpush2.bf16.msra.mxu0 0
      %573 = vmatprep.subr.bf16.mxu0 0
      %574 = vmatpush2.bf16.msra.mxu0 0
      %575 = vmatprep.subr.bf16.mxu0 0
      %576 = vmatpush2.bf16.msra.mxu0 0
      %577 = vmatprep.subr.bf16.mxu0 0
      %578 = vmatpush2.bf16.msra.mxu0 0
      %579 = vmatprep.subr.bf16.mxu0 0
      %580 = vmatpush2.bf16.msra.mxu0 0
      %581 = vmatprep.mubr.bf16.mxu0 0
      %582 = vmatmul.mubr.bf16.gmra.mxu0 %v481
      %v583 = vpop.f32.mrf.mxu0
      %v584 = vadd.f32 %v535, %v583
      %v585 = vpop.f32.mrf.mxu0
      %v586 = vpop.f32.mrf.mxu0
      %v587 = vadd.f32 %v535, %v586
      %v588 = vpop.f32.mrf.mxu0
      %589 = vdwg.mxu0
      %s590 = scalar_lea.vmem %s4, 32
      %v591 = vld [vmem:[%s590] sm:$0xf]
      %v592 = vld [vmem:[%s590 + $0x4] sm:$0xf]
      %v593 = vld [vmem:[%s590 + $0x8] sm:$0xf]
      %v594 = vld [vmem:[%s590 + $0xc] sm:$0xf]
      %s595 = scalar_lea.vmem %s5, 2
      %v596 = vld [vmem:[%s595] sm:$0x1]
      %v598 = vlaneseq
      %v599 = vshrl.u32 %v598, 7
      %v600 = vsub.s32 0, %v599
      %v601 = vrot.slane %v596, %v600
      %v607 = vunpack.c.l.b16 %v591
      %v608 = vunpack.c.l.b16 %v592
      %v609 = vunpack.c.l.b16 %v593
      %v610 = vunpack.c.l.b16 %v594
      %v611 = vpack.c.b16 %v608, %v607
      %v612 = vpack.c.b16 %v610, %v609
      %615 = vmatprep.subr.bf16.mxu0 0
      %616 = vmatpush1.bf16.msra.mxu0 0
      %617 = vmatprep.subr.bf16.mxu0 0
      %618 = vmatpush1.bf16.msra.mxu0 0
      %619 = vmatprep.subr.bf16.mxu0 0
      %620 = vmatpush1.bf16.msra.mxu0 0
      %621 = vmatprep.subr.bf16.mxu0 0
      %622 = vmatpush1.bf16.msra.mxu0 0
      %623 = vmatprep.subr.bf16.mxu0 0
      %624 = vmatpush1.bf16.msra.mxu0 0
      %625 = vmatprep.subr.bf16.mxu0 0
      %626 = vmatpush1.bf16.msra.mxu0 0
      %627 = vmatprep.subr.bf16.mxu0 0
      %628 = vmatpush1.bf16.msra.mxu0 %v612
      %629 = vmatprep.subr.bf16.mxu0 0
      %630 = vmatpush1.bf16.msra.mxu0 %v611
      %631 = vmatprep.subr.bf16.mxu0 0
      %632 = vmatpush2.bf16.msra.mxu0 0
      %633 = vmatprep.subr.bf16.mxu0 0
      %634 = vmatpush2.bf16.msra.mxu0 0
      %635 = vmatprep.subr.bf16.mxu0 0
      %636 = vmatpush2.bf16.msra.mxu0 0
      %637 = vmatprep.subr.bf16.mxu0 0
      %638 = vmatpush2.bf16.msra.mxu0 0
      %639 = vmatprep.subr.bf16.mxu0 0
      %640 = vmatpush2.bf16.msra.mxu0 0
      %641 = vmatprep.subr.bf16.mxu0 0
      %642 = vmatpush2.bf16.msra.mxu0 0
      %643 = vmatprep.subr.bf16.mxu0 0
      %644 = vmatpush2.bf16.msra.mxu0 0
      %645 = vmatprep.subr.bf16.mxu0 0
      %646 = vmatpush2.bf16.msra.mxu0 0
      %647 = vmatprep.mubr.bf16.mxu0 0
      %648 = vmatmul.mubr.bf16.gmra.mxu0 %v481
      %v649 = vpop.f32.mrf.mxu0
      %v650 = vadd.f32 %v601, %v649
      %v651 = vpop.f32.mrf.mxu0
      %v652 = vpop.f32.mrf.mxu0
      %v653 = vadd.f32 %v601, %v652
      %v654 = vpop.f32.mrf.mxu0
      %655 = vdwg.mxu0
      %v656 = vpack.c.bf16 %v521, %v518
      %v657 = vpack.c.bf16 %v587, %v584
      %v659 = vsel %vm479, %v656, 0
      %v662 = vsel %vm479, %v657, 0
      %664 = vmatprep.subr.bf16.mxu0 0
      %665 = vmatpush1.bf16.xpose.msra.mxu0 0
      %666 = vmatprep.subr.bf16.mxu0 0
      %667 = vmatpush1.bf16.xpose.msra.mxu0 0
      %668 = vmatprep.subr.bf16.mxu0 0
      %669 = vmatpush1.bf16.xpose.msra.mxu0 0
      %670 = vmatprep.subr.bf16.mxu0 0
      %671 = vmatpush1.bf16.xpose.msra.mxu0 0
      %672 = vmatprep.subr.bf16.mxu0 0
      %673 = vmatpush1.bf16.xpose.msra.mxu0 0
      %674 = vmatprep.subr.bf16.mxu0 0
      %675 = vmatpush1.bf16.xpose.msra.mxu0 0
      %676 = vmatprep.subr.bf16.mxu0 0
      %677 = vmatpush1.bf16.xpose.msra.mxu0 0
      %678 = vmatprep.subr.bf16.mxu0 0
      %679 = vmatpush1.bf16.xpose.msra.mxu0 %v662
      %680 = vmatprep.subr.bf16.mxu0 0
      %681 = vmatpush2.bf16.xpose.msra.mxu0 0
      %682 = vmatprep.subr.bf16.mxu0 0
      %683 = vmatpush2.bf16.xpose.msra.mxu0 0
      %684 = vmatprep.subr.bf16.mxu0 0
      %685 = vmatpush2.bf16.xpose.msra.mxu0 0
      %686 = vmatprep.subr.bf16.mxu0 0
      %687 = vmatpush2.bf16.xpose.msra.mxu0 0
      %688 = vmatprep.subr.bf16.mxu0 0
      %689 = vmatpush2.bf16.xpose.msra.mxu0 0
      %690 = vmatprep.subr.bf16.mxu0 0
      %691 = vmatpush2.bf16.xpose.msra.mxu0 0
      %692 = vmatprep.subr.bf16.mxu0 0
      %693 = vmatpush2.bf16.xpose.msra.mxu0 0
      %694 = vmatprep.subr.bf16.mxu0 0
      %695 = vmatpush2.bf16.xpose.msra.mxu0 0
      %696 = vmatprep.mubr.bf16.mxu0 0
      %697 = vmatmul.mubr.bf16.gmra.mxu0 %v659
      %v698 = vpop.f32.mrf.mxu0
      %v699 = vadd.f32 0.0, %v698
      %v700 = vpop.f32.mrf.mxu0
      %v701 = vpop.f32.mrf.mxu0
      %v702 = vadd.f32 0.0, %v701
      %v703 = vpop.f32.mrf.mxu0
      %704 = vdwg.mxu0
      %v705 = vmul.f32 %v699, 0.17677669
      %v706 = vmul.f32 %v702, 0.17677669
      %vm707 = vcmp.gt.f32.partialorder %v453, 0.5
      %v708 = vsel %vm707, 1, 0
      %v709 = vlaneseq
      %v710 = vshrl.u32 %v709, 7
      %v711 = vsub.s32 0, %v710
      %v712 = vrot.slane %v708, %v711
      %vm713 = vcmp.eq.s32.totalorder %v712, 1
      %v714 = vsel %vm713, %v705, -1e+09
      %v715 = vsel %vm713, %v706, -1e+09
      %vm716 = vcmask 72704
      %v717 = vsel %vm716, %v714, -inf
      %718 = vmax.xlane.f32.xlu0 %v717
      %v719 = vpop.xlane.xlu0 %718
      %vm720 = vcmask 65536
      %v721 = vsel %vm720, %v715, -inf
      %722 = vmax.xlane.f32.xlu0 %v721
      %v723 = vpop.xlane.xlu0 %722
      %v724 = vsub.f32 %v714, %v719
      %v725 = vsub.f32 %v715, %v723
      %v726 = vmul.f32 %v724, 1.442695
      %v727 = vpow.pop %v726
      %v728 = vmul.f32 %v725, 1.442695
      %v729 = vpow.pop %v728
      %v730 = vsel %vm716, %v727, 0.0
      %731 = vadd.xlane.f32.xlu0 %v730
      %v732 = vpop.xlane.xlu0 %731
      %v733 = vsel %vm720, %v729, 0.0
      %734 = vadd.xlane.f32.xlu0 %v733
      %v735 = vpop.xlane.xlu0 %734
      %v736 = vrcp.pop %v732
      %v737 = vmul.f32 %v727, %v736
      %v738 = vrcp.pop %v735
      %v739 = vmul.f32 %v729, %v738
      %v740 = vpack.c.bf16 %v739, %v737
      %v741 = vpack.c.bf16 %v653, %v650
      %v743 = vsel %vm716, %v740, 0
      %vm745 = vcmask 1043456
      %vm746 = vcmask 1044480
      %v747 = vsel %vm745, 4294967295, 65535
      %v748 = vsel %vm746, %v747, 0
      %v750 = vand.u32 %v741, %v748
      %752 = vmatprep.subr.bf16.mxu0 0
      %753 = vmatpush1.bf16.msra.mxu0 0
      %754 = vmatprep.subr.bf16.mxu0 0
      %755 = vmatpush1.bf16.msra.mxu0 0
      %756 = vmatprep.subr.bf16.mxu0 0
      %757 = vmatpush1.bf16.msra.mxu0 0
      %758 = vmatprep.subr.bf16.mxu0 0
      %759 = vmatpush1.bf16.msra.mxu0 0
      %760 = vmatprep.subr.bf16.mxu0 0
      %761 = vmatpush1.bf16.msra.mxu0 0
      %762 = vmatprep.subr.bf16.mxu0 0
      %763 = vmatpush1.bf16.msra.mxu0 0
      %764 = vmatprep.subr.bf16.mxu0 0
      %765 = vmatpush1.bf16.msra.mxu0 0
      %766 = vmatprep.subr.bf16.mxu0 0
      %767 = vmatpush1.bf16.msra.mxu0 %v750
      %768 = vmatprep.subr.bf16.mxu0 0
      %769 = vmatpush2.bf16.msra.mxu0 0
      %770 = vmatprep.subr.bf16.mxu0 0
      %771 = vmatpush2.bf16.msra.mxu0 0
      %772 = vmatprep.subr.bf16.mxu0 0
      %773 = vmatpush2.bf16.msra.mxu0 0
      %774 = vmatprep.subr.bf16.mxu0 0
      %775 = vmatpush2.bf16.msra.mxu0 0
      %776 = vmatprep.subr.bf16.mxu0 0
      %777 = vmatpush2.bf16.msra.mxu0 0
      %778 = vmatprep.subr.bf16.mxu0 0
      %779 = vmatpush2.bf16.msra.mxu0 0
      %780 = vmatprep.subr.bf16.mxu0 0
      %781 = vmatpush2.bf16.msra.mxu0 0
      %782 = vmatprep.subr.bf16.mxu0 0
      %783 = vmatpush2.bf16.msra.mxu0 0
      %784 = vmatprep.mubr.bf16.mxu0 0
      %785 = vmatmul.mubr.bf16.gmra.mxu0 %v743
      %v786 = vpop.f32.mrf.mxu0
      %v787 = vadd.f32 0.0, %v786
      %v788 = vpop.f32.mrf.mxu0
      %v789 = vpop.f32.mrf.mxu0
      %v790 = vadd.f32 0.0, %v789
      %v791 = vpop.f32.mrf.mxu0
      %792 = vdwg.mxu0
      %v793 = vld [vmem:[%s6] sm:$0xf]
      %v794 = vld [vmem:[%s6 + $0x4] sm:$0xf]
      %v795 = vld [vmem:[%s6 + $0x8] sm:$0xf]
      %v796 = vld [vmem:[%s6 + $0xc] sm:$0xf]
      %v797 = vpack.c.bf16 %v790, %v787
      %s798 = scalar_lea.vmem %s6, 16
      %v799 = vld [vmem:[%s798] sm:$0xf]
      %v800 = vld [vmem:[%s798 + $0x4] sm:$0xf]
      %v801 = vld [vmem:[%s798 + $0x8] sm:$0xf]
      %v802 = vld [vmem:[%s798 + $0xc] sm:$0xf]
      %v807 = vunpack.c.l.b16 %v799
      %v808 = vunpack.c.l.b16 %v800
      %v809 = vunpack.c.l.b16 %v801
      %v810 = vunpack.c.l.b16 %v802
      %v811 = vpack.c.b16 %v808, %v807
      %v812 = vpack.c.b16 %v810, %v809
      %v816 = vsel %vm479, %v797, 0
      %818 = vmatprep.subr.bf16.mxu0 0
      %819 = vmatpush1.bf16.msra.mxu0 0
      %820 = vmatprep.subr.bf16.mxu0 0
      %821 = vmatpush1.bf16.msra.mxu0 0
      %822 = vmatprep.subr.bf16.mxu0 0
      %823 = vmatpush1.bf16.msra.mxu0 0
      %824 = vmatprep.subr.bf16.mxu0 0
      %825 = vmatpush1.bf16.msra.mxu0 0
      %826 = vmatprep.subr.bf16.mxu0 0
      %827 = vmatpush1.bf16.msra.mxu0 0
      %828 = vmatprep.subr.bf16.mxu0 0
      %829 = vmatpush1.bf16.msra.mxu0 0
      %830 = vmatprep.subr.bf16.mxu0 0
      %831 = vmatpush1.bf16.msra.mxu0 %v812
      %832 = vmatprep.subr.bf16.mxu0 0
      %833 = vmatpush1.bf16.msra.mxu0 %v811
      %834 = vmatprep.subr.bf16.mxu0 0
      %835 = vmatpush2.bf16.msra.mxu0 0
      %836 = vmatprep.subr.bf16.mxu0 0
      %837 = vmatpush2.bf16.msra.mxu0 0
      %838 = vmatprep.subr.bf16.mxu0 0
      %839 = vmatpush2.bf16.msra.mxu0 0
      %840 = vmatprep.subr.bf16.mxu0 0
      %841 = vmatpush2.bf16.msra.mxu0 0
      %842 = vmatprep.subr.bf16.mxu0 0
      %843 = vmatpush2.bf16.msra.mxu0 0
      %844 = vmatprep.subr.bf16.mxu0 0
      %845 = vmatpush2.bf16.msra.mxu0 0
      %846 = vmatprep.subr.bf16.mxu0 0
      %847 = vmatpush2.bf16.msra.mxu0 0
      %848 = vmatprep.subr.bf16.mxu0 0
      %849 = vmatpush2.bf16.msra.mxu0 0
      %850 = vmatprep.mubr.bf16.mxu0 0
      %851 = vmatmul.mubr.bf16.gmra.mxu0 %v816
      %v852 = vpop.f32.mrf.mxu0
      %v853 = vadd.f32 0.0, %v852
      %v854 = vpop.f32.mrf.mxu0
      %v855 = vpop.f32.mrf.mxu0
      %v856 = vadd.f32 0.0, %v855
      %v857 = vpop.f32.mrf.mxu0
      %858 = vdwg.mxu0
      %v863 = vunpack.c.l.b16 %v793
      %v864 = vunpack.c.l.b16 %v794
      %v865 = vunpack.c.l.b16 %v795
      %v866 = vunpack.c.l.b16 %v796
      %v867 = vpack.c.b16 %v864, %v863
      %v868 = vpack.c.b16 %v866, %v865
      %871 = vmatprep.subr.bf16.mxu0 0
      %872 = vmatpush1.bf16.msra.mxu0 0
      %873 = vmatprep.subr.bf16.mxu0 0
      %874 = vmatpush1.bf16.msra.mxu0 0
      %875 = vmatprep.subr.bf16.mxu0 0
      %876 = vmatpush1.bf16.msra.mxu0 0
      %877 = vmatprep.subr.bf16.mxu0 0
      %878 = vmatpush1.bf16.msra.mxu0 0
      %879 = vmatprep.subr.bf16.mxu0 0
      %880 = vmatpush1.bf16.msra.mxu0 0
      %881 = vmatprep.subr.bf16.mxu0 0
      %882 = vmatpush1.bf16.msra.mxu0 0
      %883 = vmatprep.subr.bf16.mxu0 0
      %884 = vmatpush1.bf16.msra.mxu0 %v868
      %885 = vmatprep.subr.bf16.mxu0 0
      %886 = vmatpush1.bf16.msra.mxu0 %v867
      %887 = vmatprep.subr.bf16.mxu0 0
      %888 = vmatpush2.bf16.msra.mxu0 0
      %889 = vmatprep.subr.bf16.mxu0 0
      %890 = vmatpush2.bf16.msra.mxu0 0
      %891 = vmatprep.subr.bf16.mxu0 0
      %892 = vmatpush2.bf16.msra.mxu0 0
      %893 = vmatprep.subr.bf16.mxu0 0
      %894 = vmatpush2.bf16.msra.mxu0 0
      %895 = vmatprep.subr.bf16.mxu0 0
      %896 = vmatpush2.bf16.msra.mxu0 0
      %897 = vmatprep.subr.bf16.mxu0 0
      %898 = vmatpush2.bf16.msra.mxu0 0
      %899 = vmatprep.subr.bf16.mxu0 0
      %900 = vmatpush2.bf16.msra.mxu0 0
      %901 = vmatprep.subr.bf16.mxu0 0
      %902 = vmatpush2.bf16.msra.mxu0 0
      %903 = vmatprep.mubr.bf16.mxu0 0
      %904 = vmatmul.mubr.bf16.gmra.mxu0 %v481
      %v905 = vpop.f32.mrf.mxu0
      %v906 = vadd.f32 %v853, %v905
      %v907 = vpop.f32.mrf.mxu0
      %v908 = vpop.f32.mrf.mxu0
      %v909 = vadd.f32 %v856, %v908
      %v910 = vpop.f32.mrf.mxu0
      %911 = vdwg.mxu0
      %v912 = vld [vmem:[%s7] sm:$0x1]
      %v914 = vlaneseq
      %v915 = vshrl.u32 %v914, 7
      %v916 = vsub.s32 0, %v915
      %v917 = vrot.slane %v912, %v916
      %v919 = vadd.f32 %v906, %v917
      %v920 = vadd.f32 %v909, %v917
      %v921 = vsel %vm479, %v919, 0.0
      %922 = vadd.xlane.f32.xlu0 %v921
      %v923 = vpop.xlane.xlu0 %922
      %vm924 = vcmask 253952
      %v925 = vsel %vm924, %v920, 0.0
      %926 = vadd.xlane.f32.xlu0 %v925
      %v927 = vpop.xlane.xlu0 %926
      %v928 = vrcp.pop 32.0
      %v929 = vmul.f32 %v923, %v928
      %v930 = vmul.f32 %v927, %v928
      %v931 = vsub.f32 %v919, %v929
      %v932 = vsub.f32 %v920, %v930
      %v933 = vmul.f32 %v931, %v931
      %v934 = vmul.f32 %v932, %v932
      %v935 = vsel %vm479, %v933, 0.0
      %936 = vadd.xlane.f32.xlu0 %v935
      %v937 = vpop.xlane.xlu0 %936
      %v938 = vsel %vm924, %v934, 0.0
      %939 = vadd.xlane.f32.xlu0 %v938
      %v940 = vpop.xlane.xlu0 %939
      %v941 = vmul.f32 %v937, %v928
      %v942 = vmul.f32 %v940, %v928
      %v943 = vadd.f32 %v941, 1e-05
      %v944 = vadd.f32 %v942, 1e-05
      %v945 = vrsqrt.pop %v943
      %v946 = vrsqrt.pop %v944
      %v947 = vmul.f32 %v931, %v945
      %v948 = vmul.f32 %v932, %v946
      %v949 = vld [vmem:[%s8] sm:$0x1]
      %v951 = vlaneseq
      %v952 = vshrl.u32 %v951, 7
      %v953 = vsub.s32 0, %v952
      %v954 = vrot.slane %v949, %v953
      %v956 = vmul.f32 %v947, %v954
      %v957 = vmul.f32 %v948, %v954
      %v958 = vld [vmem:[%s9] sm:$0x1]
      %v960 = vlaneseq
      %v961 = vshrl.u32 %v960, 7
      %v962 = vsub.s32 0, %v961
      %v963 = vrot.slane %v958, %v962
      %v965 = vadd.f32 %v956, %v963
      %v966 = vadd.f32 %v957, %v963
      %v967 = vadd.f32 %v449, %v965
      %v968 = vadd.f32 %v450, %v966
      %v969 = vpack.c.bf16 %v452, %v451
      %v971 = vsel %vm479, %v969, 0
      %973 = vmatprep.subr.bf16.mxu0 0
      %974 = vmatpush1.bf16.msra.mxu0 0
      %975 = vmatprep.subr.bf16.mxu0 0
      %976 = vmatpush1.bf16.msra.mxu0 0
      %977 = vmatprep.subr.bf16.mxu0 0
      %978 = vmatpush1.bf16.msra.mxu0 0
      %979 = vmatprep.subr.bf16.mxu0 0
      %980 = vmatpush1.bf16.msra.mxu0 0
      %981 = vmatprep.subr.bf16.mxu0 0
      %982 = vmatpush1.bf16.msra.mxu0 0
      %983 = vmatprep.subr.bf16.mxu0 0
      %984 = vmatpush1.bf16.msra.mxu0 0
      %985 = vmatprep.subr.bf16.mxu0 0
      %986 = vmatpush1.bf16.msra.mxu0 %v476
      %987 = vmatprep.subr.bf16.mxu0 0
      %988 = vmatpush1.bf16.msra.mxu0 %v475
      %989 = vmatprep.subr.bf16.mxu0 0
      %990 = vmatpush2.bf16.msra.mxu0 0
      %991 = vmatprep.subr.bf16.mxu0 0
      %992 = vmatpush2.bf16.msra.mxu0 0
      %993 = vmatprep.subr.bf16.mxu0 0
      %994 = vmatpush2.bf16.msra.mxu0 0
      %995 = vmatprep.subr.bf16.mxu0 0
      %996 = vmatpush2.bf16.msra.mxu0 0
      %997 = vmatprep.subr.bf16.mxu0 0
      %998 = vmatpush2.bf16.msra.mxu0 0
      %999 = vmatprep.subr.bf16.mxu0 0
      %1000 = vmatpush2.bf16.msra.mxu0 0
      %1001 = vmatprep.subr.bf16.mxu0 0
      %1002 = vmatpush2.bf16.msra.mxu0 0
      %1003 = vmatprep.subr.bf16.mxu0 0
      %1004 = vmatpush2.bf16.msra.mxu0 0
      %1005 = vmatprep.mubr.bf16.mxu0 0
      %1006 = vmatmul.mubr.bf16.gmra.mxu0 %v971
      %v1007 = vpop.f32.mrf.mxu0
      %v1008 = vadd.f32 %v465, %v1007
      %v1009 = vpop.f32.mrf.mxu0
      %v1010 = vpop.f32.mrf.mxu0
      %v1011 = vadd.f32 %v465, %v1010
      %v1012 = vpop.f32.mrf.mxu0
      %1013 = vdwg.mxu0
      %1014 = vmatprep.subr.bf16.mxu0 0
      %1015 = vmatpush1.bf16.msra.mxu0 0
      %1016 = vmatprep.subr.bf16.mxu0 0
      %1017 = vmatpush1.bf16.msra.mxu0 0
      %1018 = vmatprep.subr.bf16.mxu0 0
      %1019 = vmatpush1.bf16.msra.mxu0 0
      %1020 = vmatprep.subr.bf16.mxu0 0
      %1021 = vmatpush1.bf16.msra.mxu0 0
      %1022 = vmatprep.subr.bf16.mxu0 0
      %1023 = vmatpush1.bf16.msra.mxu0 0
      %1024 = vmatprep.subr.bf16.mxu0 0
      %1025 = vmatpush1.bf16.msra.mxu0 0
      %1026 = vmatprep.subr.bf16.mxu0 0
      %1027 = vmatpush1.bf16.msra.mxu0 %v546
      %1028 = vmatprep.subr.bf16.mxu0 0
      %1029 = vmatpush1.bf16.msra.mxu0 %v545
      %1030 = vmatprep.subr.bf16.mxu0 0
      %1031 = vmatpush2.bf16.msra.mxu0 0
      %1032 = vmatprep.subr.bf16.mxu0 0
      %1033 = vmatpush2.bf16.msra.mxu0 0
      %1034 = vmatprep.subr.bf16.mxu0 0
      %1035 = vmatpush2.bf16.msra.mxu0 0
      %1036 = vmatprep.subr.bf16.mxu0 0
      %1037 = vmatpush2.bf16.msra.mxu0 0
      %1038 = vmatprep.subr.bf16.mxu0 0
      %1039 = vmatpush2.bf16.msra.mxu0 0
      %1040 = vmatprep.subr.bf16.mxu0 0
      %1041 = vmatpush2.bf16.msra.mxu0 0
      %1042 = vmatprep.subr.bf16.mxu0 0
      %1043 = vmatpush2.bf16.msra.mxu0 0
      %1044 = vmatprep.subr.bf16.mxu0 0
      %1045 = vmatpush2.bf16.msra.mxu0 0
      %1046 = vmatprep.mubr.bf16.mxu0 0
      %1047 = vmatmul.mubr.bf16.gmra.mxu0 %v971
      %v1048 = vpop.f32.mrf.mxu0
      %v1049 = vadd.f32 %v535, %v1048
      %v1050 = vpop.f32.mrf.mxu0
      %v1051 = vpop.f32.mrf.mxu0
      %v1052 = vadd.f32 %v535, %v1051
      %v1053 = vpop.f32.mrf.mxu0
      %1054 = vdwg.mxu0
      %1055 = vmatprep.subr.bf16.mxu0 0
      %1056 = vmatpush1.bf16.msra.mxu0 0
      %1057 = vmatprep.subr.bf16.mxu0 0
      %1058 = vmatpush1.bf16.msra.mxu0 0
      %1059 = vmatprep.subr.bf16.mxu0 0
      %1060 = vmatpush1.bf16.msra.mxu0 0
      %1061 = vmatprep.subr.bf16.mxu0 0
      %1062 = vmatpush1.bf16.msra.mxu0 0
      %1063 = vmatprep.subr.bf16.mxu0 0
      %1064 = vmatpush1.bf16.msra.mxu0 0
      %1065 = vmatprep.subr.bf16.mxu0 0
      %1066 = vmatpush1.bf16.msra.mxu0 0
      %1067 = vmatprep.subr.bf16.mxu0 0
      %1068 = vmatpush1.bf16.msra.mxu0 %v612
      %1069 = vmatprep.subr.bf16.mxu0 0
      %1070 = vmatpush1.bf16.msra.mxu0 %v611
      %1071 = vmatprep.subr.bf16.mxu0 0
      %1072 = vmatpush2.bf16.msra.mxu0 0
      %1073 = vmatprep.subr.bf16.mxu0 0
      %1074 = vmatpush2.bf16.msra.mxu0 0
      %1075 = vmatprep.subr.bf16.mxu0 0
      %1076 = vmatpush2.bf16.msra.mxu0 0
      %1077 = vmatprep.subr.bf16.mxu0 0
      %1078 = vmatpush2.bf16.msra.mxu0 0
      %1079 = vmatprep.subr.bf16.mxu0 0
      %1080 = vmatpush2.bf16.msra.mxu0 0
      %1081 = vmatprep.subr.bf16.mxu0 0
      %1082 = vmatpush2.bf16.msra.mxu0 0
      %1083 = vmatprep.subr.bf16.mxu0 0
      %1084 = vmatpush2.bf16.msra.mxu0 0
      %1085 = vmatprep.subr.bf16.mxu0 0
      %1086 = vmatpush2.bf16.msra.mxu0 0
      %1087 = vmatprep.mubr.bf16.mxu0 0
      %1088 = vmatmul.mubr.bf16.gmra.mxu0 %v971
      %v1089 = vpop.f32.mrf.mxu0
      %v1090 = vadd.f32 %v601, %v1089
      %v1091 = vpop.f32.mrf.mxu0
      %v1092 = vpop.f32.mrf.mxu0
      %v1093 = vadd.f32 %v601, %v1092
      %v1094 = vpop.f32.mrf.mxu0
      %1095 = vdwg.mxu0
      %v1096 = vpack.c.bf16 %v1011, %v1008
      %v1097 = vpack.c.bf16 %v1052, %v1049
      %v1099 = vsel %vm479, %v1096, 0
      %v1102 = vsel %vm479, %v1097, 0
      %1104 = vmatprep.subr.bf16.mxu0 0
      %1105 = vmatpush1.bf16.xpose.msra.mxu0 0
      %1106 = vmatprep.subr.bf16.mxu0 0
      %1107 = vmatpush1.bf16.xpose.msra.mxu0 0
      %1108 = vmatprep.subr.bf16.mxu0 0
      %1109 = vmatpush1.bf16.xpose.msra.mxu0 0
      %1110 = vmatprep.subr.bf16.mxu0 0
      %1111 = vmatpush1.bf16.xpose.msra.mxu0 0
      %1112 = vmatprep.subr.bf16.mxu0 0
      %1113 = vmatpush1.bf16.xpose.msra.mxu0 0
      %1114 = vmatprep.subr.bf16.mxu0 0
      %1115 = vmatpush1.bf16.xpose.msra.mxu0 0
      %1116 = vmatprep.subr.bf16.mxu0 0
      %1117 = vmatpush1.bf16.xpose.msra.mxu0 0
      %1118 = vmatprep.subr.bf16.mxu0 0
      %1119 = vmatpush1.bf16.xpose.msra.mxu0 %v1102
      %1120 = vmatprep.subr.bf16.mxu0 0
      %1121 = vmatpush2.bf16.xpose.msra.mxu0 0
      %1122 = vmatprep.subr.bf16.mxu0 0
      %1123 = vmatpush2.bf16.xpose.msra.mxu0 0
      %1124 = vmatprep.subr.bf16.mxu0 0
      %1125 = vmatpush2.bf16.xpose.msra.mxu0 0
      %1126 = vmatprep.subr.bf16.mxu0 0
      %1127 = vmatpush2.bf16.xpose.msra.mxu0 0
      %1128 = vmatprep.subr.bf16.mxu0 0
      %1129 = vmatpush2.bf16.xpose.msra.mxu0 0
      %1130 = vmatprep.subr.bf16.mxu0 0
      %1131 = vmatpush2.bf16.xpose.msra.mxu0 0
      %1132 = vmatprep.subr.bf16.mxu0 0
      %1133 = vmatpush2.bf16.xpose.msra.mxu0 0
      %1134 = vmatprep.subr.bf16.mxu0 0
      %1135 = vmatpush2.bf16.xpose.msra.mxu0 0
      %1136 = vmatprep.mubr.bf16.mxu0 0
      %1137 = vmatmul.mubr.bf16.gmra.mxu0 %v1099
      %v1138 = vpop.f32.mrf.mxu0
      %v1139 = vadd.f32 0.0, %v1138
      %v1140 = vpop.f32.mrf.mxu0
      %v1141 = vpop.f32.mrf.mxu0
      %v1142 = vadd.f32 0.0, %v1141
      %v1143 = vpop.f32.mrf.mxu0
      %1144 = vdwg.mxu0
      %v1145 = vmul.f32 %v1139, 0.17677669
      %v1146 = vmul.f32 %v1142, 0.17677669
      %vm1147 = vcmp.gt.f32.partialorder %v454, 0.5
      %v1148 = vsel %vm1147, 1, 0
      %v1149 = vlaneseq
      %v1150 = vshrl.u32 %v1149, 7
      %v1151 = vsub.s32 0, %v1150
      %v1152 = vrot.slane %v1148, %v1151
      %vm1153 = vcmp.eq.s32.totalorder %v1152, 1
      %v1154 = vsel %vm1153, %v1145, -1e+09
      %v1155 = vsel %vm1153, %v1146, -1e+09
      %v1156 = vsel %vm716, %v1154, -inf
      %1157 = vmax.xlane.f32.xlu0 %v1156
      %v1158 = vpop.xlane.xlu0 %1157
      %v1159 = vsel %vm720, %v1155, -inf
      %1160 = vmax.xlane.f32.xlu0 %v1159
      %v1161 = vpop.xlane.xlu0 %1160
      %v1162 = vsub.f32 %v1154, %v1158
      %v1163 = vsub.f32 %v1155, %v1161
      %v1164 = vmul.f32 %v1162, 1.442695
      %v1165 = vpow.pop %v1164
      %v1166 = vmul.f32 %v1163, 1.442695
      %v1167 = vpow.pop %v1166
      %v1168 = vsel %vm716, %v1165, 0.0
      %1169 = vadd.xlane.f32.xlu0 %v1168
      %v1170 = vpop.xlane.xlu0 %1169
      %v1171 = vsel %vm720, %v1167, 0.0
      %1172 = vadd.xlane.f32.xlu0 %v1171
      %v1173 = vpop.xlane.xlu0 %1172
      %v1174 = vrcp.pop %v1170
      %v1175 = vmul.f32 %v1165, %v1174
      %v1176 = vrcp.pop %v1173
      %v1177 = vmul.f32 %v1167, %v1176
      %v1178 = vpack.c.bf16 %v1177, %v1175
      %v1179 = vpack.c.bf16 %v1093, %v1090
      %v1181 = vsel %vm716, %v1178, 0
      %v1184 = vand.u32 %v1179, %v748
      %1186 = vmatprep.subr.bf16.mxu0 0
      %1187 = vmatpush1.bf16.msra.mxu0 0
      %1188 = vmatprep.subr.bf16.mxu0 0
      %1189 = vmatpush1.bf16.msra.mxu0 0
      %1190 = vmatprep.subr.bf16.mxu0 0
      %1191 = vmatpush1.bf16.msra.mxu0 0
      %1192 = vmatprep.subr.bf16.mxu0 0
      %1193 = vmatpush1.bf16.msra.mxu0 0
      %1194 = vmatprep.subr.bf16.mxu0 0
      %1195 = vmatpush1.bf16.msra.mxu0 0
      %1196 = vmatprep.subr.bf16.mxu0 0
      %1197 = vmatpush1.bf16.msra.mxu0 0
      %1198 = vmatprep.subr.bf16.mxu0 0
      %1199 = vmatpush1.bf16.msra.mxu0 0
      %1200 = vmatprep.subr.bf16.mxu0 0
      %1201 = vmatpush1.bf16.msra.mxu0 %v1184
      %1202 = vmatprep.subr.bf16.mxu0 0
      %1203 = vmatpush2.bf16.msra.mxu0 0
      %1204 = vmatprep.subr.bf16.mxu0 0
      %1205 = vmatpush2.bf16.msra.mxu0 0
      %1206 = vmatprep.subr.bf16.mxu0 0
      %1207 = vmatpush2.bf16.msra.mxu0 0
      %1208 = vmatprep.subr.bf16.mxu0 0
      %1209 = vmatpush2.bf16.msra.mxu0 0
      %1210 = vmatprep.subr.bf16.mxu0 0
      %1211 = vmatpush2.bf16.msra.mxu0 0
      %1212 = vmatprep.subr.bf16.mxu0 0
      %1213 = vmatpush2.bf16.msra.mxu0 0
      %1214 = vmatprep.subr.bf16.mxu0 0
      %1215 = vmatpush2.bf16.msra.mxu0 0
      %1216 = vmatprep.subr.bf16.mxu0 0
      %1217 = vmatpush2.bf16.msra.mxu0 0
      %1218 = vmatprep.mubr.bf16.mxu0 0
      %1219 = vmatmul.mubr.bf16.gmra.mxu0 %v1181
      %v1220 = vpop.f32.mrf.mxu0
      %v1221 = vadd.f32 0.0, %v1220
      %v1222 = vpop.f32.mrf.mxu0
      %v1223 = vpop.f32.mrf.mxu0
      %v1224 = vadd.f32 0.0, %v1223
      %v1225 = vpop.f32.mrf.mxu0
      %1226 = vdwg.mxu0
      %v1227 = vpack.c.bf16 %v1224, %v1221
      %v1229 = vsel %vm479, %v1227, 0
      %1231 = vmatprep.subr.bf16.mxu0 0
      %1232 = vmatpush1.bf16.msra.mxu0 0
      %1233 = vmatprep.subr.bf16.mxu0 0
      %1234 = vmatpush1.bf16.msra.mxu0 0
      %1235 = vmatprep.subr.bf16.mxu0 0
      %1236 = vmatpush1.bf16.msra.mxu0 0
      %1237 = vmatprep.subr.bf16.mxu0 0
      %1238 = vmatpush1.bf16.msra.mxu0 0
      %1239 = vmatprep.subr.bf16.mxu0 0
      %1240 = vmatpush1.bf16.msra.mxu0 0
      %1241 = vmatprep.subr.bf16.mxu0 0
      %1242 = vmatpush1.bf16.msra.mxu0 0
      %1243 = vmatprep.subr.bf16.mxu0 0
      %1244 = vmatpush1.bf16.msra.mxu0 %v812
      %1245 = vmatprep.subr.bf16.mxu0 0
      %1246 = vmatpush1.bf16.msra.mxu0 %v811
      %1247 = vmatprep.subr.bf16.mxu0 0
      %1248 = vmatpush2.bf16.msra.mxu0 0
      %1249 = vmatprep.subr.bf16.mxu0 0
      %1250 = vmatpush2.bf16.msra.mxu0 0
      %1251 = vmatprep.subr.bf16.mxu0 0
      %1252 = vmatpush2.bf16.msra.mxu0 0
      %1253 = vmatprep.subr.bf16.mxu0 0
      %1254 = vmatpush2.bf16.msra.mxu0 0
      %1255 = vmatprep.subr.bf16.mxu0 0
      %1256 = vmatpush2.bf16.msra.mxu0 0
      %1257 = vmatprep.subr.bf16.mxu0 0
      %1258 = vmatpush2.bf16.msra.mxu0 0
      %1259 = vmatprep.subr.bf16.mxu0 0
      %1260 = vmatpush2.bf16.msra.mxu0 0
      %1261 = vmatprep.subr.bf16.mxu0 0
      %1262 = vmatpush2.bf16.msra.mxu0 0
      %1263 = vmatprep.mubr.bf16.mxu0 0
      %1264 = vmatmul.mubr.bf16.gmra.mxu0 %v1229
      %v1265 = vpop.f32.mrf.mxu0
      %v1266 = vadd.f32 0.0, %v1265
      %v1267 = vpop.f32.mrf.mxu0
      %v1268 = vpop.f32.mrf.mxu0
      %v1269 = vadd.f32 0.0, %v1268
      %v1270 = vpop.f32.mrf.mxu0
      %1271 = vdwg.mxu0
      %1272 = vmatprep.subr.bf16.mxu0 0
      %1273 = vmatpush1.bf16.msra.mxu0 0
      %1274 = vmatprep.subr.bf16.mxu0 0
      %1275 = vmatpush1.bf16.msra.mxu0 0
      %1276 = vmatprep.subr.bf16.mxu0 0
      %1277 = vmatpush1.bf16.msra.mxu0 0
      %1278 = vmatprep.subr.bf16.mxu0 0
      %1279 = vmatpush1.bf16.msra.mxu0 0
      %1280 = vmatprep.subr.bf16.mxu0 0
      %1281 = vmatpush1.bf16.msra.mxu0 0
      %1282 = vmatprep.subr.bf16.mxu0 0
      %1283 = vmatpush1.bf16.msra.mxu0 0
      %1284 = vmatprep.subr.bf16.mxu0 0
      %1285 = vmatpush1.bf16.msra.mxu0 %v868
      %1286 = vmatprep.subr.bf16.mxu0 0
      %1287 = vmatpush1.bf16.msra.mxu0 %v867
      %1288 = vmatprep.subr.bf16.mxu0 0
      %1289 = vmatpush2.bf16.msra.mxu0 0
      %1290 = vmatprep.subr.bf16.mxu0 0
      %1291 = vmatpush2.bf16.msra.mxu0 0
      %1292 = vmatprep.subr.bf16.mxu0 0
      %1293 = vmatpush2.bf16.msra.mxu0 0
      %1294 = vmatprep.subr.bf16.mxu0 0
      %1295 = vmatpush2.bf16.msra.mxu0 0
      %1296 = vmatprep.subr.bf16.mxu0 0
      %1297 = vmatpush2.bf16.msra.mxu0 0
      %1298 = vmatprep.subr.bf16.mxu0 0
      %1299 = vmatpush2.bf16.msra.mxu0 0
      %1300 = vmatprep.subr.bf16.mxu0 0
      %1301 = vmatpush2.bf16.msra.mxu0 0
      %1302 = vmatprep.subr.bf16.mxu0 0
      %1303 = vmatpush2.bf16.msra.mxu0 0
      %1304 = vmatprep.mubr.bf16.mxu0 0
      %1305 = vmatmul.mubr.bf16.gmra.mxu0 %v971
      %v1306 = vpop.f32.mrf.mxu0
      %v1307 = vadd.f32 %v1266, %v1306
      %v1308 = vpop.f32.mrf.mxu0
      %v1309 = vpop.f32.mrf.mxu0
      %v1310 = vadd.f32 %v1269, %v1309
      %v1311 = vpop.f32.mrf.mxu0
      %1312 = vdwg.mxu0
      %v1313 = vadd.f32 %v1307, %v917
      %v1314 = vadd.f32 %v1310, %v917
      %v1315 = vsel %vm479, %v1313, 0.0
      %1316 = vadd.xlane.f32.xlu0 %v1315
      %v1317 = vpop.xlane.xlu0 %1316
      %v1318 = vsel %vm924, %v1314, 0.0
      %1319 = vadd.xlane.f32.xlu0 %v1318
      %v1320 = vpop.xlane.xlu0 %1319
      %v1321 = vmul.f32 %v1317, %v928
      %v1322 = vmul.f32 %v1320, %v928
      %v1323 = vsub.f32 %v1313, %v1321
      %v1324 = vsub.f32 %v1314, %v1322
      %v1325 = vmul.f32 %v1323, %v1323
      %v1326 = vmul.f32 %v1324, %v1324
      %v1327 = vsel %vm479, %v1325, 0.0
      %1328 = vadd.xlane.f32.xlu0 %v1327
      %v1329 = vpop.xlane.xlu0 %1328
      %v1330 = vsel %vm924, %v1326, 0.0
      %1331 = vadd.xlane.f32.xlu0 %v1330
      %v1332 = vpop.xlane.xlu0 %1331
      %v1333 = vmul.f32 %v1329, %v928
      %v1334 = vmul.f32 %v1332, %v928
      %v1335 = vadd.f32 %v1333, 1e-05
      %v1336 = vadd.f32 %v1334, 1e-05
      %v1337 = vrsqrt.pop %v1335
      %v1338 = vrsqrt.pop %v1336
      %v1339 = vmul.f32 %v1323, %v1337
      %v1340 = vmul.f32 %v1324, %v1338
      %v1341 = vmul.f32 %v1339, %v954
      %v1342 = vmul.f32 %v1340, %v954
      %v1343 = vadd.f32 %v1341, %v963
      %v1344 = vadd.f32 %v1342, %v963
      %v1345 = vadd.f32 %v451, %v1343
      %v1346 = vadd.f32 %v452, %v1344
      %v1347 = vpack.c.bf16 %v968, %v967
      %v1348 = vpack.c.bf16 %v1346, %v1345
      %s1349 = scalar_lea.vmem %s4, 48
      %v1350 = vld [vmem:[%s1349] sm:$0xf]
      %v1351 = vld [vmem:[%s1349 + $0x4] sm:$0xf]
      %v1352 = vld [vmem:[%s1349 + $0x8] sm:$0xf]
      %v1353 = vld [vmem:[%s1349 + $0xc] sm:$0xf]
      %s1354 = scalar_lea.vmem %s5, 3
      %v1355 = vld [vmem:[%s1354] sm:$0x1]
      %v1357 = vlaneseq
      %v1358 = vshrl.u32 %v1357, 7
      %v1359 = vsub.s32 0, %v1358
      %v1360 = vrot.slane %v1355, %v1359
      %v1366 = vunpack.c.l.b16 %v1350
      %v1367 = vunpack.c.l.b16 %v1351
      %v1368 = vunpack.c.l.b16 %v1352
      %v1369 = vunpack.c.l.b16 %v1353
      %v1370 = vpack.c.b16 %v1367, %v1366
      %v1371 = vpack.c.b16 %v1369, %v1368
      %v1375 = vsel %vm479, %v1347, 0
      %1377 = vmatprep.subr.bf16.mxu0 0
      %1378 = vmatpush1.bf16.msra.mxu0 0
      %1379 = vmatprep.subr.bf16.mxu0 0
      %1380 = vmatpush1.bf16.msra.mxu0 0
      %1381 = vmatprep.subr.bf16.mxu0 0
      %1382 = vmatpush1.bf16.msra.mxu0 0
      %1383 = vmatprep.subr.bf16.mxu0 0
      %1384 = vmatpush1.bf16.msra.mxu0 0
      %1385 = vmatprep.subr.bf16.mxu0 0
      %1386 = vmatpush1.bf16.msra.mxu0 0
      %1387 = vmatprep.subr.bf16.mxu0 0
      %1388 = vmatpush1.bf16.msra.mxu0 0
      %1389 = vmatprep.subr.bf16.mxu0 0
      %1390 = vmatpush1.bf16.msra.mxu0 %v1371
      %1391 = vmatprep.subr.bf16.mxu0 0
      %1392 = vmatpush1.bf16.msra.mxu0 %v1370
      %1393 = vmatprep.subr.bf16.mxu0 0
      %1394 = vmatpush2.bf16.msra.mxu0 0
      %1395 = vmatprep.subr.bf16.mxu0 0
      %1396 = vmatpush2.bf16.msra.mxu0 0
      %1397 = vmatprep.subr.bf16.mxu0 0
      %1398 = vmatpush2.bf16.msra.mxu0 0
      %1399 = vmatprep.subr.bf16.mxu0 0
      %1400 = vmatpush2.bf16.msra.mxu0 0
      %1401 = vmatprep.subr.bf16.mxu0 0
      %1402 = vmatpush2.bf16.msra.mxu0 0
      %1403 = vmatprep.subr.bf16.mxu0 0
      %1404 = vmatpush2.bf16.msra.mxu0 0
      %1405 = vmatprep.subr.bf16.mxu0 0
      %1406 = vmatpush2.bf16.msra.mxu0 0
      %1407 = vmatprep.subr.bf16.mxu0 0
      %1408 = vmatpush2.bf16.msra.mxu0 0
      %1409 = vmatprep.mubr.bf16.mxu0 0
      %1410 = vmatmul.mubr.bf16.gmra.mxu0 %v1375
      %v1411 = vpop.f32.mrf.mxu0
      %v1412 = vadd.f32 %v1360, %v1411
      %v1413 = vpop.f32.mrf.mxu0
      %v1414 = vpop.f32.mrf.mxu0
      %v1415 = vadd.f32 %v1360, %v1414
      %v1416 = vpop.f32.mrf.mxu0
      %1417 = vdwg.mxu0
      %s1418 = scalar_lea.vmem %s4, 64
      %v1419 = vld [vmem:[%s1418] sm:$0xf]
      %v1420 = vld [vmem:[%s1418 + $0x4] sm:$0xf]
      %v1421 = vld [vmem:[%s1418 + $0x8] sm:$0xf]
      %v1422 = vld [vmem:[%s1418 + $0xc] sm:$0xf]
      %s1423 = scalar_lea.vmem %s5, 4
      %v1424 = vld [vmem:[%s1423] sm:$0x1]
      %v1426 = vlaneseq
      %v1427 = vshrl.u32 %v1426, 7
      %v1428 = vsub.s32 0, %v1427
      %v1429 = vrot.slane %v1424, %v1428
      %v1435 = vunpack.c.l.b16 %v1419
      %v1436 = vunpack.c.l.b16 %v1420
      %v1437 = vunpack.c.l.b16 %v1421
      %v1438 = vunpack.c.l.b16 %v1422
      %v1439 = vpack.c.b16 %v1436, %v1435
      %v1440 = vpack.c.b16 %v1438, %v1437
      %v1444 = vsel %vm479, %v1348, 0
      %1446 = vmatprep.subr.bf16.mxu0 0
      %1447 = vmatpush1.bf16.msra.mxu0 0
      %1448 = vmatprep.subr.bf16.mxu0 0
      %1449 = vmatpush1.bf16.msra.mxu0 0
      %1450 = vmatprep.subr.bf16.mxu0 0
      %1451 = vmatpush1.bf16.msra.mxu0 0
      %1452 = vmatprep.subr.bf16.mxu0 0
      %1453 = vmatpush1.bf16.msra.mxu0 0
      %1454 = vmatprep.subr.bf16.mxu0 0
      %1455 = vmatpush1.bf16.msra.mxu0 0
      %1456 = vmatprep.subr.bf16.mxu0 0
      %1457 = vmatpush1.bf16.msra.mxu0 0
      %1458 = vmatprep.subr.bf16.mxu0 0
      %1459 = vmatpush1.bf16.msra.mxu0 %v1440
      %1460 = vmatprep.subr.bf16.mxu0 0
      %1461 = vmatpush1.bf16.msra.mxu0 %v1439
      %1462 = vmatprep.subr.bf16.mxu0 0
      %1463 = vmatpush2.bf16.msra.mxu0 0
      %1464 = vmatprep.subr.bf16.mxu0 0
      %1465 = vmatpush2.bf16.msra.mxu0 0
      %1466 = vmatprep.subr.bf16.mxu0 0
      %1467 = vmatpush2.bf16.msra.mxu0 0
      %1468 = vmatprep.subr.bf16.mxu0 0
      %1469 = vmatpush2.bf16.msra.mxu0 0
      %1470 = vmatprep.subr.bf16.mxu0 0
      %1471 = vmatpush2.bf16.msra.mxu0 0
      %1472 = vmatprep.subr.bf16.mxu0 0
      %1473 = vmatpush2.bf16.msra.mxu0 0
      %1474 = vmatprep.subr.bf16.mxu0 0
      %1475 = vmatpush2.bf16.msra.mxu0 0
      %1476 = vmatprep.subr.bf16.mxu0 0
      %1477 = vmatpush2.bf16.msra.mxu0 0
      %1478 = vmatprep.mubr.bf16.mxu0 0
      %1479 = vmatmul.mubr.bf16.gmra.mxu0 %v1444
      %v1480 = vpop.f32.mrf.mxu0
      %v1481 = vadd.f32 %v1429, %v1480
      %v1482 = vpop.f32.mrf.mxu0
      %v1483 = vpop.f32.mrf.mxu0
      %v1484 = vadd.f32 %v1429, %v1483
      %v1485 = vpop.f32.mrf.mxu0
      %1486 = vdwg.mxu0
      %s1487 = scalar_lea.vmem %s4, 80
      %v1488 = vld [vmem:[%s1487] sm:$0xf]
      %v1489 = vld [vmem:[%s1487 + $0x4] sm:$0xf]
      %v1490 = vld [vmem:[%s1487 + $0x8] sm:$0xf]
      %v1491 = vld [vmem:[%s1487 + $0xc] sm:$0xf]
      %s1492 = scalar_lea.vmem %s5, 5
      %v1493 = vld [vmem:[%s1492] sm:$0x1]
      %v1495 = vlaneseq
      %v1496 = vshrl.u32 %v1495, 7
      %v1497 = vsub.s32 0, %v1496
      %v1498 = vrot.slane %v1493, %v1497
      %v1504 = vunpack.c.l.b16 %v1488
      %v1505 = vunpack.c.l.b16 %v1489
      %v1506 = vunpack.c.l.b16 %v1490
      %v1507 = vunpack.c.l.b16 %v1491
      %v1508 = vpack.c.b16 %v1505, %v1504
      %v1509 = vpack.c.b16 %v1507, %v1506
      %1512 = vmatprep.subr.bf16.mxu0 0
      %1513 = vmatpush1.bf16.msra.mxu0 0
      %1514 = vmatprep.subr.bf16.mxu0 0
      %1515 = vmatpush1.bf16.msra.mxu0 0
      %1516 = vmatprep.subr.bf16.mxu0 0
      %1517 = vmatpush1.bf16.msra.mxu0 0
      %1518 = vmatprep.subr.bf16.mxu0 0
      %1519 = vmatpush1.bf16.msra.mxu0 0
      %1520 = vmatprep.subr.bf16.mxu0 0
      %1521 = vmatpush1.bf16.msra.mxu0 0
      %1522 = vmatprep.subr.bf16.mxu0 0
      %1523 = vmatpush1.bf16.msra.mxu0 0
      %1524 = vmatprep.subr.bf16.mxu0 0
      %1525 = vmatpush1.bf16.msra.mxu0 %v1509
      %1526 = vmatprep.subr.bf16.mxu0 0
      %1527 = vmatpush1.bf16.msra.mxu0 %v1508
      %1528 = vmatprep.subr.bf16.mxu0 0
      %1529 = vmatpush2.bf16.msra.mxu0 0
      %1530 = vmatprep.subr.bf16.mxu0 0
      %1531 = vmatpush2.bf16.msra.mxu0 0
      %1532 = vmatprep.subr.bf16.mxu0 0
      %1533 = vmatpush2.bf16.msra.mxu0 0
      %1534 = vmatprep.subr.bf16.mxu0 0
      %1535 = vmatpush2.bf16.msra.mxu0 0
      %1536 = vmatprep.subr.bf16.mxu0 0
      %1537 = vmatpush2.bf16.msra.mxu0 0
      %1538 = vmatprep.subr.bf16.mxu0 0
      %1539 = vmatpush2.bf16.msra.mxu0 0
      %1540 = vmatprep.subr.bf16.mxu0 0
      %1541 = vmatpush2.bf16.msra.mxu0 0
      %1542 = vmatprep.subr.bf16.mxu0 0
      %1543 = vmatpush2.bf16.msra.mxu0 0
      %1544 = vmatprep.mubr.bf16.mxu0 0
      %1545 = vmatmul.mubr.bf16.gmra.mxu0 %v1444
      %v1546 = vpop.f32.mrf.mxu0
      %v1547 = vadd.f32 %v1498, %v1546
      %v1548 = vpop.f32.mrf.mxu0
      %v1549 = vpop.f32.mrf.mxu0
      %v1550 = vadd.f32 %v1498, %v1549
      %v1551 = vpop.f32.mrf.mxu0
      %1552 = vdwg.mxu0
      %v1553 = vpack.c.bf16 %v1415, %v1412
      %v1554 = vpack.c.bf16 %v1484, %v1481
      %v1556 = vsel %vm479, %v1553, 0
      %v1559 = vsel %vm479, %v1554, 0
      %1561 = vmatprep.subr.bf16.mxu0 0
      %1562 = vmatpush1.bf16.xpose.msra.mxu0 0
      %1563 = vmatprep.subr.bf16.mxu0 0
      %1564 = vmatpush1.bf16.xpose.msra.mxu0 0
      %1565 = vmatprep.subr.bf16.mxu0 0
      %1566 = vmatpush1.bf16.xpose.msra.mxu0 0
      %1567 = vmatprep.subr.bf16.mxu0 0
      %1568 = vmatpush1.bf16.xpose.msra.mxu0 0
      %1569 = vmatprep.subr.bf16.mxu0 0
      %1570 = vmatpush1.bf16.xpose.msra.mxu0 0
      %1571 = vmatprep.subr.bf16.mxu0 0
      %1572 = vmatpush1.bf16.xpose.msra.mxu0 0
      %1573 = vmatprep.subr.bf16.mxu0 0
      %1574 = vmatpush1.bf16.xpose.msra.mxu0 0
      %1575 = vmatprep.subr.bf16.mxu0 0
      %1576 = vmatpush1.bf16.xpose.msra.mxu0 %v1559
      %1577 = vmatprep.subr.bf16.mxu0 0
      %1578 = vmatpush2.bf16.xpose.msra.mxu0 0
      %1579 = vmatprep.subr.bf16.mxu0 0
      %1580 = vmatpush2.bf16.xpose.msra.mxu0 0
      %1581 = vmatprep.subr.bf16.mxu0 0
      %1582 = vmatpush2.bf16.xpose.msra.mxu0 0
      %1583 = vmatprep.subr.bf16.mxu0 0
      %1584 = vmatpush2.bf16.xpose.msra.mxu0 0
      %1585 = vmatprep.subr.bf16.mxu0 0
      %1586 = vmatpush2.bf16.xpose.msra.mxu0 0
      %1587 = vmatprep.subr.bf16.mxu0 0
      %1588 = vmatpush2.bf16.xpose.msra.mxu0 0
      %1589 = vmatprep.subr.bf16.mxu0 0
      %1590 = vmatpush2.bf16.xpose.msra.mxu0 0
      %1591 = vmatprep.subr.bf16.mxu0 0
      %1592 = vmatpush2.bf16.xpose.msra.mxu0 0
      %1593 = vmatprep.mubr.bf16.mxu0 0
      %1594 = vmatmul.mubr.bf16.gmra.mxu0 %v1556
      %v1595 = vpop.f32.mrf.mxu0
      %v1596 = vadd.f32 0.0, %v1595
      %v1597 = vpop.f32.mrf.mxu0
      %v1598 = vpop.f32.mrf.mxu0
      %v1599 = vadd.f32 0.0, %v1598
      %v1600 = vpop.f32.mrf.mxu0
      %1601 = vdwg.mxu0
      %v1602 = vmul.f32 %v1596, 0.17677669
      %v1603 = vmul.f32 %v1599, 0.17677669
      %v1604 = vsel %vm1153, %v1602, -1e+09
      %v1605 = vsel %vm1153, %v1603, -1e+09
      %v1606 = vsel %vm716, %v1604, -inf
      %1607 = vmax.xlane.f32.xlu0 %v1606
      %v1608 = vpop.xlane.xlu0 %1607
      %v1609 = vsel %vm720, %v1605, -inf
      %1610 = vmax.xlane.f32.xlu0 %v1609
      %v1611 = vpop.xlane.xlu0 %1610
      %v1612 = vsub.f32 %v1604, %v1608
      %v1613 = vsub.f32 %v1605, %v1611
      %v1614 = vmul.f32 %v1612, 1.442695
      %v1615 = vpow.pop %v1614
      %v1616 = vmul.f32 %v1613, 1.442695
      %v1617 = vpow.pop %v1616
      %v1618 = vsel %vm716, %v1615, 0.0
      %1619 = vadd.xlane.f32.xlu0 %v1618
      %v1620 = vpop.xlane.xlu0 %1619
      %v1621 = vsel %vm720, %v1617, 0.0
      %1622 = vadd.xlane.f32.xlu0 %v1621
      %v1623 = vpop.xlane.xlu0 %1622
      %v1624 = vrcp.pop %v1620
      %v1625 = vmul.f32 %v1615, %v1624
      %v1626 = vrcp.pop %v1623
      %v1627 = vmul.f32 %v1617, %v1626
      %v1628 = vpack.c.bf16 %v1627, %v1625
      %v1629 = vpack.c.bf16 %v1550, %v1547
      %v1631 = vsel %vm716, %v1628, 0
      %v1634 = vand.u32 %v1629, %v748
      %1636 = vmatprep.subr.bf16.mxu0 0
      %1637 = vmatpush1.bf16.msra.mxu0 0
      %1638 = vmatprep.subr.bf16.mxu0 0
      %1639 = vmatpush1.bf16.msra.mxu0 0
      %1640 = vmatprep.subr.bf16.mxu0 0
      %1641 = vmatpush1.bf16.msra.mxu0 0
      %1642 = vmatprep.subr.bf16.mxu0 0
      %1643 = vmatpush1.bf16.msra.mxu0 0
      %1644 = vmatprep.subr.bf16.mxu0 0
      %1645 = vmatpush1.bf16.msra.mxu0 0
      %1646 = vmatprep.subr.bf16.mxu0 0
      %1647 = vmatpush1.bf16.msra.mxu0 0
      %1648 = vmatprep.subr.bf16.mxu0 0
      %1649 = vmatpush1.bf16.msra.mxu0 0
      %1650 = vmatprep.subr.bf16.mxu0 0
      %1651 = vmatpush1.bf16.msra.mxu0 %v1634
      %1652 = vmatprep.subr.bf16.mxu0 0
      %1653 = vmatpush2.bf16.msra.mxu0 0
      %1654 = vmatprep.subr.bf16.mxu0 0
      %1655 = vmatpush2.bf16.msra.mxu0 0
      %1656 = vmatprep.subr.bf16.mxu0 0
      %1657 = vmatpush2.bf16.msra.mxu0 0
      %1658 = vmatprep.subr.bf16.mxu0 0
      %1659 = vmatpush2.bf16.msra.mxu0 0
      %1660 = vmatprep.subr.bf16.mxu0 0
      %1661 = vmatpush2.bf16.msra.mxu0 0
      %1662 = vmatprep.subr.bf16.mxu0 0
      %1663 = vmatpush2.bf16.msra.mxu0 0
      %1664 = vmatprep.subr.bf16.mxu0 0
      %1665 = vmatpush2.bf16.msra.mxu0 0
      %1666 = vmatprep.subr.bf16.mxu0 0
      %1667 = vmatpush2.bf16.msra.mxu0 0
      %1668 = vmatprep.mubr.bf16.mxu0 0
      %1669 = vmatmul.mubr.bf16.gmra.mxu0 %v1631
      %v1670 = vpop.f32.mrf.mxu0
      %v1671 = vadd.f32 0.0, %v1670
      %v1672 = vpop.f32.mrf.mxu0
      %v1673 = vpop.f32.mrf.mxu0
      %v1674 = vadd.f32 0.0, %v1673
      %v1675 = vpop.f32.mrf.mxu0
      %1676 = vdwg.mxu0
      %s1677 = scalar_lea.vmem %s6, 32
      %v1678 = vld [vmem:[%s1677] sm:$0xf]
      %v1679 = vld [vmem:[%s1677 + $0x4] sm:$0xf]
      %v1680 = vld [vmem:[%s1677 + $0x8] sm:$0xf]
      %v1681 = vld [vmem:[%s1677 + $0xc] sm:$0xf]
      %v1682 = vpack.c.bf16 %v1674, %v1671
      %s1683 = scalar_lea.vmem %s6, 48
      %v1684 = vld [vmem:[%s1683] sm:$0xf]
      %v1685 = vld [vmem:[%s1683 + $0x4] sm:$0xf]
      %v1686 = vld [vmem:[%s1683 + $0x8] sm:$0xf]
      %v1687 = vld [vmem:[%s1683 + $0xc] sm:$0xf]
      %v1692 = vunpack.c.l.b16 %v1684
      %v1693 = vunpack.c.l.b16 %v1685
      %v1694 = vunpack.c.l.b16 %v1686
      %v1695 = vunpack.c.l.b16 %v1687
      %v1696 = vpack.c.b16 %v1693, %v1692
      %v1697 = vpack.c.b16 %v1695, %v1694
      %v1701 = vsel %vm479, %v1682, 0
      %1703 = vmatprep.subr.bf16.mxu0 0
      %1704 = vmatpush1.bf16.msra.mxu0 0
      %1705 = vmatprep.subr.bf16.mxu0 0
      %1706 = vmatpush1.bf16.msra.mxu0 0
      %1707 = vmatprep.subr.bf16.mxu0 0
      %1708 = vmatpush1.bf16.msra.mxu0 0
      %1709 = vmatprep.subr.bf16.mxu0 0
      %1710 = vmatpush1.bf16.msra.mxu0 0
      %1711 = vmatprep.subr.bf16.mxu0 0
      %1712 = vmatpush1.bf16.msra.mxu0 0
      %1713 = vmatprep.subr.bf16.mxu0 0
      %1714 = vmatpush1.bf16.msra.mxu0 0
      %1715 = vmatprep.subr.bf16.mxu0 0
      %1716 = vmatpush1.bf16.msra.mxu0 %v1697
      %1717 = vmatprep.subr.bf16.mxu0 0
      %1718 = vmatpush1.bf16.msra.mxu0 %v1696
      %1719 = vmatprep.subr.bf16.mxu0 0
      %1720 = vmatpush2.bf16.msra.mxu0 0
      %1721 = vmatprep.subr.bf16.mxu0 0
      %1722 = vmatpush2.bf16.msra.mxu0 0
      %1723 = vmatprep.subr.bf16.mxu0 0
      %1724 = vmatpush2.bf16.msra.mxu0 0
      %1725 = vmatprep.subr.bf16.mxu0 0
      %1726 = vmatpush2.bf16.msra.mxu0 0
      %1727 = vmatprep.subr.bf16.mxu0 0
      %1728 = vmatpush2.bf16.msra.mxu0 0
      %1729 = vmatprep.subr.bf16.mxu0 0
      %1730 = vmatpush2.bf16.msra.mxu0 0
      %1731 = vmatprep.subr.bf16.mxu0 0
      %1732 = vmatpush2.bf16.msra.mxu0 0
      %1733 = vmatprep.subr.bf16.mxu0 0
      %1734 = vmatpush2.bf16.msra.mxu0 0
      %1735 = vmatprep.mubr.bf16.mxu0 0
      %1736 = vmatmul.mubr.bf16.gmra.mxu0 %v1701
      %v1737 = vpop.f32.mrf.mxu0
      %v1738 = vadd.f32 0.0, %v1737
      %v1739 = vpop.f32.mrf.mxu0
      %v1740 = vpop.f32.mrf.mxu0
      %v1741 = vadd.f32 0.0, %v1740
      %v1742 = vpop.f32.mrf.mxu0
      %1743 = vdwg.mxu0
      %v1748 = vunpack.c.l.b16 %v1678
      %v1749 = vunpack.c.l.b16 %v1679
      %v1750 = vunpack.c.l.b16 %v1680
      %v1751 = vunpack.c.l.b16 %v1681
      %v1752 = vpack.c.b16 %v1749, %v1748
      %v1753 = vpack.c.b16 %v1751, %v1750
      %1756 = vmatprep.subr.bf16.mxu0 0
      %1757 = vmatpush1.bf16.msra.mxu0 0
      %1758 = vmatprep.subr.bf16.mxu0 0
      %1759 = vmatpush1.bf16.msra.mxu0 0
      %1760 = vmatprep.subr.bf16.mxu0 0
      %1761 = vmatpush1.bf16.msra.mxu0 0
      %1762 = vmatprep.subr.bf16.mxu0 0
      %1763 = vmatpush1.bf16.msra.mxu0 0
      %1764 = vmatprep.subr.bf16.mxu0 0
      %1765 = vmatpush1.bf16.msra.mxu0 0
      %1766 = vmatprep.subr.bf16.mxu0 0
      %1767 = vmatpush1.bf16.msra.mxu0 0
      %1768 = vmatprep.subr.bf16.mxu0 0
      %1769 = vmatpush1.bf16.msra.mxu0 %v1753
      %1770 = vmatprep.subr.bf16.mxu0 0
      %1771 = vmatpush1.bf16.msra.mxu0 %v1752
      %1772 = vmatprep.subr.bf16.mxu0 0
      %1773 = vmatpush2.bf16.msra.mxu0 0
      %1774 = vmatprep.subr.bf16.mxu0 0
      %1775 = vmatpush2.bf16.msra.mxu0 0
      %1776 = vmatprep.subr.bf16.mxu0 0
      %1777 = vmatpush2.bf16.msra.mxu0 0
      %1778 = vmatprep.subr.bf16.mxu0 0
      %1779 = vmatpush2.bf16.msra.mxu0 0
      %1780 = vmatprep.subr.bf16.mxu0 0
      %1781 = vmatpush2.bf16.msra.mxu0 0
      %1782 = vmatprep.subr.bf16.mxu0 0
      %1783 = vmatpush2.bf16.msra.mxu0 0
      %1784 = vmatprep.subr.bf16.mxu0 0
      %1785 = vmatpush2.bf16.msra.mxu0 0
      %1786 = vmatprep.subr.bf16.mxu0 0
      %1787 = vmatpush2.bf16.msra.mxu0 0
      %1788 = vmatprep.mubr.bf16.mxu0 0
      %1789 = vmatmul.mubr.bf16.gmra.mxu0 %v1375
      %v1790 = vpop.f32.mrf.mxu0
      %v1791 = vadd.f32 %v1738, %v1790
      %v1792 = vpop.f32.mrf.mxu0
      %v1793 = vpop.f32.mrf.mxu0
      %v1794 = vadd.f32 %v1741, %v1793
      %v1795 = vpop.f32.mrf.mxu0
      %1796 = vdwg.mxu0
      %s1797 = scalar_lea.vmem %s7, 1
      %v1798 = vld [vmem:[%s1797] sm:$0x1]
      %v1800 = vlaneseq
      %v1801 = vshrl.u32 %v1800, 7
      %v1802 = vsub.s32 0, %v1801
      %v1803 = vrot.slane %v1798, %v1802
      %v1805 = vadd.f32 %v1791, %v1803
      %v1806 = vadd.f32 %v1794, %v1803
      %v1807 = vsel %vm479, %v1805, 0.0
      %1808 = vadd.xlane.f32.xlu0 %v1807
      %v1809 = vpop.xlane.xlu0 %1808
      %v1810 = vsel %vm924, %v1806, 0.0
      %1811 = vadd.xlane.f32.xlu0 %v1810
      %v1812 = vpop.xlane.xlu0 %1811
      %v1813 = vmul.f32 %v1809, %v928
      %v1814 = vmul.f32 %v1812, %v928
      %v1815 = vsub.f32 %v1805, %v1813
      %v1816 = vsub.f32 %v1806, %v1814
      %v1817 = vmul.f32 %v1815, %v1815
      %v1818 = vmul.f32 %v1816, %v1816
      %v1819 = vsel %vm479, %v1817, 0.0
      %1820 = vadd.xlane.f32.xlu0 %v1819
      %v1821 = vpop.xlane.xlu0 %1820
      %v1822 = vsel %vm924, %v1818, 0.0
      %1823 = vadd.xlane.f32.xlu0 %v1822
      %v1824 = vpop.xlane.xlu0 %1823
      %v1825 = vmul.f32 %v1821, %v928
      %v1826 = vmul.f32 %v1824, %v928
      %v1827 = vadd.f32 %v1825, 1e-05
      %v1828 = vadd.f32 %v1826, 1e-05
      %v1829 = vrsqrt.pop %v1827
      %v1830 = vrsqrt.pop %v1828
      %v1831 = vmul.f32 %v1815, %v1829
      %v1832 = vmul.f32 %v1816, %v1830
      %s1833 = scalar_lea.vmem %s8, 1
      %v1834 = vld [vmem:[%s1833] sm:$0x1]
      %v1836 = vlaneseq
      %v1837 = vshrl.u32 %v1836, 7
      %v1838 = vsub.s32 0, %v1837
      %v1839 = vrot.slane %v1834, %v1838
      %v1841 = vmul.f32 %v1831, %v1839
      %v1842 = vmul.f32 %v1832, %v1839
      %s1843 = scalar_lea.vmem %s9, 1
      %v1844 = vld [vmem:[%s1843] sm:$0x1]
      %v1846 = vlaneseq
      %v1847 = vshrl.u32 %v1846, 7
      %v1848 = vsub.s32 0, %v1847
      %v1849 = vrot.slane %v1844, %v1848
      %v1851 = vadd.f32 %v1841, %v1849
      %v1852 = vadd.f32 %v1842, %v1849
      %v1853 = vadd.f32 %v967, %v1851
      %v1854 = vadd.f32 %v968, %v1852
      %1855 = vmatprep.subr.bf16.mxu0 0
      %1856 = vmatpush1.bf16.msra.mxu0 0
      %1857 = vmatprep.subr.bf16.mxu0 0
      %1858 = vmatpush1.bf16.msra.mxu0 0
      %1859 = vmatprep.subr.bf16.mxu0 0
      %1860 = vmatpush1.bf16.msra.mxu0 0
      %1861 = vmatprep.subr.bf16.mxu0 0
      %1862 = vmatpush1.bf16.msra.mxu0 0
      %1863 = vmatprep.subr.bf16.mxu0 0
      %1864 = vmatpush1.bf16.msra.mxu0 0
      %1865 = vmatprep.subr.bf16.mxu0 0
      %1866 = vmatpush1.bf16.msra.mxu0 0
      %1867 = vmatprep.subr.bf16.mxu0 0
      %1868 = vmatpush1.bf16.msra.mxu0 %v1371
      %1869 = vmatprep.subr.bf16.mxu0 0
      %1870 = vmatpush1.bf16.msra.mxu0 %v1370
      %1871 = vmatprep.subr.bf16.mxu0 0
      %1872 = vmatpush2.bf16.msra.mxu0 0
      %1873 = vmatprep.subr.bf16.mxu0 0
      %1874 = vmatpush2.bf16.msra.mxu0 0
      %1875 = vmatprep.subr.bf16.mxu0 0
      %1876 = vmatpush2.bf16.msra.mxu0 0
      %1877 = vmatprep.subr.bf16.mxu0 0
      %1878 = vmatpush2.bf16.msra.mxu0 0
      %1879 = vmatprep.subr.bf16.mxu0 0
      %1880 = vmatpush2.bf16.msra.mxu0 0
      %1881 = vmatprep.subr.bf16.mxu0 0
      %1882 = vmatpush2.bf16.msra.mxu0 0
      %1883 = vmatprep.subr.bf16.mxu0 0
      %1884 = vmatpush2.bf16.msra.mxu0 0
      %1885 = vmatprep.subr.bf16.mxu0 0
      %1886 = vmatpush2.bf16.msra.mxu0 0
      %1887 = vmatprep.mubr.bf16.mxu0 0
      %1888 = vmatmul.mubr.bf16.gmra.mxu0 %v1444
      %v1889 = vpop.f32.mrf.mxu0
      %v1890 = vadd.f32 %v1360, %v1889
      %v1891 = vpop.f32.mrf.mxu0
      %v1892 = vpop.f32.mrf.mxu0
      %v1893 = vadd.f32 %v1360, %v1892
      %v1894 = vpop.f32.mrf.mxu0
      %1895 = vdwg.mxu0
      %1896 = vmatprep.subr.bf16.mxu0 0
      %1897 = vmatpush1.bf16.msra.mxu0 0
      %1898 = vmatprep.subr.bf16.mxu0 0
      %1899 = vmatpush1.bf16.msra.mxu0 0
      %1900 = vmatprep.subr.bf16.mxu0 0
      %1901 = vmatpush1.bf16.msra.mxu0 0
      %1902 = vmatprep.subr.bf16.mxu0 0
      %1903 = vmatpush1.bf16.msra.mxu0 0
      %1904 = vmatprep.subr.bf16.mxu0 0
      %1905 = vmatpush1.bf16.msra.mxu0 0
      %1906 = vmatprep.subr.bf16.mxu0 0
      %1907 = vmatpush1.bf16.msra.mxu0 0
      %1908 = vmatprep.subr.bf16.mxu0 0
      %1909 = vmatpush1.bf16.msra.mxu0 %v1440
      %1910 = vmatprep.subr.bf16.mxu0 0
      %1911 = vmatpush1.bf16.msra.mxu0 %v1439
      %1912 = vmatprep.subr.bf16.mxu0 0
      %1913 = vmatpush2.bf16.msra.mxu0 0
      %1914 = vmatprep.subr.bf16.mxu0 0
      %1915 = vmatpush2.bf16.msra.mxu0 0
      %1916 = vmatprep.subr.bf16.mxu0 0
      %1917 = vmatpush2.bf16.msra.mxu0 0
      %1918 = vmatprep.subr.bf16.mxu0 0
      %1919 = vmatpush2.bf16.msra.mxu0 0
      %1920 = vmatprep.subr.bf16.mxu0 0
      %1921 = vmatpush2.bf16.msra.mxu0 0
      %1922 = vmatprep.subr.bf16.mxu0 0
      %1923 = vmatpush2.bf16.msra.mxu0 0
      %1924 = vmatprep.subr.bf16.mxu0 0
      %1925 = vmatpush2.bf16.msra.mxu0 0
      %1926 = vmatprep.subr.bf16.mxu0 0
      %1927 = vmatpush2.bf16.msra.mxu0 0
      %1928 = vmatprep.mubr.bf16.mxu0 0
      %1929 = vmatmul.mubr.bf16.gmra.mxu0 %v1375
      %v1930 = vpop.f32.mrf.mxu0
      %v1931 = vadd.f32 %v1429, %v1930
      %v1932 = vpop.f32.mrf.mxu0
      %v1933 = vpop.f32.mrf.mxu0
      %v1934 = vadd.f32 %v1429, %v1933
      %v1935 = vpop.f32.mrf.mxu0
      %1936 = vdwg.mxu0
      %1937 = vmatprep.subr.bf16.mxu0 0
      %1938 = vmatpush1.bf16.msra.mxu0 0
      %1939 = vmatprep.subr.bf16.mxu0 0
      %1940 = vmatpush1.bf16.msra.mxu0 0
      %1941 = vmatprep.subr.bf16.mxu0 0
      %1942 = vmatpush1.bf16.msra.mxu0 0
      %1943 = vmatprep.subr.bf16.mxu0 0
      %1944 = vmatpush1.bf16.msra.mxu0 0
      %1945 = vmatprep.subr.bf16.mxu0 0
      %1946 = vmatpush1.bf16.msra.mxu0 0
      %1947 = vmatprep.subr.bf16.mxu0 0
      %1948 = vmatpush1.bf16.msra.mxu0 0
      %1949 = vmatprep.subr.bf16.mxu0 0
      %1950 = vmatpush1.bf16.msra.mxu0 %v1509
      %1951 = vmatprep.subr.bf16.mxu0 0
      %1952 = vmatpush1.bf16.msra.mxu0 %v1508
      %1953 = vmatprep.subr.bf16.mxu0 0
      %1954 = vmatpush2.bf16.msra.mxu0 0
      %1955 = vmatprep.subr.bf16.mxu0 0
      %1956 = vmatpush2.bf16.msra.mxu0 0
      %1957 = vmatprep.subr.bf16.mxu0 0
      %1958 = vmatpush2.bf16.msra.mxu0 0
      %1959 = vmatprep.subr.bf16.mxu0 0
      %1960 = vmatpush2.bf16.msra.mxu0 0
      %1961 = vmatprep.subr.bf16.mxu0 0
      %1962 = vmatpush2.bf16.msra.mxu0 0
      %1963 = vmatprep.subr.bf16.mxu0 0
      %1964 = vmatpush2.bf16.msra.mxu0 0
      %1965 = vmatprep.subr.bf16.mxu0 0
      %1966 = vmatpush2.bf16.msra.mxu0 0
      %1967 = vmatprep.subr.bf16.mxu0 0
      %1968 = vmatpush2.bf16.msra.mxu0 0
      %1969 = vmatprep.mubr.bf16.mxu0 0
      %1970 = vmatmul.mubr.bf16.gmra.mxu0 %v1375
      %v1971 = vpop.f32.mrf.mxu0
      %v1972 = vadd.f32 %v1498, %v1971
      %v1973 = vpop.f32.mrf.mxu0
      %v1974 = vpop.f32.mrf.mxu0
      %v1975 = vadd.f32 %v1498, %v1974
      %v1976 = vpop.f32.mrf.mxu0
      %1977 = vdwg.mxu0
      %v1978 = vpack.c.bf16 %v1893, %v1890
      %v1979 = vpack.c.bf16 %v1934, %v1931
      %v1981 = vsel %vm479, %v1978, 0
      %v1984 = vsel %vm479, %v1979, 0
      %1986 = vmatprep.subr.bf16.mxu0 0
      %1987 = vmatpush1.bf16.xpose.msra.mxu0 0
      %1988 = vmatprep.subr.bf16.mxu0 0
      %1989 = vmatpush1.bf16.xpose.msra.mxu0 0
      %1990 = vmatprep.subr.bf16.mxu0 0
      %1991 = vmatpush1.bf16.xpose.msra.mxu0 0
      %1992 = vmatprep.subr.bf16.mxu0 0
      %1993 = vmatpush1.bf16.xpose.msra.mxu0 0
      %1994 = vmatprep.subr.bf16.mxu0 0
      %1995 = vmatpush1.bf16.xpose.msra.mxu0 0
      %1996 = vmatprep.subr.bf16.mxu0 0
      %1997 = vmatpush1.bf16.xpose.msra.mxu0 0
      %1998 = vmatprep.subr.bf16.mxu0 0
      %1999 = vmatpush1.bf16.xpose.msra.mxu0 0
      %2000 = vmatprep.subr.bf16.mxu0 0
      %2001 = vmatpush1.bf16.xpose.msra.mxu0 %v1984
      %2002 = vmatprep.subr.bf16.mxu0 0
      %2003 = vmatpush2.bf16.xpose.msra.mxu0 0
      %2004 = vmatprep.subr.bf16.mxu0 0
      %2005 = vmatpush2.bf16.xpose.msra.mxu0 0
      %2006 = vmatprep.subr.bf16.mxu0 0
      %2007 = vmatpush2.bf16.xpose.msra.mxu0 0
      %2008 = vmatprep.subr.bf16.mxu0 0
      %2009 = vmatpush2.bf16.xpose.msra.mxu0 0
      %2010 = vmatprep.subr.bf16.mxu0 0
      %2011 = vmatpush2.bf16.xpose.msra.mxu0 0
      %2012 = vmatprep.subr.bf16.mxu0 0
      %2013 = vmatpush2.bf16.xpose.msra.mxu0 0
      %2014 = vmatprep.subr.bf16.mxu0 0
      %2015 = vmatpush2.bf16.xpose.msra.mxu0 0
      %2016 = vmatprep.subr.bf16.mxu0 0
      %2017 = vmatpush2.bf16.xpose.msra.mxu0 0
      %2018 = vmatprep.mubr.bf16.mxu0 0
      %2019 = vmatmul.mubr.bf16.gmra.mxu0 %v1981
      %v2020 = vpop.f32.mrf.mxu0
      %v2021 = vadd.f32 0.0, %v2020
      %v2022 = vpop.f32.mrf.mxu0
      %v2023 = vpop.f32.mrf.mxu0
      %v2024 = vadd.f32 0.0, %v2023
      %v2025 = vpop.f32.mrf.mxu0
      %2026 = vdwg.mxu0
      %v2027 = vmul.f32 %v2021, 0.17677669
      %v2028 = vmul.f32 %v2024, 0.17677669
      %v2029 = vsel %vm713, %v2027, -1e+09
      %v2030 = vsel %vm713, %v2028, -1e+09
      %v2031 = vsel %vm716, %v2029, -inf
      %2032 = vmax.xlane.f32.xlu0 %v2031
      %v2033 = vpop.xlane.xlu0 %2032
      %v2034 = vsel %vm720, %v2030, -inf
      %2035 = vmax.xlane.f32.xlu0 %v2034
      %v2036 = vpop.xlane.xlu0 %2035
      %v2037 = vsub.f32 %v2029, %v2033
      %v2038 = vsub.f32 %v2030, %v2036
      %v2039 = vmul.f32 %v2037, 1.442695
      %v2040 = vpow.pop %v2039
      %v2041 = vmul.f32 %v2038, 1.442695
      %v2042 = vpow.pop %v2041
      %v2043 = vsel %vm716, %v2040, 0.0
      %2044 = vadd.xlane.f32.xlu0 %v2043
      %v2045 = vpop.xlane.xlu0 %2044
      %v2046 = vsel %vm720, %v2042, 0.0
      %2047 = vadd.xlane.f32.xlu0 %v2046
      %v2048 = vpop.xlane.xlu0 %2047
      %v2049 = vrcp.pop %v2045
      %v2050 = vmul.f32 %v2040, %v2049
      %v2051 = vrcp.pop %v2048
      %v2052 = vmul.f32 %v2042, %v2051
      %v2053 = vpack.c.bf16 %v2052, %v2050
      %v2054 = vpack.c.bf16 %v1975, %v1972
      %v2056 = vsel %vm716, %v2053, 0
      %v2059 = vand.u32 %v2054, %v748
      %2061 = vmatprep.subr.bf16.mxu0 0
      %2062 = vmatpush1.bf16.msra.mxu0 0
      %2063 = vmatprep.subr.bf16.mxu0 0
      %2064 = vmatpush1.bf16.msra.mxu0 0
      %2065 = vmatprep.subr.bf16.mxu0 0
      %2066 = vmatpush1.bf16.msra.mxu0 0
      %2067 = vmatprep.subr.bf16.mxu0 0
      %2068 = vmatpush1.bf16.msra.mxu0 0
      %2069 = vmatprep.subr.bf16.mxu0 0
      %2070 = vmatpush1.bf16.msra.mxu0 0
      %2071 = vmatprep.subr.bf16.mxu0 0
      %2072 = vmatpush1.bf16.msra.mxu0 0
      %2073 = vmatprep.subr.bf16.mxu0 0
      %2074 = vmatpush1.bf16.msra.mxu0 0
      %2075 = vmatprep.subr.bf16.mxu0 0
      %2076 = vmatpush1.bf16.msra.mxu0 %v2059
      %2077 = vmatprep.subr.bf16.mxu0 0
      %2078 = vmatpush2.bf16.msra.mxu0 0
      %2079 = vmatprep.subr.bf16.mxu0 0
      %2080 = vmatpush2.bf16.msra.mxu0 0
      %2081 = vmatprep.subr.bf16.mxu0 0
      %2082 = vmatpush2.bf16.msra.mxu0 0
      %2083 = vmatprep.subr.bf16.mxu0 0
      %2084 = vmatpush2.bf16.msra.mxu0 0
      %2085 = vmatprep.subr.bf16.mxu0 0
      %2086 = vmatpush2.bf16.msra.mxu0 0
      %2087 = vmatprep.subr.bf16.mxu0 0
      %2088 = vmatpush2.bf16.msra.mxu0 0
      %2089 = vmatprep.subr.bf16.mxu0 0
      %2090 = vmatpush2.bf16.msra.mxu0 0
      %2091 = vmatprep.subr.bf16.mxu0 0
      %2092 = vmatpush2.bf16.msra.mxu0 0
      %2093 = vmatprep.mubr.bf16.mxu0 0
      %2094 = vmatmul.mubr.bf16.gmra.mxu0 %v2056
      %v2095 = vpop.f32.mrf.mxu0
      %v2096 = vadd.f32 0.0, %v2095
      %v2097 = vpop.f32.mrf.mxu0
      %v2098 = vpop.f32.mrf.mxu0
      %v2099 = vadd.f32 0.0, %v2098
      %v2100 = vpop.f32.mrf.mxu0
      %2101 = vdwg.mxu0
      %v2102 = vpack.c.bf16 %v2099, %v2096
      %v2104 = vsel %vm479, %v2102, 0
      %2106 = vmatprep.subr.bf16.mxu0 0
      %2107 = vmatpush1.bf16.msra.mxu0 0
      %2108 = vmatprep.subr.bf16.mxu0 0
      %2109 = vmatpush1.bf16.msra.mxu0 0
      %2110 = vmatprep.subr.bf16.mxu0 0
      %2111 = vmatpush1.bf16.msra.mxu0 0
      %2112 = vmatprep.subr.bf16.mxu0 0
      %2113 = vmatpush1.bf16.msra.mxu0 0
      %2114 = vmatprep.subr.bf16.mxu0 0
      %2115 = vmatpush1.bf16.msra.mxu0 0
      %2116 = vmatprep.subr.bf16.mxu0 0
      %2117 = vmatpush1.bf16.msra.mxu0 0
      %2118 = vmatprep.subr.bf16.mxu0 0
      %2119 = vmatpush1.bf16.msra.mxu0 %v1697
      %2120 = vmatprep.subr.bf16.mxu0 0
      %2121 = vmatpush1.bf16.msra.mxu0 %v1696
      %2122 = vmatprep.subr.bf16.mxu0 0
      %2123 = vmatpush2.bf16.msra.mxu0 0
      %2124 = vmatprep.subr.bf16.mxu0 0
      %2125 = vmatpush2.bf16.msra.mxu0 0
      %2126 = vmatprep.subr.bf16.mxu0 0
      %2127 = vmatpush2.bf16.msra.mxu0 0
      %2128 = vmatprep.subr.bf16.mxu0 0
      %2129 = vmatpush2.bf16.msra.mxu0 0
      %2130 = vmatprep.subr.bf16.mxu0 0
      %2131 = vmatpush2.bf16.msra.mxu0 0
      %2132 = vmatprep.subr.bf16.mxu0 0
      %2133 = vmatpush2.bf16.msra.mxu0 0
      %2134 = vmatprep.subr.bf16.mxu0 0
      %2135 = vmatpush2.bf16.msra.mxu0 0
      %2136 = vmatprep.subr.bf16.mxu0 0
      %2137 = vmatpush2.bf16.msra.mxu0 0
      %2138 = vmatprep.mubr.bf16.mxu0 0
      %2139 = vmatmul.mubr.bf16.gmra.mxu0 %v2104
      %v2140 = vpop.f32.mrf.mxu0
      %v2141 = vadd.f32 0.0, %v2140
      %v2142 = vpop.f32.mrf.mxu0
      %v2143 = vpop.f32.mrf.mxu0
      %v2144 = vadd.f32 0.0, %v2143
      %v2145 = vpop.f32.mrf.mxu0
      %2146 = vdwg.mxu0
      %2147 = vmatprep.subr.bf16.mxu0 0
      %2148 = vmatpush1.bf16.msra.mxu0 0
      %2149 = vmatprep.subr.bf16.mxu0 0
      %2150 = vmatpush1.bf16.msra.mxu0 0
      %2151 = vmatprep.subr.bf16.mxu0 0
      %2152 = vmatpush1.bf16.msra.mxu0 0
      %2153 = vmatprep.subr.bf16.mxu0 0
      %2154 = vmatpush1.bf16.msra.mxu0 0
      %2155 = vmatprep.subr.bf16.mxu0 0
      %2156 = vmatpush1.bf16.msra.mxu0 0
      %2157 = vmatprep.subr.bf16.mxu0 0
      %2158 = vmatpush1.bf16.msra.mxu0 0
      %2159 = vmatprep.subr.bf16.mxu0 0
      %2160 = vmatpush1.bf16.msra.mxu0 %v1753
      %2161 = vmatprep.subr.bf16.mxu0 0
      %2162 = vmatpush1.bf16.msra.mxu0 %v1752
      %2163 = vmatprep.subr.bf16.mxu0 0
      %2164 = vmatpush2.bf16.msra.mxu0 0
      %2165 = vmatprep.subr.bf16.mxu0 0
      %2166 = vmatpush2.bf16.msra.mxu0 0
      %2167 = vmatprep.subr.bf16.mxu0 0
      %2168 = vmatpush2.bf16.msra.mxu0 0
      %2169 = vmatprep.subr.bf16.mxu0 0
      %2170 = vmatpush2.bf16.msra.mxu0 0
      %2171 = vmatprep.subr.bf16.mxu0 0
      %2172 = vmatpush2.bf16.msra.mxu0 0
      %2173 = vmatprep.subr.bf16.mxu0 0
      %2174 = vmatpush2.bf16.msra.mxu0 0
      %2175 = vmatprep.subr.bf16.mxu0 0
      %2176 = vmatpush2.bf16.msra.mxu0 0
      %2177 = vmatprep.subr.bf16.mxu0 0
      %2178 = vmatpush2.bf16.msra.mxu0 0
      %2179 = vmatprep.mubr.bf16.mxu0 0
      %2180 = vmatmul.mubr.bf16.gmra.mxu0 %v1444
      %v2181 = vpop.f32.mrf.mxu0
      %v2182 = vadd.f32 %v2141, %v2181
      %v2183 = vpop.f32.mrf.mxu0
      %v2184 = vpop.f32.mrf.mxu0
      %v2185 = vadd.f32 %v2144, %v2184
      %v2186 = vpop.f32.mrf.mxu0
      %2187 = vdwg.mxu0
      %v2188 = vadd.f32 %v2182, %v1803
      %v2189 = vadd.f32 %v2185, %v1803
      %v2190 = vsel %vm479, %v2188, 0.0
      %2191 = vadd.xlane.f32.xlu0 %v2190
      %v2192 = vpop.xlane.xlu0 %2191
      %v2193 = vsel %vm924, %v2189, 0.0
      %2194 = vadd.xlane.f32.xlu0 %v2193
      %v2195 = vpop.xlane.xlu0 %2194
      %v2196 = vmul.f32 %v2192, %v928
      %v2197 = vmul.f32 %v2195, %v928
      %v2198 = vsub.f32 %v2188, %v2196
      %v2199 = vsub.f32 %v2189, %v2197
      %v2200 = vmul.f32 %v2198, %v2198
      %v2201 = vmul.f32 %v2199, %v2199
      %v2202 = vsel %vm479, %v2200, 0.0
      %2203 = vadd.xlane.f32.xlu0 %v2202
      %v2204 = vpop.xlane.xlu0 %2203
      %v2205 = vsel %vm924, %v2201, 0.0
      %2206 = vadd.xlane.f32.xlu0 %v2205
      %v2207 = vpop.xlane.xlu0 %2206
      %v2208 = vmul.f32 %v2204, %v928
      %v2209 = vmul.f32 %v2207, %v928
      %v2210 = vadd.f32 %v2208, 1e-05
      %v2211 = vadd.f32 %v2209, 1e-05
      %v2212 = vrsqrt.pop %v2210
      %v2213 = vrsqrt.pop %v2211
      %v2214 = vmul.f32 %v2198, %v2212
      %v2215 = vmul.f32 %v2199, %v2213
      %v2216 = vmul.f32 %v2214, %v1839
      %v2217 = vmul.f32 %v2215, %v1839
      %v2218 = vadd.f32 %v2216, %v1849
      %v2219 = vadd.f32 %v2217, %v1849
      %v2220 = vadd.f32 %v1345, %v2218
      %v2221 = vadd.f32 %v1346, %v2219
      %v2222 = vpack.c.bf16 %v1854, %v1853
      %s2223 = scalar_lea.vmem %s4, 96
      %v2224 = vld [vmem:[%s2223] sm:$0xf]
      %v2225 = vld [vmem:[%s2223 + $0x4] sm:$0xf]
      %v2226 = vld [vmem:[%s2223 + $0x8] sm:$0xf]
      %v2227 = vld [vmem:[%s2223 + $0xc] sm:$0xf]
      %s2228 = scalar_lea.vmem %s5, 6
      %v2229 = vld [vmem:[%s2228] sm:$0x1]
      %v2231 = vlaneseq
      %v2232 = vshrl.u32 %v2231, 7
      %v2233 = vsub.s32 0, %v2232
      %v2234 = vrot.slane %v2229, %v2233
      %v2240 = vunpack.c.l.b16 %v2224
      %v2241 = vunpack.c.l.b16 %v2225
      %v2242 = vunpack.c.l.b16 %v2226
      %v2243 = vunpack.c.l.b16 %v2227
      %v2244 = vpack.c.b16 %v2241, %v2240
      %v2245 = vpack.c.b16 %v2243, %v2242
      %v2249 = vsel %vm479, %v2222, 0
      %2251 = vmatprep.subr.bf16.mxu0 0
      %2252 = vmatpush1.bf16.msra.mxu0 0
      %2253 = vmatprep.subr.bf16.mxu0 0
      %2254 = vmatpush1.bf16.msra.mxu0 0
      %2255 = vmatprep.subr.bf16.mxu0 0
      %2256 = vmatpush1.bf16.msra.mxu0 0
      %2257 = vmatprep.subr.bf16.mxu0 0
      %2258 = vmatpush1.bf16.msra.mxu0 0
      %2259 = vmatprep.subr.bf16.mxu0 0
      %2260 = vmatpush1.bf16.msra.mxu0 0
      %2261 = vmatprep.subr.bf16.mxu0 0
      %2262 = vmatpush1.bf16.msra.mxu0 0
      %2263 = vmatprep.subr.bf16.mxu0 0
      %2264 = vmatpush1.bf16.msra.mxu0 %v2245
      %2265 = vmatprep.subr.bf16.mxu0 0
      %2266 = vmatpush1.bf16.msra.mxu0 %v2244
      %2267 = vmatprep.subr.bf16.mxu0 0
      %2268 = vmatpush2.bf16.msra.mxu0 0
      %2269 = vmatprep.subr.bf16.mxu0 0
      %2270 = vmatpush2.bf16.msra.mxu0 0
      %2271 = vmatprep.subr.bf16.mxu0 0
      %2272 = vmatpush2.bf16.msra.mxu0 0
      %2273 = vmatprep.subr.bf16.mxu0 0
      %2274 = vmatpush2.bf16.msra.mxu0 0
      %2275 = vmatprep.subr.bf16.mxu0 0
      %2276 = vmatpush2.bf16.msra.mxu0 0
      %2277 = vmatprep.subr.bf16.mxu0 0
      %2278 = vmatpush2.bf16.msra.mxu0 0
      %2279 = vmatprep.subr.bf16.mxu0 0
      %2280 = vmatpush2.bf16.msra.mxu0 0
      %2281 = vmatprep.subr.bf16.mxu0 0
      %2282 = vmatpush2.bf16.msra.mxu0 0
      %2283 = vmatprep.mubr.bf16.mxu0 0
      %2284 = vmatmul.mubr.bf16.gmra.mxu0 %v2249
      %v2285 = vpop.f32.mrf.mxu0
      %v2286 = vadd.f32 %v2234, %v2285
      %v2287 = vpop.f32.mrf.mxu0
      %v2288 = vpop.f32.mrf.mxu0
      %v2289 = vadd.f32 %v2234, %v2288
      %v2290 = vpop.f32.mrf.mxu0
      %2291 = vdwg.mxu0
      %s2292 = scalar_lea.vmem %s4, 112
      %v2293 = vld [vmem:[%s2292] sm:$0xf]
      %v2294 = vld [vmem:[%s2292 + $0x4] sm:$0xf]
      %v2295 = vld [vmem:[%s2292 + $0x8] sm:$0xf]
      %v2296 = vld [vmem:[%s2292 + $0xc] sm:$0xf]
      %s2297 = scalar_lea.vmem %s5, 7
      %v2298 = vld [vmem:[%s2297] sm:$0x1]
      %v2300 = vlaneseq
      %v2301 = vshrl.u32 %v2300, 7
      %v2302 = vsub.s32 0, %v2301
      %v2303 = vrot.slane %v2298, %v2302
      %v2309 = vunpack.c.l.b16 %v2293
      %v2310 = vunpack.c.l.b16 %v2294
      %v2311 = vunpack.c.l.b16 %v2295
      %v2312 = vunpack.c.l.b16 %v2296
      %v2313 = vpack.c.b16 %v2310, %v2309
      %v2314 = vpack.c.b16 %v2312, %v2311
      %2317 = vmatprep.subr.bf16.mxu0 0
      %2318 = vmatpush1.bf16.msra.mxu0 0
      %2319 = vmatprep.subr.bf16.mxu0 0
      %2320 = vmatpush1.bf16.msra.mxu0 0
      %2321 = vmatprep.subr.bf16.mxu0 0
      %2322 = vmatpush1.bf16.msra.mxu0 0
      %2323 = vmatprep.subr.bf16.mxu0 0
      %2324 = vmatpush1.bf16.msra.mxu0 0
      %2325 = vmatprep.subr.bf16.mxu0 0
      %2326 = vmatpush1.bf16.msra.mxu0 0
      %2327 = vmatprep.subr.bf16.mxu0 0
      %2328 = vmatpush1.bf16.msra.mxu0 0
      %2329 = vmatprep.subr.bf16.mxu0 0
      %2330 = vmatpush1.bf16.msra.mxu0 %v2314
      %2331 = vmatprep.subr.bf16.mxu0 0
      %2332 = vmatpush1.bf16.msra.mxu0 %v2313
      %2333 = vmatprep.subr.bf16.mxu0 0
      %2334 = vmatpush2.bf16.msra.mxu0 0
      %2335 = vmatprep.subr.bf16.mxu0 0
      %2336 = vmatpush2.bf16.msra.mxu0 0
      %2337 = vmatprep.subr.bf16.mxu0 0
      %2338 = vmatpush2.bf16.msra.mxu0 0
      %2339 = vmatprep.subr.bf16.mxu0 0
      %2340 = vmatpush2.bf16.msra.mxu0 0
      %2341 = vmatprep.subr.bf16.mxu0 0
      %2342 = vmatpush2.bf16.msra.mxu0 0
      %2343 = vmatprep.subr.bf16.mxu0 0
      %2344 = vmatpush2.bf16.msra.mxu0 0
      %2345 = vmatprep.subr.bf16.mxu0 0
      %2346 = vmatpush2.bf16.msra.mxu0 0
      %2347 = vmatprep.subr.bf16.mxu0 0
      %2348 = vmatpush2.bf16.msra.mxu0 0
      %2349 = vmatprep.mubr.bf16.mxu0 0
      %2350 = vmatmul.mubr.bf16.gmra.mxu0 %v2249
      %v2351 = vpop.f32.mrf.mxu0
      %v2352 = vadd.f32 %v2303, %v2351
      %v2353 = vpop.f32.mrf.mxu0
      %v2354 = vpop.f32.mrf.mxu0
      %v2355 = vadd.f32 %v2303, %v2354
      %v2356 = vpop.f32.mrf.mxu0
      %2357 = vdwg.mxu0
      %s2358 = scalar_lea.vmem %s4, 128
      %v2359 = vld [vmem:[%s2358] sm:$0xf]
      %v2360 = vld [vmem:[%s2358 + $0x4] sm:$0xf]
      %v2361 = vld [vmem:[%s2358 + $0x8] sm:$0xf]
      %v2362 = vld [vmem:[%s2358 + $0xc] sm:$0xf]
      %s2363 = scalar_lea.vmem %s5, 8
      %v2364 = vld [vmem:[%s2363] sm:$0x1]
      %v2366 = vlaneseq
      %v2367 = vshrl.u32 %v2366, 7
      %v2368 = vsub.s32 0, %v2367
      %v2369 = vrot.slane %v2364, %v2368
      %v2375 = vunpack.c.l.b16 %v2359
      %v2376 = vunpack.c.l.b16 %v2360
      %v2377 = vunpack.c.l.b16 %v2361
      %v2378 = vunpack.c.l.b16 %v2362
      %v2379 = vpack.c.b16 %v2376, %v2375
      %v2380 = vpack.c.b16 %v2378, %v2377
      %2383 = vmatprep.subr.bf16.mxu0 0
      %2384 = vmatpush1.bf16.msra.mxu0 0
      %2385 = vmatprep.subr.bf16.mxu0 0
      %2386 = vmatpush1.bf16.msra.mxu0 0
      %2387 = vmatprep.subr.bf16.mxu0 0
      %2388 = vmatpush1.bf16.msra.mxu0 0
      %2389 = vmatprep.subr.bf16.mxu0 0
      %2390 = vmatpush1.bf16.msra.mxu0 0
      %2391 = vmatprep.subr.bf16.mxu0 0
      %2392 = vmatpush1.bf16.msra.mxu0 0
      %2393 = vmatprep.subr.bf16.mxu0 0
      %2394 = vmatpush1.bf16.msra.mxu0 0
      %2395 = vmatprep.subr.bf16.mxu0 0
      %2396 = vmatpush1.bf16.msra.mxu0 %v2380
      %2397 = vmatprep.subr.bf16.mxu0 0
      %2398 = vmatpush1.bf16.msra.mxu0 %v2379
      %2399 = vmatprep.subr.bf16.mxu0 0
      %2400 = vmatpush2.bf16.msra.mxu0 0
      %2401 = vmatprep.subr.bf16.mxu0 0
      %2402 = vmatpush2.bf16.msra.mxu0 0
      %2403 = vmatprep.subr.bf16.mxu0 0
      %2404 = vmatpush2.bf16.msra.mxu0 0
      %2405 = vmatprep.subr.bf16.mxu0 0
      %2406 = vmatpush2.bf16.msra.mxu0 0
      %2407 = vmatprep.subr.bf16.mxu0 0
      %2408 = vmatpush2.bf16.msra.mxu0 0
      %2409 = vmatprep.subr.bf16.mxu0 0
      %2410 = vmatpush2.bf16.msra.mxu0 0
      %2411 = vmatprep.subr.bf16.mxu0 0
      %2412 = vmatpush2.bf16.msra.mxu0 0
      %2413 = vmatprep.subr.bf16.mxu0 0
      %2414 = vmatpush2.bf16.msra.mxu0 0
      %2415 = vmatprep.mubr.bf16.mxu0 0
      %2416 = vmatmul.mubr.bf16.gmra.mxu0 %v2249
      %v2417 = vpop.f32.mrf.mxu0
      %v2418 = vadd.f32 %v2369, %v2417
      %v2419 = vpop.f32.mrf.mxu0
      %v2420 = vpop.f32.mrf.mxu0
      %v2421 = vadd.f32 %v2369, %v2420
      %v2422 = vpop.f32.mrf.mxu0
      %2423 = vdwg.mxu0
      %v2424 = vpack.c.bf16 %v2289, %v2286
      %v2425 = vpack.c.bf16 %v2355, %v2352
      %v2427 = vsel %vm479, %v2424, 0
      %v2430 = vsel %vm479, %v2425, 0
      %2432 = vmatprep.subr.bf16.mxu0 0
      %2433 = vmatpush1.bf16.xpose.msra.mxu0 0
      %2434 = vmatprep.subr.bf16.mxu0 0
      %2435 = vmatpush1.bf16.xpose.msra.mxu0 0
      %2436 = vmatprep.subr.bf16.mxu0 0
      %2437 = vmatpush1.bf16.xpose.msra.mxu0 0
      %2438 = vmatprep.subr.bf16.mxu0 0
      %2439 = vmatpush1.bf16.xpose.msra.mxu0 0
      %2440 = vmatprep.subr.bf16.mxu0 0
      %2441 = vmatpush1.bf16.xpose.msra.mxu0 0
      %2442 = vmatprep.subr.bf16.mxu0 0
      %2443 = vmatpush1.bf16.xpose.msra.mxu0 0
      %2444 = vmatprep.subr.bf16.mxu0 0
      %2445 = vmatpush1.bf16.xpose.msra.mxu0 0
      %2446 = vmatprep.subr.bf16.mxu0 0
      %2447 = vmatpush1.bf16.xpose.msra.mxu0 %v2430
      %2448 = vmatprep.subr.bf16.mxu0 0
      %2449 = vmatpush2.bf16.xpose.msra.mxu0 0
      %2450 = vmatprep.subr.bf16.mxu0 0
      %2451 = vmatpush2.bf16.xpose.msra.mxu0 0
      %2452 = vmatprep.subr.bf16.mxu0 0
      %2453 = vmatpush2.bf16.xpose.msra.mxu0 0
      %2454 = vmatprep.subr.bf16.mxu0 0
      %2455 = vmatpush2.bf16.xpose.msra.mxu0 0
      %2456 = vmatprep.subr.bf16.mxu0 0
      %2457 = vmatpush2.bf16.xpose.msra.mxu0 0
      %2458 = vmatprep.subr.bf16.mxu0 0
      %2459 = vmatpush2.bf16.xpose.msra.mxu0 0
      %2460 = vmatprep.subr.bf16.mxu0 0
      %2461 = vmatpush2.bf16.xpose.msra.mxu0 0
      %2462 = vmatprep.subr.bf16.mxu0 0
      %2463 = vmatpush2.bf16.xpose.msra.mxu0 0
      %2464 = vmatprep.mubr.bf16.mxu0 0
      %2465 = vmatmul.mubr.bf16.gmra.mxu0 %v2427
      %v2466 = vpop.f32.mrf.mxu0
      %v2467 = vadd.f32 0.0, %v2466
      %v2468 = vpop.f32.mrf.mxu0
      %v2469 = vpop.f32.mrf.mxu0
      %v2470 = vadd.f32 0.0, %v2469
      %v2471 = vpop.f32.mrf.mxu0
      %2472 = vdwg.mxu0
      %v2473 = vmul.f32 %v2467, 0.17677669
      %v2474 = vmul.f32 %v2470, 0.17677669
      %v2475 = vsel %vm713, %v2473, -1e+09
      %v2476 = vsel %vm713, %v2474, -1e+09
      %v2477 = vsel %vm716, %v2475, -inf
      %2478 = vmax.xlane.f32.xlu0 %v2477
      %v2479 = vpop.xlane.xlu0 %2478
      %v2480 = vsel %vm720, %v2476, -inf
      %2481 = vmax.xlane.f32.xlu0 %v2480
      %v2482 = vpop.xlane.xlu0 %2481
      %v2483 = vsub.f32 %v2475, %v2479
      %v2484 = vsub.f32 %v2476, %v2482
      %v2485 = vmul.f32 %v2483, 1.442695
      %v2486 = vpow.pop %v2485
      %v2487 = vmul.f32 %v2484, 1.442695
      %v2488 = vpow.pop %v2487
      %v2489 = vsel %vm716, %v2486, 0.0
      %2490 = vadd.xlane.f32.xlu0 %v2489
      %v2491 = vpop.xlane.xlu0 %2490
      %v2492 = vsel %vm720, %v2488, 0.0
      %2493 = vadd.xlane.f32.xlu0 %v2492
      %v2494 = vpop.xlane.xlu0 %2493
      %v2495 = vrcp.pop %v2491
      %v2496 = vmul.f32 %v2486, %v2495
      %v2497 = vrcp.pop %v2494
      %v2498 = vmul.f32 %v2488, %v2497
      %v2499 = vpack.c.bf16 %v2498, %v2496
      %v2500 = vpack.c.bf16 %v2421, %v2418
      %v2502 = vsel %vm716, %v2499, 0
      %v2505 = vand.u32 %v2500, %v748
      %2507 = vmatprep.subr.bf16.mxu0 0
      %2508 = vmatpush1.bf16.msra.mxu0 0
      %2509 = vmatprep.subr.bf16.mxu0 0
      %2510 = vmatpush1.bf16.msra.mxu0 0
      %2511 = vmatprep.subr.bf16.mxu0 0
      %2512 = vmatpush1.bf16.msra.mxu0 0
      %2513 = vmatprep.subr.bf16.mxu0 0
      %2514 = vmatpush1.bf16.msra.mxu0 0
      %2515 = vmatprep.subr.bf16.mxu0 0
      %2516 = vmatpush1.bf16.msra.mxu0 0
      %2517 = vmatprep.subr.bf16.mxu0 0
      %2518 = vmatpush1.bf16.msra.mxu0 0
      %2519 = vmatprep.subr.bf16.mxu0 0
      %2520 = vmatpush1.bf16.msra.mxu0 0
      %2521 = vmatprep.subr.bf16.mxu0 0
      %2522 = vmatpush1.bf16.msra.mxu0 %v2505
      %2523 = vmatprep.subr.bf16.mxu0 0
      %2524 = vmatpush2.bf16.msra.mxu0 0
      %2525 = vmatprep.subr.bf16.mxu0 0
      %2526 = vmatpush2.bf16.msra.mxu0 0
      %2527 = vmatprep.subr.bf16.mxu0 0
      %2528 = vmatpush2.bf16.msra.mxu0 0
      %2529 = vmatprep.subr.bf16.mxu0 0
      %2530 = vmatpush2.bf16.msra.mxu0 0
      %2531 = vmatprep.subr.bf16.mxu0 0
      %2532 = vmatpush2.bf16.msra.mxu0 0
      %2533 = vmatprep.subr.bf16.mxu0 0
      %2534 = vmatpush2.bf16.msra.mxu0 0
      %2535 = vmatprep.subr.bf16.mxu0 0
      %2536 = vmatpush2.bf16.msra.mxu0 0
      %2537 = vmatprep.subr.bf16.mxu0 0
      %2538 = vmatpush2.bf16.msra.mxu0 0
      %2539 = vmatprep.mubr.bf16.mxu0 0
      %2540 = vmatmul.mubr.bf16.gmra.mxu0 %v2502
      %v2541 = vpop.f32.mrf.mxu0
      %v2542 = vadd.f32 0.0, %v2541
      %v2543 = vpop.f32.mrf.mxu0
      %v2544 = vpop.f32.mrf.mxu0
      %v2545 = vadd.f32 0.0, %v2544
      %v2546 = vpop.f32.mrf.mxu0
      %2547 = vdwg.mxu0
      %s2548 = scalar_lea.vmem %s6, 64
      %v2549 = vld [vmem:[%s2548] sm:$0xf]
      %v2550 = vld [vmem:[%s2548 + $0x4] sm:$0xf]
      %v2551 = vld [vmem:[%s2548 + $0x8] sm:$0xf]
      %v2552 = vld [vmem:[%s2548 + $0xc] sm:$0xf]
      %v2553 = vpack.c.bf16 %v2545, %v2542
      %s2554 = scalar_lea.vmem %s6, 80
      %v2555 = vld [vmem:[%s2554] sm:$0xf]
      %v2556 = vld [vmem:[%s2554 + $0x4] sm:$0xf]
      %v2557 = vld [vmem:[%s2554 + $0x8] sm:$0xf]
      %v2558 = vld [vmem:[%s2554 + $0xc] sm:$0xf]
      %v2563 = vunpack.c.l.b16 %v2555
      %v2564 = vunpack.c.l.b16 %v2556
      %v2565 = vunpack.c.l.b16 %v2557
      %v2566 = vunpack.c.l.b16 %v2558
      %v2567 = vpack.c.b16 %v2564, %v2563
      %v2568 = vpack.c.b16 %v2566, %v2565
      %v2572 = vsel %vm479, %v2553, 0
      %2574 = vmatprep.subr.bf16.mxu0 0
      %2575 = vmatpush1.bf16.msra.mxu0 0
      %2576 = vmatprep.subr.bf16.mxu0 0
      %2577 = vmatpush1.bf16.msra.mxu0 0
      %2578 = vmatprep.subr.bf16.mxu0 0
      %2579 = vmatpush1.bf16.msra.mxu0 0
      %2580 = vmatprep.subr.bf16.mxu0 0
      %2581 = vmatpush1.bf16.msra.mxu0 0
      %2582 = vmatprep.subr.bf16.mxu0 0
      %2583 = vmatpush1.bf16.msra.mxu0 0
      %2584 = vmatprep.subr.bf16.mxu0 0
      %2585 = vmatpush1.bf16.msra.mxu0 0
      %2586 = vmatprep.subr.bf16.mxu0 0
      %2587 = vmatpush1.bf16.msra.mxu0 %v2568
      %2588 = vmatprep.subr.bf16.mxu0 0
      %2589 = vmatpush1.bf16.msra.mxu0 %v2567
      %2590 = vmatprep.subr.bf16.mxu0 0
      %2591 = vmatpush2.bf16.msra.mxu0 0
      %2592 = vmatprep.subr.bf16.mxu0 0
      %2593 = vmatpush2.bf16.msra.mxu0 0
      %2594 = vmatprep.subr.bf16.mxu0 0
      %2595 = vmatpush2.bf16.msra.mxu0 0
      %2596 = vmatprep.subr.bf16.mxu0 0
      %2597 = vmatpush2.bf16.msra.mxu0 0
      %2598 = vmatprep.subr.bf16.mxu0 0
      %2599 = vmatpush2.bf16.msra.mxu0 0
      %2600 = vmatprep.subr.bf16.mxu0 0
      %2601 = vmatpush2.bf16.msra.mxu0 0
      %2602 = vmatprep.subr.bf16.mxu0 0
      %2603 = vmatpush2.bf16.msra.mxu0 0
      %2604 = vmatprep.subr.bf16.mxu0 0
      %2605 = vmatpush2.bf16.msra.mxu0 0
      %2606 = vmatprep.mubr.bf16.mxu0 0
      %2607 = vmatmul.mubr.bf16.gmra.mxu0 %v2572
      %v2608 = vpop.f32.mrf.mxu0
      %v2609 = vadd.f32 0.0, %v2608
      %v2610 = vpop.f32.mrf.mxu0
      %v2611 = vpop.f32.mrf.mxu0
      %v2612 = vadd.f32 0.0, %v2611
      %v2613 = vpop.f32.mrf.mxu0
      %2614 = vdwg.mxu0
      %v2619 = vunpack.c.l.b16 %v2549
      %v2620 = vunpack.c.l.b16 %v2550
      %v2621 = vunpack.c.l.b16 %v2551
      %v2622 = vunpack.c.l.b16 %v2552
      %v2623 = vpack.c.b16 %v2620, %v2619
      %v2624 = vpack.c.b16 %v2622, %v2621
      %2627 = vmatprep.subr.bf16.mxu0 0
      %2628 = vmatpush1.bf16.msra.mxu0 0
      %2629 = vmatprep.subr.bf16.mxu0 0
      %2630 = vmatpush1.bf16.msra.mxu0 0
      %2631 = vmatprep.subr.bf16.mxu0 0
      %2632 = vmatpush1.bf16.msra.mxu0 0
      %2633 = vmatprep.subr.bf16.mxu0 0
      %2634 = vmatpush1.bf16.msra.mxu0 0
      %2635 = vmatprep.subr.bf16.mxu0 0
      %2636 = vmatpush1.bf16.msra.mxu0 0
      %2637 = vmatprep.subr.bf16.mxu0 0
      %2638 = vmatpush1.bf16.msra.mxu0 0
      %2639 = vmatprep.subr.bf16.mxu0 0
      %2640 = vmatpush1.bf16.msra.mxu0 %v2624
      %2641 = vmatprep.subr.bf16.mxu0 0
      %2642 = vmatpush1.bf16.msra.mxu0 %v2623
      %2643 = vmatprep.subr.bf16.mxu0 0
      %2644 = vmatpush2.bf16.msra.mxu0 0
      %2645 = vmatprep.subr.bf16.mxu0 0
      %2646 = vmatpush2.bf16.msra.mxu0 0
      %2647 = vmatprep.subr.bf16.mxu0 0
      %2648 = vmatpush2.bf16.msra.mxu0 0
      %2649 = vmatprep.subr.bf16.mxu0 0
      %2650 = vmatpush2.bf16.msra.mxu0 0
      %2651 = vmatprep.subr.bf16.mxu0 0
      %2652 = vmatpush2.bf16.msra.mxu0 0
      %2653 = vmatprep.subr.bf16.mxu0 0
      %2654 = vmatpush2.bf16.msra.mxu0 0
      %2655 = vmatprep.subr.bf16.mxu0 0
      %2656 = vmatpush2.bf16.msra.mxu0 0
      %2657 = vmatprep.subr.bf16.mxu0 0
      %2658 = vmatpush2.bf16.msra.mxu0 0
      %2659 = vmatprep.mubr.bf16.mxu0 0
      %2660 = vmatmul.mubr.bf16.gmra.mxu0 %v2249
      %v2661 = vpop.f32.mrf.mxu0
      %v2662 = vadd.f32 %v2609, %v2661
      %v2663 = vpop.f32.mrf.mxu0
      %v2664 = vpop.f32.mrf.mxu0
      %v2665 = vadd.f32 %v2612, %v2664
      %v2666 = vpop.f32.mrf.mxu0
      %2667 = vdwg.mxu0
      %s2668 = scalar_lea.vmem %s7, 2
      %v2669 = vld [vmem:[%s2668] sm:$0x1]
      %v2671 = vlaneseq
      %v2672 = vshrl.u32 %v2671, 7
      %v2673 = vsub.s32 0, %v2672
      %v2674 = vrot.slane %v2669, %v2673
      %v2676 = vadd.f32 %v2662, %v2674
      %v2677 = vadd.f32 %v2665, %v2674
      %v2678 = vsel %vm479, %v2676, 0.0
      %2679 = vadd.xlane.f32.xlu0 %v2678
      %v2680 = vpop.xlane.xlu0 %2679
      %v2681 = vsel %vm924, %v2677, 0.0
      %2682 = vadd.xlane.f32.xlu0 %v2681
      %v2683 = vpop.xlane.xlu0 %2682
      %v2684 = vmul.f32 %v2680, %v928
      %v2685 = vmul.f32 %v2683, %v928
      %v2686 = vsub.f32 %v2676, %v2684
      %v2687 = vsub.f32 %v2677, %v2685
      %v2688 = vmul.f32 %v2686, %v2686
      %v2689 = vmul.f32 %v2687, %v2687
      %v2690 = vsel %vm479, %v2688, 0.0
      %2691 = vadd.xlane.f32.xlu0 %v2690
      %v2692 = vpop.xlane.xlu0 %2691
      %v2693 = vsel %vm924, %v2689, 0.0
      %2694 = vadd.xlane.f32.xlu0 %v2693
      %v2695 = vpop.xlane.xlu0 %2694
      %v2696 = vmul.f32 %v2692, %v928
      %v2697 = vmul.f32 %v2695, %v928
      %v2698 = vadd.f32 %v2696, 1e-05
      %v2699 = vadd.f32 %v2697, 1e-05
      %v2700 = vrsqrt.pop %v2698
      %v2701 = vrsqrt.pop %v2699
      %v2702 = vmul.f32 %v2686, %v2700
      %v2703 = vmul.f32 %v2687, %v2701
      %s2704 = scalar_lea.vmem %s8, 2
      %v2705 = vld [vmem:[%s2704] sm:$0x1]
      %v2707 = vlaneseq
      %v2708 = vshrl.u32 %v2707, 7
      %v2709 = vsub.s32 0, %v2708
      %v2710 = vrot.slane %v2705, %v2709
      %v2712 = vmul.f32 %v2702, %v2710
      %v2713 = vmul.f32 %v2703, %v2710
      %s2714 = scalar_lea.vmem %s9, 2
      %v2715 = vld [vmem:[%s2714] sm:$0x1]
      %v2717 = vlaneseq
      %v2718 = vshrl.u32 %v2717, 7
      %v2719 = vsub.s32 0, %v2718
      %v2720 = vrot.slane %v2715, %v2719
      %v2722 = vadd.f32 %v2712, %v2720
      %v2723 = vadd.f32 %v2713, %v2720
      %v2724 = vadd.f32 %v1853, %v2722
      %v2725 = vadd.f32 %v1854, %v2723
      %v2726 = vpack.c.bf16 %v2221, %v2220
      %v2728 = vsel %vm479, %v2726, 0
      %2730 = vmatprep.subr.bf16.mxu0 0
      %2731 = vmatpush1.bf16.msra.mxu0 0
      %2732 = vmatprep.subr.bf16.mxu0 0
      %2733 = vmatpush1.bf16.msra.mxu0 0
      %2734 = vmatprep.subr.bf16.mxu0 0
      %2735 = vmatpush1.bf16.msra.mxu0 0
      %2736 = vmatprep.subr.bf16.mxu0 0
      %2737 = vmatpush1.bf16.msra.mxu0 0
      %2738 = vmatprep.subr.bf16.mxu0 0
      %2739 = vmatpush1.bf16.msra.mxu0 0
      %2740 = vmatprep.subr.bf16.mxu0 0
      %2741 = vmatpush1.bf16.msra.mxu0 0
      %2742 = vmatprep.subr.bf16.mxu0 0
      %2743 = vmatpush1.bf16.msra.mxu0 %v2245
      %2744 = vmatprep.subr.bf16.mxu0 0
      %2745 = vmatpush1.bf16.msra.mxu0 %v2244
      %2746 = vmatprep.subr.bf16.mxu0 0
      %2747 = vmatpush2.bf16.msra.mxu0 0
      %2748 = vmatprep.subr.bf16.mxu0 0
      %2749 = vmatpush2.bf16.msra.mxu0 0
      %2750 = vmatprep.subr.bf16.mxu0 0
      %2751 = vmatpush2.bf16.msra.mxu0 0
      %2752 = vmatprep.subr.bf16.mxu0 0
      %2753 = vmatpush2.bf16.msra.mxu0 0
      %2754 = vmatprep.subr.bf16.mxu0 0
      %2755 = vmatpush2.bf16.msra.mxu0 0
      %2756 = vmatprep.subr.bf16.mxu0 0
      %2757 = vmatpush2.bf16.msra.mxu0 0
      %2758 = vmatprep.subr.bf16.mxu0 0
      %2759 = vmatpush2.bf16.msra.mxu0 0
      %2760 = vmatprep.subr.bf16.mxu0 0
      %2761 = vmatpush2.bf16.msra.mxu0 0
      %2762 = vmatprep.mubr.bf16.mxu0 0
      %2763 = vmatmul.mubr.bf16.gmra.mxu0 %v2728
      %v2764 = vpop.f32.mrf.mxu0
      %v2765 = vadd.f32 %v2234, %v2764
      %v2766 = vpop.f32.mrf.mxu0
      %v2767 = vpop.f32.mrf.mxu0
      %v2768 = vadd.f32 %v2234, %v2767
      %v2769 = vpop.f32.mrf.mxu0
      %2770 = vdwg.mxu0
      %2771 = vmatprep.subr.bf16.mxu0 0
      %2772 = vmatpush1.bf16.msra.mxu0 0
      %2773 = vmatprep.subr.bf16.mxu0 0
      %2774 = vmatpush1.bf16.msra.mxu0 0
      %2775 = vmatprep.subr.bf16.mxu0 0
      %2776 = vmatpush1.bf16.msra.mxu0 0
      %2777 = vmatprep.subr.bf16.mxu0 0
      %2778 = vmatpush1.bf16.msra.mxu0 0
      %2779 = vmatprep.subr.bf16.mxu0 0
      %2780 = vmatpush1.bf16.msra.mxu0 0
      %2781 = vmatprep.subr.bf16.mxu0 0
      %2782 = vmatpush1.bf16.msra.mxu0 0
      %2783 = vmatprep.subr.bf16.mxu0 0
      %2784 = vmatpush1.bf16.msra.mxu0 %v2314
      %2785 = vmatprep.subr.bf16.mxu0 0
      %2786 = vmatpush1.bf16.msra.mxu0 %v2313
      %2787 = vmatprep.subr.bf16.mxu0 0
      %2788 = vmatpush2.bf16.msra.mxu0 0
      %2789 = vmatprep.subr.bf16.mxu0 0
      %2790 = vmatpush2.bf16.msra.mxu0 0
      %2791 = vmatprep.subr.bf16.mxu0 0
      %2792 = vmatpush2.bf16.msra.mxu0 0
      %2793 = vmatprep.subr.bf16.mxu0 0
      %2794 = vmatpush2.bf16.msra.mxu0 0
      %2795 = vmatprep.subr.bf16.mxu0 0
      %2796 = vmatpush2.bf16.msra.mxu0 0
      %2797 = vmatprep.subr.bf16.mxu0 0
      %2798 = vmatpush2.bf16.msra.mxu0 0
      %2799 = vmatprep.subr.bf16.mxu0 0
      %2800 = vmatpush2.bf16.msra.mxu0 0
      %2801 = vmatprep.subr.bf16.mxu0 0
      %2802 = vmatpush2.bf16.msra.mxu0 0
      %2803 = vmatprep.mubr.bf16.mxu0 0
      %2804 = vmatmul.mubr.bf16.gmra.mxu0 %v2728
      %v2805 = vpop.f32.mrf.mxu0
      %v2806 = vadd.f32 %v2303, %v2805
      %v2807 = vpop.f32.mrf.mxu0
      %v2808 = vpop.f32.mrf.mxu0
      %v2809 = vadd.f32 %v2303, %v2808
      %v2810 = vpop.f32.mrf.mxu0
      %2811 = vdwg.mxu0
      %2812 = vmatprep.subr.bf16.mxu0 0
      %2813 = vmatpush1.bf16.msra.mxu0 0
      %2814 = vmatprep.subr.bf16.mxu0 0
      %2815 = vmatpush1.bf16.msra.mxu0 0
      %2816 = vmatprep.subr.bf16.mxu0 0
      %2817 = vmatpush1.bf16.msra.mxu0 0
      %2818 = vmatprep.subr.bf16.mxu0 0
      %2819 = vmatpush1.bf16.msra.mxu0 0
      %2820 = vmatprep.subr.bf16.mxu0 0
      %2821 = vmatpush1.bf16.msra.mxu0 0
      %2822 = vmatprep.subr.bf16.mxu0 0
      %2823 = vmatpush1.bf16.msra.mxu0 0
      %2824 = vmatprep.subr.bf16.mxu0 0
      %2825 = vmatpush1.bf16.msra.mxu0 %v2380
      %2826 = vmatprep.subr.bf16.mxu0 0
      %2827 = vmatpush1.bf16.msra.mxu0 %v2379
      %2828 = vmatprep.subr.bf16.mxu0 0
      %2829 = vmatpush2.bf16.msra.mxu0 0
      %2830 = vmatprep.subr.bf16.mxu0 0
      %2831 = vmatpush2.bf16.msra.mxu0 0
      %2832 = vmatprep.subr.bf16.mxu0 0
      %2833 = vmatpush2.bf16.msra.mxu0 0
      %2834 = vmatprep.subr.bf16.mxu0 0
      %2835 = vmatpush2.bf16.msra.mxu0 0
      %2836 = vmatprep.subr.bf16.mxu0 0
      %2837 = vmatpush2.bf16.msra.mxu0 0
      %2838 = vmatprep.subr.bf16.mxu0 0
      %2839 = vmatpush2.bf16.msra.mxu0 0
      %2840 = vmatprep.subr.bf16.mxu0 0
      %2841 = vmatpush2.bf16.msra.mxu0 0
      %2842 = vmatprep.subr.bf16.mxu0 0
      %2843 = vmatpush2.bf16.msra.mxu0 0
      %2844 = vmatprep.mubr.bf16.mxu0 0
      %2845 = vmatmul.mubr.bf16.gmra.mxu0 %v2728
      %v2846 = vpop.f32.mrf.mxu0
      %v2847 = vadd.f32 %v2369, %v2846
      %v2848 = vpop.f32.mrf.mxu0
      %v2849 = vpop.f32.mrf.mxu0
      %v2850 = vadd.f32 %v2369, %v2849
      %v2851 = vpop.f32.mrf.mxu0
      %2852 = vdwg.mxu0
      %v2853 = vpack.c.bf16 %v2768, %v2765
      %v2854 = vpack.c.bf16 %v2809, %v2806
      %v2856 = vsel %vm479, %v2853, 0
      %v2859 = vsel %vm479, %v2854, 0
      %2861 = vmatprep.subr.bf16.mxu0 0
      %2862 = vmatpush1.bf16.xpose.msra.mxu0 0
      %2863 = vmatprep.subr.bf16.mxu0 0
      %2864 = vmatpush1.bf16.xpose.msra.mxu0 0
      %2865 = vmatprep.subr.bf16.mxu0 0
      %2866 = vmatpush1.bf16.xpose.msra.mxu0 0
      %2867 = vmatprep.subr.bf16.mxu0 0
      %2868 = vmatpush1.bf16.xpose.msra.mxu0 0
      %2869 = vmatprep.subr.bf16.mxu0 0
      %2870 = vmatpush1.bf16.xpose.msra.mxu0 0
      %2871 = vmatprep.subr.bf16.mxu0 0
      %2872 = vmatpush1.bf16.xpose.msra.mxu0 0
      %2873 = vmatprep.subr.bf16.mxu0 0
      %2874 = vmatpush1.bf16.xpose.msra.mxu0 0
      %2875 = vmatprep.subr.bf16.mxu0 0
      %2876 = vmatpush1.bf16.xpose.msra.mxu0 %v2859
      %2877 = vmatprep.subr.bf16.mxu0 0
      %2878 = vmatpush2.bf16.xpose.msra.mxu0 0
      %2879 = vmatprep.subr.bf16.mxu0 0
      %2880 = vmatpush2.bf16.xpose.msra.mxu0 0
      %2881 = vmatprep.subr.bf16.mxu0 0
      %2882 = vmatpush2.bf16.xpose.msra.mxu0 0
      %2883 = vmatprep.subr.bf16.mxu0 0
      %2884 = vmatpush2.bf16.xpose.msra.mxu0 0
      %2885 = vmatprep.subr.bf16.mxu0 0
      %2886 = vmatpush2.bf16.xpose.msra.mxu0 0
      %2887 = vmatprep.subr.bf16.mxu0 0
      %2888 = vmatpush2.bf16.xpose.msra.mxu0 0
      %2889 = vmatprep.subr.bf16.mxu0 0
      %2890 = vmatpush2.bf16.xpose.msra.mxu0 0
      %2891 = vmatprep.subr.bf16.mxu0 0
      %2892 = vmatpush2.bf16.xpose.msra.mxu0 0
      %2893 = vmatprep.mubr.bf16.mxu0 0
      %2894 = vmatmul.mubr.bf16.gmra.mxu0 %v2856
      %v2895 = vpop.f32.mrf.mxu0
      %v2896 = vadd.f32 0.0, %v2895
      %v2897 = vpop.f32.mrf.mxu0
      %v2898 = vpop.f32.mrf.mxu0
      %v2899 = vadd.f32 0.0, %v2898
      %v2900 = vpop.f32.mrf.mxu0
      %2901 = vdwg.mxu0
      %v2902 = vmul.f32 %v2896, 0.17677669
      %v2903 = vmul.f32 %v2899, 0.17677669
      %v2904 = vsel %vm1153, %v2902, -1e+09
      %v2905 = vsel %vm1153, %v2903, -1e+09
      %v2906 = vsel %vm716, %v2904, -inf
      %2907 = vmax.xlane.f32.xlu0 %v2906
      %v2908 = vpop.xlane.xlu0 %2907
      %v2909 = vsel %vm720, %v2905, -inf
      %2910 = vmax.xlane.f32.xlu0 %v2909
      %v2911 = vpop.xlane.xlu0 %2910
      %v2912 = vsub.f32 %v2904, %v2908
      %v2913 = vsub.f32 %v2905, %v2911
      %v2914 = vmul.f32 %v2912, 1.442695
      %v2915 = vpow.pop %v2914
      %v2916 = vmul.f32 %v2913, 1.442695
      %v2917 = vpow.pop %v2916
      %v2918 = vsel %vm716, %v2915, 0.0
      %2919 = vadd.xlane.f32.xlu0 %v2918
      %v2920 = vpop.xlane.xlu0 %2919
      %v2921 = vsel %vm720, %v2917, 0.0
      %2922 = vadd.xlane.f32.xlu0 %v2921
      %v2923 = vpop.xlane.xlu0 %2922
      %v2924 = vrcp.pop %v2920
      %v2925 = vmul.f32 %v2915, %v2924
      %v2926 = vrcp.pop %v2923
      %v2927 = vmul.f32 %v2917, %v2926
      %v2928 = vpack.c.bf16 %v2927, %v2925
      %v2929 = vpack.c.bf16 %v2850, %v2847
      %v2931 = vsel %vm716, %v2928, 0
      %v2934 = vand.u32 %v2929, %v748
      %2936 = vmatprep.subr.bf16.mxu0 0
      %2937 = vmatpush1.bf16.msra.mxu0 0
      %2938 = vmatprep.subr.bf16.mxu0 0
      %2939 = vmatpush1.bf16.msra.mxu0 0
      %2940 = vmatprep.subr.bf16.mxu0 0
      %2941 = vmatpush1.bf16.msra.mxu0 0
      %2942 = vmatprep.subr.bf16.mxu0 0
      %2943 = vmatpush1.bf16.msra.mxu0 0
      %2944 = vmatprep.subr.bf16.mxu0 0
      %2945 = vmatpush1.bf16.msra.mxu0 0
      %2946 = vmatprep.subr.bf16.mxu0 0
      %2947 = vmatpush1.bf16.msra.mxu0 0
      %2948 = vmatprep.subr.bf16.mxu0 0
      %2949 = vmatpush1.bf16.msra.mxu0 0
      %2950 = vmatprep.subr.bf16.mxu0 0
      %2951 = vmatpush1.bf16.msra.mxu0 %v2934
      %2952 = vmatprep.subr.bf16.mxu0 0
      %2953 = vmatpush2.bf16.msra.mxu0 0
      %2954 = vmatprep.subr.bf16.mxu0 0
      %2955 = vmatpush2.bf16.msra.mxu0 0
      %2956 = vmatprep.subr.bf16.mxu0 0
      %2957 = vmatpush2.bf16.msra.mxu0 0
      %2958 = vmatprep.subr.bf16.mxu0 0
      %2959 = vmatpush2.bf16.msra.mxu0 0
      %2960 = vmatprep.subr.bf16.mxu0 0
      %2961 = vmatpush2.bf16.msra.mxu0 0
      %2962 = vmatprep.subr.bf16.mxu0 0
      %2963 = vmatpush2.bf16.msra.mxu0 0
      %2964 = vmatprep.subr.bf16.mxu0 0
      %2965 = vmatpush2.bf16.msra.mxu0 0
      %2966 = vmatprep.subr.bf16.mxu0 0
      %2967 = vmatpush2.bf16.msra.mxu0 0
      %2968 = vmatprep.mubr.bf16.mxu0 0
      %2969 = vmatmul.mubr.bf16.gmra.mxu0 %v2931
      %v2970 = vpop.f32.mrf.mxu0
      %v2971 = vadd.f32 0.0, %v2970
      %v2972 = vpop.f32.mrf.mxu0
      %v2973 = vpop.f32.mrf.mxu0
      %v2974 = vadd.f32 0.0, %v2973
      %v2975 = vpop.f32.mrf.mxu0
      %2976 = vdwg.mxu0
      %v2977 = vpack.c.bf16 %v2974, %v2971
      %v2979 = vsel %vm479, %v2977, 0
      %2981 = vmatprep.subr.bf16.mxu0 0
      %2982 = vmatpush1.bf16.msra.mxu0 0
      %2983 = vmatprep.subr.bf16.mxu0 0
      %2984 = vmatpush1.bf16.msra.mxu0 0
      %2985 = vmatprep.subr.bf16.mxu0 0
      %2986 = vmatpush1.bf16.msra.mxu0 0
      %2987 = vmatprep.subr.bf16.mxu0 0
      %2988 = vmatpush1.bf16.msra.mxu0 0
      %2989 = vmatprep.subr.bf16.mxu0 0
      %2990 = vmatpush1.bf16.msra.mxu0 0
      %2991 = vmatprep.subr.bf16.mxu0 0
      %2992 = vmatpush1.bf16.msra.mxu0 0
      %2993 = vmatprep.subr.bf16.mxu0 0
      %2994 = vmatpush1.bf16.msra.mxu0 %v2568
      %2995 = vmatprep.subr.bf16.mxu0 0
      %2996 = vmatpush1.bf16.msra.mxu0 %v2567
      %2997 = vmatprep.subr.bf16.mxu0 0
      %2998 = vmatpush2.bf16.msra.mxu0 0
      %2999 = vmatprep.subr.bf16.mxu0 0
      %3000 = vmatpush2.bf16.msra.mxu0 0
      %3001 = vmatprep.subr.bf16.mxu0 0
      %3002 = vmatpush2.bf16.msra.mxu0 0
      %3003 = vmatprep.subr.bf16.mxu0 0
      %3004 = vmatpush2.bf16.msra.mxu0 0
      %3005 = vmatprep.subr.bf16.mxu0 0
      %3006 = vmatpush2.bf16.msra.mxu0 0
      %3007 = vmatprep.subr.bf16.mxu0 0
      %3008 = vmatpush2.bf16.msra.mxu0 0
      %3009 = vmatprep.subr.bf16.mxu0 0
      %3010 = vmatpush2.bf16.msra.mxu0 0
      %3011 = vmatprep.subr.bf16.mxu0 0
      %3012 = vmatpush2.bf16.msra.mxu0 0
      %3013 = vmatprep.mubr.bf16.mxu0 0
      %3014 = vmatmul.mubr.bf16.gmra.mxu0 %v2979
      %v3015 = vpop.f32.mrf.mxu0
      %v3016 = vadd.f32 0.0, %v3015
      %v3017 = vpop.f32.mrf.mxu0
      %v3018 = vpop.f32.mrf.mxu0
      %v3019 = vadd.f32 0.0, %v3018
      %v3020 = vpop.f32.mrf.mxu0
      %3021 = vdwg.mxu0
      %3022 = vmatprep.subr.bf16.mxu0 0
      %3023 = vmatpush1.bf16.msra.mxu0 0
      %3024 = vmatprep.subr.bf16.mxu0 0
      %3025 = vmatpush1.bf16.msra.mxu0 0
      %3026 = vmatprep.subr.bf16.mxu0 0
      %3027 = vmatpush1.bf16.msra.mxu0 0
      %3028 = vmatprep.subr.bf16.mxu0 0
      %3029 = vmatpush1.bf16.msra.mxu0 0
      %3030 = vmatprep.subr.bf16.mxu0 0
      %3031 = vmatpush1.bf16.msra.mxu0 0
      %3032 = vmatprep.subr.bf16.mxu0 0
      %3033 = vmatpush1.bf16.msra.mxu0 0
      %3034 = vmatprep.subr.bf16.mxu0 0
      %3035 = vmatpush1.bf16.msra.mxu0 %v2624
      %3036 = vmatprep.subr.bf16.mxu0 0
      %3037 = vmatpush1.bf16.msra.mxu0 %v2623
      %3038 = vmatprep.subr.bf16.mxu0 0
      %3039 = vmatpush2.bf16.msra.mxu0 0
      %3040 = vmatprep.subr.bf16.mxu0 0
      %3041 = vmatpush2.bf16.msra.mxu0 0
      %3042 = vmatprep.subr.bf16.mxu0 0
      %3043 = vmatpush2.bf16.msra.mxu0 0
      %3044 = vmatprep.subr.bf16.mxu0 0
      %3045 = vmatpush2.bf16.msra.mxu0 0
      %3046 = vmatprep.subr.bf16.mxu0 0
      %3047 = vmatpush2.bf16.msra.mxu0 0
      %3048 = vmatprep.subr.bf16.mxu0 0
      %3049 = vmatpush2.bf16.msra.mxu0 0
      %3050 = vmatprep.subr.bf16.mxu0 0
      %3051 = vmatpush2.bf16.msra.mxu0 0
      %3052 = vmatprep.subr.bf16.mxu0 0
      %3053 = vmatpush2.bf16.msra.mxu0 0
      %3054 = vmatprep.mubr.bf16.mxu0 0
      %3055 = vmatmul.mubr.bf16.gmra.mxu0 %v2728
      %v3056 = vpop.f32.mrf.mxu0
      %v3057 = vadd.f32 %v3016, %v3056
      %v3058 = vpop.f32.mrf.mxu0
      %v3059 = vpop.f32.mrf.mxu0
      %v3060 = vadd.f32 %v3019, %v3059
      %v3061 = vpop.f32.mrf.mxu0
      %3062 = vdwg.mxu0
      %v3063 = vadd.f32 %v3057, %v2674
      %v3064 = vadd.f32 %v3060, %v2674
      %v3065 = vsel %vm479, %v3063, 0.0
      %3066 = vadd.xlane.f32.xlu0 %v3065
      %v3067 = vpop.xlane.xlu0 %3066
      %v3068 = vsel %vm924, %v3064, 0.0
      %3069 = vadd.xlane.f32.xlu0 %v3068
      %v3070 = vpop.xlane.xlu0 %3069
      %v3071 = vmul.f32 %v3067, %v928
      %v3072 = vmul.f32 %v3070, %v928
      %v3073 = vsub.f32 %v3063, %v3071
      %v3074 = vsub.f32 %v3064, %v3072
      %v3075 = vmul.f32 %v3073, %v3073
      %v3076 = vmul.f32 %v3074, %v3074
      %v3077 = vsel %vm479, %v3075, 0.0
      %3078 = vadd.xlane.f32.xlu0 %v3077
      %v3079 = vpop.xlane.xlu0 %3078
      %v3080 = vsel %vm924, %v3076, 0.0
      %3081 = vadd.xlane.f32.xlu0 %v3080
      %v3082 = vpop.xlane.xlu0 %3081
      %v3083 = vmul.f32 %v3079, %v928
      %v3084 = vmul.f32 %v3082, %v928
      %v3085 = vadd.f32 %v3083, 1e-05
      %v3086 = vadd.f32 %v3084, 1e-05
      %v3087 = vrsqrt.pop %v3085
      %v3088 = vrsqrt.pop %v3086
      %v3089 = vmul.f32 %v3073, %v3087
      %v3090 = vmul.f32 %v3074, %v3088
      %v3091 = vmul.f32 %v3089, %v2710
      %v3092 = vmul.f32 %v3090, %v2710
      %v3093 = vadd.f32 %v3091, %v2720
      %v3094 = vadd.f32 %v3092, %v2720
      %v3095 = vadd.f32 %v2220, %v3093
      %v3096 = vadd.f32 %v2221, %v3094
      %v3097 = vpack.c.bf16 %v2725, %v2724
      %v3098 = vpack.c.bf16 %v3096, %v3095
      %s3099 = scalar_lea.vmem %s4, 144
      %v3100 = vld [vmem:[%s3099] sm:$0xf]
      %v3101 = vld [vmem:[%s3099 + $0x4] sm:$0xf]
      %v3102 = vld [vmem:[%s3099 + $0x8] sm:$0xf]
      %v3103 = vld [vmem:[%s3099 + $0xc] sm:$0xf]
      %s3104 = scalar_lea.vmem %s5, 9
      %v3105 = vld [vmem:[%s3104] sm:$0x1]
      %v3107 = vlaneseq
      %v3108 = vshrl.u32 %v3107, 7
      %v3109 = vsub.s32 0, %v3108
      %v3110 = vrot.slane %v3105, %v3109
      %v3116 = vunpack.c.l.b16 %v3100
      %v3117 = vunpack.c.l.b16 %v3101
      %v3118 = vunpack.c.l.b16 %v3102
      %v3119 = vunpack.c.l.b16 %v3103
      %v3120 = vpack.c.b16 %v3117, %v3116
      %v3121 = vpack.c.b16 %v3119, %v3118
      %v3125 = vsel %vm479, %v3097, 0
      %3127 = vmatprep.subr.bf16.mxu0 0
      %3128 = vmatpush1.bf16.msra.mxu0 0
      %3129 = vmatprep.subr.bf16.mxu0 0
      %3130 = vmatpush1.bf16.msra.mxu0 0
      %3131 = vmatprep.subr.bf16.mxu0 0
      %3132 = vmatpush1.bf16.msra.mxu0 0
      %3133 = vmatprep.subr.bf16.mxu0 0
      %3134 = vmatpush1.bf16.msra.mxu0 0
      %3135 = vmatprep.subr.bf16.mxu0 0
      %3136 = vmatpush1.bf16.msra.mxu0 0
      %3137 = vmatprep.subr.bf16.mxu0 0
      %3138 = vmatpush1.bf16.msra.mxu0 0
      %3139 = vmatprep.subr.bf16.mxu0 0
      %3140 = vmatpush1.bf16.msra.mxu0 %v3121
      %3141 = vmatprep.subr.bf16.mxu0 0
      %3142 = vmatpush1.bf16.msra.mxu0 %v3120
      %3143 = vmatprep.subr.bf16.mxu0 0
      %3144 = vmatpush2.bf16.msra.mxu0 0
      %3145 = vmatprep.subr.bf16.mxu0 0
      %3146 = vmatpush2.bf16.msra.mxu0 0
      %3147 = vmatprep.subr.bf16.mxu0 0
      %3148 = vmatpush2.bf16.msra.mxu0 0
      %3149 = vmatprep.subr.bf16.mxu0 0
      %3150 = vmatpush2.bf16.msra.mxu0 0
      %3151 = vmatprep.subr.bf16.mxu0 0
      %3152 = vmatpush2.bf16.msra.mxu0 0
      %3153 = vmatprep.subr.bf16.mxu0 0
      %3154 = vmatpush2.bf16.msra.mxu0 0
      %3155 = vmatprep.subr.bf16.mxu0 0
      %3156 = vmatpush2.bf16.msra.mxu0 0
      %3157 = vmatprep.subr.bf16.mxu0 0
      %3158 = vmatpush2.bf16.msra.mxu0 0
      %3159 = vmatprep.mubr.bf16.mxu0 0
      %3160 = vmatmul.mubr.bf16.gmra.mxu0 %v3125
      %v3161 = vpop.f32.mrf.mxu0
      %v3162 = vadd.f32 %v3110, %v3161
      %v3163 = vpop.f32.mrf.mxu0
      %v3164 = vpop.f32.mrf.mxu0
      %v3165 = vadd.f32 %v3110, %v3164
      %v3166 = vpop.f32.mrf.mxu0
      %3167 = vdwg.mxu0
      %s3168 = scalar_lea.vmem %s4, 160
      %v3169 = vld [vmem:[%s3168] sm:$0xf]
      %v3170 = vld [vmem:[%s3168 + $0x4] sm:$0xf]
      %v3171 = vld [vmem:[%s3168 + $0x8] sm:$0xf]
      %v3172 = vld [vmem:[%s3168 + $0xc] sm:$0xf]
      %s3173 = scalar_lea.vmem %s5, 10
      %v3174 = vld [vmem:[%s3173] sm:$0x1]
      %v3176 = vlaneseq
      %v3177 = vshrl.u32 %v3176, 7
      %v3178 = vsub.s32 0, %v3177
      %v3179 = vrot.slane %v3174, %v3178
      %v3185 = vunpack.c.l.b16 %v3169
      %v3186 = vunpack.c.l.b16 %v3170
      %v3187 = vunpack.c.l.b16 %v3171
      %v3188 = vunpack.c.l.b16 %v3172
      %v3189 = vpack.c.b16 %v3186, %v3185
      %v3190 = vpack.c.b16 %v3188, %v3187
      %v3194 = vsel %vm479, %v3098, 0
      %3196 = vmatprep.subr.bf16.mxu0 0
      %3197 = vmatpush1.bf16.msra.mxu0 0
      %3198 = vmatprep.subr.bf16.mxu0 0
      %3199 = vmatpush1.bf16.msra.mxu0 0
      %3200 = vmatprep.subr.bf16.mxu0 0
      %3201 = vmatpush1.bf16.msra.mxu0 0
      %3202 = vmatprep.subr.bf16.mxu0 0
      %3203 = vmatpush1.bf16.msra.mxu0 0
      %3204 = vmatprep.subr.bf16.mxu0 0
      %3205 = vmatpush1.bf16.msra.mxu0 0
      %3206 = vmatprep.subr.bf16.mxu0 0
      %3207 = vmatpush1.bf16.msra.mxu0 0
      %3208 = vmatprep.subr.bf16.mxu0 0
      %3209 = vmatpush1.bf16.msra.mxu0 %v3190
      %3210 = vmatprep.subr.bf16.mxu0 0
      %3211 = vmatpush1.bf16.msra.mxu0 %v3189
      %3212 = vmatprep.subr.bf16.mxu0 0
      %3213 = vmatpush2.bf16.msra.mxu0 0
      %3214 = vmatprep.subr.bf16.mxu0 0
      %3215 = vmatpush2.bf16.msra.mxu0 0
      %3216 = vmatprep.subr.bf16.mxu0 0
      %3217 = vmatpush2.bf16.msra.mxu0 0
      %3218 = vmatprep.subr.bf16.mxu0 0
      %3219 = vmatpush2.bf16.msra.mxu0 0
      %3220 = vmatprep.subr.bf16.mxu0 0
      %3221 = vmatpush2.bf16.msra.mxu0 0
      %3222 = vmatprep.subr.bf16.mxu0 0
      %3223 = vmatpush2.bf16.msra.mxu0 0
      %3224 = vmatprep.subr.bf16.mxu0 0
      %3225 = vmatpush2.bf16.msra.mxu0 0
      %3226 = vmatprep.subr.bf16.mxu0 0
      %3227 = vmatpush2.bf16.msra.mxu0 0
      %3228 = vmatprep.mubr.bf16.mxu0 0
      %3229 = vmatmul.mubr.bf16.gmra.mxu0 %v3194
      %v3230 = vpop.f32.mrf.mxu0
      %v3231 = vadd.f32 %v3179, %v3230
      %v3232 = vpop.f32.mrf.mxu0
      %v3233 = vpop.f32.mrf.mxu0
      %v3234 = vadd.f32 %v3179, %v3233
      %v3235 = vpop.f32.mrf.mxu0
      %3236 = vdwg.mxu0
      %s3237 = scalar_lea.vmem %s4, 176
      %v3238 = vld [vmem:[%s3237] sm:$0xf]
      %v3239 = vld [vmem:[%s3237 + $0x4] sm:$0xf]
      %v3240 = vld [vmem:[%s3237 + $0x8] sm:$0xf]
      %v3241 = vld [vmem:[%s3237 + $0xc] sm:$0xf]
      %s3242 = scalar_lea.vmem %s5, 11
      %v3243 = vld [vmem:[%s3242] sm:$0x1]
      %v3245 = vlaneseq
      %v3246 = vshrl.u32 %v3245, 7
      %v3247 = vsub.s32 0, %v3246
      %v3248 = vrot.slane %v3243, %v3247
      %v3254 = vunpack.c.l.b16 %v3238
      %v3255 = vunpack.c.l.b16 %v3239
      %v3256 = vunpack.c.l.b16 %v3240
      %v3257 = vunpack.c.l.b16 %v3241
      %v3258 = vpack.c.b16 %v3255, %v3254
      %v3259 = vpack.c.b16 %v3257, %v3256
      %3262 = vmatprep.subr.bf16.mxu0 0
      %3263 = vmatpush1.bf16.msra.mxu0 0
      %3264 = vmatprep.subr.bf16.mxu0 0
      %3265 = vmatpush1.bf16.msra.mxu0 0
      %3266 = vmatprep.subr.bf16.mxu0 0
      %3267 = vmatpush1.bf16.msra.mxu0 0
      %3268 = vmatprep.subr.bf16.mxu0 0
      %3269 = vmatpush1.bf16.msra.mxu0 0
      %3270 = vmatprep.subr.bf16.mxu0 0
      %3271 = vmatpush1.bf16.msra.mxu0 0
      %3272 = vmatprep.subr.bf16.mxu0 0
      %3273 = vmatpush1.bf16.msra.mxu0 0
      %3274 = vmatprep.subr.bf16.mxu0 0
      %3275 = vmatpush1.bf16.msra.mxu0 %v3259
      %3276 = vmatprep.subr.bf16.mxu0 0
      %3277 = vmatpush1.bf16.msra.mxu0 %v3258
      %3278 = vmatprep.subr.bf16.mxu0 0
      %3279 = vmatpush2.bf16.msra.mxu0 0
      %3280 = vmatprep.subr.bf16.mxu0 0
      %3281 = vmatpush2.bf16.msra.mxu0 0
      %3282 = vmatprep.subr.bf16.mxu0 0
      %3283 = vmatpush2.bf16.msra.mxu0 0
      %3284 = vmatprep.subr.bf16.mxu0 0
      %3285 = vmatpush2.bf16.msra.mxu0 0
      %3286 = vmatprep.subr.bf16.mxu0 0
      %3287 = vmatpush2.bf16.msra.mxu0 0
      %3288 = vmatprep.subr.bf16.mxu0 0
      %3289 = vmatpush2.bf16.msra.mxu0 0
      %3290 = vmatprep.subr.bf16.mxu0 0
      %3291 = vmatpush2.bf16.msra.mxu0 0
      %3292 = vmatprep.subr.bf16.mxu0 0
      %3293 = vmatpush2.bf16.msra.mxu0 0
      %3294 = vmatprep.mubr.bf16.mxu0 0
      %3295 = vmatmul.mubr.bf16.gmra.mxu0 %v3194
      %v3296 = vpop.f32.mrf.mxu0
      %v3297 = vadd.f32 %v3248, %v3296
      %v3298 = vpop.f32.mrf.mxu0
      %v3299 = vpop.f32.mrf.mxu0
      %v3300 = vadd.f32 %v3248, %v3299
      %v3301 = vpop.f32.mrf.mxu0
      %3302 = vdwg.mxu0
      %v3303 = vpack.c.bf16 %v3165, %v3162
      %v3304 = vpack.c.bf16 %v3234, %v3231
      %v3306 = vsel %vm479, %v3303, 0
      %v3309 = vsel %vm479, %v3304, 0
      %3311 = vmatprep.subr.bf16.mxu0 0
      %3312 = vmatpush1.bf16.xpose.msra.mxu0 0
      %3313 = vmatprep.subr.bf16.mxu0 0
      %3314 = vmatpush1.bf16.xpose.msra.mxu0 0
      %3315 = vmatprep.subr.bf16.mxu0 0
      %3316 = vmatpush1.bf16.xpose.msra.mxu0 0
      %3317 = vmatprep.subr.bf16.mxu0 0
      %3318 = vmatpush1.bf16.xpose.msra.mxu0 0
      %3319 = vmatprep.subr.bf16.mxu0 0
      %3320 = vmatpush1.bf16.xpose.msra.mxu0 0
      %3321 = vmatprep.subr.bf16.mxu0 0
      %3322 = vmatpush1.bf16.xpose.msra.mxu0 0
      %3323 = vmatprep.subr.bf16.mxu0 0
      %3324 = vmatpush1.bf16.xpose.msra.mxu0 0
      %3325 = vmatprep.subr.bf16.mxu0 0
      %3326 = vmatpush1.bf16.xpose.msra.mxu0 %v3309
      %3327 = vmatprep.subr.bf16.mxu0 0
      %3328 = vmatpush2.bf16.xpose.msra.mxu0 0
      %3329 = vmatprep.subr.bf16.mxu0 0
      %3330 = vmatpush2.bf16.xpose.msra.mxu0 0
      %3331 = vmatprep.subr.bf16.mxu0 0
      %3332 = vmatpush2.bf16.xpose.msra.mxu0 0
      %3333 = vmatprep.subr.bf16.mxu0 0
      %3334 = vmatpush2.bf16.xpose.msra.mxu0 0
      %3335 = vmatprep.subr.bf16.mxu0 0
      %3336 = vmatpush2.bf16.xpose.msra.mxu0 0
      %3337 = vmatprep.subr.bf16.mxu0 0
      %3338 = vmatpush2.bf16.xpose.msra.mxu0 0
      %3339 = vmatprep.subr.bf16.mxu0 0
      %3340 = vmatpush2.bf16.xpose.msra.mxu0 0
      %3341 = vmatprep.subr.bf16.mxu0 0
      %3342 = vmatpush2.bf16.xpose.msra.mxu0 0
      %3343 = vmatprep.mubr.bf16.mxu0 0
      %3344 = vmatmul.mubr.bf16.gmra.mxu0 %v3306
      %v3345 = vpop.f32.mrf.mxu0
      %v3346 = vadd.f32 0.0, %v3345
      %v3347 = vpop.f32.mrf.mxu0
      %v3348 = vpop.f32.mrf.mxu0
      %v3349 = vadd.f32 0.0, %v3348
      %v3350 = vpop.f32.mrf.mxu0
      %3351 = vdwg.mxu0
      %v3352 = vmul.f32 %v3346, 0.17677669
      %v3353 = vmul.f32 %v3349, 0.17677669
      %v3354 = vsel %vm1153, %v3352, -1e+09
      %v3355 = vsel %vm1153, %v3353, -1e+09
      %v3356 = vsel %vm716, %v3354, -inf
      %3357 = vmax.xlane.f32.xlu0 %v3356
      %v3358 = vpop.xlane.xlu0 %3357
      %v3359 = vsel %vm720, %v3355, -inf
      %3360 = vmax.xlane.f32.xlu0 %v3359
      %v3361 = vpop.xlane.xlu0 %3360
      %v3362 = vsub.f32 %v3354, %v3358
      %v3363 = vsub.f32 %v3355, %v3361
      %v3364 = vmul.f32 %v3362, 1.442695
      %v3365 = vpow.pop %v3364
      %v3366 = vmul.f32 %v3363, 1.442695
      %v3367 = vpow.pop %v3366
      %v3368 = vsel %vm716, %v3365, 0.0
      %3369 = vadd.xlane.f32.xlu0 %v3368
      %v3370 = vpop.xlane.xlu0 %3369
      %v3371 = vsel %vm720, %v3367, 0.0
      %3372 = vadd.xlane.f32.xlu0 %v3371
      %v3373 = vpop.xlane.xlu0 %3372
      %v3374 = vrcp.pop %v3370
      %v3375 = vmul.f32 %v3365, %v3374
      %v3376 = vrcp.pop %v3373
      %v3377 = vmul.f32 %v3367, %v3376
      %v3378 = vpack.c.bf16 %v3377, %v3375
      %v3379 = vpack.c.bf16 %v3300, %v3297
      %v3381 = vsel %vm716, %v3378, 0
      %v3384 = vand.u32 %v3379, %v748
      %3386 = vmatprep.subr.bf16.mxu0 0
      %3387 = vmatpush1.bf16.msra.mxu0 0
      %3388 = vmatprep.subr.bf16.mxu0 0
      %3389 = vmatpush1.bf16.msra.mxu0 0
      %3390 = vmatprep.subr.bf16.mxu0 0
      %3391 = vmatpush1.bf16.msra.mxu0 0
      %3392 = vmatprep.subr.bf16.mxu0 0
      %3393 = vmatpush1.bf16.msra.mxu0 0
      %3394 = vmatprep.subr.bf16.mxu0 0
      %3395 = vmatpush1.bf16.msra.mxu0 0
      %3396 = vmatprep.subr.bf16.mxu0 0
      %3397 = vmatpush1.bf16.msra.mxu0 0
      %3398 = vmatprep.subr.bf16.mxu0 0
      %3399 = vmatpush1.bf16.msra.mxu0 0
      %3400 = vmatprep.subr.bf16.mxu0 0
      %3401 = vmatpush1.bf16.msra.mxu0 %v3384
      %3402 = vmatprep.subr.bf16.mxu0 0
      %3403 = vmatpush2.bf16.msra.mxu0 0
      %3404 = vmatprep.subr.bf16.mxu0 0
      %3405 = vmatpush2.bf16.msra.mxu0 0
      %3406 = vmatprep.subr.bf16.mxu0 0
      %3407 = vmatpush2.bf16.msra.mxu0 0
      %3408 = vmatprep.subr.bf16.mxu0 0
      %3409 = vmatpush2.bf16.msra.mxu0 0
      %3410 = vmatprep.subr.bf16.mxu0 0
      %3411 = vmatpush2.bf16.msra.mxu0 0
      %3412 = vmatprep.subr.bf16.mxu0 0
      %3413 = vmatpush2.bf16.msra.mxu0 0
      %3414 = vmatprep.subr.bf16.mxu0 0
      %3415 = vmatpush2.bf16.msra.mxu0 0
      %3416 = vmatprep.subr.bf16.mxu0 0
      %3417 = vmatpush2.bf16.msra.mxu0 0
      %3418 = vmatprep.mubr.bf16.mxu0 0
      %3419 = vmatmul.mubr.bf16.gmra.mxu0 %v3381
      %v3420 = vpop.f32.mrf.mxu0
      %v3421 = vadd.f32 0.0, %v3420
      %v3422 = vpop.f32.mrf.mxu0
      %v3423 = vpop.f32.mrf.mxu0
      %v3424 = vadd.f32 0.0, %v3423
      %v3425 = vpop.f32.mrf.mxu0
      %3426 = vdwg.mxu0
      %s3427 = scalar_lea.vmem %s6, 96
      %v3428 = vld [vmem:[%s3427] sm:$0xf]
      %v3429 = vld [vmem:[%s3427 + $0x4] sm:$0xf]
      %v3430 = vld [vmem:[%s3427 + $0x8] sm:$0xf]
      %v3431 = vld [vmem:[%s3427 + $0xc] sm:$0xf]
      %v3432 = vpack.c.bf16 %v3424, %v3421
      %s3433 = scalar_lea.vmem %s6, 112
      %v3434 = vld [vmem:[%s3433] sm:$0xf]
      %v3435 = vld [vmem:[%s3433 + $0x4] sm:$0xf]
      %v3436 = vld [vmem:[%s3433 + $0x8] sm:$0xf]
      %v3437 = vld [vmem:[%s3433 + $0xc] sm:$0xf]
      %v3442 = vunpack.c.l.b16 %v3434
      %v3443 = vunpack.c.l.b16 %v3435
      %v3444 = vunpack.c.l.b16 %v3436
      %v3445 = vunpack.c.l.b16 %v3437
      %v3446 = vpack.c.b16 %v3443, %v3442
      %v3447 = vpack.c.b16 %v3445, %v3444
      %v3451 = vsel %vm479, %v3432, 0
      %3453 = vmatprep.subr.bf16.mxu0 0
      %3454 = vmatpush1.bf16.msra.mxu0 0
      %3455 = vmatprep.subr.bf16.mxu0 0
      %3456 = vmatpush1.bf16.msra.mxu0 0
      %3457 = vmatprep.subr.bf16.mxu0 0
      %3458 = vmatpush1.bf16.msra.mxu0 0
      %3459 = vmatprep.subr.bf16.mxu0 0
      %3460 = vmatpush1.bf16.msra.mxu0 0
      %3461 = vmatprep.subr.bf16.mxu0 0
      %3462 = vmatpush1.bf16.msra.mxu0 0
      %3463 = vmatprep.subr.bf16.mxu0 0
      %3464 = vmatpush1.bf16.msra.mxu0 0
      %3465 = vmatprep.subr.bf16.mxu0 0
      %3466 = vmatpush1.bf16.msra.mxu0 %v3447
      %3467 = vmatprep.subr.bf16.mxu0 0
      %3468 = vmatpush1.bf16.msra.mxu0 %v3446
      %3469 = vmatprep.subr.bf16.mxu0 0
      %3470 = vmatpush2.bf16.msra.mxu0 0
      %3471 = vmatprep.subr.bf16.mxu0 0
      %3472 = vmatpush2.bf16.msra.mxu0 0
      %3473 = vmatprep.subr.bf16.mxu0 0
      %3474 = vmatpush2.bf16.msra.mxu0 0
      %3475 = vmatprep.subr.bf16.mxu0 0
      %3476 = vmatpush2.bf16.msra.mxu0 0
      %3477 = vmatprep.subr.bf16.mxu0 0
      %3478 = vmatpush2.bf16.msra.mxu0 0
      %3479 = vmatprep.subr.bf16.mxu0 0
      %3480 = vmatpush2.bf16.msra.mxu0 0
      %3481 = vmatprep.subr.bf16.mxu0 0
      %3482 = vmatpush2.bf16.msra.mxu0 0
      %3483 = vmatprep.subr.bf16.mxu0 0
      %3484 = vmatpush2.bf16.msra.mxu0 0
      %3485 = vmatprep.mubr.bf16.mxu0 0
      %3486 = vmatmul.mubr.bf16.gmra.mxu0 %v3451
      %v3487 = vpop.f32.mrf.mxu0
      %v3488 = vadd.f32 0.0, %v3487
      %v3489 = vpop.f32.mrf.mxu0
      %v3490 = vpop.f32.mrf.mxu0
      %v3491 = vadd.f32 0.0, %v3490
      %v3492 = vpop.f32.mrf.mxu0
      %3493 = vdwg.mxu0
      %v3498 = vunpack.c.l.b16 %v3428
      %v3499 = vunpack.c.l.b16 %v3429
      %v3500 = vunpack.c.l.b16 %v3430
      %v3501 = vunpack.c.l.b16 %v3431
      %v3502 = vpack.c.b16 %v3499, %v3498
      %v3503 = vpack.c.b16 %v3501, %v3500
      %3506 = vmatprep.subr.bf16.mxu0 0
      %3507 = vmatpush1.bf16.msra.mxu0 0
      %3508 = vmatprep.subr.bf16.mxu0 0
      %3509 = vmatpush1.bf16.msra.mxu0 0
      %3510 = vmatprep.subr.bf16.mxu0 0
      %3511 = vmatpush1.bf16.msra.mxu0 0
      %3512 = vmatprep.subr.bf16.mxu0 0
      %3513 = vmatpush1.bf16.msra.mxu0 0
      %3514 = vmatprep.subr.bf16.mxu0 0
      %3515 = vmatpush1.bf16.msra.mxu0 0
      %3516 = vmatprep.subr.bf16.mxu0 0
      %3517 = vmatpush1.bf16.msra.mxu0 0
      %3518 = vmatprep.subr.bf16.mxu0 0
      %3519 = vmatpush1.bf16.msra.mxu0 %v3503
      %3520 = vmatprep.subr.bf16.mxu0 0
      %3521 = vmatpush1.bf16.msra.mxu0 %v3502
      %3522 = vmatprep.subr.bf16.mxu0 0
      %3523 = vmatpush2.bf16.msra.mxu0 0
      %3524 = vmatprep.subr.bf16.mxu0 0
      %3525 = vmatpush2.bf16.msra.mxu0 0
      %3526 = vmatprep.subr.bf16.mxu0 0
      %3527 = vmatpush2.bf16.msra.mxu0 0
      %3528 = vmatprep.subr.bf16.mxu0 0
      %3529 = vmatpush2.bf16.msra.mxu0 0
      %3530 = vmatprep.subr.bf16.mxu0 0
      %3531 = vmatpush2.bf16.msra.mxu0 0
      %3532 = vmatprep.subr.bf16.mxu0 0
      %3533 = vmatpush2.bf16.msra.mxu0 0
      %3534 = vmatprep.subr.bf16.mxu0 0
      %3535 = vmatpush2.bf16.msra.mxu0 0
      %3536 = vmatprep.subr.bf16.mxu0 0
      %3537 = vmatpush2.bf16.msra.mxu0 0
      %3538 = vmatprep.mubr.bf16.mxu0 0
      %3539 = vmatmul.mubr.bf16.gmra.mxu0 %v3125
      %v3540 = vpop.f32.mrf.mxu0
      %v3541 = vadd.f32 %v3488, %v3540
      %v3542 = vpop.f32.mrf.mxu0
      %v3543 = vpop.f32.mrf.mxu0
      %v3544 = vadd.f32 %v3491, %v3543
      %v3545 = vpop.f32.mrf.mxu0
      %3546 = vdwg.mxu0
      %s3547 = scalar_lea.vmem %s7, 3
      %v3548 = vld [vmem:[%s3547] sm:$0x1]
      %v3550 = vlaneseq
      %v3551 = vshrl.u32 %v3550, 7
      %v3552 = vsub.s32 0, %v3551
      %v3553 = vrot.slane %v3548, %v3552
      %v3555 = vadd.f32 %v3541, %v3553
      %v3556 = vadd.f32 %v3544, %v3553
      %v3557 = vsel %vm479, %v3555, 0.0
      %3558 = vadd.xlane.f32.xlu0 %v3557
      %v3559 = vpop.xlane.xlu0 %3558
      %v3560 = vsel %vm924, %v3556, 0.0
      %3561 = vadd.xlane.f32.xlu0 %v3560
      %v3562 = vpop.xlane.xlu0 %3561
      %v3563 = vmul.f32 %v3559, %v928
      %v3564 = vmul.f32 %v3562, %v928
      %v3565 = vsub.f32 %v3555, %v3563
      %v3566 = vsub.f32 %v3556, %v3564
      %v3567 = vmul.f32 %v3565, %v3565
      %v3568 = vmul.f32 %v3566, %v3566
      %v3569 = vsel %vm479, %v3567, 0.0
      %3570 = vadd.xlane.f32.xlu0 %v3569
      %v3571 = vpop.xlane.xlu0 %3570
      %v3572 = vsel %vm924, %v3568, 0.0
      %3573 = vadd.xlane.f32.xlu0 %v3572
      %v3574 = vpop.xlane.xlu0 %3573
      %v3575 = vmul.f32 %v3571, %v928
      %v3576 = vmul.f32 %v3574, %v928
      %v3577 = vadd.f32 %v3575, 1e-05
      %v3578 = vadd.f32 %v3576, 1e-05
      %v3579 = vrsqrt.pop %v3577
      %v3580 = vrsqrt.pop %v3578
      %v3581 = vmul.f32 %v3565, %v3579
      %v3582 = vmul.f32 %v3566, %v3580
      %s3583 = scalar_lea.vmem %s8, 3
      %v3584 = vld [vmem:[%s3583] sm:$0x1]
      %v3586 = vlaneseq
      %v3587 = vshrl.u32 %v3586, 7
      %v3588 = vsub.s32 0, %v3587
      %v3589 = vrot.slane %v3584, %v3588
      %v3591 = vmul.f32 %v3581, %v3589
      %v3592 = vmul.f32 %v3582, %v3589
      %s3593 = scalar_lea.vmem %s9, 3
      %v3594 = vld [vmem:[%s3593] sm:$0x1]
      %v3596 = vlaneseq
      %v3597 = vshrl.u32 %v3596, 7
      %v3598 = vsub.s32 0, %v3597
      %v3599 = vrot.slane %v3594, %v3598
      %v3601 = vadd.f32 %v3591, %v3599
      %v3602 = vadd.f32 %v3592, %v3599
      %v3603 = vadd.f32 %v2724, %v3601
      %v3604 = vadd.f32 %v2725, %v3602
      %3605 = vmatprep.subr.bf16.mxu0 0
      %3606 = vmatpush1.bf16.msra.mxu0 0
      %3607 = vmatprep.subr.bf16.mxu0 0
      %3608 = vmatpush1.bf16.msra.mxu0 0
      %3609 = vmatprep.subr.bf16.mxu0 0
      %3610 = vmatpush1.bf16.msra.mxu0 0
      %3611 = vmatprep.subr.bf16.mxu0 0
      %3612 = vmatpush1.bf16.msra.mxu0 0
      %3613 = vmatprep.subr.bf16.mxu0 0
      %3614 = vmatpush1.bf16.msra.mxu0 0
      %3615 = vmatprep.subr.bf16.mxu0 0
      %3616 = vmatpush1.bf16.msra.mxu0 0
      %3617 = vmatprep.subr.bf16.mxu0 0
      %3618 = vmatpush1.bf16.msra.mxu0 %v3121
      %3619 = vmatprep.subr.bf16.mxu0 0
      %3620 = vmatpush1.bf16.msra.mxu0 %v3120
      %3621 = vmatprep.subr.bf16.mxu0 0
      %3622 = vmatpush2.bf16.msra.mxu0 0
      %3623 = vmatprep.subr.bf16.mxu0 0
      %3624 = vmatpush2.bf16.msra.mxu0 0
      %3625 = vmatprep.subr.bf16.mxu0 0
      %3626 = vmatpush2.bf16.msra.mxu0 0
      %3627 = vmatprep.subr.bf16.mxu0 0
      %3628 = vmatpush2.bf16.msra.mxu0 0
      %3629 = vmatprep.subr.bf16.mxu0 0
      %3630 = vmatpush2.bf16.msra.mxu0 0
      %3631 = vmatprep.subr.bf16.mxu0 0
      %3632 = vmatpush2.bf16.msra.mxu0 0
      %3633 = vmatprep.subr.bf16.mxu0 0
      %3634 = vmatpush2.bf16.msra.mxu0 0
      %3635 = vmatprep.subr.bf16.mxu0 0
      %3636 = vmatpush2.bf16.msra.mxu0 0
      %3637 = vmatprep.mubr.bf16.mxu0 0
      %3638 = vmatmul.mubr.bf16.gmra.mxu0 %v3194
      %v3639 = vpop.f32.mrf.mxu0
      %v3640 = vadd.f32 %v3110, %v3639
      %v3641 = vpop.f32.mrf.mxu0
      %v3642 = vpop.f32.mrf.mxu0
      %v3643 = vadd.f32 %v3110, %v3642
      %v3644 = vpop.f32.mrf.mxu0
      %3645 = vdwg.mxu0
      %3646 = vmatprep.subr.bf16.mxu0 0
      %3647 = vmatpush1.bf16.msra.mxu0 0
      %3648 = vmatprep.subr.bf16.mxu0 0
      %3649 = vmatpush1.bf16.msra.mxu0 0
      %3650 = vmatprep.subr.bf16.mxu0 0
      %3651 = vmatpush1.bf16.msra.mxu0 0
      %3652 = vmatprep.subr.bf16.mxu0 0
      %3653 = vmatpush1.bf16.msra.mxu0 0
      %3654 = vmatprep.subr.bf16.mxu0 0
      %3655 = vmatpush1.bf16.msra.mxu0 0
      %3656 = vmatprep.subr.bf16.mxu0 0
      %3657 = vmatpush1.bf16.msra.mxu0 0
      %3658 = vmatprep.subr.bf16.mxu0 0
      %3659 = vmatpush1.bf16.msra.mxu0 %v3190
      %3660 = vmatprep.subr.bf16.mxu0 0
      %3661 = vmatpush1.bf16.msra.mxu0 %v3189
      %3662 = vmatprep.subr.bf16.mxu0 0
      %3663 = vmatpush2.bf16.msra.mxu0 0
      %3664 = vmatprep.subr.bf16.mxu0 0
      %3665 = vmatpush2.bf16.msra.mxu0 0
      %3666 = vmatprep.subr.bf16.mxu0 0
      %3667 = vmatpush2.bf16.msra.mxu0 0
      %3668 = vmatprep.subr.bf16.mxu0 0
      %3669 = vmatpush2.bf16.msra.mxu0 0
      %3670 = vmatprep.subr.bf16.mxu0 0
      %3671 = vmatpush2.bf16.msra.mxu0 0
      %3672 = vmatprep.subr.bf16.mxu0 0
      %3673 = vmatpush2.bf16.msra.mxu0 0
      %3674 = vmatprep.subr.bf16.mxu0 0
      %3675 = vmatpush2.bf16.msra.mxu0 0
      %3676 = vmatprep.subr.bf16.mxu0 0
      %3677 = vmatpush2.bf16.msra.mxu0 0
      %3678 = vmatprep.mubr.bf16.mxu0 0
      %3679 = vmatmul.mubr.bf16.gmra.mxu0 %v3125
      %v3680 = vpop.f32.mrf.mxu0
      %v3681 = vadd.f32 %v3179, %v3680
      %v3682 = vpop.f32.mrf.mxu0
      %v3683 = vpop.f32.mrf.mxu0
      %v3684 = vadd.f32 %v3179, %v3683
      %v3685 = vpop.f32.mrf.mxu0
      %3686 = vdwg.mxu0
      %3687 = vmatprep.subr.bf16.mxu0 0
      %3688 = vmatpush1.bf16.msra.mxu0 0
      %3689 = vmatprep.subr.bf16.mxu0 0
      %3690 = vmatpush1.bf16.msra.mxu0 0
      %3691 = vmatprep.subr.bf16.mxu0 0
      %3692 = vmatpush1.bf16.msra.mxu0 0
      %3693 = vmatprep.subr.bf16.mxu0 0
      %3694 = vmatpush1.bf16.msra.mxu0 0
      %3695 = vmatprep.subr.bf16.mxu0 0
      %3696 = vmatpush1.bf16.msra.mxu0 0
      %3697 = vmatprep.subr.bf16.mxu0 0
      %3698 = vmatpush1.bf16.msra.mxu0 0
      %3699 = vmatprep.subr.bf16.mxu0 0
      %3700 = vmatpush1.bf16.msra.mxu0 %v3259
      %3701 = vmatprep.subr.bf16.mxu0 0
      %3702 = vmatpush1.bf16.msra.mxu0 %v3258
      %3703 = vmatprep.subr.bf16.mxu0 0
      %3704 = vmatpush2.bf16.msra.mxu0 0
      %3705 = vmatprep.subr.bf16.mxu0 0
      %3706 = vmatpush2.bf16.msra.mxu0 0
      %3707 = vmatprep.subr.bf16.mxu0 0
      %3708 = vmatpush2.bf16.msra.mxu0 0
      %3709 = vmatprep.subr.bf16.mxu0 0
      %3710 = vmatpush2.bf16.msra.mxu0 0
      %3711 = vmatprep.subr.bf16.mxu0 0
      %3712 = vmatpush2.bf16.msra.mxu0 0
      %3713 = vmatprep.subr.bf16.mxu0 0
      %3714 = vmatpush2.bf16.msra.mxu0 0
      %3715 = vmatprep.subr.bf16.mxu0 0
      %3716 = vmatpush2.bf16.msra.mxu0 0
      %3717 = vmatprep.subr.bf16.mxu0 0
      %3718 = vmatpush2.bf16.msra.mxu0 0
      %3719 = vmatprep.mubr.bf16.mxu0 0
      %3720 = vmatmul.mubr.bf16.gmra.mxu0 %v3125
      %v3721 = vpop.f32.mrf.mxu0
      %v3722 = vadd.f32 %v3248, %v3721
      %v3723 = vpop.f32.mrf.mxu0
      %v3724 = vpop.f32.mrf.mxu0
      %v3725 = vadd.f32 %v3248, %v3724
      %v3726 = vpop.f32.mrf.mxu0
      %3727 = vdwg.mxu0
      %v3728 = vpack.c.bf16 %v3643, %v3640
      %v3729 = vpack.c.bf16 %v3684, %v3681
      %v3731 = vsel %vm479, %v3728, 0
      %v3734 = vsel %vm479, %v3729, 0
      %3736 = vmatprep.subr.bf16.mxu0 0
      %3737 = vmatpush1.bf16.xpose.msra.mxu0 0
      %3738 = vmatprep.subr.bf16.mxu0 0
      %3739 = vmatpush1.bf16.xpose.msra.mxu0 0
      %3740 = vmatprep.subr.bf16.mxu0 0
      %3741 = vmatpush1.bf16.xpose.msra.mxu0 0
      %3742 = vmatprep.subr.bf16.mxu0 0
      %3743 = vmatpush1.bf16.xpose.msra.mxu0 0
      %3744 = vmatprep.subr.bf16.mxu0 0
      %3745 = vmatpush1.bf16.xpose.msra.mxu0 0
      %3746 = vmatprep.subr.bf16.mxu0 0
      %3747 = vmatpush1.bf16.xpose.msra.mxu0 0
      %3748 = vmatprep.subr.bf16.mxu0 0
      %3749 = vmatpush1.bf16.xpose.msra.mxu0 0
      %3750 = vmatprep.subr.bf16.mxu0 0
      %3751 = vmatpush1.bf16.xpose.msra.mxu0 %v3734
      %3752 = vmatprep.subr.bf16.mxu0 0
      %3753 = vmatpush2.bf16.xpose.msra.mxu0 0
      %3754 = vmatprep.subr.bf16.mxu0 0
      %3755 = vmatpush2.bf16.xpose.msra.mxu0 0
      %3756 = vmatprep.subr.bf16.mxu0 0
      %3757 = vmatpush2.bf16.xpose.msra.mxu0 0
      %3758 = vmatprep.subr.bf16.mxu0 0
      %3759 = vmatpush2.bf16.xpose.msra.mxu0 0
      %3760 = vmatprep.subr.bf16.mxu0 0
      %3761 = vmatpush2.bf16.xpose.msra.mxu0 0
      %3762 = vmatprep.subr.bf16.mxu0 0
      %3763 = vmatpush2.bf16.xpose.msra.mxu0 0
      %3764 = vmatprep.subr.bf16.mxu0 0
      %3765 = vmatpush2.bf16.xpose.msra.mxu0 0
      %3766 = vmatprep.subr.bf16.mxu0 0
      %3767 = vmatpush2.bf16.xpose.msra.mxu0 0
      %3768 = vmatprep.mubr.bf16.mxu0 0
      %3769 = vmatmul.mubr.bf16.gmra.mxu0 %v3731
      %v3770 = vpop.f32.mrf.mxu0
      %v3771 = vadd.f32 0.0, %v3770
      %v3772 = vpop.f32.mrf.mxu0
      %v3773 = vpop.f32.mrf.mxu0
      %v3774 = vadd.f32 0.0, %v3773
      %v3775 = vpop.f32.mrf.mxu0
      %3776 = vdwg.mxu0
      %v3777 = vmul.f32 %v3771, 0.17677669
      %v3778 = vmul.f32 %v3774, 0.17677669
      %v3779 = vsel %vm713, %v3777, -1e+09
      %v3780 = vsel %vm713, %v3778, -1e+09
      %v3781 = vsel %vm716, %v3779, -inf
      %3782 = vmax.xlane.f32.xlu0 %v3781
      %v3783 = vpop.xlane.xlu0 %3782
      %v3784 = vsel %vm720, %v3780, -inf
      %3785 = vmax.xlane.f32.xlu0 %v3784
      %v3786 = vpop.xlane.xlu0 %3785
      %v3787 = vsub.f32 %v3779, %v3783
      %v3788 = vsub.f32 %v3780, %v3786
      %v3789 = vmul.f32 %v3787, 1.442695
      %v3790 = vpow.pop %v3789
      %v3791 = vmul.f32 %v3788, 1.442695
      %v3792 = vpow.pop %v3791
      %v3793 = vsel %vm716, %v3790, 0.0
      %3794 = vadd.xlane.f32.xlu0 %v3793
      %v3795 = vpop.xlane.xlu0 %3794
      %v3796 = vsel %vm720, %v3792, 0.0
      %3797 = vadd.xlane.f32.xlu0 %v3796
      %v3798 = vpop.xlane.xlu0 %3797
      %v3799 = vrcp.pop %v3795
      %v3800 = vmul.f32 %v3790, %v3799
      %v3801 = vrcp.pop %v3798
      %v3802 = vmul.f32 %v3792, %v3801
      %v3803 = vpack.c.bf16 %v3802, %v3800
      %v3804 = vpack.c.bf16 %v3725, %v3722
      %v3806 = vsel %vm716, %v3803, 0
      %v3809 = vand.u32 %v3804, %v748
      %3811 = vmatprep.subr.bf16.mxu0 0
      %3812 = vmatpush1.bf16.msra.mxu0 0
      %3813 = vmatprep.subr.bf16.mxu0 0
      %3814 = vmatpush1.bf16.msra.mxu0 0
      %3815 = vmatprep.subr.bf16.mxu0 0
      %3816 = vmatpush1.bf16.msra.mxu0 0
      %3817 = vmatprep.subr.bf16.mxu0 0
      %3818 = vmatpush1.bf16.msra.mxu0 0
      %3819 = vmatprep.subr.bf16.mxu0 0
      %3820 = vmatpush1.bf16.msra.mxu0 0
      %3821 = vmatprep.subr.bf16.mxu0 0
      %3822 = vmatpush1.bf16.msra.mxu0 0
      %3823 = vmatprep.subr.bf16.mxu0 0
      %3824 = vmatpush1.bf16.msra.mxu0 0
      %3825 = vmatprep.subr.bf16.mxu0 0
      %3826 = vmatpush1.bf16.msra.mxu0 %v3809
      %3827 = vmatprep.subr.bf16.mxu0 0
      %3828 = vmatpush2.bf16.msra.mxu0 0
      %3829 = vmatprep.subr.bf16.mxu0 0
      %3830 = vmatpush2.bf16.msra.mxu0 0
      %3831 = vmatprep.subr.bf16.mxu0 0
      %3832 = vmatpush2.bf16.msra.mxu0 0
      %3833 = vmatprep.subr.bf16.mxu0 0
      %3834 = vmatpush2.bf16.msra.mxu0 0
      %3835 = vmatprep.subr.bf16.mxu0 0
      %3836 = vmatpush2.bf16.msra.mxu0 0
      %3837 = vmatprep.subr.bf16.mxu0 0
      %3838 = vmatpush2.bf16.msra.mxu0 0
      %3839 = vmatprep.subr.bf16.mxu0 0
      %3840 = vmatpush2.bf16.msra.mxu0 0
      %3841 = vmatprep.subr.bf16.mxu0 0
      %3842 = vmatpush2.bf16.msra.mxu0 0
      %3843 = vmatprep.mubr.bf16.mxu0 0
      %3844 = vmatmul.mubr.bf16.gmra.mxu0 %v3806
      %v3845 = vpop.f32.mrf.mxu0
      %v3846 = vadd.f32 0.0, %v3845
      %v3847 = vpop.f32.mrf.mxu0
      %v3848 = vpop.f32.mrf.mxu0
      %v3849 = vadd.f32 0.0, %v3848
      %v3850 = vpop.f32.mrf.mxu0
      %3851 = vdwg.mxu0
      %v3852 = vpack.c.bf16 %v3849, %v3846
      %v3854 = vsel %vm479, %v3852, 0
      %3856 = vmatprep.subr.bf16.mxu0 0
      %3857 = vmatpush1.bf16.msra.mxu0 0
      %3858 = vmatprep.subr.bf16.mxu0 0
      %3859 = vmatpush1.bf16.msra.mxu0 0
      %3860 = vmatprep.subr.bf16.mxu0 0
      %3861 = vmatpush1.bf16.msra.mxu0 0
      %3862 = vmatprep.subr.bf16.mxu0 0
      %3863 = vmatpush1.bf16.msra.mxu0 0
      %3864 = vmatprep.subr.bf16.mxu0 0
      %3865 = vmatpush1.bf16.msra.mxu0 0
      %3866 = vmatprep.subr.bf16.mxu0 0
      %3867 = vmatpush1.bf16.msra.mxu0 0
      %3868 = vmatprep.subr.bf16.mxu0 0
      %3869 = vmatpush1.bf16.msra.mxu0 %v3447
      %3870 = vmatprep.subr.bf16.mxu0 0
      %3871 = vmatpush1.bf16.msra.mxu0 %v3446
      %3872 = vmatprep.subr.bf16.mxu0 0
      %3873 = vmatpush2.bf16.msra.mxu0 0
      %3874 = vmatprep.subr.bf16.mxu0 0
      %3875 = vmatpush2.bf16.msra.mxu0 0
      %3876 = vmatprep.subr.bf16.mxu0 0
      %3877 = vmatpush2.bf16.msra.mxu0 0
      %3878 = vmatprep.subr.bf16.mxu0 0
      %3879 = vmatpush2.bf16.msra.mxu0 0
      %3880 = vmatprep.subr.bf16.mxu0 0
      %3881 = vmatpush2.bf16.msra.mxu0 0
      %3882 = vmatprep.subr.bf16.mxu0 0
      %3883 = vmatpush2.bf16.msra.mxu0 0
      %3884 = vmatprep.subr.bf16.mxu0 0
      %3885 = vmatpush2.bf16.msra.mxu0 0
      %3886 = vmatprep.subr.bf16.mxu0 0
      %3887 = vmatpush2.bf16.msra.mxu0 0
      %3888 = vmatprep.mubr.bf16.mxu0 0
      %3889 = vmatmul.mubr.bf16.gmra.mxu0 %v3854
      %v3890 = vpop.f32.mrf.mxu0
      %v3891 = vadd.f32 0.0, %v3890
      %v3892 = vpop.f32.mrf.mxu0
      %v3893 = vpop.f32.mrf.mxu0
      %v3894 = vadd.f32 0.0, %v3893
      %v3895 = vpop.f32.mrf.mxu0
      %3896 = vdwg.mxu0
      %3897 = vmatprep.subr.bf16.mxu0 0
      %3898 = vmatpush1.bf16.msra.mxu0 0
      %3899 = vmatprep.subr.bf16.mxu0 0
      %3900 = vmatpush1.bf16.msra.mxu0 0
      %3901 = vmatprep.subr.bf16.mxu0 0
      %3902 = vmatpush1.bf16.msra.mxu0 0
      %3903 = vmatprep.subr.bf16.mxu0 0
      %3904 = vmatpush1.bf16.msra.mxu0 0
      %3905 = vmatprep.subr.bf16.mxu0 0
      %3906 = vmatpush1.bf16.msra.mxu0 0
      %3907 = vmatprep.subr.bf16.mxu0 0
      %3908 = vmatpush1.bf16.msra.mxu0 0
      %3909 = vmatprep.subr.bf16.mxu0 0
      %3910 = vmatpush1.bf16.msra.mxu0 %v3503
      %3911 = vmatprep.subr.bf16.mxu0 0
      %3912 = vmatpush1.bf16.msra.mxu0 %v3502
      %3913 = vmatprep.subr.bf16.mxu0 0
      %3914 = vmatpush2.bf16.msra.mxu0 0
      %3915 = vmatprep.subr.bf16.mxu0 0
      %3916 = vmatpush2.bf16.msra.mxu0 0
      %3917 = vmatprep.subr.bf16.mxu0 0
      %3918 = vmatpush2.bf16.msra.mxu0 0
      %3919 = vmatprep.subr.bf16.mxu0 0
      %3920 = vmatpush2.bf16.msra.mxu0 0
      %3921 = vmatprep.subr.bf16.mxu0 0
      %3922 = vmatpush2.bf16.msra.mxu0 0
      %3923 = vmatprep.subr.bf16.mxu0 0
      %3924 = vmatpush2.bf16.msra.mxu0 0
      %3925 = vmatprep.subr.bf16.mxu0 0
      %3926 = vmatpush2.bf16.msra.mxu0 0
      %3927 = vmatprep.subr.bf16.mxu0 0
      %3928 = vmatpush2.bf16.msra.mxu0 0
      %3929 = vmatprep.mubr.bf16.mxu0 0
      %3930 = vmatmul.mubr.bf16.gmra.mxu0 %v3194
      %v3931 = vpop.f32.mrf.mxu0
      %v3932 = vadd.f32 %v3891, %v3931
      %v3933 = vpop.f32.mrf.mxu0
      %v3934 = vpop.f32.mrf.mxu0
      %v3935 = vadd.f32 %v3894, %v3934
      %v3936 = vpop.f32.mrf.mxu0
      %3937 = vdwg.mxu0
      %v3938 = vadd.f32 %v3932, %v3553
      %v3939 = vadd.f32 %v3935, %v3553
      %v3940 = vsel %vm479, %v3938, 0.0
      %3941 = vadd.xlane.f32.xlu0 %v3940
      %v3942 = vpop.xlane.xlu0 %3941
      %v3943 = vsel %vm924, %v3939, 0.0
      %3944 = vadd.xlane.f32.xlu0 %v3943
      %v3945 = vpop.xlane.xlu0 %3944
      %v3946 = vmul.f32 %v3942, %v928
      %v3947 = vmul.f32 %v3945, %v928
      %v3948 = vsub.f32 %v3938, %v3946
      %v3949 = vsub.f32 %v3939, %v3947
      %v3950 = vmul.f32 %v3948, %v3948
      %v3951 = vmul.f32 %v3949, %v3949
      %v3952 = vsel %vm479, %v3950, 0.0
      %3953 = vadd.xlane.f32.xlu0 %v3952
      %v3954 = vpop.xlane.xlu0 %3953
      %v3955 = vsel %vm924, %v3951, 0.0
      %3956 = vadd.xlane.f32.xlu0 %v3955
      %v3957 = vpop.xlane.xlu0 %3956
      %v3958 = vmul.f32 %v3954, %v928
      %v3959 = vmul.f32 %v3957, %v928
      %v3960 = vadd.f32 %v3958, 1e-05
      %v3961 = vadd.f32 %v3959, 1e-05
      %v3962 = vrsqrt.pop %v3960
      %v3963 = vrsqrt.pop %v3961
      %v3964 = vmul.f32 %v3948, %v3962
      %v3965 = vmul.f32 %v3949, %v3963
      %v3966 = vmul.f32 %v3964, %v3589
      %v3967 = vmul.f32 %v3965, %v3589
      %v3968 = vadd.f32 %v3966, %v3599
      %v3969 = vadd.f32 %v3967, %v3599
      %v3970 = vadd.f32 %v3095, %v3968
      %v3971 = vadd.f32 %v3096, %v3969
      %3972 = vst.msk [vmem:[%s442] sm:$0xff] %vm479, %v3603
      %3973 = vst.msk [vmem:[%s442 + $0x8] sm:$0x1] %vm924, %v3604
      %3974 = vst.msk [vmem:[%s447] sm:$0xff] %vm479, %v3970
      %3975 = vst.msk [vmem:[%s447 + $0x8] sm:$0x1] %vm924, %v3971
      %p3976 = scmp.lt.s32.totalorder %s23, 1
      %s3977 = scalar_select %p3976, %s23, 1
      %s3978 = smul.addr %s3977, 2
      %s3979 = smul.addr %s3978, 8
      %s3980 = scalar_lea.vmem %s10, %s3979
      %p3981 = scmp.lt.s32.totalorder %s23, 1
      %s3982 = scalar_select %p3981, %s23, 1
      %s3983 = smul.addr %s3982, 2
      %s3984 = smul.addr %s3983, 8
      %s3985 = scalar_lea.vmem %s11, %s3984
      // Predicated region
      $region61: #{transvcl_forward.5} parent=59 // pred_check
        %p3986 = pneg %p271
      $region62: #{transvcl_forward.5} parent=59 // pred_check_branch
        %3988 = sbr.rel (%p3986) target = $region64
      $region63: #{transvcl_forward.5} parent=59 // pred_region
        _
      $region64: #{transvcl_forward.5} parent=59 // pred_fallthru
        _
      // Predicated region
      $region65: #{transvcl_forward.5} parent=59 // pred_check
        %p3989 = pneg %p297
      $region66: #{transvcl_forward.5} parent=59 // pred_check_branch
        %3991 = sbr.rel (%p3989) target = $region68
      $region67: #{transvcl_forward.5} parent=59 // pred_region
        _
      $region68: #{transvcl_forward.5} parent=59 // pred_fallthru
        _
    $region60: #{transvcl_forward.5} parent=5 // pred_fallthru
      _
    %p3992 = scmp.le.s32.totalorder 2, %s18
    // Predicated region
    $region69: #{transvcl_forward.5} parent=5 // pred_check
      %p3993 = pneg %p3992
    $region70: #{transvcl_forward.5} parent=5 // pred_check_branch
      %3995 = sbr.rel (%p3993) target = $region72
    $region71: #{transvcl_forward.5} parent=5 // pred_region
      %s3996 = ssub.s32 %s18, 2
      // Predicated region
      $region73: #{transvcl_forward.5} parent=71 // pred_check
        %p3997 = pneg %p277
      $region74: #{transvcl_forward.5} parent=71 // pred_check_branch
        %3999 = sbr.rel (%p3997) target = $region76
      $region75: #{transvcl_forward.5} parent=71 // pred_region
        %p4000 = scmp.lt.s32.totalorder %s24, 1
        %s4001 = scalar_select %p4000, %s24, 1
        %s4002 = smul.addr %s4001, 2
        %s4003 = smul.addr %s4002, 8
        %s4004 = scalar_lea.vmem %s10, %s4003
      $region76: #{transvcl_forward.5} parent=71 // pred_fallthru
        _
      // Predicated region
      $region77: #{transvcl_forward.5} parent=71 // pred_check
        %p4005 = pneg %p303
      $region78: #{transvcl_forward.5} parent=71 // pred_check_branch
        %4007 = sbr.rel (%p4005) target = $region80
      $region79: #{transvcl_forward.5} parent=71 // pred_region
        %p4008 = scmp.lt.s32.totalorder %s24, 1
        %s4009 = scalar_select %p4008, %s24, 1
        %s4010 = smul.addr %s4009, 2
        %s4011 = smul.addr %s4010, 8
        %s4012 = scalar_lea.vmem %s11, %s4011
      $region80: #{transvcl_forward.5} parent=71 // pred_fallthru
        _
    $region72: #{transvcl_forward.5} parent=5 // pred_fallthru
      _
  $region6: #{transvcl_forward.5} parent=0 // loop_footer
    %s22 = sadd.s32 1, %s18
  $region7: #{transvcl_forward.5} parent=0 // loop_footer_branch
    %17 = sbr.rel target = $region3
  $region8: #{transvcl_forward.5} parent=0 // loop_exit
    _

// kernel: transvcl_forward.8
$region0: #{transvcl_forward.8}
  #allocation0 [shape = 'u32[]', space=smem, size = 0x4, offset = 0x4, fixed_abs, tag = 'smem constant byte address 0x4 - core index']
  #allocation1 [shape = 'u32[144,128]{1,0:T(1,128)}', space=vmem, size = 0x12000, scoped, tag = 'internal scratch']
  %s0 = inlined_call_operand.vmem [shape: bf16[1,8], index: 0, kind: input, shape index: {}]
  %s1 = inlined_call_operand.vmem [shape: f32[6,1], index: 1, kind: input, shape index: {}]
  %s2 = inlined_call_operand.vmem [shape: f32[6,1], index: 2, kind: input, shape index: {}]
  %s3 = inlined_call_operand.vmem [shape: f32[6,8], index: 3, kind: output, shape index: {}]
  %s4 = sld [smem:[#allocation0]]
  $region22: #{transvcl_forward.8} parent=0
    _
  %s6 = ssub.s32 1, %s4
  %s7 = scalar_select 0, %s6, %s4
  // Predicated region
  $region2: #{transvcl_forward.8} parent=0 // pred_check
    _
  $region3: #{transvcl_forward.8} parent=0 // pred_check_branch
    %9 = sbr.rel (0) target = $region5
  $region4: #{transvcl_forward.8} parent=0 // pred_region
    _
  $region5: #{transvcl_forward.8} parent=0 // pred_fallthru
    _
  // Predicated region
  $region6: #{transvcl_forward.8} parent=0 // pred_check
    _
  $region7: #{transvcl_forward.8} parent=0 // pred_check_branch
    %11 = sbr.rel (0) target = $region9
  $region8: #{transvcl_forward.8} parent=0 // pred_region
    _
  $region9: #{transvcl_forward.8} parent=0 // pred_fallthru
    _
  // Predicated region
  $region10: #{transvcl_forward.8} parent=0 // pred_check
    _
  $region11: #{transvcl_forward.8} parent=0 // pred_check_branch
    %13 = sbr.rel (0) target = $region13
  $region12: #{transvcl_forward.8} parent=0 // pred_region
    _
  $region13: #{transvcl_forward.8} parent=0 // pred_fallthru
    _
  %v14 = vld [vmem:[%s0] sm:$0x1]
  %v15 = vunpack.c.l.bf16 %v14
  %v16 = vld [vmem:[%s1] sm:$0x3f]
  %v17 = vlaneseq
  %v18 = vshrl.u32 %v17, 7
  %v19 = vsub.s32 0, %v18
  %v20 = vrot.slane %v15, %v19
  %22 = vset.pattern.permute.xlu0 0
  %23 = vperm.xlu0 %22, %v16
  %v24 = vpop.permute.xlu0 %23
  %v26 = vmul.f32 %v20, %v24
  %v27 = vld [vmem:[%s2] sm:$0x3f]
  %29 = vset.pattern.permute.xlu0 0
  %30 = vperm.xlu0 %29, %v27
  %v31 = vpop.permute.xlu0 %30
  %v33 = vadd.f32 %v26, %v31
  %v34 = vlaneseq
  %v35 = vshrl.u32 %v34, 7
  %vm36 = vcmp.lt.s32.totalorder %v35, 4
  %v37 = vxor.u32 %v33, 2147483648
  %v38 = vmul.f32 %v37, 1.442695
  %v39 = vpow.pop %v38
  %v40 = vadd.f32 %v39, 1.0
  %v41 = vrcp.pop %v40
  %v42 = vmul.f32 1.0, %v41
  %v43 = vsel %vm36, %v33, %v42
  %vm44 = vcmask 62464
  %45 = vst.msk [vmem:[%s3] sm:$0x3f] %vm44, %v43
  // Predicated region
  $region14: #{transvcl_forward.8} parent=0 // pred_check
    _
  $region15: #{transvcl_forward.8} parent=0 // pred_check_branch
    %47 = sbr.rel (0) target = $region17
  $region16: #{transvcl_forward.8} parent=0 // pred_region
    _
  $region17: #{transvcl_forward.8} parent=0 // pred_fallthru
    _
  // Predicated region
  $region18: #{transvcl_forward.8} parent=0 // pred_check
    _
  $region19: #{transvcl_forward.8} parent=0 // pred_check_branch
    %49 = sbr.rel (0) target = $region21
  $region20: #{transvcl_forward.8} parent=0 // pred_region
    _
  $region21: #{transvcl_forward.8} parent=0 // pred_fallthru
    _

// kernel: transvcl_forward.9
$region0: #{transvcl_forward.9}
  #allocation0 [shape = 'u32[]', space=smem, size = 0x4, offset = 0x4, fixed_abs, tag = 'smem constant byte address 0x4 - core index']
  #allocation1 [shape = 'u32[144,128]{1,0:T(1,128)}', space=vmem, size = 0x12000, scoped, tag = 'internal scratch']
  %s0 = inlined_call_operand.vmem [shape: bf16[1,2], index: 0, kind: input, shape index: {}]
  %s1 = inlined_call_operand.vmem [shape: f32[6,1], index: 1, kind: input, shape index: {}]
  %s2 = inlined_call_operand.vmem [shape: f32[6,1], index: 2, kind: input, shape index: {}]
  %s3 = inlined_call_operand.vmem [shape: f32[6,2], index: 3, kind: output, shape index: {}]
  %s4 = sld [smem:[#allocation0]]
  $region22: #{transvcl_forward.9} parent=0
    _
  %s6 = ssub.s32 1, %s4
  %s7 = scalar_select 0, %s6, %s4
  // Predicated region
  $region2: #{transvcl_forward.9} parent=0 // pred_check
    _
  $region3: #{transvcl_forward.9} parent=0 // pred_check_branch
    %9 = sbr.rel (0) target = $region5
  $region4: #{transvcl_forward.9} parent=0 // pred_region
    _
  $region5: #{transvcl_forward.9} parent=0 // pred_fallthru
    _
  // Predicated region
  $region6: #{transvcl_forward.9} parent=0 // pred_check
    _
  $region7: #{transvcl_forward.9} parent=0 // pred_check_branch
    %11 = sbr.rel (0) target = $region9
  $region8: #{transvcl_forward.9} parent=0 // pred_region
    _
  $region9: #{transvcl_forward.9} parent=0 // pred_fallthru
    _
  // Predicated region
  $region10: #{transvcl_forward.9} parent=0 // pred_check
    _
  $region11: #{transvcl_forward.9} parent=0 // pred_check_branch
    %13 = sbr.rel (0) target = $region13
  $region12: #{transvcl_forward.9} parent=0 // pred_region
    _
  $region13: #{transvcl_forward.9} parent=0 // pred_fallthru
    _
  %v14 = vld [vmem:[%s0] sm:$0x1]
  %v15 = vunpack.c.l.bf16 %v14
  %v16 = vld [vmem:[%s1] sm:$0x3f]
  %v17 = vlaneseq
  %v18 = vshrl.u32 %v17, 7
  %v19 = vsub.s32 0, %v18
  %v20 = vrot.slane %v15, %v19
  %22 = vset.pattern.permute.xlu0 0
  %23 = vperm.xlu0 %22, %v16
  %v24 = vpop.permute.xlu0 %23
  %v26 = vmul.f32 %v20, %v24
  %v27 = vld [vmem:[%s2] sm:$0x3f]
  %29 = vset.pattern.permute.xlu0 0
  %30 = vperm.xlu0 %29, %v27
  %v31 = vpop.permute.xlu0 %30
  %v33 = vadd.f32 %v26, %v31
  %v34 = vlaneseq
  %v35 = vshrl.u32 %v34, 7
  %vm36 = vcmp.lt.s32.totalorder %v35, 4
  %v37 = vxor.u32 %v33, 2147483648
  %v38 = vmul.f32 %v37, 1.442695
  %v39 = vpow.pop %v38
  %v40 = vadd.f32 %v39, 1.0
  %v41 = vrcp.pop %v40
  %v42 = vmul.f32 1.0, %v41
  %v43 = vsel %vm36, %v33, %v42
  %vm44 = vcmask 13312
  %45 = vst.msk [vmem:[%s3] sm:$0x3f] %vm44, %v43
  // Predicated region
  $region14: #{transvcl_forward.9} parent=0 // pred_check
    _
  $region15: #{transvcl_forward.9} parent=0 // pred_check_branch
    %47 = sbr.rel (0) target = $region17
  $region16: #{transvcl_forward.9} parent=0 // pred_region
    _
  $region17: #{transvcl_forward.9} parent=0 // pred_fallthru
    _
  // Predicated region
  $region18: #{transvcl_forward.9} parent=0 // pred_check
    _
  $region19: #{transvcl_forward.9} parent=0 // pred_check_branch
    %49 = sbr.rel (0) target = $region21
  $region20: #{transvcl_forward.9} parent=0 // pred_region
    _
  $region21: #{transvcl_forward.9} parent=0 // pred_fallthru
    _

</llo_original>
